<compile_context>
chip_gen: v7x
topology: tpu7x:2x2x1
jax: 0.10.0
libtpu: 0.0.40
codegen_flags: <defaults>
</compile_context>

<pallas_src>
import numpy as np
import jax
import jax.numpy as jnp
from jax import lax
from jax.experimental import pallas as pl
from jax.experimental.pallas import tpu as pltpu


P1 = 64                      # per-parity 7x7 pooled grid, stride-9 flattened (63) + 1 pad row
HOFF = 16                    # zero rows before the flattened grid (halo for conv-2 taps)
HF = HOFF + P1 + 32          # 112 rows total in the padded layer-1 buffer

_BLOCK_N = 16                                    # images per grid step
_VMEM_LIMIT = 48 * 1024 * 1024                   # OK on v7x (64 MiB); ample on v5e/v6e


def _round_up(x, m):
    return ((x + m - 1) // m) * m


def _choose_block_n(n):
    return _BLOCK_N if n >= _BLOCK_N else max(1, n)


# ---------------------------------------------------------------------------
# Fused Pallas kernel: conv1+BN+ReLU+pool -> conv2+BN+ReLU+pool (all in VMEM)
# ---------------------------------------------------------------------------
def _fused_cnn_kernel(cols1_ref, w1_ref, s1_ref, mask_ref, w2_ref, s2_ref, out_ref):
    """cols1_ref: (bn*16*P1, 25) bf16  layer-1 im2col, rows (img, p, a, q, b, pos)
       w1_ref   : (25, 16)       bf16  conv1 weights, BN scale folded
       s1_ref   : (1, 16)        f32   folded BN shift (layer 1)
       mask_ref : (P1, 16)       f32   1.0 on valid stride-9 positions, else 0.0
       w2_ref   : (400, 32)      bf16  conv2 weights (dh,dw,cin)->cout, BN folded
       s2_ref   : (1, 32)        f32   folded BN shift (layer 2)
       out_ref  : (bn, P1, 32)   bf16  pooled layer-2 output (stride-9 positions)
    """
    bn = out_ref.shape[0]

    # ---- layer 1: one MXU GEMM over (img x 16 phase groups x P1 positions) ----
    y1 = jnp.dot(cols1_ref[...], w1_ref[...], preferred_element_type=jnp.float32)
    r = y1.reshape(bn * 2, 2, 2, 2, P1, 16)                 # ((n,p), a, q, b, pos, c)
    pooled1 = jnp.maximum(jnp.maximum(r[:, 0, :, 0], r[:, 0, :, 1]),
                          jnp.maximum(r[:, 1, :, 0], r[:, 1, :, 1]))  # ((n,p), q, pos, c)
    # BN shift + ReLU after the max (monotone), then zero the pad positions so the
    # stride-9 layout carries exact conv zero-padding for layer 2.
    h1 = jnp.maximum(pooled1 + s1_ref[...], 0.0) * mask_ref[...]
    h1 = h1.reshape(bn, 4, P1, 16).astype(jnp.bfloat16)     # parity index = 2p+q

    # zero halo along the flattened position axis
    h1f = jnp.concatenate(
        [jnp.zeros((bn, 4, HOFF, 16), jnp.bfloat16),
         h1,
         jnp.zeros((bn, 4, HF - HOFF - P1, 16), jnp.bfloat16)],
        axis=2)                                             # (bn, 4, HF, 16)

    # ---- layer 2: build the (rows, 400) patch matrix in VMEM, one GEMM ----
    # 36 distinct (parity, offset) views shared by the 4 pool phases x 25 taps.
    view = {}
    for pm in (0, 1):
        for dm in (-1, 0, 1):
            for pn in (0, 1):
                for dn in (-1, 0, 1):
                    start = HOFF + dm * 9 + dn
                    view[(pm, dm, pn, dn)] = h1f[:, 2 * pm + pn, start:start + P1, :]

    blocks = []
    for a2 in (0, 1):                                       # pool-2 offsets
        for b2 in (0, 1):
            taps = []
            for dh in range(5):
                m = a2 + dh - 2
                for dw in range(5):
                    nn_ = b2 + dw - 2
                    taps.append(view[(m % 2, m // 2, nn_ % 2, nn_ // 2)])
            blocks.append(jnp.concatenate(taps, axis=-1).reshape(bn * P1, 400))
    cols2 = jnp.concatenate(blocks, axis=0)                 # (4*bn*P1, 400) bf16

    y2 = jnp.dot(cols2, w2_ref[...], preferred_element_type=jnp.float32)
    y2 = y2.reshape(4, bn, P1, 32)
    pooled2 = jnp.maximum(jnp.maximum(y2[0], y2[1]), jnp.maximum(y2[2], y2[3]))
    h2 = jnp.maximum(pooled2 + s2_ref[...], 0.0)
    out_ref[...] = h2.astype(out_ref.dtype)


# ---------------------------------------------------------------------------
# Wrapper-side glue (layer-1 im2col, param folding, FC epilogue)
# ---------------------------------------------------------------------------
def _build_cols1(x):
    """x: (n, 28, 28) bf16 -> (n*16*P1, 25) layer-1 patch matrix.

    Row order (img, p, a, q, b, pos): (a,b) = 2x2 pool offset, (p,q) = parity of
    the pooled position, pos = i*9 + j flattens the per-parity 7x7 grid with
    stride 9 (columns 7, 8 and row 63 are zero pad)."""
    n = x.shape[0]
    xp = jnp.pad(x, ((0, 0), (2, 2), (2, 2)))                       # (n, 32, 32)
    taps = [xp[:, dh:dh + 28, dw:dw + 28] for dh in range(5) for dw in range(5)]
    pat = jnp.stack(taps, axis=-1)                                  # (n, 28, 28, 25) [u, v, t]
    pat = pat.reshape(n, 7, 4, 7, 4, 25)                            # u = 4i+u4, v = 4j+v4
    pat = pat.transpose(0, 2, 4, 1, 3, 5)                           # (n, u4, v4, i, j, t)
    pat = jnp.pad(pat, ((0, 0),) * 4 + ((0, 2), (0, 0)))            # j: 7 -> 9
    pat = pat.reshape(n, 4, 4, 63, 25)
    pat = jnp.pad(pat, ((0, 0),) * 3 + ((0, 1), (0, 0)))            # pos: 63 -> 64
    return pat.reshape(n * 16 * P1, 25)


def _position_mask():
    pos = np.arange(P1)
    valid = ((pos % 9) <= 6) & (pos < 63)
    return jnp.asarray(np.ascontiguousarray(
        np.broadcast_to(valid[:, None], (P1, 16))).astype(np.float32))


def prepare_params(params, eps=1e-5):
    """One-time parameter prep (hoisted out of the per-forward path)."""
    def fold(w, b, gamma, beta, mean, var):
        scale = gamma / jnp.sqrt(var + eps)
        shift = beta + (b - mean) * scale
        cout = w.shape[-1]
        wm = (w.reshape(-1, cout) * scale[None, :]).astype(jnp.bfloat16)
        return wm, shift.reshape(1, cout).astype(jnp.float32)

    w1, s1 = fold(*params["layer1"])          # (25, 16), (1, 16)
    w2, s2 = fold(*params["layer2"])          # (400, 32), (1, 32)

    nc = params["fc_w"].shape[-1]
    # PyTorch flattens (C, H, W); the kernel emits (pos=e*9+f, C) with zero pad
    # rows -> permute + zero-pad the fc weight once, so no per-forward slicing.
    fcw = params["fc_w"].reshape(32, 7, 7, nc).transpose(1, 2, 0, 3)    # (e, f, c, nc)
    fcw = jnp.pad(fcw, ((0, 0), (0, 2), (0, 0), (0, 0)))                # f: 7 -> 9
    fcw = fcw.reshape(63 * 32, nc)
    fcw = jnp.pad(fcw, ((0, P1 * 32 - 63 * 32), (0, 0))).astype(jnp.bfloat16)  # (2048, nc)

    return {
        "w1": w1, "s1": s1, "w2": w2, "s2": s2,
        "fcw": fcw,
        "fcb": params["fc_b"].reshape(1, nc).astype(jnp.float32),
        "mask": _position_mask(),
    }


@jax.jit
def cnn_forward(prep, x_nchw):
    """Equivalent of CNN.forward for (N, 1, 28, 28) inputs (MNIST)."""
    n = x_nchw.shape[0]
    bn = _choose_block_n(n)
    npad = _round_up(n, bn)
    x = x_nchw[:, 0, :, :].astype(jnp.bfloat16)             # (n, 28, 28)
    if npad != n:
        x = jnp.pad(x, ((0, npad - n), (0, 0), (0, 0)))
    cols1 = _build_cols1(x)                                 # (npad*16*P1, 25)

    h2 = pl.pallas_call(
        _fused_cnn_kernel,
        out_shape=jax.ShapeDtypeStruct((npad, P1, 32), jnp.bfloat16),
        grid=(npad // bn,),
        in_specs=[
            pl.BlockSpec((bn * 16 * P1, 25), lambda i: (i, 0)),
            pl.BlockSpec((25, 16), lambda i: (0, 0)),
            pl.BlockSpec((1, 16), lambda i: (0, 0)),
            pl.BlockSpec((P1, 16), lambda i: (0, 0)),
            pl.BlockSpec((400, 32), lambda i: (0, 0)),
            pl.BlockSpec((1, 32), lambda i: (0, 0)),
        ],
        out_specs=pl.BlockSpec((bn, P1, 32), lambda i: (i, 0, 0)),
        compiler_params=pltpu.CompilerParams(
            dimension_semantics=("parallel",),
            vmem_limit_bytes=_VMEM_LIMIT),
    )(cols1, prep["w1"], prep["s1"], prep["mask"], prep["w2"], prep["s2"])

    # FC epilogue: one bf16 XLA GEMM for the whole batch (f32 accumulation).
    # Padded/garbage h2 positions hit exactly-zero fc weight rows.
    flat = h2.reshape(npad, P1 * 32)
    out = jnp.dot(flat, prep["fcw"], preferred_element_type=jnp.float32) + prep["fcb"]
    return out[:n]


# ---------------------------------------------------------------------------
# Deterministic synthetic parameters (mirrors the nn.Module shapes)
# ---------------------------------------------------------------------------
def init_params(key, num_classes=10):
    keys = jax.random.split(key, 14)

    def conv_bn(kseq, cin, cout):
        kw, kb, kg, kbe, km, kv = kseq
        w = 0.1 * jax.random.normal(kw, (5, 5, cin, cout), jnp.float32)
        b = 0.1 * jax.random.normal(kb, (cout,), jnp.float32)
        gamma = 1.0 + 0.1 * jax.random.normal(kg, (cout,), jnp.float32)
        beta = 0.1 * jax.random.normal(kbe, (cout,), jnp.float32)
        mean = 0.1 * jax.random.normal(km, (cout,), jnp.float32)
        var = jax.random.uniform(kv, (cout,), jnp.float32, minval=0.5, maxval=1.5)
        return (w, b, gamma, beta, mean, var)

    return {
        "layer1": conv_bn(keys[0:6], 1, 16),
        "layer2": conv_bn(keys[6:12], 16, 32),
        "fc_w": 0.05 * jax.random.normal(keys[12], (7 * 7 * 32, num_classes), jnp.float32),
        "fc_b": 0.05 * jax.random.normal(keys[13], (num_classes,), jnp.float32),
    }


# ---------------------------------------------------------------------------
# Pure-JAX f32 reference for a sanity check of the Pallas pipeline
# ---------------------------------------------------------------------------
def reference_forward(params, x_nchw, eps=1e-5):
    x = jnp.transpose(x_nchw, (0, 2, 3, 1))

    def layer(x, w, b, gamma, beta, mean, var):
        y = lax.conv_general_dilated(
            x, w, (1, 1), ((2, 2), (2, 2)),
            dimension_numbers=("NHWC", "HWIO", "NHWC"))
        y = y + b
        y = (y - mean) / jnp.sqrt(var + eps) * gamma + beta
        y = jnp.maximum(y, 0.0)
        return lax.reduce_window(y, -jnp.inf, lax.max,
                                 (1, 2, 2, 1), (1, 2, 2, 1), "VALID")

    h = layer(x, *params["layer1"])
    h = layer(h, *params["layer2"])
    flat = jnp.transpose(h, (0, 3, 1, 2)).reshape(x.shape[0], -1)   # (C, H, W) flatten
    return flat @ params["fc_w"] + params["fc_b"]


if __name__ == "__main__":
    key = jax.random.PRNGKey(0)
    kx, kp = jax.random.split(key)
    params = init_params(kp, num_classes=10)
    prep = prepare_params(params)

    # MNIST-like input: fc expects 7*7*32 => 28x28 spatial, 1 channel.
    x = jax.random.normal(kx, (2, 1, 28, 28), jnp.float32)

    out = jax.block_until_ready(cnn_forward(prep, x))
    assert out.shape == (2, 10), out.shape

    ref = reference_forward(params, x)
    # bf16 MXU operands / bf16 intermediates vs. an f32 reference.
    np.testing.assert_allclose(np.asarray(out), np.asarray(ref),
                               atol=2e-1, rtol=5e-2)
    print("KERNEL_OK")
</pallas_src>

<mosaic_0001>
module attributes {stable_mosaic.version = 11 : i64} {
  func.func @_fused_cnn_kernel(%arg0: i32, %arg1: memref<2048x25xbf16, #tpu.memory_space<vmem>>, %arg2: memref<25x16xbf16, #tpu.memory_space<vmem>>, %arg3: memref<1x16xf32, #tpu.memory_space<vmem>>, %arg4: memref<64x16xf32, #tpu.memory_space<vmem>>, %arg5: memref<400x32xbf16, #tpu.memory_space<vmem>>, %arg6: memref<1x32xf32, #tpu.memory_space<vmem>>, %arg7: memref<2x64x32xbf16, #tpu.memory_space<vmem>>) attributes {dimension_semantics = [#tpu.dimension_semantics<parallel>], iteration_bounds = array<i64: 1>, scalar_prefetch = 0 : i64, scratch_operands = 0 : i64, tpu.core_type = #tpu.core_type<tc>, window_params = [{transform_indices = @transform_0, window_bounds = array<i64: 2048, 25>}, {pipeline_mode = #tpu.pipeline_mode<synchronous>, transform_indices = @transform_1, window_bounds = array<i64: 25, 16>}, {pipeline_mode = #tpu.pipeline_mode<synchronous>, transform_indices = @transform_2, window_bounds = array<i64: 1, 16>}, {pipeline_mode = #tpu.pipeline_mode<synchronous>, transform_indices = @transform_3, window_bounds = array<i64: 64, 16>}, {pipeline_mode = #tpu.pipeline_mode<synchronous>, transform_indices = @transform_4, window_bounds = array<i64: 400, 32>}, {pipeline_mode = #tpu.pipeline_mode<synchronous>, transform_indices = @transform_5, window_bounds = array<i64: 1, 32>}, {transform_indices = @transform_6, window_bounds = array<i64: 2, 64, 32>}]} {
    %c0 = arith.constant 0 : index
    %c0_0 = arith.constant 0 : index
    %0 = vector.load %arg1[%c0, %c0_0] : memref<2048x25xbf16, #tpu.memory_space<vmem>>, vector<2048x25xbf16>
    %c0_1 = arith.constant 0 : index
    %c0_2 = arith.constant 0 : index
    %1 = vector.load %arg2[%c0_1, %c0_2] : memref<25x16xbf16, #tpu.memory_space<vmem>>, vector<25x16xbf16>
    %cst = arith.constant dense<0.000000e+00> : vector<2048x16xf32>
    %2 = tpu.matmul %0, %1, %cst {dimension_numbers = #tpu.dot_dimension_numbers<[1], [0], [0], [1], [0, 0, 1, 1], [], []>} : vector<2048x25xbf16>, vector<25x16xbf16>, vector<2048x16xf32> -> vector<2048x16xf32>
    %3 = vector.shape_cast %2 : vector<2048x16xf32> to vector<4x2x2x2x64x16xf32>
    %4 = vector.extract_strided_slice %3 {offsets = [0, 0, 0, 0, 0, 0], sizes = [4, 1, 2, 1, 64, 16], strides = [1, 1, 1, 1, 1, 1]} : vector<4x2x2x2x64x16xf32> to vector<4x1x2x1x64x16xf32>
    %5 = vector.shape_cast %4 : vector<4x1x2x1x64x16xf32> to vector<4x2x64x16xf32>
    %6 = vector.extract_strided_slice %3 {offsets = [0, 0, 0, 1, 0, 0], sizes = [4, 1, 2, 1, 64, 16], strides = [1, 1, 1, 1, 1, 1]} : vector<4x2x2x2x64x16xf32> to vector<4x1x2x1x64x16xf32>
    %7 = vector.shape_cast %6 : vector<4x1x2x1x64x16xf32> to vector<4x2x64x16xf32>
    %8 = arith.maximumf %5, %7 : vector<4x2x64x16xf32>
    %9 = vector.extract_strided_slice %3 {offsets = [0, 1, 0, 0, 0, 0], sizes = [4, 1, 2, 1, 64, 16], strides = [1, 1, 1, 1, 1, 1]} : vector<4x2x2x2x64x16xf32> to vector<4x1x2x1x64x16xf32>
    %10 = vector.shape_cast %9 : vector<4x1x2x1x64x16xf32> to vector<4x2x64x16xf32>
    %11 = vector.extract_strided_slice %3 {offsets = [0, 1, 0, 1, 0, 0], sizes = [4, 1, 2, 1, 64, 16], strides = [1, 1, 1, 1, 1, 1]} : vector<4x2x2x2x64x16xf32> to vector<4x1x2x1x64x16xf32>
    %12 = vector.shape_cast %11 : vector<4x1x2x1x64x16xf32> to vector<4x2x64x16xf32>
    %13 = arith.maximumf %10, %12 : vector<4x2x64x16xf32>
    %14 = arith.maximumf %8, %13 : vector<4x2x64x16xf32>
    %c0_3 = arith.constant 0 : index
    %c0_4 = arith.constant 0 : index
    %15 = vector.load %arg3[%c0_3, %c0_4] : memref<1x16xf32, #tpu.memory_space<vmem>>, vector<1x16xf32>
    %16 = vector.shape_cast %15 : vector<1x16xf32> to vector<1x1x1x16xf32>
    %17 = vector.broadcast %16 : vector<1x1x1x16xf32> to vector<4x2x64x16xf32>
    %18 = arith.addf %14, %17 : vector<4x2x64x16xf32>
    %cst_5 = arith.constant 0.000000e+00 : f32
    %19 = vector.broadcast %cst_5 : f32 to vector<4x2x64x16xf32>
    %20 = arith.maximumf %18, %19 : vector<4x2x64x16xf32>
    %c0_6 = arith.constant 0 : index
    %c0_7 = arith.constant 0 : index
    %21 = vector.load %arg4[%c0_6, %c0_7] : memref<64x16xf32, #tpu.memory_space<vmem>>, vector<64x16xf32>
    %22 = vector.shape_cast %21 : vector<64x16xf32> to vector<1x1x64x16xf32>
    %23 = vector.broadcast %22 : vector<1x1x64x16xf32> to vector<4x2x64x16xf32>
    %24 = arith.mulf %20, %23 : vector<4x2x64x16xf32>
    %25 = vector.shape_cast %24 : vector<4x2x64x16xf32> to vector<2x4x64x16xf32>
    %26 = arith.truncf %25 : vector<2x4x64x16xf32> to vector<2x4x64x16xbf16>
    %cst_8 = arith.constant 0.000000e+00 : bf16
    %27 = vector.broadcast %cst_8 : bf16 to vector<2x4x16x16xbf16>
    %cst_9 = arith.constant 0.000000e+00 : bf16
    %28 = vector.broadcast %cst_9 : bf16 to vector<2x4x32x16xbf16>
    %29 = tpu.concatenate %27, %26, %28 in 2 : vector<2x4x16x16xbf16>, vector<2x4x64x16xbf16>, vector<2x4x32x16xbf16> -> vector<2x4x112x16xbf16>
    %30 = vector.extract_strided_slice %29 {offsets = [0, 0, 6, 0], sizes = [2, 1, 64, 16], strides = [1, 1, 1, 1]} : vector<2x4x112x16xbf16> to vector<2x1x64x16xbf16>
    %31 = vector.shape_cast %30 : vector<2x1x64x16xbf16> to vector<2x64x16xbf16>
    %32 = vector.extract_strided_slice %29 {offsets = [0, 0, 7, 0], sizes = [2, 1, 64, 16], strides = [1, 1, 1, 1]} : vector<2x4x112x16xbf16> to vector<2x1x64x16xbf16>
    %33 = vector.shape_cast %32 : vector<2x1x64x16xbf16> to vector<2x64x16xbf16>
    %34 = vector.extract_strided_slice %29 {offsets = [0, 0, 8, 0], sizes = [2, 1, 64, 16], strides = [1, 1, 1, 1]} : vector<2x4x112x16xbf16> to vector<2x1x64x16xbf16>
    %35 = vector.shape_cast %34 : vector<2x1x64x16xbf16> to vector<2x64x16xbf16>
    %36 = vector.extract_strided_slice %29 {offsets = [0, 1, 6, 0], sizes = [2, 1, 64, 16], strides = [1, 1, 1, 1]} : vector<2x4x112x16xbf16> to vector<2x1x64x16xbf16>
    %37 = vector.shape_cast %36 : vector<2x1x64x16xbf16> to vector<2x64x16xbf16>
    %38 = vector.extract_strided_slice %29 {offsets = [0, 1, 7, 0], sizes = [2, 1, 64, 16], strides = [1, 1, 1, 1]} : vector<2x4x112x16xbf16> to vector<2x1x64x16xbf16>
    %39 = vector.shape_cast %38 : vector<2x1x64x16xbf16> to vector<2x64x16xbf16>
    %40 = vector.extract_strided_slice %29 {offsets = [0, 1, 8, 0], sizes = [2, 1, 64, 16], strides = [1, 1, 1, 1]} : vector<2x4x112x16xbf16> to vector<2x1x64x16xbf16>
    %41 = vector.shape_cast %40 : vector<2x1x64x16xbf16> to vector<2x64x16xbf16>
    %42 = vector.extract_strided_slice %29 {offsets = [0, 0, 15, 0], sizes = [2, 1, 64, 16], strides = [1, 1, 1, 1]} : vector<2x4x112x16xbf16> to vector<2x1x64x16xbf16>
    %43 = vector.shape_cast %42 : vector<2x1x64x16xbf16> to vector<2x64x16xbf16>
    %44 = vector.extract_strided_slice %29 {offsets = [0, 0, 16, 0], sizes = [2, 1, 64, 16], strides = [1, 1, 1, 1]} : vector<2x4x112x16xbf16> to vector<2x1x64x16xbf16>
    %45 = vector.shape_cast %44 : vector<2x1x64x16xbf16> to vector<2x64x16xbf16>
    %46 = vector.extract_strided_slice %29 {offsets = [0, 0, 17, 0], sizes = [2, 1, 64, 16], strides = [1, 1, 1, 1]} : vector<2x4x112x16xbf16> to vector<2x1x64x16xbf16>
    %47 = vector.shape_cast %46 : vector<2x1x64x16xbf16> to vector<2x64x16xbf16>
    %48 = vector.extract_strided_slice %29 {offsets = [0, 1, 15, 0], sizes = [2, 1, 64, 16], strides = [1, 1, 1, 1]} : vector<2x4x112x16xbf16> to vector<2x1x64x16xbf16>
    %49 = vector.shape_cast %48 : vector<2x1x64x16xbf16> to vector<2x64x16xbf16>
    %50 = vector.extract_strided_slice %29 {offsets = [0, 1, 16, 0], sizes = [2, 1, 64, 16], strides = [1, 1, 1, 1]} : vector<2x4x112x16xbf16> to vector<2x1x64x16xbf16>
    %51 = vector.shape_cast %50 : vector<2x1x64x16xbf16> to vector<2x64x16xbf16>
    %52 = vector.extract_strided_slice %29 {offsets = [0, 1, 17, 0], sizes = [2, 1, 64, 16], strides = [1, 1, 1, 1]} : vector<2x4x112x16xbf16> to vector<2x1x64x16xbf16>
    %53 = vector.shape_cast %52 : vector<2x1x64x16xbf16> to vector<2x64x16xbf16>
    %54 = vector.extract_strided_slice %29 {offsets = [0, 0, 24, 0], sizes = [2, 1, 64, 16], strides = [1, 1, 1, 1]} : vector<2x4x112x16xbf16> to vector<2x1x64x16xbf16>
    %55 = vector.shape_cast %54 : vector<2x1x64x16xbf16> to vector<2x64x16xbf16>
    %56 = vector.extract_strided_slice %29 {offsets = [0, 0, 25, 0], sizes = [2, 1, 64, 16], strides = [1, 1, 1, 1]} : vector<2x4x112x16xbf16> to vector<2x1x64x16xbf16>
    %57 = vector.shape_cast %56 : vector<2x1x64x16xbf16> to vector<2x64x16xbf16>
    %58 = vector.extract_strided_slice %29 {offsets = [0, 0, 26, 0], sizes = [2, 1, 64, 16], strides = [1, 1, 1, 1]} : vector<2x4x112x16xbf16> to vector<2x1x64x16xbf16>
    %59 = vector.shape_cast %58 : vector<2x1x64x16xbf16> to vector<2x64x16xbf16>
    %60 = vector.extract_strided_slice %29 {offsets = [0, 1, 24, 0], sizes = [2, 1, 64, 16], strides = [1, 1, 1, 1]} : vector<2x4x112x16xbf16> to vector<2x1x64x16xbf16>
    %61 = vector.shape_cast %60 : vector<2x1x64x16xbf16> to vector<2x64x16xbf16>
    %62 = vector.extract_strided_slice %29 {offsets = [0, 1, 25, 0], sizes = [2, 1, 64, 16], strides = [1, 1, 1, 1]} : vector<2x4x112x16xbf16> to vector<2x1x64x16xbf16>
    %63 = vector.shape_cast %62 : vector<2x1x64x16xbf16> to vector<2x64x16xbf16>
    %64 = vector.extract_strided_slice %29 {offsets = [0, 1, 26, 0], sizes = [2, 1, 64, 16], strides = [1, 1, 1, 1]} : vector<2x4x112x16xbf16> to vector<2x1x64x16xbf16>
    %65 = vector.shape_cast %64 : vector<2x1x64x16xbf16> to vector<2x64x16xbf16>
    %66 = vector.extract_strided_slice %29 {offsets = [0, 2, 6, 0], sizes = [2, 1, 64, 16], strides = [1, 1, 1, 1]} : vector<2x4x112x16xbf16> to vector<2x1x64x16xbf16>
    %67 = vector.shape_cast %66 : vector<2x1x64x16xbf16> to vector<2x64x16xbf16>
    %68 = vector.extract_strided_slice %29 {offsets = [0, 2, 7, 0], sizes = [2, 1, 64, 16], strides = [1, 1, 1, 1]} : vector<2x4x112x16xbf16> to vector<2x1x64x16xbf16>
    %69 = vector.shape_cast %68 : vector<2x1x64x16xbf16> to vector<2x64x16xbf16>
    %70 = vector.extract_strided_slice %29 {offsets = [0, 2, 8, 0], sizes = [2, 1, 64, 16], strides = [1, 1, 1, 1]} : vector<2x4x112x16xbf16> to vector<2x1x64x16xbf16>
    %71 = vector.shape_cast %70 : vector<2x1x64x16xbf16> to vector<2x64x16xbf16>
    %72 = vector.extract_strided_slice %29 {offsets = [0, 3, 6, 0], sizes = [2, 1, 64, 16], strides = [1, 1, 1, 1]} : vector<2x4x112x16xbf16> to vector<2x1x64x16xbf16>
    %73 = vector.shape_cast %72 : vector<2x1x64x16xbf16> to vector<2x64x16xbf16>
    %74 = vector.extract_strided_slice %29 {offsets = [0, 3, 7, 0], sizes = [2, 1, 64, 16], strides = [1, 1, 1, 1]} : vector<2x4x112x16xbf16> to vector<2x1x64x16xbf16>
    %75 = vector.shape_cast %74 : vector<2x1x64x16xbf16> to vector<2x64x16xbf16>
    %76 = vector.extract_strided_slice %29 {offsets = [0, 3, 8, 0], sizes = [2, 1, 64, 16], strides = [1, 1, 1, 1]} : vector<2x4x112x16xbf16> to vector<2x1x64x16xbf16>
    %77 = vector.shape_cast %76 : vector<2x1x64x16xbf16> to vector<2x64x16xbf16>
    %78 = vector.extract_strided_slice %29 {offsets = [0, 2, 15, 0], sizes = [2, 1, 64, 16], strides = [1, 1, 1, 1]} : vector<2x4x112x16xbf16> to vector<2x1x64x16xbf16>
    %79 = vector.shape_cast %78 : vector<2x1x64x16xbf16> to vector<2x64x16xbf16>
    %80 = vector.extract_strided_slice %29 {offsets = [0, 2, 16, 0], sizes = [2, 1, 64, 16], strides = [1, 1, 1, 1]} : vector<2x4x112x16xbf16> to vector<2x1x64x16xbf16>
    %81 = vector.shape_cast %80 : vector<2x1x64x16xbf16> to vector<2x64x16xbf16>
    %82 = vector.extract_strided_slice %29 {offsets = [0, 2, 17, 0], sizes = [2, 1, 64, 16], strides = [1, 1, 1, 1]} : vector<2x4x112x16xbf16> to vector<2x1x64x16xbf16>
    %83 = vector.shape_cast %82 : vector<2x1x64x16xbf16> to vector<2x64x16xbf16>
    %84 = vector.extract_strided_slice %29 {offsets = [0, 3, 15, 0], sizes = [2, 1, 64, 16], strides = [1, 1, 1, 1]} : vector<2x4x112x16xbf16> to vector<2x1x64x16xbf16>
    %85 = vector.shape_cast %84 : vector<2x1x64x16xbf16> to vector<2x64x16xbf16>
    %86 = vector.extract_strided_slice %29 {offsets = [0, 3, 16, 0], sizes = [2, 1, 64, 16], strides = [1, 1, 1, 1]} : vector<2x4x112x16xbf16> to vector<2x1x64x16xbf16>
    %87 = vector.shape_cast %86 : vector<2x1x64x16xbf16> to vector<2x64x16xbf16>
    %88 = vector.extract_strided_slice %29 {offsets = [0, 3, 17, 0], sizes = [2, 1, 64, 16], strides = [1, 1, 1, 1]} : vector<2x4x112x16xbf16> to vector<2x1x64x16xbf16>
    %89 = vector.shape_cast %88 : vector<2x1x64x16xbf16> to vector<2x64x16xbf16>
    %90 = vector.extract_strided_slice %29 {offsets = [0, 2, 24, 0], sizes = [2, 1, 64, 16], strides = [1, 1, 1, 1]} : vector<2x4x112x16xbf16> to vector<2x1x64x16xbf16>
    %91 = vector.shape_cast %90 : vector<2x1x64x16xbf16> to vector<2x64x16xbf16>
    %92 = vector.extract_strided_slice %29 {offsets = [0, 2, 25, 0], sizes = [2, 1, 64, 16], strides = [1, 1, 1, 1]} : vector<2x4x112x16xbf16> to vector<2x1x64x16xbf16>
    %93 = vector.shape_cast %92 : vector<2x1x64x16xbf16> to vector<2x64x16xbf16>
    %94 = vector.extract_strided_slice %29 {offsets = [0, 2, 26, 0], sizes = [2, 1, 64, 16], strides = [1, 1, 1, 1]} : vector<2x4x112x16xbf16> to vector<2x1x64x16xbf16>
    %95 = vector.shape_cast %94 : vector<2x1x64x16xbf16> to vector<2x64x16xbf16>
    %96 = vector.extract_strided_slice %29 {offsets = [0, 3, 24, 0], sizes = [2, 1, 64, 16], strides = [1, 1, 1, 1]} : vector<2x4x112x16xbf16> to vector<2x1x64x16xbf16>
    %97 = vector.shape_cast %96 : vector<2x1x64x16xbf16> to vector<2x64x16xbf16>
    %98 = vector.extract_strided_slice %29 {offsets = [0, 3, 25, 0], sizes = [2, 1, 64, 16], strides = [1, 1, 1, 1]} : vector<2x4x112x16xbf16> to vector<2x1x64x16xbf16>
    %99 = vector.shape_cast %98 : vector<2x1x64x16xbf16> to vector<2x64x16xbf16>
    %100 = vector.extract_strided_slice %29 {offsets = [0, 3, 26, 0], sizes = [2, 1, 64, 16], strides = [1, 1, 1, 1]} : vector<2x4x112x16xbf16> to vector<2x1x64x16xbf16>
    %101 = vector.shape_cast %100 : vector<2x1x64x16xbf16> to vector<2x64x16xbf16>
    %102 = tpu.concatenate %31, %37, %33, %39, %35, %67, %73, %69, %75, %71, %43, %49, %45, %51, %47, %79 in 2 : vector<2x64x16xbf16>, vector<2x64x16xbf16>, vector<2x64x16xbf16>, vector<2x64x16xbf16>, vector<2x64x16xbf16>, vector<2x64x16xbf16>, vector<2x64x16xbf16>, vector<2x64x16xbf16>, vector<2x64x16xbf16>, vector<2x64x16xbf16>, vector<2x64x16xbf16>, vector<2x64x16xbf16>, vector<2x64x16xbf16>, vector<2x64x16xbf16>, vector<2x64x16xbf16>, vector<2x64x16xbf16> -> vector<2x64x256xbf16>
    %103 = tpu.concatenate %85, %81, %87, %83, %55, %61, %57, %63, %59 in 2 : vector<2x64x16xbf16>, vector<2x64x16xbf16>, vector<2x64x16xbf16>, vector<2x64x16xbf16>, vector<2x64x16xbf16>, vector<2x64x16xbf16>, vector<2x64x16xbf16>, vector<2x64x16xbf16>, vector<2x64x16xbf16> -> vector<2x64x144xbf16>
    %104 = tpu.concatenate %102, %103 in 2 : vector<2x64x256xbf16>, vector<2x64x144xbf16> -> vector<2x64x400xbf16>
    %105 = vector.shape_cast %104 : vector<2x64x400xbf16> to vector<128x400xbf16>
    %106 = tpu.concatenate %37, %33, %39, %35, %41, %73, %69, %75, %71, %77, %49, %45, %51, %47, %53, %85 in 2 : vector<2x64x16xbf16>, vector<2x64x16xbf16>, vector<2x64x16xbf16>, vector<2x64x16xbf16>, vector<2x64x16xbf16>, vector<2x64x16xbf16>, vector<2x64x16xbf16>, vector<2x64x16xbf16>, vector<2x64x16xbf16>, vector<2x64x16xbf16>, vector<2x64x16xbf16>, vector<2x64x16xbf16>, vector<2x64x16xbf16>, vector<2x64x16xbf16>, vector<2x64x16xbf16>, vector<2x64x16xbf16> -> vector<2x64x256xbf16>
    %107 = tpu.concatenate %81, %87, %83, %89, %61, %57, %63, %59, %65 in 2 : vector<2x64x16xbf16>, vector<2x64x16xbf16>, vector<2x64x16xbf16>, vector<2x64x16xbf16>, vector<2x64x16xbf16>, vector<2x64x16xbf16>, vector<2x64x16xbf16>, vector<2x64x16xbf16>, vector<2x64x16xbf16> -> vector<2x64x144xbf16>
    %108 = tpu.concatenate %106, %107 in 2 : vector<2x64x256xbf16>, vector<2x64x144xbf16> -> vector<2x64x400xbf16>
    %109 = vector.shape_cast %108 : vector<2x64x400xbf16> to vector<128x400xbf16>
    %110 = tpu.concatenate %67, %73, %69, %75, %71, %43, %49, %45, %51, %47, %79, %85, %81, %87, %83, %55 in 2 : vector<2x64x16xbf16>, vector<2x64x16xbf16>, vector<2x64x16xbf16>, vector<2x64x16xbf16>, vector<2x64x16xbf16>, vector<2x64x16xbf16>, vector<2x64x16xbf16>, vector<2x64x16xbf16>, vector<2x64x16xbf16>, vector<2x64x16xbf16>, vector<2x64x16xbf16>, vector<2x64x16xbf16>, vector<2x64x16xbf16>, vector<2x64x16xbf16>, vector<2x64x16xbf16>, vector<2x64x16xbf16> -> vector<2x64x256xbf16>
    %111 = tpu.concatenate %61, %57, %63, %59, %91, %97, %93, %99, %95 in 2 : vector<2x64x16xbf16>, vector<2x64x16xbf16>, vector<2x64x16xbf16>, vector<2x64x16xbf16>, vector<2x64x16xbf16>, vector<2x64x16xbf16>, vector<2x64x16xbf16>, vector<2x64x16xbf16>, vector<2x64x16xbf16> -> vector<2x64x144xbf16>
    %112 = tpu.concatenate %110, %111 in 2 : vector<2x64x256xbf16>, vector<2x64x144xbf16> -> vector<2x64x400xbf16>
    %113 = vector.shape_cast %112 : vector<2x64x400xbf16> to vector<128x400xbf16>
    %114 = tpu.concatenate %73, %69, %75, %71, %77, %49, %45, %51, %47, %53, %85, %81, %87, %83, %89, %61 in 2 : vector<2x64x16xbf16>, vector<2x64x16xbf16>, vector<2x64x16xbf16>, vector<2x64x16xbf16>, vector<2x64x16xbf16>, vector<2x64x16xbf16>, vector<2x64x16xbf16>, vector<2x64x16xbf16>, vector<2x64x16xbf16>, vector<2x64x16xbf16>, vector<2x64x16xbf16>, vector<2x64x16xbf16>, vector<2x64x16xbf16>, vector<2x64x16xbf16>, vector<2x64x16xbf16>, vector<2x64x16xbf16> -> vector<2x64x256xbf16>
    %115 = tpu.concatenate %57, %63, %59, %65, %97, %93, %99, %95, %101 in 2 : vector<2x64x16xbf16>, vector<2x64x16xbf16>, vector<2x64x16xbf16>, vector<2x64x16xbf16>, vector<2x64x16xbf16>, vector<2x64x16xbf16>, vector<2x64x16xbf16>, vector<2x64x16xbf16>, vector<2x64x16xbf16> -> vector<2x64x144xbf16>
    %116 = tpu.concatenate %114, %115 in 2 : vector<2x64x256xbf16>, vector<2x64x144xbf16> -> vector<2x64x400xbf16>
    %117 = vector.shape_cast %116 : vector<2x64x400xbf16> to vector<128x400xbf16>
    %118 = tpu.concatenate %105, %109, %113, %117 in 0 : vector<128x400xbf16>, vector<128x400xbf16>, vector<128x400xbf16>, vector<128x400xbf16> -> vector<512x400xbf16>
    %c0_10 = arith.constant 0 : index
    %c0_11 = arith.constant 0 : index
    %119 = vector.load %arg5[%c0_10, %c0_11] : memref<400x32xbf16, #tpu.memory_space<vmem>>, vector<400x32xbf16>
    %cst_12 = arith.constant dense<0.000000e+00> : vector<512x32xf32>
    %120 = tpu.matmul %118, %119, %cst_12 {dimension_numbers = #tpu.dot_dimension_numbers<[1], [0], [0], [1], [0, 0, 1, 1], [], []>} : vector<512x400xbf16>, vector<400x32xbf16>, vector<512x32xf32> -> vector<512x32xf32>
    %121 = vector.shape_cast %120 : vector<512x32xf32> to vector<4x2x64x32xf32>
    %122 = vector.extract_strided_slice %121 {offsets = [0, 0, 0, 0], sizes = [1, 2, 64, 32], strides = [1, 1, 1, 1]} : vector<4x2x64x32xf32> to vector<1x2x64x32xf32>
    %123 = vector.shape_cast %122 : vector<1x2x64x32xf32> to vector<2x64x32xf32>
    %124 = vector.extract_strided_slice %121 {offsets = [1, 0, 0, 0], sizes = [1, 2, 64, 32], strides = [1, 1, 1, 1]} : vector<4x2x64x32xf32> to vector<1x2x64x32xf32>
    %125 = vector.shape_cast %124 : vector<1x2x64x32xf32> to vector<2x64x32xf32>
    %126 = arith.maximumf %123, %125 : vector<2x64x32xf32>
    %127 = vector.extract_strided_slice %121 {offsets = [2, 0, 0, 0], sizes = [1, 2, 64, 32], strides = [1, 1, 1, 1]} : vector<4x2x64x32xf32> to vector<1x2x64x32xf32>
    %128 = vector.shape_cast %127 : vector<1x2x64x32xf32> to vector<2x64x32xf32>
    %129 = vector.extract_strided_slice %121 {offsets = [3, 0, 0, 0], sizes = [1, 2, 64, 32], strides = [1, 1, 1, 1]} : vector<4x2x64x32xf32> to vector<1x2x64x32xf32>
    %130 = vector.shape_cast %129 : vector<1x2x64x32xf32> to vector<2x64x32xf32>
    %131 = arith.maximumf %128, %130 : vector<2x64x32xf32>
    %132 = arith.maximumf %126, %131 : vector<2x64x32xf32>
    %c0_13 = arith.constant 0 : index
    %c0_14 = arith.constant 0 : index
    %133 = vector.load %arg6[%c0_13, %c0_14] : memref<1x32xf32, #tpu.memory_space<vmem>>, vector<1x32xf32>
    %134 = vector.shape_cast %133 : vector<1x32xf32> to vector<1x1x32xf32>
    %135 = vector.broadcast %134 : vector<1x1x32xf32> to vector<2x64x32xf32>
    %136 = arith.addf %132, %135 : vector<2x64x32xf32>
    %cst_15 = arith.constant 0.000000e+00 : f32
    %137 = vector.broadcast %cst_15 : f32 to vector<2x64x32xf32>
    %138 = arith.maximumf %136, %137 : vector<2x64x32xf32>
    %139 = arith.truncf %138 : vector<2x64x32xf32> to vector<2x64x32xbf16>
    %c0_16 = arith.constant 0 : index
    %c0_17 = arith.constant 0 : index
    %c0_18 = arith.constant 0 : index
    %140 = vector.load %arg7[%c0_16, %c0_17, %c0_18] : memref<2x64x32xbf16, #tpu.memory_space<vmem>>, vector<2x64x32xbf16>
    tpu.vector_store %arg7[%c0_16, %c0_17, %c0_18], %139 {strides = array<i32>} : memref<2x64x32xbf16, #tpu.memory_space<vmem>>, vector<2x64x32xbf16>,
    return
  }
  func.func @transform_0(%arg0: i32) -> (i32, i32) {
    %c0_i32 = arith.constant 0 : i32
    %c0_i32_0 = arith.constant 0 : i32
    return %arg0, %c0_i32 : i32, i32
  }
  func.func @transform_1(%arg0: i32) -> (i32, i32) {
    %c0_i32 = arith.constant 0 : i32
    %c0_i32_0 = arith.constant 0 : i32
    %c0_i32_1 = arith.constant 0 : i32
    return %c0_i32, %c0_i32_0 : i32, i32
  }
  func.func @transform_2(%arg0: i32) -> (i32, i32) {
    %c0_i32 = arith.constant 0 : i32
    %c0_i32_0 = arith.constant 0 : i32
    %c0_i32_1 = arith.constant 0 : i32
    return %c0_i32, %c0_i32_0 : i32, i32
  }
  func.func @transform_3(%arg0: i32) -> (i32, i32) {
    %c0_i32 = arith.constant 0 : i32
    %c0_i32_0 = arith.constant 0 : i32
    %c0_i32_1 = arith.constant 0 : i32
    return %c0_i32, %c0_i32_0 : i32, i32
  }
  func.func @transform_4(%arg0: i32) -> (i32, i32) {
    %c0_i32 = arith.constant 0 : i32
    %c0_i32_0 = arith.constant 0 : i32
    %c0_i32_1 = arith.constant 0 : i32
    return %c0_i32, %c0_i32_0 : i32, i32
  }
  func.func @transform_5(%arg0: i32) -> (i32, i32) {
    %c0_i32 = arith.constant 0 : i32
    %c0_i32_0 = arith.constant 0 : i32
    %c0_i32_1 = arith.constant 0 : i32
    return %c0_i32, %c0_i32_0 : i32, i32
  }
  func.func @transform_6(%arg0: i32) -> (i32, i32, i32) {
    %c0_i32 = arith.constant 0 : i32
    %c0_i32_0 = arith.constant 0 : i32
    %c0_i32_1 = arith.constant 0 : i32
    return %arg0, %c0_i32, %c0_i32_0 : i32, i32, i32
  }
}

</mosaic_0001>

<llo_original>
// kernel: cnn_forward.1
$region0: #{cnn_forward.1}
  #allocation0 [shape = 'u32[]', space=smem, size = 0x4, offset = 0x4, fixed_abs, tag = 'smem constant byte address 0x4 - core index']
  #allocation1 [shape = 'u32[144,128]{1,0:T(1,128)}', space=vmem, size = 0x12000, scoped, tag = 'internal scratch']
  %s0 = inlined_call_operand.vmem [shape: bf16[2048,25], index: 0, kind: input, shape index: {}]
  %s1 = inlined_call_operand.vmem [shape: bf16[25,16], index: 1, kind: input, shape index: {}]
  %s2 = inlined_call_operand.vmem [shape: f32[1,16], index: 2, kind: input, shape index: {}]
  %s3 = inlined_call_operand.vmem [shape: f32[64,16], index: 3, kind: input, shape index: {}]
  %s4 = inlined_call_operand.vmem [shape: bf16[400,32], index: 4, kind: input, shape index: {}]
  %s5 = inlined_call_operand.vmem [shape: f32[1,32], index: 5, kind: input, shape index: {}]
  %s6 = inlined_call_operand.vmem [shape: bf16[2,64,32], index: 6, kind: output, shape index: {}]
  %s7 = sld [smem:[#allocation0]]
  $region34: #{cnn_forward.1} parent=0
    _
  %s9 = ssub.s32 1, %s7
  %s10 = scalar_select 0, %s9, %s7
  // Predicated region
  $region2: #{cnn_forward.1} parent=0 // pred_check
    _
  $region3: #{cnn_forward.1} parent=0 // pred_check_branch
    %12 = sbr.rel (0) target = $region5
  $region4: #{cnn_forward.1} parent=0 // pred_region
    _
  $region5: #{cnn_forward.1} parent=0 // pred_fallthru
    _
  // Predicated region
  $region6: #{cnn_forward.1} parent=0 // pred_check
    _
  $region7: #{cnn_forward.1} parent=0 // pred_check_branch
    %14 = sbr.rel (0) target = $region9
  $region8: #{cnn_forward.1} parent=0 // pred_region
    _
  $region9: #{cnn_forward.1} parent=0 // pred_fallthru
    _
  // Predicated region
  $region10: #{cnn_forward.1} parent=0 // pred_check
    _
  $region11: #{cnn_forward.1} parent=0 // pred_check_branch
    %16 = sbr.rel (0) target = $region13
  $region12: #{cnn_forward.1} parent=0 // pred_region
    _
  $region13: #{cnn_forward.1} parent=0 // pred_fallthru
    _
  // Predicated region
  $region14: #{cnn_forward.1} parent=0 // pred_check
    _
  $region15: #{cnn_forward.1} parent=0 // pred_check_branch
    %18 = sbr.rel (0) target = $region17
  $region16: #{cnn_forward.1} parent=0 // pred_region
    _
  $region17: #{cnn_forward.1} parent=0 // pred_fallthru
    _
  // Predicated region
  $region18: #{cnn_forward.1} parent=0 // pred_check
    _
  $region19: #{cnn_forward.1} parent=0 // pred_check_branch
    %20 = sbr.rel (0) target = $region21
  $region20: #{cnn_forward.1} parent=0 // pred_region
    _
  $region21: #{cnn_forward.1} parent=0 // pred_fallthru
    _
  // Predicated region
  $region22: #{cnn_forward.1} parent=0 // pred_check
    _
  $region23: #{cnn_forward.1} parent=0 // pred_check_branch
    %22 = sbr.rel (0) target = $region25
  $region24: #{cnn_forward.1} parent=0 // pred_region
    _
  $region25: #{cnn_forward.1} parent=0 // pred_fallthru
    _
  %v24 = vld [vmem:[%s0] sm:$0xf]
  %v25 = vld [vmem:[%s0 + $0x4] sm:$0xf]
  %v26 = vld [vmem:[%s0 + $0x8] sm:$0xf]
  %v27 = vld [vmem:[%s0 + $0xc] sm:$0xf]
  %v28 = vld [vmem:[%s0 + $0x10] sm:$0xf]
  %v29 = vld [vmem:[%s0 + $0x14] sm:$0xf]
  %v30 = vld [vmem:[%s0 + $0x18] sm:$0xf]
  %v31 = vld [vmem:[%s0 + $0x1c] sm:$0xf]
  %v32 = vld [vmem:[%s0 + $0x20] sm:$0xf]
  %v33 = vld [vmem:[%s0 + $0x24] sm:$0xf]
  %v34 = vld [vmem:[%s0 + $0x28] sm:$0xf]
  %v35 = vld [vmem:[%s0 + $0x2c] sm:$0xf]
  %v36 = vld [vmem:[%s0 + $0x30] sm:$0xf]
  %v37 = vld [vmem:[%s0 + $0x34] sm:$0xf]
  %v38 = vld [vmem:[%s0 + $0x38] sm:$0xf]
  %v39 = vld [vmem:[%s0 + $0x3c] sm:$0xf]
  %v40 = vld [vmem:[%s0 + $0x40] sm:$0xf]
  %v41 = vld [vmem:[%s0 + $0x44] sm:$0xf]
  %v42 = vld [vmem:[%s0 + $0x48] sm:$0xf]
  %v43 = vld [vmem:[%s0 + $0x4c] sm:$0xf]
  %v44 = vld [vmem:[%s0 + $0x50] sm:$0xf]
  %v45 = vld [vmem:[%s0 + $0x54] sm:$0xf]
  %v46 = vld [vmem:[%s0 + $0x58] sm:$0xf]
  %v47 = vld [vmem:[%s0 + $0x5c] sm:$0xf]
  %v48 = vld [vmem:[%s0 + $0x60] sm:$0xf]
  %v49 = vld [vmem:[%s0 + $0x64] sm:$0xf]
  %v50 = vld [vmem:[%s0 + $0x68] sm:$0xf]
  %v51 = vld [vmem:[%s0 + $0x6c] sm:$0xf]
  %v52 = vld [vmem:[%s0 + $0x70] sm:$0xf]
  %v53 = vld [vmem:[%s0 + $0x74] sm:$0xf]
  %v54 = vld [vmem:[%s0 + $0x78] sm:$0xf]
  %v55 = vld [vmem:[%s0 + $0x7c] sm:$0xf]
  %v56 = vld [vmem:[%s0 + $0x80] sm:$0xf]
  %v57 = vld [vmem:[%s0 + $0x84] sm:$0xf]
  %v58 = vld [vmem:[%s0 + $0x88] sm:$0xf]
  %v59 = vld [vmem:[%s0 + $0x8c] sm:$0xf]
  %v60 = vld [vmem:[%s0 + $0x90] sm:$0xf]
  %v61 = vld [vmem:[%s0 + $0x94] sm:$0xf]
  %v62 = vld [vmem:[%s0 + $0x98] sm:$0xf]
  %v63 = vld [vmem:[%s0 + $0x9c] sm:$0xf]
  %v64 = vld [vmem:[%s0 + $0xa0] sm:$0xf]
  %v65 = vld [vmem:[%s0 + $0xa4] sm:$0xf]
  %v66 = vld [vmem:[%s0 + $0xa8] sm:$0xf]
  %v67 = vld [vmem:[%s0 + $0xac] sm:$0xf]
  %v68 = vld [vmem:[%s0 + $0xb0] sm:$0xf]
  %v69 = vld [vmem:[%s0 + $0xb4] sm:$0xf]
  %v70 = vld [vmem:[%s0 + $0xb8] sm:$0xf]
  %v71 = vld [vmem:[%s0 + $0xbc] sm:$0xf]
  %v72 = vld [vmem:[%s0 + $0xc0] sm:$0xf]
  %v73 = vld [vmem:[%s0 + $0xc4] sm:$0xf]
  %v74 = vld [vmem:[%s0 + $0xc8] sm:$0xf]
  %v75 = vld [vmem:[%s0 + $0xcc] sm:$0xf]
  %v76 = vld [vmem:[%s0 + $0xd0] sm:$0xf]
  %v77 = vld [vmem:[%s0 + $0xd4] sm:$0xf]
  %v78 = vld [vmem:[%s0 + $0xd8] sm:$0xf]
  %v79 = vld [vmem:[%s0 + $0xdc] sm:$0xf]
  %v80 = vld [vmem:[%s0 + $0xe0] sm:$0xf]
  %v81 = vld [vmem:[%s0 + $0xe4] sm:$0xf]
  %v82 = vld [vmem:[%s0 + $0xe8] sm:$0xf]
  %v83 = vld [vmem:[%s0 + $0xec] sm:$0xf]
  %v84 = vld [vmem:[%s0 + $0xf0] sm:$0xf]
  %v85 = vld [vmem:[%s0 + $0xf4] sm:$0xf]
  %v86 = vld [vmem:[%s0 + $0xf8] sm:$0xf]
  %v87 = vld [vmem:[%s0 + $0xfc] sm:$0xf]
  %v88 = vld [vmem:[%s0 + $0x100] sm:$0xf]
  %v89 = vld [vmem:[%s0 + $0x104] sm:$0xf]
  %v90 = vld [vmem:[%s0 + $0x108] sm:$0xf]
  %v91 = vld [vmem:[%s0 + $0x10c] sm:$0xf]
  %v92 = vld [vmem:[%s0 + $0x110] sm:$0xf]
  %v93 = vld [vmem:[%s0 + $0x114] sm:$0xf]
  %v94 = vld [vmem:[%s0 + $0x118] sm:$0xf]
  %v95 = vld [vmem:[%s0 + $0x11c] sm:$0xf]
  %v96 = vld [vmem:[%s0 + $0x120] sm:$0xf]
  %v97 = vld [vmem:[%s0 + $0x124] sm:$0xf]
  %v98 = vld [vmem:[%s0 + $0x128] sm:$0xf]
  %v99 = vld [vmem:[%s0 + $0x12c] sm:$0xf]
  %v100 = vld [vmem:[%s0 + $0x130] sm:$0xf]
  %v101 = vld [vmem:[%s0 + $0x134] sm:$0xf]
  %v102 = vld [vmem:[%s0 + $0x138] sm:$0xf]
  %v103 = vld [vmem:[%s0 + $0x13c] sm:$0xf]
  %v104 = vld [vmem:[%s0 + $0x140] sm:$0xf]
  %v105 = vld [vmem:[%s0 + $0x144] sm:$0xf]
  %v106 = vld [vmem:[%s0 + $0x148] sm:$0xf]
  %v107 = vld [vmem:[%s0 + $0x14c] sm:$0xf]
  %v108 = vld [vmem:[%s0 + $0x150] sm:$0xf]
  %v109 = vld [vmem:[%s0 + $0x154] sm:$0xf]
  %v110 = vld [vmem:[%s0 + $0x158] sm:$0xf]
  %v111 = vld [vmem:[%s0 + $0x15c] sm:$0xf]
  %v112 = vld [vmem:[%s0 + $0x160] sm:$0xf]
  %v113 = vld [vmem:[%s0 + $0x164] sm:$0xf]
  %v114 = vld [vmem:[%s0 + $0x168] sm:$0xf]
  %v115 = vld [vmem:[%s0 + $0x16c] sm:$0xf]
  %v116 = vld [vmem:[%s0 + $0x170] sm:$0xf]
  %v117 = vld [vmem:[%s0 + $0x174] sm:$0xf]
  %v118 = vld [vmem:[%s0 + $0x178] sm:$0xf]
  %v119 = vld [vmem:[%s0 + $0x17c] sm:$0xf]
  %v120 = vld [vmem:[%s0 + $0x180] sm:$0xf]
  %v121 = vld [vmem:[%s0 + $0x184] sm:$0xf]
  %v122 = vld [vmem:[%s0 + $0x188] sm:$0xf]
  %v123 = vld [vmem:[%s0 + $0x18c] sm:$0xf]
  %v124 = vld [vmem:[%s0 + $0x190] sm:$0xf]
  %v125 = vld [vmem:[%s0 + $0x194] sm:$0xf]
  %v126 = vld [vmem:[%s0 + $0x198] sm:$0xf]
  %v127 = vld [vmem:[%s0 + $0x19c] sm:$0xf]
  %v128 = vld [vmem:[%s0 + $0x1a0] sm:$0xf]
  %v129 = vld [vmem:[%s0 + $0x1a4] sm:$0xf]
  %v130 = vld [vmem:[%s0 + $0x1a8] sm:$0xf]
  %v131 = vld [vmem:[%s0 + $0x1ac] sm:$0xf]
  %v132 = vld [vmem:[%s0 + $0x1b0] sm:$0xf]
  %v133 = vld [vmem:[%s0 + $0x1b4] sm:$0xf]
  %v134 = vld [vmem:[%s0 + $0x1b8] sm:$0xf]
  %v135 = vld [vmem:[%s0 + $0x1bc] sm:$0xf]
  %v136 = vld [vmem:[%s0 + $0x1c0] sm:$0xf]
  %v137 = vld [vmem:[%s0 + $0x1c4] sm:$0xf]
  %v138 = vld [vmem:[%s0 + $0x1c8] sm:$0xf]
  %v139 = vld [vmem:[%s0 + $0x1cc] sm:$0xf]
  %v140 = vld [vmem:[%s0 + $0x1d0] sm:$0xf]
  %v141 = vld [vmem:[%s0 + $0x1d4] sm:$0xf]
  %v142 = vld [vmem:[%s0 + $0x1d8] sm:$0xf]
  %v143 = vld [vmem:[%s0 + $0x1dc] sm:$0xf]
  %v144 = vld [vmem:[%s0 + $0x1e0] sm:$0xf]
  %v145 = vld [vmem:[%s0 + $0x1e4] sm:$0xf]
  %v146 = vld [vmem:[%s0 + $0x1e8] sm:$0xf]
  %v147 = vld [vmem:[%s0 + $0x1ec] sm:$0xf]
  %v148 = vld [vmem:[%s0 + $0x1f0] sm:$0xf]
  %v149 = vld [vmem:[%s0 + $0x1f4] sm:$0xf]
  %v150 = vld [vmem:[%s0 + $0x1f8] sm:$0xf]
  %v151 = vld [vmem:[%s0 + $0x1fc] sm:$0xf]
  %v152 = vld [vmem:[%s0 + $0x200] sm:$0xf]
  %v153 = vld [vmem:[%s0 + $0x204] sm:$0xf]
  %v154 = vld [vmem:[%s0 + $0x208] sm:$0xf]
  %v155 = vld [vmem:[%s0 + $0x20c] sm:$0xf]
  %v156 = vld [vmem:[%s0 + $0x210] sm:$0xf]
  %v157 = vld [vmem:[%s0 + $0x214] sm:$0xf]
  %v158 = vld [vmem:[%s0 + $0x218] sm:$0xf]
  %v159 = vld [vmem:[%s0 + $0x21c] sm:$0xf]
  %v160 = vld [vmem:[%s0 + $0x220] sm:$0xf]
  %v161 = vld [vmem:[%s0 + $0x224] sm:$0xf]
  %v162 = vld [vmem:[%s0 + $0x228] sm:$0xf]
  %v163 = vld [vmem:[%s0 + $0x22c] sm:$0xf]
  %v164 = vld [vmem:[%s0 + $0x230] sm:$0xf]
  %v165 = vld [vmem:[%s0 + $0x234] sm:$0xf]
  %v166 = vld [vmem:[%s0 + $0x238] sm:$0xf]
  %v167 = vld [vmem:[%s0 + $0x23c] sm:$0xf]
  %v168 = vld [vmem:[%s0 + $0x240] sm:$0xf]
  %v169 = vld [vmem:[%s0 + $0x244] sm:$0xf]
  %v170 = vld [vmem:[%s0 + $0x248] sm:$0xf]
  %v171 = vld [vmem:[%s0 + $0x24c] sm:$0xf]
  %v172 = vld [vmem:[%s0 + $0x250] sm:$0xf]
  %v173 = vld [vmem:[%s0 + $0x254] sm:$0xf]
  %v174 = vld [vmem:[%s0 + $0x258] sm:$0xf]
  %v175 = vld [vmem:[%s0 + $0x25c] sm:$0xf]
  %v176 = vld [vmem:[%s0 + $0x260] sm:$0xf]
  %v177 = vld [vmem:[%s0 + $0x264] sm:$0xf]
  %v178 = vld [vmem:[%s0 + $0x268] sm:$0xf]
  %v179 = vld [vmem:[%s0 + $0x26c] sm:$0xf]
  %v180 = vld [vmem:[%s0 + $0x270] sm:$0xf]
  %v181 = vld [vmem:[%s0 + $0x274] sm:$0xf]
  %v182 = vld [vmem:[%s0 + $0x278] sm:$0xf]
  %v183 = vld [vmem:[%s0 + $0x27c] sm:$0xf]
  %v184 = vld [vmem:[%s0 + $0x280] sm:$0xf]
  %v185 = vld [vmem:[%s0 + $0x284] sm:$0xf]
  %v186 = vld [vmem:[%s0 + $0x288] sm:$0xf]
  %v187 = vld [vmem:[%s0 + $0x28c] sm:$0xf]
  %v188 = vld [vmem:[%s0 + $0x290] sm:$0xf]
  %v189 = vld [vmem:[%s0 + $0x294] sm:$0xf]
  %v190 = vld [vmem:[%s0 + $0x298] sm:$0xf]
  %v191 = vld [vmem:[%s0 + $0x29c] sm:$0xf]
  %v192 = vld [vmem:[%s0 + $0x2a0] sm:$0xf]
  %v193 = vld [vmem:[%s0 + $0x2a4] sm:$0xf]
  %v194 = vld [vmem:[%s0 + $0x2a8] sm:$0xf]
  %v195 = vld [vmem:[%s0 + $0x2ac] sm:$0xf]
  %v196 = vld [vmem:[%s0 + $0x2b0] sm:$0xf]
  %v197 = vld [vmem:[%s0 + $0x2b4] sm:$0xf]
  %v198 = vld [vmem:[%s0 + $0x2b8] sm:$0xf]
  %v199 = vld [vmem:[%s0 + $0x2bc] sm:$0xf]
  %v200 = vld [vmem:[%s0 + $0x2c0] sm:$0xf]
  %v201 = vld [vmem:[%s0 + $0x2c4] sm:$0xf]
  %v202 = vld [vmem:[%s0 + $0x2c8] sm:$0xf]
  %v203 = vld [vmem:[%s0 + $0x2cc] sm:$0xf]
  %v204 = vld [vmem:[%s0 + $0x2d0] sm:$0xf]
  %v205 = vld [vmem:[%s0 + $0x2d4] sm:$0xf]
  %v206 = vld [vmem:[%s0 + $0x2d8] sm:$0xf]
  %v207 = vld [vmem:[%s0 + $0x2dc] sm:$0xf]
  %v208 = vld [vmem:[%s0 + $0x2e0] sm:$0xf]
  %v209 = vld [vmem:[%s0 + $0x2e4] sm:$0xf]
  %v210 = vld [vmem:[%s0 + $0x2e8] sm:$0xf]
  %v211 = vld [vmem:[%s0 + $0x2ec] sm:$0xf]
  %v212 = vld [vmem:[%s0 + $0x2f0] sm:$0xf]
  %v213 = vld [vmem:[%s0 + $0x2f4] sm:$0xf]
  %v214 = vld [vmem:[%s0 + $0x2f8] sm:$0xf]
  %v215 = vld [vmem:[%s0 + $0x2fc] sm:$0xf]
  %v216 = vld [vmem:[%s0 + $0x300] sm:$0xf]
  %v217 = vld [vmem:[%s0 + $0x304] sm:$0xf]
  %v218 = vld [vmem:[%s0 + $0x308] sm:$0xf]
  %v219 = vld [vmem:[%s0 + $0x30c] sm:$0xf]
  %v220 = vld [vmem:[%s0 + $0x310] sm:$0xf]
  %v221 = vld [vmem:[%s0 + $0x314] sm:$0xf]
  %v222 = vld [vmem:[%s0 + $0x318] sm:$0xf]
  %v223 = vld [vmem:[%s0 + $0x31c] sm:$0xf]
  %v224 = vld [vmem:[%s0 + $0x320] sm:$0xf]
  %v225 = vld [vmem:[%s0 + $0x324] sm:$0xf]
  %v226 = vld [vmem:[%s0 + $0x328] sm:$0xf]
  %v227 = vld [vmem:[%s0 + $0x32c] sm:$0xf]
  %v228 = vld [vmem:[%s0 + $0x330] sm:$0xf]
  %v229 = vld [vmem:[%s0 + $0x334] sm:$0xf]
  %v230 = vld [vmem:[%s0 + $0x338] sm:$0xf]
  %v231 = vld [vmem:[%s0 + $0x33c] sm:$0xf]
  %v232 = vld [vmem:[%s0 + $0x340] sm:$0xf]
  %v233 = vld [vmem:[%s0 + $0x344] sm:$0xf]
  %v234 = vld [vmem:[%s0 + $0x348] sm:$0xf]
  %v235 = vld [vmem:[%s0 + $0x34c] sm:$0xf]
  %v236 = vld [vmem:[%s0 + $0x350] sm:$0xf]
  %v237 = vld [vmem:[%s0 + $0x354] sm:$0xf]
  %v238 = vld [vmem:[%s0 + $0x358] sm:$0xf]
  %v239 = vld [vmem:[%s0 + $0x35c] sm:$0xf]
  %v240 = vld [vmem:[%s0 + $0x360] sm:$0xf]
  %v241 = vld [vmem:[%s0 + $0x364] sm:$0xf]
  %v242 = vld [vmem:[%s0 + $0x368] sm:$0xf]
  %v243 = vld [vmem:[%s0 + $0x36c] sm:$0xf]
  %v244 = vld [vmem:[%s0 + $0x370] sm:$0xf]
  %v245 = vld [vmem:[%s0 + $0x374] sm:$0xf]
  %v246 = vld [vmem:[%s0 + $0x378] sm:$0xf]
  %v247 = vld [vmem:[%s0 + $0x37c] sm:$0xf]
  %v248 = vld [vmem:[%s0 + $0x380] sm:$0xf]
  %v249 = vld [vmem:[%s0 + $0x384] sm:$0xf]
  %v250 = vld [vmem:[%s0 + $0x388] sm:$0xf]
  %v251 = vld [vmem:[%s0 + $0x38c] sm:$0xf]
  %v252 = vld [vmem:[%s0 + $0x390] sm:$0xf]
  %v253 = vld [vmem:[%s0 + $0x394] sm:$0xf]
  %v254 = vld [vmem:[%s0 + $0x398] sm:$0xf]
  %v255 = vld [vmem:[%s0 + $0x39c] sm:$0xf]
  %v256 = vld [vmem:[%s0 + $0x3a0] sm:$0xf]
  %v257 = vld [vmem:[%s0 + $0x3a4] sm:$0xf]
  %v258 = vld [vmem:[%s0 + $0x3a8] sm:$0xf]
  %v259 = vld [vmem:[%s0 + $0x3ac] sm:$0xf]
  %v260 = vld [vmem:[%s0 + $0x3b0] sm:$0xf]
  %v261 = vld [vmem:[%s0 + $0x3b4] sm:$0xf]
  %v262 = vld [vmem:[%s0 + $0x3b8] sm:$0xf]
  %v263 = vld [vmem:[%s0 + $0x3bc] sm:$0xf]
  %v264 = vld [vmem:[%s0 + $0x3c0] sm:$0xf]
  %v265 = vld [vmem:[%s0 + $0x3c4] sm:$0xf]
  %v266 = vld [vmem:[%s0 + $0x3c8] sm:$0xf]
  %v267 = vld [vmem:[%s0 + $0x3cc] sm:$0xf]
  %v268 = vld [vmem:[%s0 + $0x3d0] sm:$0xf]
  %v269 = vld [vmem:[%s0 + $0x3d4] sm:$0xf]
  %v270 = vld [vmem:[%s0 + $0x3d8] sm:$0xf]
  %v271 = vld [vmem:[%s0 + $0x3dc] sm:$0xf]
  %v272 = vld [vmem:[%s0 + $0x3e0] sm:$0xf]
  %v273 = vld [vmem:[%s0 + $0x3e4] sm:$0xf]
  %v274 = vld [vmem:[%s0 + $0x3e8] sm:$0xf]
  %v275 = vld [vmem:[%s0 + $0x3ec] sm:$0xf]
  %v276 = vld [vmem:[%s0 + $0x3f0] sm:$0xf]
  %v277 = vld [vmem:[%s0 + $0x3f4] sm:$0xf]
  %v278 = vld [vmem:[%s0 + $0x3f8] sm:$0xf]
  %v279 = vld [vmem:[%s0 + $0x3fc] sm:$0xf]
  %v280 = vld [vmem:[%s1] sm:$0xf]
  %v281 = vld [vmem:[%s1 + $0x4] sm:$0xf]
  %v282 = vld [vmem:[%s1 + $0x8] sm:$0xf]
  %v283 = vld [vmem:[%s1 + $0xc] sm:$0x1]
  %v540 = vunpack.c.l.b16 %v24
  %v541 = vunpack.c.l.b16 %v25
  %v542 = vunpack.c.l.b16 %v26
  %v543 = vunpack.c.l.b16 %v27
  %v544 = vunpack.c.l.b16 %v28
  %v545 = vunpack.c.l.b16 %v29
  %v546 = vunpack.c.l.b16 %v30
  %v547 = vunpack.c.l.b16 %v31
  %v548 = vunpack.c.l.b16 %v32
  %v549 = vunpack.c.l.b16 %v33
  %v550 = vunpack.c.l.b16 %v34
  %v551 = vunpack.c.l.b16 %v35
  %v552 = vunpack.c.l.b16 %v36
  %v553 = vunpack.c.l.b16 %v37
  %v554 = vunpack.c.l.b16 %v38
  %v555 = vunpack.c.l.b16 %v39
  %v556 = vunpack.c.l.b16 %v40
  %v557 = vunpack.c.l.b16 %v41
  %v558 = vunpack.c.l.b16 %v42
  %v559 = vunpack.c.l.b16 %v43
  %v560 = vunpack.c.l.b16 %v44
  %v561 = vunpack.c.l.b16 %v45
  %v562 = vunpack.c.l.b16 %v46
  %v563 = vunpack.c.l.b16 %v47
  %v564 = vunpack.c.l.b16 %v48
  %v565 = vunpack.c.l.b16 %v49
  %v566 = vunpack.c.l.b16 %v50
  %v567 = vunpack.c.l.b16 %v51
  %v568 = vunpack.c.l.b16 %v52
  %v569 = vunpack.c.l.b16 %v53
  %v570 = vunpack.c.l.b16 %v54
  %v571 = vunpack.c.l.b16 %v55
  %v572 = vunpack.c.l.b16 %v56
  %v573 = vunpack.c.l.b16 %v57
  %v574 = vunpack.c.l.b16 %v58
  %v575 = vunpack.c.l.b16 %v59
  %v576 = vunpack.c.l.b16 %v60
  %v577 = vunpack.c.l.b16 %v61
  %v578 = vunpack.c.l.b16 %v62
  %v579 = vunpack.c.l.b16 %v63
  %v580 = vunpack.c.l.b16 %v64
  %v581 = vunpack.c.l.b16 %v65
  %v582 = vunpack.c.l.b16 %v66
  %v583 = vunpack.c.l.b16 %v67
  %v584 = vunpack.c.l.b16 %v68
  %v585 = vunpack.c.l.b16 %v69
  %v586 = vunpack.c.l.b16 %v70
  %v587 = vunpack.c.l.b16 %v71
  %v588 = vunpack.c.l.b16 %v72
  %v589 = vunpack.c.l.b16 %v73
  %v590 = vunpack.c.l.b16 %v74
  %v591 = vunpack.c.l.b16 %v75
  %v592 = vunpack.c.l.b16 %v76
  %v593 = vunpack.c.l.b16 %v77
  %v594 = vunpack.c.l.b16 %v78
  %v595 = vunpack.c.l.b16 %v79
  %v596 = vunpack.c.l.b16 %v80
  %v597 = vunpack.c.l.b16 %v81
  %v598 = vunpack.c.l.b16 %v82
  %v599 = vunpack.c.l.b16 %v83
  %v600 = vunpack.c.l.b16 %v84
  %v601 = vunpack.c.l.b16 %v85
  %v602 = vunpack.c.l.b16 %v86
  %v603 = vunpack.c.l.b16 %v87
  %v604 = vunpack.c.l.b16 %v88
  %v605 = vunpack.c.l.b16 %v89
  %v606 = vunpack.c.l.b16 %v90
  %v607 = vunpack.c.l.b16 %v91
  %v608 = vunpack.c.l.b16 %v92
  %v609 = vunpack.c.l.b16 %v93
  %v610 = vunpack.c.l.b16 %v94
  %v611 = vunpack.c.l.b16 %v95
  %v612 = vunpack.c.l.b16 %v96
  %v613 = vunpack.c.l.b16 %v97
  %v614 = vunpack.c.l.b16 %v98
  %v615 = vunpack.c.l.b16 %v99
  %v616 = vunpack.c.l.b16 %v100
  %v617 = vunpack.c.l.b16 %v101
  %v618 = vunpack.c.l.b16 %v102
  %v619 = vunpack.c.l.b16 %v103
  %v620 = vunpack.c.l.b16 %v104
  %v621 = vunpack.c.l.b16 %v105
  %v622 = vunpack.c.l.b16 %v106
  %v623 = vunpack.c.l.b16 %v107
  %v624 = vunpack.c.l.b16 %v108
  %v625 = vunpack.c.l.b16 %v109
  %v626 = vunpack.c.l.b16 %v110
  %v627 = vunpack.c.l.b16 %v111
  %v628 = vunpack.c.l.b16 %v112
  %v629 = vunpack.c.l.b16 %v113
  %v630 = vunpack.c.l.b16 %v114
  %v631 = vunpack.c.l.b16 %v115
  %v632 = vunpack.c.l.b16 %v116
  %v633 = vunpack.c.l.b16 %v117
  %v634 = vunpack.c.l.b16 %v118
  %v635 = vunpack.c.l.b16 %v119
  %v636 = vunpack.c.l.b16 %v120
  %v637 = vunpack.c.l.b16 %v121
  %v638 = vunpack.c.l.b16 %v122
  %v639 = vunpack.c.l.b16 %v123
  %v640 = vunpack.c.l.b16 %v124
  %v641 = vunpack.c.l.b16 %v125
  %v642 = vunpack.c.l.b16 %v126
  %v643 = vunpack.c.l.b16 %v127
  %v644 = vunpack.c.l.b16 %v128
  %v645 = vunpack.c.l.b16 %v129
  %v646 = vunpack.c.l.b16 %v130
  %v647 = vunpack.c.l.b16 %v131
  %v648 = vunpack.c.l.b16 %v132
  %v649 = vunpack.c.l.b16 %v133
  %v650 = vunpack.c.l.b16 %v134
  %v651 = vunpack.c.l.b16 %v135
  %v652 = vunpack.c.l.b16 %v136
  %v653 = vunpack.c.l.b16 %v137
  %v654 = vunpack.c.l.b16 %v138
  %v655 = vunpack.c.l.b16 %v139
  %v656 = vunpack.c.l.b16 %v140
  %v657 = vunpack.c.l.b16 %v141
  %v658 = vunpack.c.l.b16 %v142
  %v659 = vunpack.c.l.b16 %v143
  %v660 = vunpack.c.l.b16 %v144
  %v661 = vunpack.c.l.b16 %v145
  %v662 = vunpack.c.l.b16 %v146
  %v663 = vunpack.c.l.b16 %v147
  %v664 = vunpack.c.l.b16 %v148
  %v665 = vunpack.c.l.b16 %v149
  %v666 = vunpack.c.l.b16 %v150
  %v667 = vunpack.c.l.b16 %v151
  %v668 = vunpack.c.l.b16 %v152
  %v669 = vunpack.c.l.b16 %v153
  %v670 = vunpack.c.l.b16 %v154
  %v671 = vunpack.c.l.b16 %v155
  %v672 = vunpack.c.l.b16 %v156
  %v673 = vunpack.c.l.b16 %v157
  %v674 = vunpack.c.l.b16 %v158
  %v675 = vunpack.c.l.b16 %v159
  %v676 = vunpack.c.l.b16 %v160
  %v677 = vunpack.c.l.b16 %v161
  %v678 = vunpack.c.l.b16 %v162
  %v679 = vunpack.c.l.b16 %v163
  %v680 = vunpack.c.l.b16 %v164
  %v681 = vunpack.c.l.b16 %v165
  %v682 = vunpack.c.l.b16 %v166
  %v683 = vunpack.c.l.b16 %v167
  %v684 = vunpack.c.l.b16 %v168
  %v685 = vunpack.c.l.b16 %v169
  %v686 = vunpack.c.l.b16 %v170
  %v687 = vunpack.c.l.b16 %v171
  %v688 = vunpack.c.l.b16 %v172
  %v689 = vunpack.c.l.b16 %v173
  %v690 = vunpack.c.l.b16 %v174
  %v691 = vunpack.c.l.b16 %v175
  %v692 = vunpack.c.l.b16 %v176
  %v693 = vunpack.c.l.b16 %v177
  %v694 = vunpack.c.l.b16 %v178
  %v695 = vunpack.c.l.b16 %v179
  %v696 = vunpack.c.l.b16 %v180
  %v697 = vunpack.c.l.b16 %v181
  %v698 = vunpack.c.l.b16 %v182
  %v699 = vunpack.c.l.b16 %v183
  %v700 = vunpack.c.l.b16 %v184
  %v701 = vunpack.c.l.b16 %v185
  %v702 = vunpack.c.l.b16 %v186
  %v703 = vunpack.c.l.b16 %v187
  %v704 = vunpack.c.l.b16 %v188
  %v705 = vunpack.c.l.b16 %v189
  %v706 = vunpack.c.l.b16 %v190
  %v707 = vunpack.c.l.b16 %v191
  %v708 = vunpack.c.l.b16 %v192
  %v709 = vunpack.c.l.b16 %v193
  %v710 = vunpack.c.l.b16 %v194
  %v711 = vunpack.c.l.b16 %v195
  %v712 = vunpack.c.l.b16 %v196
  %v713 = vunpack.c.l.b16 %v197
  %v714 = vunpack.c.l.b16 %v198
  %v715 = vunpack.c.l.b16 %v199
  %v716 = vunpack.c.l.b16 %v200
  %v717 = vunpack.c.l.b16 %v201
  %v718 = vunpack.c.l.b16 %v202
  %v719 = vunpack.c.l.b16 %v203
  %v720 = vunpack.c.l.b16 %v204
  %v721 = vunpack.c.l.b16 %v205
  %v722 = vunpack.c.l.b16 %v206
  %v723 = vunpack.c.l.b16 %v207
  %v724 = vunpack.c.l.b16 %v208
  %v725 = vunpack.c.l.b16 %v209
  %v726 = vunpack.c.l.b16 %v210
  %v727 = vunpack.c.l.b16 %v211
  %v728 = vunpack.c.l.b16 %v212
  %v729 = vunpack.c.l.b16 %v213
  %v730 = vunpack.c.l.b16 %v214
  %v731 = vunpack.c.l.b16 %v215
  %v732 = vunpack.c.l.b16 %v216
  %v733 = vunpack.c.l.b16 %v217
  %v734 = vunpack.c.l.b16 %v218
  %v735 = vunpack.c.l.b16 %v219
  %v736 = vunpack.c.l.b16 %v220
  %v737 = vunpack.c.l.b16 %v221
  %v738 = vunpack.c.l.b16 %v222
  %v739 = vunpack.c.l.b16 %v223
  %v740 = vunpack.c.l.b16 %v224
  %v741 = vunpack.c.l.b16 %v225
  %v742 = vunpack.c.l.b16 %v226
  %v743 = vunpack.c.l.b16 %v227
  %v744 = vunpack.c.l.b16 %v228
  %v745 = vunpack.c.l.b16 %v229
  %v746 = vunpack.c.l.b16 %v230
  %v747 = vunpack.c.l.b16 %v231
  %v748 = vunpack.c.l.b16 %v232
  %v749 = vunpack.c.l.b16 %v233
  %v750 = vunpack.c.l.b16 %v234
  %v751 = vunpack.c.l.b16 %v235
  %v752 = vunpack.c.l.b16 %v236
  %v753 = vunpack.c.l.b16 %v237
  %v754 = vunpack.c.l.b16 %v238
  %v755 = vunpack.c.l.b16 %v239
  %v756 = vunpack.c.l.b16 %v240
  %v757 = vunpack.c.l.b16 %v241
  %v758 = vunpack.c.l.b16 %v242
  %v759 = vunpack.c.l.b16 %v243
  %v760 = vunpack.c.l.b16 %v244
  %v761 = vunpack.c.l.b16 %v245
  %v762 = vunpack.c.l.b16 %v246
  %v763 = vunpack.c.l.b16 %v247
  %v764 = vunpack.c.l.b16 %v248
  %v765 = vunpack.c.l.b16 %v249
  %v766 = vunpack.c.l.b16 %v250
  %v767 = vunpack.c.l.b16 %v251
  %v768 = vunpack.c.l.b16 %v252
  %v769 = vunpack.c.l.b16 %v253
  %v770 = vunpack.c.l.b16 %v254
  %v771 = vunpack.c.l.b16 %v255
  %v772 = vunpack.c.l.b16 %v256
  %v773 = vunpack.c.l.b16 %v257
  %v774 = vunpack.c.l.b16 %v258
  %v775 = vunpack.c.l.b16 %v259
  %v776 = vunpack.c.l.b16 %v260
  %v777 = vunpack.c.l.b16 %v261
  %v778 = vunpack.c.l.b16 %v262
  %v779 = vunpack.c.l.b16 %v263
  %v780 = vunpack.c.l.b16 %v264
  %v781 = vunpack.c.l.b16 %v265
  %v782 = vunpack.c.l.b16 %v266
  %v783 = vunpack.c.l.b16 %v267
  %v784 = vunpack.c.l.b16 %v268
  %v785 = vunpack.c.l.b16 %v269
  %v786 = vunpack.c.l.b16 %v270
  %v787 = vunpack.c.l.b16 %v271
  %v788 = vunpack.c.l.b16 %v272
  %v789 = vunpack.c.l.b16 %v273
  %v790 = vunpack.c.l.b16 %v274
  %v791 = vunpack.c.l.b16 %v275
  %v792 = vunpack.c.l.b16 %v276
  %v793 = vunpack.c.l.b16 %v277
  %v794 = vunpack.c.l.b16 %v278
  %v795 = vunpack.c.l.b16 %v279
  %v796 = vpack.c.b16 %v541, %v540
  %v797 = vpack.c.b16 %v543, %v542
  %v798 = vpack.c.b16 %v545, %v544
  %v799 = vpack.c.b16 %v547, %v546
  %v800 = vpack.c.b16 %v549, %v548
  %v801 = vpack.c.b16 %v551, %v550
  %v802 = vpack.c.b16 %v553, %v552
  %v803 = vpack.c.b16 %v555, %v554
  %v804 = vpack.c.b16 %v557, %v556
  %v805 = vpack.c.b16 %v559, %v558
  %v806 = vpack.c.b16 %v561, %v560
  %v807 = vpack.c.b16 %v563, %v562
  %v808 = vpack.c.b16 %v565, %v564
  %v809 = vpack.c.b16 %v567, %v566
  %v810 = vpack.c.b16 %v569, %v568
  %v811 = vpack.c.b16 %v571, %v570
  %v812 = vpack.c.b16 %v573, %v572
  %v813 = vpack.c.b16 %v575, %v574
  %v814 = vpack.c.b16 %v577, %v576
  %v815 = vpack.c.b16 %v579, %v578
  %v816 = vpack.c.b16 %v581, %v580
  %v817 = vpack.c.b16 %v583, %v582
  %v818 = vpack.c.b16 %v585, %v584
  %v819 = vpack.c.b16 %v587, %v586
  %v820 = vpack.c.b16 %v589, %v588
  %v821 = vpack.c.b16 %v591, %v590
  %v822 = vpack.c.b16 %v593, %v592
  %v823 = vpack.c.b16 %v595, %v594
  %v824 = vpack.c.b16 %v597, %v596
  %v825 = vpack.c.b16 %v599, %v598
  %v826 = vpack.c.b16 %v601, %v600
  %v827 = vpack.c.b16 %v603, %v602
  %v828 = vpack.c.b16 %v605, %v604
  %v829 = vpack.c.b16 %v607, %v606
  %v830 = vpack.c.b16 %v609, %v608
  %v831 = vpack.c.b16 %v611, %v610
  %v832 = vpack.c.b16 %v613, %v612
  %v833 = vpack.c.b16 %v615, %v614
  %v834 = vpack.c.b16 %v617, %v616
  %v835 = vpack.c.b16 %v619, %v618
  %v836 = vpack.c.b16 %v621, %v620
  %v837 = vpack.c.b16 %v623, %v622
  %v838 = vpack.c.b16 %v625, %v624
  %v839 = vpack.c.b16 %v627, %v626
  %v840 = vpack.c.b16 %v629, %v628
  %v841 = vpack.c.b16 %v631, %v630
  %v842 = vpack.c.b16 %v633, %v632
  %v843 = vpack.c.b16 %v635, %v634
  %v844 = vpack.c.b16 %v637, %v636
  %v845 = vpack.c.b16 %v639, %v638
  %v846 = vpack.c.b16 %v641, %v640
  %v847 = vpack.c.b16 %v643, %v642
  %v848 = vpack.c.b16 %v645, %v644
  %v849 = vpack.c.b16 %v647, %v646
  %v850 = vpack.c.b16 %v649, %v648
  %v851 = vpack.c.b16 %v651, %v650
  %v852 = vpack.c.b16 %v653, %v652
  %v853 = vpack.c.b16 %v655, %v654
  %v854 = vpack.c.b16 %v657, %v656
  %v855 = vpack.c.b16 %v659, %v658
  %v856 = vpack.c.b16 %v661, %v660
  %v857 = vpack.c.b16 %v663, %v662
  %v858 = vpack.c.b16 %v665, %v664
  %v859 = vpack.c.b16 %v667, %v666
  %v860 = vpack.c.b16 %v669, %v668
  %v861 = vpack.c.b16 %v671, %v670
  %v862 = vpack.c.b16 %v673, %v672
  %v863 = vpack.c.b16 %v675, %v674
  %v864 = vpack.c.b16 %v677, %v676
  %v865 = vpack.c.b16 %v679, %v678
  %v866 = vpack.c.b16 %v681, %v680
  %v867 = vpack.c.b16 %v683, %v682
  %v868 = vpack.c.b16 %v685, %v684
  %v869 = vpack.c.b16 %v687, %v686
  %v870 = vpack.c.b16 %v689, %v688
  %v871 = vpack.c.b16 %v691, %v690
  %v872 = vpack.c.b16 %v693, %v692
  %v873 = vpack.c.b16 %v695, %v694
  %v874 = vpack.c.b16 %v697, %v696
  %v875 = vpack.c.b16 %v699, %v698
  %v876 = vpack.c.b16 %v701, %v700
  %v877 = vpack.c.b16 %v703, %v702
  %v878 = vpack.c.b16 %v705, %v704
  %v879 = vpack.c.b16 %v707, %v706
  %v880 = vpack.c.b16 %v709, %v708
  %v881 = vpack.c.b16 %v711, %v710
  %v882 = vpack.c.b16 %v713, %v712
  %v883 = vpack.c.b16 %v715, %v714
  %v884 = vpack.c.b16 %v717, %v716
  %v885 = vpack.c.b16 %v719, %v718
  %v886 = vpack.c.b16 %v721, %v720
  %v887 = vpack.c.b16 %v723, %v722
  %v888 = vpack.c.b16 %v725, %v724
  %v889 = vpack.c.b16 %v727, %v726
  %v890 = vpack.c.b16 %v729, %v728
  %v891 = vpack.c.b16 %v731, %v730
  %v892 = vpack.c.b16 %v733, %v732
  %v893 = vpack.c.b16 %v735, %v734
  %v894 = vpack.c.b16 %v737, %v736
  %v895 = vpack.c.b16 %v739, %v738
  %v896 = vpack.c.b16 %v741, %v740
  %v897 = vpack.c.b16 %v743, %v742
  %v898 = vpack.c.b16 %v745, %v744
  %v899 = vpack.c.b16 %v747, %v746
  %v900 = vpack.c.b16 %v749, %v748
  %v901 = vpack.c.b16 %v751, %v750
  %v902 = vpack.c.b16 %v753, %v752
  %v903 = vpack.c.b16 %v755, %v754
  %v904 = vpack.c.b16 %v757, %v756
  %v905 = vpack.c.b16 %v759, %v758
  %v906 = vpack.c.b16 %v761, %v760
  %v907 = vpack.c.b16 %v763, %v762
  %v908 = vpack.c.b16 %v765, %v764
  %v909 = vpack.c.b16 %v767, %v766
  %v910 = vpack.c.b16 %v769, %v768
  %v911 = vpack.c.b16 %v771, %v770
  %v912 = vpack.c.b16 %v773, %v772
  %v913 = vpack.c.b16 %v775, %v774
  %v914 = vpack.c.b16 %v777, %v776
  %v915 = vpack.c.b16 %v779, %v778
  %v916 = vpack.c.b16 %v781, %v780
  %v917 = vpack.c.b16 %v783, %v782
  %v918 = vpack.c.b16 %v785, %v784
  %v919 = vpack.c.b16 %v787, %v786
  %v920 = vpack.c.b16 %v789, %v788
  %v921 = vpack.c.b16 %v791, %v790
  %v922 = vpack.c.b16 %v793, %v792
  %v923 = vpack.c.b16 %v795, %v794
  %v928 = vunpack.c.l.b16 %v280
  %v929 = vunpack.c.l.b16 %v281
  %v930 = vunpack.c.l.b16 %v282
  %v931 = vunpack.c.l.b16 %v283
  %v932 = vpack.c.b16 %v929, %v928
  %v933 = vpack.c.b16 %v931, %v930
  %vm935 = vcmask 203776
  %v937 = vsel %vm935, %v796, 0
  %v940 = vsel %vm935, %v797, 0
  %v943 = vsel %vm935, %v798, 0
  %v946 = vsel %vm935, %v799, 0
  %v949 = vsel %vm935, %v800, 0
  %v952 = vsel %vm935, %v801, 0
  %v955 = vsel %vm935, %v802, 0
  %v958 = vsel %vm935, %v803, 0
  %v961 = vsel %vm935, %v804, 0
  %v964 = vsel %vm935, %v805, 0
  %v967 = vsel %vm935, %v806, 0
  %v970 = vsel %vm935, %v807, 0
  %v973 = vsel %vm935, %v808, 0
  %v976 = vsel %vm935, %v809, 0
  %v979 = vsel %vm935, %v810, 0
  %v982 = vsel %vm935, %v811, 0
  %v985 = vsel %vm935, %v812, 0
  %v988 = vsel %vm935, %v813, 0
  %v991 = vsel %vm935, %v814, 0
  %v994 = vsel %vm935, %v815, 0
  %v997 = vsel %vm935, %v816, 0
  %v1000 = vsel %vm935, %v817, 0
  %v1003 = vsel %vm935, %v818, 0
  %v1006 = vsel %vm935, %v819, 0
  %v1009 = vsel %vm935, %v820, 0
  %v1012 = vsel %vm935, %v821, 0
  %v1015 = vsel %vm935, %v822, 0
  %v1018 = vsel %vm935, %v823, 0
  %v1021 = vsel %vm935, %v824, 0
  %v1024 = vsel %vm935, %v825, 0
  %v1027 = vsel %vm935, %v826, 0
  %v1030 = vsel %vm935, %v827, 0
  %v1033 = vsel %vm935, %v828, 0
  %v1036 = vsel %vm935, %v829, 0
  %v1039 = vsel %vm935, %v830, 0
  %v1042 = vsel %vm935, %v831, 0
  %v1045 = vsel %vm935, %v832, 0
  %v1048 = vsel %vm935, %v833, 0
  %v1051 = vsel %vm935, %v834, 0
  %v1054 = vsel %vm935, %v835, 0
  %v1057 = vsel %vm935, %v836, 0
  %v1060 = vsel %vm935, %v837, 0
  %v1063 = vsel %vm935, %v838, 0
  %v1066 = vsel %vm935, %v839, 0
  %v1069 = vsel %vm935, %v840, 0
  %v1072 = vsel %vm935, %v841, 0
  %v1075 = vsel %vm935, %v842, 0
  %v1078 = vsel %vm935, %v843, 0
  %v1081 = vsel %vm935, %v844, 0
  %v1084 = vsel %vm935, %v845, 0
  %v1087 = vsel %vm935, %v846, 0
  %v1090 = vsel %vm935, %v847, 0
  %v1093 = vsel %vm935, %v848, 0
  %v1096 = vsel %vm935, %v849, 0
  %v1099 = vsel %vm935, %v850, 0
  %v1102 = vsel %vm935, %v851, 0
  %v1105 = vsel %vm935, %v852, 0
  %v1108 = vsel %vm935, %v853, 0
  %v1111 = vsel %vm935, %v854, 0
  %v1114 = vsel %vm935, %v855, 0
  %v1117 = vsel %vm935, %v856, 0
  %v1120 = vsel %vm935, %v857, 0
  %v1123 = vsel %vm935, %v858, 0
  %v1126 = vsel %vm935, %v859, 0
  %v1129 = vsel %vm935, %v860, 0
  %v1132 = vsel %vm935, %v861, 0
  %v1135 = vsel %vm935, %v862, 0
  %v1138 = vsel %vm935, %v863, 0
  %v1141 = vsel %vm935, %v864, 0
  %v1144 = vsel %vm935, %v865, 0
  %v1147 = vsel %vm935, %v866, 0
  %v1150 = vsel %vm935, %v867, 0
  %v1153 = vsel %vm935, %v868, 0
  %v1156 = vsel %vm935, %v869, 0
  %v1159 = vsel %vm935, %v870, 0
  %v1162 = vsel %vm935, %v871, 0
  %v1165 = vsel %vm935, %v872, 0
  %v1168 = vsel %vm935, %v873, 0
  %v1171 = vsel %vm935, %v874, 0
  %v1174 = vsel %vm935, %v875, 0
  %v1177 = vsel %vm935, %v876, 0
  %v1180 = vsel %vm935, %v877, 0
  %v1183 = vsel %vm935, %v878, 0
  %v1186 = vsel %vm935, %v879, 0
  %v1189 = vsel %vm935, %v880, 0
  %v1192 = vsel %vm935, %v881, 0
  %v1195 = vsel %vm935, %v882, 0
  %v1198 = vsel %vm935, %v883, 0
  %v1201 = vsel %vm935, %v884, 0
  %v1204 = vsel %vm935, %v885, 0
  %v1207 = vsel %vm935, %v886, 0
  %v1210 = vsel %vm935, %v887, 0
  %v1213 = vsel %vm935, %v888, 0
  %v1216 = vsel %vm935, %v889, 0
  %v1219 = vsel %vm935, %v890, 0
  %v1222 = vsel %vm935, %v891, 0
  %v1225 = vsel %vm935, %v892, 0
  %v1228 = vsel %vm935, %v893, 0
  %v1231 = vsel %vm935, %v894, 0
  %v1234 = vsel %vm935, %v895, 0
  %v1237 = vsel %vm935, %v896, 0
  %v1240 = vsel %vm935, %v897, 0
  %v1243 = vsel %vm935, %v898, 0
  %v1246 = vsel %vm935, %v899, 0
  %v1249 = vsel %vm935, %v900, 0
  %v1252 = vsel %vm935, %v901, 0
  %v1255 = vsel %vm935, %v902, 0
  %v1258 = vsel %vm935, %v903, 0
  %v1261 = vsel %vm935, %v904, 0
  %v1264 = vsel %vm935, %v905, 0
  %v1267 = vsel %vm935, %v906, 0
  %v1270 = vsel %vm935, %v907, 0
  %v1273 = vsel %vm935, %v908, 0
  %v1276 = vsel %vm935, %v909, 0
  %v1279 = vsel %vm935, %v910, 0
  %v1282 = vsel %vm935, %v911, 0
  %v1285 = vsel %vm935, %v912, 0
  %v1288 = vsel %vm935, %v913, 0
  %v1291 = vsel %vm935, %v914, 0
  %v1294 = vsel %vm935, %v915, 0
  %v1297 = vsel %vm935, %v916, 0
  %v1300 = vsel %vm935, %v917, 0
  %v1303 = vsel %vm935, %v918, 0
  %v1306 = vsel %vm935, %v919, 0
  %v1309 = vsel %vm935, %v920, 0
  %v1312 = vsel %vm935, %v921, 0
  %v1315 = vsel %vm935, %v922, 0
  %v1318 = vsel %vm935, %v923, 0
  %vm1320 = vcmask 1043456
  %vm1321 = vcmask 1044480
  %v1322 = vsel %vm1320, 4294967295, 65535
  %v1323 = vsel %vm1321, %v1322, 0
  %v1325 = vand.u32 %v933, %v1323
  %1327 = vmatprep.subr.bf16.mxu0 0
  %1328 = vmatpush1.bf16.msra.mxu0 %v932
  %1329 = vmatprep.subr.bf16.mxu0 0
  %1330 = vmatpush1.bf16.msra.mxu0 %v1325
  %1331 = vmatprep.subr.bf16.mxu0 0
  %1332 = vmatpush1.bf16.msra.mxu0 0
  %1333 = vmatprep.subr.bf16.mxu0 0
  %1334 = vmatpush1.bf16.msra.mxu0 0
  %1335 = vmatprep.subr.bf16.mxu0 0
  %1336 = vmatpush1.bf16.msra.mxu0 0
  %1337 = vmatprep.subr.bf16.mxu0 0
  %1338 = vmatpush1.bf16.msra.mxu0 0
  %1339 = vmatprep.subr.bf16.mxu0 0
  %1340 = vmatpush1.bf16.msra.mxu0 0
  %1341 = vmatprep.subr.bf16.mxu0 0
  %1342 = vmatpush1.bf16.msra.mxu0 0
  %1343 = vmatprep.subr.bf16.mxu0 0
  %1344 = vmatpush1.bf16.msra.mxu0 0
  %1345 = vmatprep.subr.bf16.mxu0 0
  %1346 = vmatpush1.bf16.msra.mxu0 0
  %1347 = vmatprep.subr.bf16.mxu0 0
  %1348 = vmatpush1.bf16.msra.mxu0 0
  %1349 = vmatprep.subr.bf16.mxu0 0
  %1350 = vmatpush1.bf16.msra.mxu0 0
  %1351 = vmatprep.subr.bf16.mxu0 0
  %1352 = vmatpush1.bf16.msra.mxu0 0
  %1353 = vmatprep.subr.bf16.mxu0 0
  %1354 = vmatpush1.bf16.msra.mxu0 0
  %1355 = vmatprep.subr.bf16.mxu0 0
  %1356 = vmatpush1.bf16.msra.mxu0 0
  %1357 = vmatprep.subr.bf16.mxu0 0
  %1358 = vmatpush1.bf16.msra.mxu0 0
  %1359 = vmatprep.mubr.bf16.mxu0 0
  %1360 = vmatmul.mubr.bf16.gmra.mrb[0].mxu0 %v937
  %v1361 = vpop.f32.mrb[0].mxu0
  %v1362 = vadd.f32 0.0, %v1361
  %v1363 = vpop.f32.mrb[0].mxu0
  %v1364 = vpop.f32.mrb[0].mxu0
  %v1365 = vadd.f32 0.0, %v1364
  %v1366 = vpop.f32.mrb[0].mxu0
  %1367 = vmatprep.mubr.bf16.mxu0 0
  %1368 = vmatmul.mubr.bf16.gmra.mrb[0].mxu0 %v940
  %v1369 = vpop.f32.mrb[0].mxu0
  %v1370 = vadd.f32 0.0, %v1369
  %v1371 = vpop.f32.mrb[0].mxu0
  %v1372 = vpop.f32.mrb[0].mxu0
  %v1373 = vadd.f32 0.0, %v1372
  %v1374 = vpop.f32.mrb[0].mxu0
  %1375 = vmatprep.mubr.bf16.mxu0 0
  %1376 = vmatmul.mubr.bf16.gmra.mrb[0].mxu0 %v943
  %v1377 = vpop.f32.mrb[0].mxu0
  %v1378 = vadd.f32 0.0, %v1377
  %v1379 = vpop.f32.mrb[0].mxu0
  %v1380 = vpop.f32.mrb[0].mxu0
  %v1381 = vadd.f32 0.0, %v1380
  %v1382 = vpop.f32.mrb[0].mxu0
  %1383 = vmatprep.mubr.bf16.mxu0 0
  %1384 = vmatmul.mubr.bf16.gmra.mrb[0].mxu0 %v946
  %v1385 = vpop.f32.mrb[0].mxu0
  %v1386 = vadd.f32 0.0, %v1385
  %v1387 = vpop.f32.mrb[0].mxu0
  %v1388 = vpop.f32.mrb[0].mxu0
  %v1389 = vadd.f32 0.0, %v1388
  %v1390 = vpop.f32.mrb[0].mxu0
  %1391 = vmatprep.mubr.bf16.mxu0 0
  %1392 = vmatmul.mubr.bf16.gmra.mrb[0].mxu0 %v949
  %v1393 = vpop.f32.mrb[0].mxu0
  %v1394 = vadd.f32 0.0, %v1393
  %v1395 = vpop.f32.mrb[0].mxu0
  %v1396 = vpop.f32.mrb[0].mxu0
  %v1397 = vadd.f32 0.0, %v1396
  %v1398 = vpop.f32.mrb[0].mxu0
  %1399 = vmatprep.mubr.bf16.mxu0 0
  %1400 = vmatmul.mubr.bf16.gmra.mrb[0].mxu0 %v952
  %v1401 = vpop.f32.mrb[0].mxu0
  %v1402 = vadd.f32 0.0, %v1401
  %v1403 = vpop.f32.mrb[0].mxu0
  %v1404 = vpop.f32.mrb[0].mxu0
  %v1405 = vadd.f32 0.0, %v1404
  %v1406 = vpop.f32.mrb[0].mxu0
  %1407 = vmatprep.mubr.bf16.mxu0 0
  %1408 = vmatmul.mubr.bf16.gmra.mrb[0].mxu0 %v955
  %v1409 = vpop.f32.mrb[0].mxu0
  %v1410 = vadd.f32 0.0, %v1409
  %v1411 = vpop.f32.mrb[0].mxu0
  %v1412 = vpop.f32.mrb[0].mxu0
  %v1413 = vadd.f32 0.0, %v1412
  %v1414 = vpop.f32.mrb[0].mxu0
  %1415 = vmatprep.mubr.bf16.mxu0 0
  %1416 = vmatmul.mubr.bf16.gmra.mrb[0].mxu0 %v958
  %v1417 = vpop.f32.mrb[0].mxu0
  %v1418 = vadd.f32 0.0, %v1417
  %v1419 = vpop.f32.mrb[0].mxu0
  %v1420 = vpop.f32.mrb[0].mxu0
  %v1421 = vadd.f32 0.0, %v1420
  %v1422 = vpop.f32.mrb[0].mxu0
  %1423 = vmatprep.mubr.bf16.mxu0 0
  %1424 = vmatmul.mubr.bf16.gmra.mrb[0].mxu0 %v961
  %v1425 = vpop.f32.mrb[0].mxu0
  %v1426 = vadd.f32 0.0, %v1425
  %v1427 = vpop.f32.mrb[0].mxu0
  %v1428 = vpop.f32.mrb[0].mxu0
  %v1429 = vadd.f32 0.0, %v1428
  %v1430 = vpop.f32.mrb[0].mxu0
  %1431 = vmatprep.mubr.bf16.mxu0 0
  %1432 = vmatmul.mubr.bf16.gmra.mrb[0].mxu0 %v964
  %v1433 = vpop.f32.mrb[0].mxu0
  %v1434 = vadd.f32 0.0, %v1433
  %v1435 = vpop.f32.mrb[0].mxu0
  %v1436 = vpop.f32.mrb[0].mxu0
  %v1437 = vadd.f32 0.0, %v1436
  %v1438 = vpop.f32.mrb[0].mxu0
  %1439 = vmatprep.mubr.bf16.mxu0 0
  %1440 = vmatmul.mubr.bf16.gmra.mrb[0].mxu0 %v967
  %v1441 = vpop.f32.mrb[0].mxu0
  %v1442 = vadd.f32 0.0, %v1441
  %v1443 = vpop.f32.mrb[0].mxu0
  %v1444 = vpop.f32.mrb[0].mxu0
  %v1445 = vadd.f32 0.0, %v1444
  %v1446 = vpop.f32.mrb[0].mxu0
  %1447 = vmatprep.mubr.bf16.mxu0 0
  %1448 = vmatmul.mubr.bf16.gmra.mrb[0].mxu0 %v970
  %v1449 = vpop.f32.mrb[0].mxu0
  %v1450 = vadd.f32 0.0, %v1449
  %v1451 = vpop.f32.mrb[0].mxu0
  %v1452 = vpop.f32.mrb[0].mxu0
  %v1453 = vadd.f32 0.0, %v1452
  %v1454 = vpop.f32.mrb[0].mxu0
  %1455 = vmatprep.mubr.bf16.mxu0 0
  %1456 = vmatmul.mubr.bf16.gmra.mrb[0].mxu0 %v973
  %v1457 = vpop.f32.mrb[0].mxu0
  %v1458 = vadd.f32 0.0, %v1457
  %v1459 = vpop.f32.mrb[0].mxu0
  %v1460 = vpop.f32.mrb[0].mxu0
  %v1461 = vadd.f32 0.0, %v1460
  %v1462 = vpop.f32.mrb[0].mxu0
  %1463 = vmatprep.mubr.bf16.mxu0 0
  %1464 = vmatmul.mubr.bf16.gmra.mrb[0].mxu0 %v976
  %v1465 = vpop.f32.mrb[0].mxu0
  %v1466 = vadd.f32 0.0, %v1465
  %v1467 = vpop.f32.mrb[0].mxu0
  %v1468 = vpop.f32.mrb[0].mxu0
  %v1469 = vadd.f32 0.0, %v1468
  %v1470 = vpop.f32.mrb[0].mxu0
  %1471 = vmatprep.mubr.bf16.mxu0 0
  %1472 = vmatmul.mubr.bf16.gmra.mrb[0].mxu0 %v979
  %v1473 = vpop.f32.mrb[0].mxu0
  %v1474 = vadd.f32 0.0, %v1473
  %v1475 = vpop.f32.mrb[0].mxu0
  %v1476 = vpop.f32.mrb[0].mxu0
  %v1477 = vadd.f32 0.0, %v1476
  %v1478 = vpop.f32.mrb[0].mxu0
  %1479 = vmatprep.mubr.bf16.mxu0 0
  %1480 = vmatmul.mubr.bf16.gmra.mrb[0].mxu0 %v982
  %v1481 = vpop.f32.mrb[0].mxu0
  %v1482 = vadd.f32 0.0, %v1481
  %v1483 = vpop.f32.mrb[0].mxu0
  %v1484 = vpop.f32.mrb[0].mxu0
  %v1485 = vadd.f32 0.0, %v1484
  %v1486 = vpop.f32.mrb[0].mxu0
  %1487 = vmatprep.mubr.bf16.mxu0 0
  %1488 = vmatmul.mubr.bf16.gmra.mrb[0].mxu0 %v985
  %v1489 = vpop.f32.mrb[0].mxu0
  %v1490 = vadd.f32 0.0, %v1489
  %v1491 = vpop.f32.mrb[0].mxu0
  %v1492 = vpop.f32.mrb[0].mxu0
  %v1493 = vadd.f32 0.0, %v1492
  %v1494 = vpop.f32.mrb[0].mxu0
  %1495 = vmatprep.mubr.bf16.mxu0 0
  %1496 = vmatmul.mubr.bf16.gmra.mrb[0].mxu0 %v988
  %v1497 = vpop.f32.mrb[0].mxu0
  %v1498 = vadd.f32 0.0, %v1497
  %v1499 = vpop.f32.mrb[0].mxu0
  %v1500 = vpop.f32.mrb[0].mxu0
  %v1501 = vadd.f32 0.0, %v1500
  %v1502 = vpop.f32.mrb[0].mxu0
  %1503 = vmatprep.mubr.bf16.mxu0 0
  %1504 = vmatmul.mubr.bf16.gmra.mrb[0].mxu0 %v991
  %v1505 = vpop.f32.mrb[0].mxu0
  %v1506 = vadd.f32 0.0, %v1505
  %v1507 = vpop.f32.mrb[0].mxu0
  %v1508 = vpop.f32.mrb[0].mxu0
  %v1509 = vadd.f32 0.0, %v1508
  %v1510 = vpop.f32.mrb[0].mxu0
  %1511 = vmatprep.mubr.bf16.mxu0 0
  %1512 = vmatmul.mubr.bf16.gmra.mrb[0].mxu0 %v994
  %v1513 = vpop.f32.mrb[0].mxu0
  %v1514 = vadd.f32 0.0, %v1513
  %v1515 = vpop.f32.mrb[0].mxu0
  %v1516 = vpop.f32.mrb[0].mxu0
  %v1517 = vadd.f32 0.0, %v1516
  %v1518 = vpop.f32.mrb[0].mxu0
  %1519 = vmatprep.mubr.bf16.mxu0 0
  %1520 = vmatmul.mubr.bf16.gmra.mrb[0].mxu0 %v997
  %v1521 = vpop.f32.mrb[0].mxu0
  %v1522 = vadd.f32 0.0, %v1521
  %v1523 = vpop.f32.mrb[0].mxu0
  %v1524 = vpop.f32.mrb[0].mxu0
  %v1525 = vadd.f32 0.0, %v1524
  %v1526 = vpop.f32.mrb[0].mxu0
  %1527 = vmatprep.mubr.bf16.mxu0 0
  %1528 = vmatmul.mubr.bf16.gmra.mrb[0].mxu0 %v1000
  %v1529 = vpop.f32.mrb[0].mxu0
  %v1530 = vadd.f32 0.0, %v1529
  %v1531 = vpop.f32.mrb[0].mxu0
  %v1532 = vpop.f32.mrb[0].mxu0
  %v1533 = vadd.f32 0.0, %v1532
  %v1534 = vpop.f32.mrb[0].mxu0
  %1535 = vmatprep.mubr.bf16.mxu0 0
  %1536 = vmatmul.mubr.bf16.gmra.mrb[0].mxu0 %v1003
  %v1537 = vpop.f32.mrb[0].mxu0
  %v1538 = vadd.f32 0.0, %v1537
  %v1539 = vpop.f32.mrb[0].mxu0
  %v1540 = vpop.f32.mrb[0].mxu0
  %v1541 = vadd.f32 0.0, %v1540
  %v1542 = vpop.f32.mrb[0].mxu0
  %1543 = vmatprep.mubr.bf16.mxu0 0
  %1544 = vmatmul.mubr.bf16.gmra.mrb[0].mxu0 %v1006
  %v1545 = vpop.f32.mrb[0].mxu0
  %v1546 = vadd.f32 0.0, %v1545
  %v1547 = vpop.f32.mrb[0].mxu0
  %v1548 = vpop.f32.mrb[0].mxu0
  %v1549 = vadd.f32 0.0, %v1548
  %v1550 = vpop.f32.mrb[0].mxu0
  %1551 = vmatprep.mubr.bf16.mxu0 0
  %1552 = vmatmul.mubr.bf16.gmra.mrb[0].mxu0 %v1009
  %v1553 = vpop.f32.mrb[0].mxu0
  %v1554 = vadd.f32 0.0, %v1553
  %v1555 = vpop.f32.mrb[0].mxu0
  %v1556 = vpop.f32.mrb[0].mxu0
  %v1557 = vadd.f32 0.0, %v1556
  %v1558 = vpop.f32.mrb[0].mxu0
  %1559 = vmatprep.mubr.bf16.mxu0 0
  %1560 = vmatmul.mubr.bf16.gmra.mrb[0].mxu0 %v1012
  %v1561 = vpop.f32.mrb[0].mxu0
  %v1562 = vadd.f32 0.0, %v1561
  %v1563 = vpop.f32.mrb[0].mxu0
  %v1564 = vpop.f32.mrb[0].mxu0
  %v1565 = vadd.f32 0.0, %v1564
  %v1566 = vpop.f32.mrb[0].mxu0
  %1567 = vmatprep.mubr.bf16.mxu0 0
  %1568 = vmatmul.mubr.bf16.gmra.mrb[0].mxu0 %v1015
  %v1569 = vpop.f32.mrb[0].mxu0
  %v1570 = vadd.f32 0.0, %v1569
  %v1571 = vpop.f32.mrb[0].mxu0
  %v1572 = vpop.f32.mrb[0].mxu0
  %v1573 = vadd.f32 0.0, %v1572
  %v1574 = vpop.f32.mrb[0].mxu0
  %1575 = vmatprep.mubr.bf16.mxu0 0
  %1576 = vmatmul.mubr.bf16.gmra.mrb[0].mxu0 %v1018
  %v1577 = vpop.f32.mrb[0].mxu0
  %v1578 = vadd.f32 0.0, %v1577
  %v1579 = vpop.f32.mrb[0].mxu0
  %v1580 = vpop.f32.mrb[0].mxu0
  %v1581 = vadd.f32 0.0, %v1580
  %v1582 = vpop.f32.mrb[0].mxu0
  %1583 = vmatprep.mubr.bf16.mxu0 0
  %1584 = vmatmul.mubr.bf16.gmra.mrb[0].mxu0 %v1021
  %v1585 = vpop.f32.mrb[0].mxu0
  %v1586 = vadd.f32 0.0, %v1585
  %v1587 = vpop.f32.mrb[0].mxu0
  %v1588 = vpop.f32.mrb[0].mxu0
  %v1589 = vadd.f32 0.0, %v1588
  %v1590 = vpop.f32.mrb[0].mxu0
  %1591 = vmatprep.mubr.bf16.mxu0 0
  %1592 = vmatmul.mubr.bf16.gmra.mrb[0].mxu0 %v1024
  %v1593 = vpop.f32.mrb[0].mxu0
  %v1594 = vadd.f32 0.0, %v1593
  %v1595 = vpop.f32.mrb[0].mxu0
  %v1596 = vpop.f32.mrb[0].mxu0
  %v1597 = vadd.f32 0.0, %v1596
  %v1598 = vpop.f32.mrb[0].mxu0
  %1599 = vmatprep.mubr.bf16.mxu0 0
  %1600 = vmatmul.mubr.bf16.gmra.mrb[0].mxu0 %v1027
  %v1601 = vpop.f32.mrb[0].mxu0
  %v1602 = vadd.f32 0.0, %v1601
  %v1603 = vpop.f32.mrb[0].mxu0
  %v1604 = vpop.f32.mrb[0].mxu0
  %v1605 = vadd.f32 0.0, %v1604
  %v1606 = vpop.f32.mrb[0].mxu0
  %1607 = vmatprep.mubr.bf16.mxu0 0
  %1608 = vmatmul.mubr.bf16.gmra.mrb[0].mxu0 %v1030
  %v1609 = vpop.f32.mrb[0].mxu0
  %v1610 = vadd.f32 0.0, %v1609
  %v1611 = vpop.f32.mrb[0].mxu0
  %v1612 = vpop.f32.mrb[0].mxu0
  %v1613 = vadd.f32 0.0, %v1612
  %v1614 = vpop.f32.mrb[0].mxu0
  %1615 = vmatprep.mubr.bf16.mxu0 0
  %1616 = vmatmul.mubr.bf16.gmra.mrb[0].mxu0 %v1033
  %v1617 = vpop.f32.mrb[0].mxu0
  %v1618 = vadd.f32 0.0, %v1617
  %v1619 = vpop.f32.mrb[0].mxu0
  %v1620 = vpop.f32.mrb[0].mxu0
  %v1621 = vadd.f32 0.0, %v1620
  %v1622 = vpop.f32.mrb[0].mxu0
  %1623 = vmatprep.mubr.bf16.mxu0 0
  %1624 = vmatmul.mubr.bf16.gmra.mrb[0].mxu0 %v1036
  %v1625 = vpop.f32.mrb[0].mxu0
  %v1626 = vadd.f32 0.0, %v1625
  %v1627 = vpop.f32.mrb[0].mxu0
  %v1628 = vpop.f32.mrb[0].mxu0
  %v1629 = vadd.f32 0.0, %v1628
  %v1630 = vpop.f32.mrb[0].mxu0
  %1631 = vmatprep.mubr.bf16.mxu0 0
  %1632 = vmatmul.mubr.bf16.gmra.mrb[0].mxu0 %v1039
  %v1633 = vpop.f32.mrb[0].mxu0
  %v1634 = vadd.f32 0.0, %v1633
  %v1635 = vpop.f32.mrb[0].mxu0
  %v1636 = vpop.f32.mrb[0].mxu0
  %v1637 = vadd.f32 0.0, %v1636
  %v1638 = vpop.f32.mrb[0].mxu0
  %1639 = vmatprep.mubr.bf16.mxu0 0
  %1640 = vmatmul.mubr.bf16.gmra.mrb[0].mxu0 %v1042
  %v1641 = vpop.f32.mrb[0].mxu0
  %v1642 = vadd.f32 0.0, %v1641
  %v1643 = vpop.f32.mrb[0].mxu0
  %v1644 = vpop.f32.mrb[0].mxu0
  %v1645 = vadd.f32 0.0, %v1644
  %v1646 = vpop.f32.mrb[0].mxu0
  %1647 = vmatprep.mubr.bf16.mxu0 0
  %1648 = vmatmul.mubr.bf16.gmra.mrb[0].mxu0 %v1045
  %v1649 = vpop.f32.mrb[0].mxu0
  %v1650 = vadd.f32 0.0, %v1649
  %v1651 = vpop.f32.mrb[0].mxu0
  %v1652 = vpop.f32.mrb[0].mxu0
  %v1653 = vadd.f32 0.0, %v1652
  %v1654 = vpop.f32.mrb[0].mxu0
  %1655 = vmatprep.mubr.bf16.mxu0 0
  %1656 = vmatmul.mubr.bf16.gmra.mrb[0].mxu0 %v1048
  %v1657 = vpop.f32.mrb[0].mxu0
  %v1658 = vadd.f32 0.0, %v1657
  %v1659 = vpop.f32.mrb[0].mxu0
  %v1660 = vpop.f32.mrb[0].mxu0
  %v1661 = vadd.f32 0.0, %v1660
  %v1662 = vpop.f32.mrb[0].mxu0
  %1663 = vmatprep.mubr.bf16.mxu0 0
  %1664 = vmatmul.mubr.bf16.gmra.mrb[0].mxu0 %v1051
  %v1665 = vpop.f32.mrb[0].mxu0
  %v1666 = vadd.f32 0.0, %v1665
  %v1667 = vpop.f32.mrb[0].mxu0
  %v1668 = vpop.f32.mrb[0].mxu0
  %v1669 = vadd.f32 0.0, %v1668
  %v1670 = vpop.f32.mrb[0].mxu0
  %1671 = vmatprep.mubr.bf16.mxu0 0
  %1672 = vmatmul.mubr.bf16.gmra.mrb[0].mxu0 %v1054
  %v1673 = vpop.f32.mrb[0].mxu0
  %v1674 = vadd.f32 0.0, %v1673
  %v1675 = vpop.f32.mrb[0].mxu0
  %v1676 = vpop.f32.mrb[0].mxu0
  %v1677 = vadd.f32 0.0, %v1676
  %v1678 = vpop.f32.mrb[0].mxu0
  %1679 = vmatprep.mubr.bf16.mxu0 0
  %1680 = vmatmul.mubr.bf16.gmra.mrb[0].mxu0 %v1057
  %v1681 = vpop.f32.mrb[0].mxu0
  %v1682 = vadd.f32 0.0, %v1681
  %v1683 = vpop.f32.mrb[0].mxu0
  %v1684 = vpop.f32.mrb[0].mxu0
  %v1685 = vadd.f32 0.0, %v1684
  %v1686 = vpop.f32.mrb[0].mxu0
  %1687 = vmatprep.mubr.bf16.mxu0 0
  %1688 = vmatmul.mubr.bf16.gmra.mrb[0].mxu0 %v1060
  %v1689 = vpop.f32.mrb[0].mxu0
  %v1690 = vadd.f32 0.0, %v1689
  %v1691 = vpop.f32.mrb[0].mxu0
  %v1692 = vpop.f32.mrb[0].mxu0
  %v1693 = vadd.f32 0.0, %v1692
  %v1694 = vpop.f32.mrb[0].mxu0
  %1695 = vmatprep.mubr.bf16.mxu0 0
  %1696 = vmatmul.mubr.bf16.gmra.mrb[0].mxu0 %v1063
  %v1697 = vpop.f32.mrb[0].mxu0
  %v1698 = vadd.f32 0.0, %v1697
  %v1699 = vpop.f32.mrb[0].mxu0
  %v1700 = vpop.f32.mrb[0].mxu0
  %v1701 = vadd.f32 0.0, %v1700
  %v1702 = vpop.f32.mrb[0].mxu0
  %1703 = vmatprep.mubr.bf16.mxu0 0
  %1704 = vmatmul.mubr.bf16.gmra.mrb[0].mxu0 %v1066
  %v1705 = vpop.f32.mrb[0].mxu0
  %v1706 = vadd.f32 0.0, %v1705
  %v1707 = vpop.f32.mrb[0].mxu0
  %v1708 = vpop.f32.mrb[0].mxu0
  %v1709 = vadd.f32 0.0, %v1708
  %v1710 = vpop.f32.mrb[0].mxu0
  %1711 = vmatprep.mubr.bf16.mxu0 0
  %1712 = vmatmul.mubr.bf16.gmra.mrb[0].mxu0 %v1069
  %v1713 = vpop.f32.mrb[0].mxu0
  %v1714 = vadd.f32 0.0, %v1713
  %v1715 = vpop.f32.mrb[0].mxu0
  %v1716 = vpop.f32.mrb[0].mxu0
  %v1717 = vadd.f32 0.0, %v1716
  %v1718 = vpop.f32.mrb[0].mxu0
  %1719 = vmatprep.mubr.bf16.mxu0 0
  %1720 = vmatmul.mubr.bf16.gmra.mrb[0].mxu0 %v1072
  %v1721 = vpop.f32.mrb[0].mxu0
  %v1722 = vadd.f32 0.0, %v1721
  %v1723 = vpop.f32.mrb[0].mxu0
  %v1724 = vpop.f32.mrb[0].mxu0
  %v1725 = vadd.f32 0.0, %v1724
  %v1726 = vpop.f32.mrb[0].mxu0
  %1727 = vmatprep.mubr.bf16.mxu0 0
  %1728 = vmatmul.mubr.bf16.gmra.mrb[0].mxu0 %v1075
  %v1729 = vpop.f32.mrb[0].mxu0
  %v1730 = vadd.f32 0.0, %v1729
  %v1731 = vpop.f32.mrb[0].mxu0
  %v1732 = vpop.f32.mrb[0].mxu0
  %v1733 = vadd.f32 0.0, %v1732
  %v1734 = vpop.f32.mrb[0].mxu0
  %1735 = vmatprep.mubr.bf16.mxu0 0
  %1736 = vmatmul.mubr.bf16.gmra.mrb[0].mxu0 %v1078
  %v1737 = vpop.f32.mrb[0].mxu0
  %v1738 = vadd.f32 0.0, %v1737
  %v1739 = vpop.f32.mrb[0].mxu0
  %v1740 = vpop.f32.mrb[0].mxu0
  %v1741 = vadd.f32 0.0, %v1740
  %v1742 = vpop.f32.mrb[0].mxu0
  %1743 = vmatprep.mubr.bf16.mxu0 0
  %1744 = vmatmul.mubr.bf16.gmra.mrb[0].mxu0 %v1081
  %v1745 = vpop.f32.mrb[0].mxu0
  %v1746 = vadd.f32 0.0, %v1745
  %v1747 = vpop.f32.mrb[0].mxu0
  %v1748 = vpop.f32.mrb[0].mxu0
  %v1749 = vadd.f32 0.0, %v1748
  %v1750 = vpop.f32.mrb[0].mxu0
  %1751 = vmatprep.mubr.bf16.mxu0 0
  %1752 = vmatmul.mubr.bf16.gmra.mrb[0].mxu0 %v1084
  %v1753 = vpop.f32.mrb[0].mxu0
  %v1754 = vadd.f32 0.0, %v1753
  %v1755 = vpop.f32.mrb[0].mxu0
  %v1756 = vpop.f32.mrb[0].mxu0
  %v1757 = vadd.f32 0.0, %v1756
  %v1758 = vpop.f32.mrb[0].mxu0
  %1759 = vmatprep.mubr.bf16.mxu0 0
  %1760 = vmatmul.mubr.bf16.gmra.mrb[0].mxu0 %v1087
  %v1761 = vpop.f32.mrb[0].mxu0
  %v1762 = vadd.f32 0.0, %v1761
  %v1763 = vpop.f32.mrb[0].mxu0
  %v1764 = vpop.f32.mrb[0].mxu0
  %v1765 = vadd.f32 0.0, %v1764
  %v1766 = vpop.f32.mrb[0].mxu0
  %1767 = vmatprep.mubr.bf16.mxu0 0
  %1768 = vmatmul.mubr.bf16.gmra.mrb[0].mxu0 %v1090
  %v1769 = vpop.f32.mrb[0].mxu0
  %v1770 = vadd.f32 0.0, %v1769
  %v1771 = vpop.f32.mrb[0].mxu0
  %v1772 = vpop.f32.mrb[0].mxu0
  %v1773 = vadd.f32 0.0, %v1772
  %v1774 = vpop.f32.mrb[0].mxu0
  %1775 = vmatprep.mubr.bf16.mxu0 0
  %1776 = vmatmul.mubr.bf16.gmra.mrb[0].mxu0 %v1093
  %v1777 = vpop.f32.mrb[0].mxu0
  %v1778 = vadd.f32 0.0, %v1777
  %v1779 = vpop.f32.mrb[0].mxu0
  %v1780 = vpop.f32.mrb[0].mxu0
  %v1781 = vadd.f32 0.0, %v1780
  %v1782 = vpop.f32.mrb[0].mxu0
  %1783 = vmatprep.mubr.bf16.mxu0 0
  %1784 = vmatmul.mubr.bf16.gmra.mrb[0].mxu0 %v1096
  %v1785 = vpop.f32.mrb[0].mxu0
  %v1786 = vadd.f32 0.0, %v1785
  %v1787 = vpop.f32.mrb[0].mxu0
  %v1788 = vpop.f32.mrb[0].mxu0
  %v1789 = vadd.f32 0.0, %v1788
  %v1790 = vpop.f32.mrb[0].mxu0
  %1791 = vmatprep.mubr.bf16.mxu0 0
  %1792 = vmatmul.mubr.bf16.gmra.mrb[0].mxu0 %v1099
  %v1793 = vpop.f32.mrb[0].mxu0
  %v1794 = vadd.f32 0.0, %v1793
  %v1795 = vpop.f32.mrb[0].mxu0
  %v1796 = vpop.f32.mrb[0].mxu0
  %v1797 = vadd.f32 0.0, %v1796
  %v1798 = vpop.f32.mrb[0].mxu0
  %1799 = vmatprep.mubr.bf16.mxu0 0
  %1800 = vmatmul.mubr.bf16.gmra.mrb[0].mxu0 %v1102
  %v1801 = vpop.f32.mrb[0].mxu0
  %v1802 = vadd.f32 0.0, %v1801
  %v1803 = vpop.f32.mrb[0].mxu0
  %v1804 = vpop.f32.mrb[0].mxu0
  %v1805 = vadd.f32 0.0, %v1804
  %v1806 = vpop.f32.mrb[0].mxu0
  %1807 = vmatprep.mubr.bf16.mxu0 0
  %1808 = vmatmul.mubr.bf16.gmra.mrb[0].mxu0 %v1105
  %v1809 = vpop.f32.mrb[0].mxu0
  %v1810 = vadd.f32 0.0, %v1809
  %v1811 = vpop.f32.mrb[0].mxu0
  %v1812 = vpop.f32.mrb[0].mxu0
  %v1813 = vadd.f32 0.0, %v1812
  %v1814 = vpop.f32.mrb[0].mxu0
  %1815 = vmatprep.mubr.bf16.mxu0 0
  %1816 = vmatmul.mubr.bf16.gmra.mrb[0].mxu0 %v1108
  %v1817 = vpop.f32.mrb[0].mxu0
  %v1818 = vadd.f32 0.0, %v1817
  %v1819 = vpop.f32.mrb[0].mxu0
  %v1820 = vpop.f32.mrb[0].mxu0
  %v1821 = vadd.f32 0.0, %v1820
  %v1822 = vpop.f32.mrb[0].mxu0
  %1823 = vmatprep.mubr.bf16.mxu0 0
  %1824 = vmatmul.mubr.bf16.gmra.mrb[0].mxu0 %v1111
  %v1825 = vpop.f32.mrb[0].mxu0
  %v1826 = vadd.f32 0.0, %v1825
  %v1827 = vpop.f32.mrb[0].mxu0
  %v1828 = vpop.f32.mrb[0].mxu0
  %v1829 = vadd.f32 0.0, %v1828
  %v1830 = vpop.f32.mrb[0].mxu0
  %1831 = vmatprep.mubr.bf16.mxu0 0
  %1832 = vmatmul.mubr.bf16.gmra.mrb[0].mxu0 %v1114
  %v1833 = vpop.f32.mrb[0].mxu0
  %v1834 = vadd.f32 0.0, %v1833
  %v1835 = vpop.f32.mrb[0].mxu0
  %v1836 = vpop.f32.mrb[0].mxu0
  %v1837 = vadd.f32 0.0, %v1836
  %v1838 = vpop.f32.mrb[0].mxu0
  %1839 = vmatprep.mubr.bf16.mxu0 0
  %1840 = vmatmul.mubr.bf16.gmra.mrb[0].mxu0 %v1117
  %v1841 = vpop.f32.mrb[0].mxu0
  %v1842 = vadd.f32 0.0, %v1841
  %v1843 = vpop.f32.mrb[0].mxu0
  %v1844 = vpop.f32.mrb[0].mxu0
  %v1845 = vadd.f32 0.0, %v1844
  %v1846 = vpop.f32.mrb[0].mxu0
  %1847 = vmatprep.mubr.bf16.mxu0 0
  %1848 = vmatmul.mubr.bf16.gmra.mrb[0].mxu0 %v1120
  %v1849 = vpop.f32.mrb[0].mxu0
  %v1850 = vadd.f32 0.0, %v1849
  %v1851 = vpop.f32.mrb[0].mxu0
  %v1852 = vpop.f32.mrb[0].mxu0
  %v1853 = vadd.f32 0.0, %v1852
  %v1854 = vpop.f32.mrb[0].mxu0
  %1855 = vmatprep.mubr.bf16.mxu0 0
  %1856 = vmatmul.mubr.bf16.gmra.mrb[0].mxu0 %v1123
  %v1857 = vpop.f32.mrb[0].mxu0
  %v1858 = vadd.f32 0.0, %v1857
  %v1859 = vpop.f32.mrb[0].mxu0
  %v1860 = vpop.f32.mrb[0].mxu0
  %v1861 = vadd.f32 0.0, %v1860
  %v1862 = vpop.f32.mrb[0].mxu0
  %1863 = vmatprep.mubr.bf16.mxu0 0
  %1864 = vmatmul.mubr.bf16.gmra.mrb[0].mxu0 %v1126
  %v1865 = vpop.f32.mrb[0].mxu0
  %v1866 = vadd.f32 0.0, %v1865
  %v1867 = vpop.f32.mrb[0].mxu0
  %v1868 = vpop.f32.mrb[0].mxu0
  %v1869 = vadd.f32 0.0, %v1868
  %v1870 = vpop.f32.mrb[0].mxu0
  %1871 = vmatprep.mubr.bf16.mxu0 0
  %1872 = vmatmul.mubr.bf16.gmra.mrb[0].mxu0 %v1129
  %v1873 = vpop.f32.mrb[0].mxu0
  %v1874 = vadd.f32 0.0, %v1873
  %v1875 = vpop.f32.mrb[0].mxu0
  %v1876 = vpop.f32.mrb[0].mxu0
  %v1877 = vadd.f32 0.0, %v1876
  %v1878 = vpop.f32.mrb[0].mxu0
  %1879 = vmatprep.mubr.bf16.mxu0 0
  %1880 = vmatmul.mubr.bf16.gmra.mrb[0].mxu0 %v1132
  %v1881 = vpop.f32.mrb[0].mxu0
  %v1882 = vadd.f32 0.0, %v1881
  %v1883 = vpop.f32.mrb[0].mxu0
  %v1884 = vpop.f32.mrb[0].mxu0
  %v1885 = vadd.f32 0.0, %v1884
  %v1886 = vpop.f32.mrb[0].mxu0
  %1887 = vmatprep.mubr.bf16.mxu0 0
  %1888 = vmatmul.mubr.bf16.gmra.mrb[0].mxu0 %v1135
  %v1889 = vpop.f32.mrb[0].mxu0
  %v1890 = vadd.f32 0.0, %v1889
  %v1891 = vpop.f32.mrb[0].mxu0
  %v1892 = vpop.f32.mrb[0].mxu0
  %v1893 = vadd.f32 0.0, %v1892
  %v1894 = vpop.f32.mrb[0].mxu0
  %1895 = vmatprep.mubr.bf16.mxu0 0
  %1896 = vmatmul.mubr.bf16.gmra.mrb[0].mxu0 %v1138
  %v1897 = vpop.f32.mrb[0].mxu0
  %v1898 = vadd.f32 0.0, %v1897
  %v1899 = vpop.f32.mrb[0].mxu0
  %v1900 = vpop.f32.mrb[0].mxu0
  %v1901 = vadd.f32 0.0, %v1900
  %v1902 = vpop.f32.mrb[0].mxu0
  %1903 = vmatprep.mubr.bf16.mxu0 0
  %1904 = vmatmul.mubr.bf16.gmra.mrb[0].mxu0 %v1141
  %v1905 = vpop.f32.mrb[0].mxu0
  %v1906 = vadd.f32 0.0, %v1905
  %v1907 = vpop.f32.mrb[0].mxu0
  %v1908 = vpop.f32.mrb[0].mxu0
  %v1909 = vadd.f32 0.0, %v1908
  %v1910 = vpop.f32.mrb[0].mxu0
  %1911 = vmatprep.mubr.bf16.mxu0 0
  %1912 = vmatmul.mubr.bf16.gmra.mrb[0].mxu0 %v1144
  %v1913 = vpop.f32.mrb[0].mxu0
  %v1914 = vadd.f32 0.0, %v1913
  %v1915 = vpop.f32.mrb[0].mxu0
  %v1916 = vpop.f32.mrb[0].mxu0
  %v1917 = vadd.f32 0.0, %v1916
  %v1918 = vpop.f32.mrb[0].mxu0
  %1919 = vmatprep.mubr.bf16.mxu0 0
  %1920 = vmatmul.mubr.bf16.gmra.mrb[0].mxu0 %v1147
  %v1921 = vpop.f32.mrb[0].mxu0
  %v1922 = vadd.f32 0.0, %v1921
  %v1923 = vpop.f32.mrb[0].mxu0
  %v1924 = vpop.f32.mrb[0].mxu0
  %v1925 = vadd.f32 0.0, %v1924
  %v1926 = vpop.f32.mrb[0].mxu0
  %1927 = vmatprep.mubr.bf16.mxu0 0
  %1928 = vmatmul.mubr.bf16.gmra.mrb[0].mxu0 %v1150
  %v1929 = vpop.f32.mrb[0].mxu0
  %v1930 = vadd.f32 0.0, %v1929
  %v1931 = vpop.f32.mrb[0].mxu0
  %v1932 = vpop.f32.mrb[0].mxu0
  %v1933 = vadd.f32 0.0, %v1932
  %v1934 = vpop.f32.mrb[0].mxu0
  %1935 = vmatprep.mubr.bf16.mxu0 0
  %1936 = vmatmul.mubr.bf16.gmra.mrb[0].mxu0 %v1153
  %v1937 = vpop.f32.mrb[0].mxu0
  %v1938 = vadd.f32 0.0, %v1937
  %v1939 = vpop.f32.mrb[0].mxu0
  %v1940 = vpop.f32.mrb[0].mxu0
  %v1941 = vadd.f32 0.0, %v1940
  %v1942 = vpop.f32.mrb[0].mxu0
  %1943 = vmatprep.mubr.bf16.mxu0 0
  %1944 = vmatmul.mubr.bf16.gmra.mrb[0].mxu0 %v1156
  %v1945 = vpop.f32.mrb[0].mxu0
  %v1946 = vadd.f32 0.0, %v1945
  %v1947 = vpop.f32.mrb[0].mxu0
  %v1948 = vpop.f32.mrb[0].mxu0
  %v1949 = vadd.f32 0.0, %v1948
  %v1950 = vpop.f32.mrb[0].mxu0
  %1951 = vmatprep.mubr.bf16.mxu0 0
  %1952 = vmatmul.mubr.bf16.gmra.mrb[0].mxu0 %v1159
  %v1953 = vpop.f32.mrb[0].mxu0
  %v1954 = vadd.f32 0.0, %v1953
  %v1955 = vpop.f32.mrb[0].mxu0
  %v1956 = vpop.f32.mrb[0].mxu0
  %v1957 = vadd.f32 0.0, %v1956
  %v1958 = vpop.f32.mrb[0].mxu0
  %1959 = vmatprep.mubr.bf16.mxu0 0
  %1960 = vmatmul.mubr.bf16.gmra.mrb[0].mxu0 %v1162
  %v1961 = vpop.f32.mrb[0].mxu0
  %v1962 = vadd.f32 0.0, %v1961
  %v1963 = vpop.f32.mrb[0].mxu0
  %v1964 = vpop.f32.mrb[0].mxu0
  %v1965 = vadd.f32 0.0, %v1964
  %v1966 = vpop.f32.mrb[0].mxu0
  %1967 = vmatprep.mubr.bf16.mxu0 0
  %1968 = vmatmul.mubr.bf16.gmra.mrb[0].mxu0 %v1165
  %v1969 = vpop.f32.mrb[0].mxu0
  %v1970 = vadd.f32 0.0, %v1969
  %v1971 = vpop.f32.mrb[0].mxu0
  %v1972 = vpop.f32.mrb[0].mxu0
  %v1973 = vadd.f32 0.0, %v1972
  %v1974 = vpop.f32.mrb[0].mxu0
  %1975 = vmatprep.mubr.bf16.mxu0 0
  %1976 = vmatmul.mubr.bf16.gmra.mrb[0].mxu0 %v1168
  %v1977 = vpop.f32.mrb[0].mxu0
  %v1978 = vadd.f32 0.0, %v1977
  %v1979 = vpop.f32.mrb[0].mxu0
  %v1980 = vpop.f32.mrb[0].mxu0
  %v1981 = vadd.f32 0.0, %v1980
  %v1982 = vpop.f32.mrb[0].mxu0
  %1983 = vmatprep.mubr.bf16.mxu0 0
  %1984 = vmatmul.mubr.bf16.gmra.mrb[0].mxu0 %v1171
  %v1985 = vpop.f32.mrb[0].mxu0
  %v1986 = vadd.f32 0.0, %v1985
  %v1987 = vpop.f32.mrb[0].mxu0
  %v1988 = vpop.f32.mrb[0].mxu0
  %v1989 = vadd.f32 0.0, %v1988
  %v1990 = vpop.f32.mrb[0].mxu0
  %1991 = vmatprep.mubr.bf16.mxu0 0
  %1992 = vmatmul.mubr.bf16.gmra.mrb[0].mxu0 %v1174
  %v1993 = vpop.f32.mrb[0].mxu0
  %v1994 = vadd.f32 0.0, %v1993
  %v1995 = vpop.f32.mrb[0].mxu0
  %v1996 = vpop.f32.mrb[0].mxu0
  %v1997 = vadd.f32 0.0, %v1996
  %v1998 = vpop.f32.mrb[0].mxu0
  %1999 = vmatprep.mubr.bf16.mxu0 0
  %2000 = vmatmul.mubr.bf16.gmra.mrb[0].mxu0 %v1177
  %v2001 = vpop.f32.mrb[0].mxu0
  %v2002 = vadd.f32 0.0, %v2001
  %v2003 = vpop.f32.mrb[0].mxu0
  %v2004 = vpop.f32.mrb[0].mxu0
  %v2005 = vadd.f32 0.0, %v2004
  %v2006 = vpop.f32.mrb[0].mxu0
  %2007 = vmatprep.mubr.bf16.mxu0 0
  %2008 = vmatmul.mubr.bf16.gmra.mrb[0].mxu0 %v1180
  %v2009 = vpop.f32.mrb[0].mxu0
  %v2010 = vadd.f32 0.0, %v2009
  %v2011 = vpop.f32.mrb[0].mxu0
  %v2012 = vpop.f32.mrb[0].mxu0
  %v2013 = vadd.f32 0.0, %v2012
  %v2014 = vpop.f32.mrb[0].mxu0
  %2015 = vmatprep.mubr.bf16.mxu0 0
  %2016 = vmatmul.mubr.bf16.gmra.mrb[0].mxu0 %v1183
  %v2017 = vpop.f32.mrb[0].mxu0
  %v2018 = vadd.f32 0.0, %v2017
  %v2019 = vpop.f32.mrb[0].mxu0
  %v2020 = vpop.f32.mrb[0].mxu0
  %v2021 = vadd.f32 0.0, %v2020
  %v2022 = vpop.f32.mrb[0].mxu0
  %2023 = vmatprep.mubr.bf16.mxu0 0
  %2024 = vmatmul.mubr.bf16.gmra.mrb[0].mxu0 %v1186
  %v2025 = vpop.f32.mrb[0].mxu0
  %v2026 = vadd.f32 0.0, %v2025
  %v2027 = vpop.f32.mrb[0].mxu0
  %v2028 = vpop.f32.mrb[0].mxu0
  %v2029 = vadd.f32 0.0, %v2028
  %v2030 = vpop.f32.mrb[0].mxu0
  %2031 = vmatprep.mubr.bf16.mxu0 0
  %2032 = vmatmul.mubr.bf16.gmra.mrb[0].mxu0 %v1189
  %v2033 = vpop.f32.mrb[0].mxu0
  %v2034 = vadd.f32 0.0, %v2033
  %v2035 = vpop.f32.mrb[0].mxu0
  %v2036 = vpop.f32.mrb[0].mxu0
  %v2037 = vadd.f32 0.0, %v2036
  %v2038 = vpop.f32.mrb[0].mxu0
  %2039 = vmatprep.mubr.bf16.mxu0 0
  %2040 = vmatmul.mubr.bf16.gmra.mrb[0].mxu0 %v1192
  %v2041 = vpop.f32.mrb[0].mxu0
  %v2042 = vadd.f32 0.0, %v2041
  %v2043 = vpop.f32.mrb[0].mxu0
  %v2044 = vpop.f32.mrb[0].mxu0
  %v2045 = vadd.f32 0.0, %v2044
  %v2046 = vpop.f32.mrb[0].mxu0
  %2047 = vmatprep.mubr.bf16.mxu0 0
  %2048 = vmatmul.mubr.bf16.gmra.mrb[0].mxu0 %v1195
  %v2049 = vpop.f32.mrb[0].mxu0
  %v2050 = vadd.f32 0.0, %v2049
  %v2051 = vpop.f32.mrb[0].mxu0
  %v2052 = vpop.f32.mrb[0].mxu0
  %v2053 = vadd.f32 0.0, %v2052
  %v2054 = vpop.f32.mrb[0].mxu0
  %2055 = vmatprep.mubr.bf16.mxu0 0
  %2056 = vmatmul.mubr.bf16.gmra.mrb[0].mxu0 %v1198
  %v2057 = vpop.f32.mrb[0].mxu0
  %v2058 = vadd.f32 0.0, %v2057
  %v2059 = vpop.f32.mrb[0].mxu0
  %v2060 = vpop.f32.mrb[0].mxu0
  %v2061 = vadd.f32 0.0, %v2060
  %v2062 = vpop.f32.mrb[0].mxu0
  %2063 = vmatprep.mubr.bf16.mxu0 0
  %2064 = vmatmul.mubr.bf16.gmra.mrb[0].mxu0 %v1201
  %v2065 = vpop.f32.mrb[0].mxu0
  %v2066 = vadd.f32 0.0, %v2065
  %v2067 = vpop.f32.mrb[0].mxu0
  %v2068 = vpop.f32.mrb[0].mxu0
  %v2069 = vadd.f32 0.0, %v2068
  %v2070 = vpop.f32.mrb[0].mxu0
  %2071 = vmatprep.mubr.bf16.mxu0 0
  %2072 = vmatmul.mubr.bf16.gmra.mrb[0].mxu0 %v1204
  %v2073 = vpop.f32.mrb[0].mxu0
  %v2074 = vadd.f32 0.0, %v2073
  %v2075 = vpop.f32.mrb[0].mxu0
  %v2076 = vpop.f32.mrb[0].mxu0
  %v2077 = vadd.f32 0.0, %v2076
  %v2078 = vpop.f32.mrb[0].mxu0
  %2079 = vmatprep.mubr.bf16.mxu0 0
  %2080 = vmatmul.mubr.bf16.gmra.mrb[0].mxu0 %v1207
  %v2081 = vpop.f32.mrb[0].mxu0
  %v2082 = vadd.f32 0.0, %v2081
  %v2083 = vpop.f32.mrb[0].mxu0
  %v2084 = vpop.f32.mrb[0].mxu0
  %v2085 = vadd.f32 0.0, %v2084
  %v2086 = vpop.f32.mrb[0].mxu0
  %2087 = vmatprep.mubr.bf16.mxu0 0
  %2088 = vmatmul.mubr.bf16.gmra.mrb[0].mxu0 %v1210
  %v2089 = vpop.f32.mrb[0].mxu0
  %v2090 = vadd.f32 0.0, %v2089
  %v2091 = vpop.f32.mrb[0].mxu0
  %v2092 = vpop.f32.mrb[0].mxu0
  %v2093 = vadd.f32 0.0, %v2092
  %v2094 = vpop.f32.mrb[0].mxu0
  %2095 = vmatprep.mubr.bf16.mxu0 0
  %2096 = vmatmul.mubr.bf16.gmra.mrb[0].mxu0 %v1213
  %v2097 = vpop.f32.mrb[0].mxu0
  %v2098 = vadd.f32 0.0, %v2097
  %v2099 = vpop.f32.mrb[0].mxu0
  %v2100 = vpop.f32.mrb[0].mxu0
  %v2101 = vadd.f32 0.0, %v2100
  %v2102 = vpop.f32.mrb[0].mxu0
  %2103 = vmatprep.mubr.bf16.mxu0 0
  %2104 = vmatmul.mubr.bf16.gmra.mrb[0].mxu0 %v1216
  %v2105 = vpop.f32.mrb[0].mxu0
  %v2106 = vadd.f32 0.0, %v2105
  %v2107 = vpop.f32.mrb[0].mxu0
  %v2108 = vpop.f32.mrb[0].mxu0
  %v2109 = vadd.f32 0.0, %v2108
  %v2110 = vpop.f32.mrb[0].mxu0
  %2111 = vmatprep.mubr.bf16.mxu0 0
  %2112 = vmatmul.mubr.bf16.gmra.mrb[0].mxu0 %v1219
  %v2113 = vpop.f32.mrb[0].mxu0
  %v2114 = vadd.f32 0.0, %v2113
  %v2115 = vpop.f32.mrb[0].mxu0
  %v2116 = vpop.f32.mrb[0].mxu0
  %v2117 = vadd.f32 0.0, %v2116
  %v2118 = vpop.f32.mrb[0].mxu0
  %2119 = vmatprep.mubr.bf16.mxu0 0
  %2120 = vmatmul.mubr.bf16.gmra.mrb[0].mxu0 %v1222
  %v2121 = vpop.f32.mrb[0].mxu0
  %v2122 = vadd.f32 0.0, %v2121
  %v2123 = vpop.f32.mrb[0].mxu0
  %v2124 = vpop.f32.mrb[0].mxu0
  %v2125 = vadd.f32 0.0, %v2124
  %v2126 = vpop.f32.mrb[0].mxu0
  %2127 = vmatprep.mubr.bf16.mxu0 0
  %2128 = vmatmul.mubr.bf16.gmra.mrb[0].mxu0 %v1225
  %v2129 = vpop.f32.mrb[0].mxu0
  %v2130 = vadd.f32 0.0, %v2129
  %v2131 = vpop.f32.mrb[0].mxu0
  %v2132 = vpop.f32.mrb[0].mxu0
  %v2133 = vadd.f32 0.0, %v2132
  %v2134 = vpop.f32.mrb[0].mxu0
  %2135 = vmatprep.mubr.bf16.mxu0 0
  %2136 = vmatmul.mubr.bf16.gmra.mrb[0].mxu0 %v1228
  %v2137 = vpop.f32.mrb[0].mxu0
  %v2138 = vadd.f32 0.0, %v2137
  %v2139 = vpop.f32.mrb[0].mxu0
  %v2140 = vpop.f32.mrb[0].mxu0
  %v2141 = vadd.f32 0.0, %v2140
  %v2142 = vpop.f32.mrb[0].mxu0
  %2143 = vmatprep.mubr.bf16.mxu0 0
  %2144 = vmatmul.mubr.bf16.gmra.mrb[0].mxu0 %v1231
  %v2145 = vpop.f32.mrb[0].mxu0
  %v2146 = vadd.f32 0.0, %v2145
  %v2147 = vpop.f32.mrb[0].mxu0
  %v2148 = vpop.f32.mrb[0].mxu0
  %v2149 = vadd.f32 0.0, %v2148
  %v2150 = vpop.f32.mrb[0].mxu0
  %2151 = vmatprep.mubr.bf16.mxu0 0
  %2152 = vmatmul.mubr.bf16.gmra.mrb[0].mxu0 %v1234
  %v2153 = vpop.f32.mrb[0].mxu0
  %v2154 = vadd.f32 0.0, %v2153
  %v2155 = vpop.f32.mrb[0].mxu0
  %v2156 = vpop.f32.mrb[0].mxu0
  %v2157 = vadd.f32 0.0, %v2156
  %v2158 = vpop.f32.mrb[0].mxu0
  %2159 = vmatprep.mubr.bf16.mxu0 0
  %2160 = vmatmul.mubr.bf16.gmra.mrb[0].mxu0 %v1237
  %v2161 = vpop.f32.mrb[0].mxu0
  %v2162 = vadd.f32 0.0, %v2161
  %v2163 = vpop.f32.mrb[0].mxu0
  %v2164 = vpop.f32.mrb[0].mxu0
  %v2165 = vadd.f32 0.0, %v2164
  %v2166 = vpop.f32.mrb[0].mxu0
  %2167 = vmatprep.mubr.bf16.mxu0 0
  %2168 = vmatmul.mubr.bf16.gmra.mrb[0].mxu0 %v1240
  %v2169 = vpop.f32.mrb[0].mxu0
  %v2170 = vadd.f32 0.0, %v2169
  %v2171 = vpop.f32.mrb[0].mxu0
  %v2172 = vpop.f32.mrb[0].mxu0
  %v2173 = vadd.f32 0.0, %v2172
  %v2174 = vpop.f32.mrb[0].mxu0
  %2175 = vmatprep.mubr.bf16.mxu0 0
  %2176 = vmatmul.mubr.bf16.gmra.mrb[0].mxu0 %v1243
  %v2177 = vpop.f32.mrb[0].mxu0
  %v2178 = vadd.f32 0.0, %v2177
  %v2179 = vpop.f32.mrb[0].mxu0
  %v2180 = vpop.f32.mrb[0].mxu0
  %v2181 = vadd.f32 0.0, %v2180
  %v2182 = vpop.f32.mrb[0].mxu0
  %2183 = vmatprep.mubr.bf16.mxu0 0
  %2184 = vmatmul.mubr.bf16.gmra.mrb[0].mxu0 %v1246
  %v2185 = vpop.f32.mrb[0].mxu0
  %v2186 = vadd.f32 0.0, %v2185
  %v2187 = vpop.f32.mrb[0].mxu0
  %v2188 = vpop.f32.mrb[0].mxu0
  %v2189 = vadd.f32 0.0, %v2188
  %v2190 = vpop.f32.mrb[0].mxu0
  %2191 = vmatprep.mubr.bf16.mxu0 0
  %2192 = vmatmul.mubr.bf16.gmra.mrb[0].mxu0 %v1249
  %v2193 = vpop.f32.mrb[0].mxu0
  %v2194 = vadd.f32 0.0, %v2193
  %v2195 = vpop.f32.mrb[0].mxu0
  %v2196 = vpop.f32.mrb[0].mxu0
  %v2197 = vadd.f32 0.0, %v2196
  %v2198 = vpop.f32.mrb[0].mxu0
  %2199 = vmatprep.mubr.bf16.mxu0 0
  %2200 = vmatmul.mubr.bf16.gmra.mrb[0].mxu0 %v1252
  %v2201 = vpop.f32.mrb[0].mxu0
  %v2202 = vadd.f32 0.0, %v2201
  %v2203 = vpop.f32.mrb[0].mxu0
  %v2204 = vpop.f32.mrb[0].mxu0
  %v2205 = vadd.f32 0.0, %v2204
  %v2206 = vpop.f32.mrb[0].mxu0
  %2207 = vmatprep.mubr.bf16.mxu0 0
  %2208 = vmatmul.mubr.bf16.gmra.mrb[0].mxu0 %v1255
  %v2209 = vpop.f32.mrb[0].mxu0
  %v2210 = vadd.f32 0.0, %v2209
  %v2211 = vpop.f32.mrb[0].mxu0
  %v2212 = vpop.f32.mrb[0].mxu0
  %v2213 = vadd.f32 0.0, %v2212
  %v2214 = vpop.f32.mrb[0].mxu0
  %2215 = vmatprep.mubr.bf16.mxu0 0
  %2216 = vmatmul.mubr.bf16.gmra.mrb[0].mxu0 %v1258
  %v2217 = vpop.f32.mrb[0].mxu0
  %v2218 = vadd.f32 0.0, %v2217
  %v2219 = vpop.f32.mrb[0].mxu0
  %v2220 = vpop.f32.mrb[0].mxu0
  %v2221 = vadd.f32 0.0, %v2220
  %v2222 = vpop.f32.mrb[0].mxu0
  %2223 = vmatprep.mubr.bf16.mxu0 0
  %2224 = vmatmul.mubr.bf16.gmra.mrb[0].mxu0 %v1261
  %v2225 = vpop.f32.mrb[0].mxu0
  %v2226 = vadd.f32 0.0, %v2225
  %v2227 = vpop.f32.mrb[0].mxu0
  %v2228 = vpop.f32.mrb[0].mxu0
  %v2229 = vadd.f32 0.0, %v2228
  %v2230 = vpop.f32.mrb[0].mxu0
  %2231 = vmatprep.mubr.bf16.mxu0 0
  %2232 = vmatmul.mubr.bf16.gmra.mrb[0].mxu0 %v1264
  %v2233 = vpop.f32.mrb[0].mxu0
  %v2234 = vadd.f32 0.0, %v2233
  %v2235 = vpop.f32.mrb[0].mxu0
  %v2236 = vpop.f32.mrb[0].mxu0
  %v2237 = vadd.f32 0.0, %v2236
  %v2238 = vpop.f32.mrb[0].mxu0
  %2239 = vmatprep.mubr.bf16.mxu0 0
  %2240 = vmatmul.mubr.bf16.gmra.mrb[0].mxu0 %v1267
  %v2241 = vpop.f32.mrb[0].mxu0
  %v2242 = vadd.f32 0.0, %v2241
  %v2243 = vpop.f32.mrb[0].mxu0
  %v2244 = vpop.f32.mrb[0].mxu0
  %v2245 = vadd.f32 0.0, %v2244
  %v2246 = vpop.f32.mrb[0].mxu0
  %2247 = vmatprep.mubr.bf16.mxu0 0
  %2248 = vmatmul.mubr.bf16.gmra.mrb[0].mxu0 %v1270
  %v2249 = vpop.f32.mrb[0].mxu0
  %v2250 = vadd.f32 0.0, %v2249
  %v2251 = vpop.f32.mrb[0].mxu0
  %v2252 = vpop.f32.mrb[0].mxu0
  %v2253 = vadd.f32 0.0, %v2252
  %v2254 = vpop.f32.mrb[0].mxu0
  %2255 = vmatprep.mubr.bf16.mxu0 0
  %2256 = vmatmul.mubr.bf16.gmra.mrb[0].mxu0 %v1273
  %v2257 = vpop.f32.mrb[0].mxu0
  %v2258 = vadd.f32 0.0, %v2257
  %v2259 = vpop.f32.mrb[0].mxu0
  %v2260 = vpop.f32.mrb[0].mxu0
  %v2261 = vadd.f32 0.0, %v2260
  %v2262 = vpop.f32.mrb[0].mxu0
  %2263 = vmatprep.mubr.bf16.mxu0 0
  %2264 = vmatmul.mubr.bf16.gmra.mrb[0].mxu0 %v1276
  %v2265 = vpop.f32.mrb[0].mxu0
  %v2266 = vadd.f32 0.0, %v2265
  %v2267 = vpop.f32.mrb[0].mxu0
  %v2268 = vpop.f32.mrb[0].mxu0
  %v2269 = vadd.f32 0.0, %v2268
  %v2270 = vpop.f32.mrb[0].mxu0
  %2271 = vmatprep.mubr.bf16.mxu0 0
  %2272 = vmatmul.mubr.bf16.gmra.mrb[0].mxu0 %v1279
  %v2273 = vpop.f32.mrb[0].mxu0
  %v2274 = vadd.f32 0.0, %v2273
  %v2275 = vpop.f32.mrb[0].mxu0
  %v2276 = vpop.f32.mrb[0].mxu0
  %v2277 = vadd.f32 0.0, %v2276
  %v2278 = vpop.f32.mrb[0].mxu0
  %2279 = vmatprep.mubr.bf16.mxu0 0
  %2280 = vmatmul.mubr.bf16.gmra.mrb[0].mxu0 %v1282
  %v2281 = vpop.f32.mrb[0].mxu0
  %v2282 = vadd.f32 0.0, %v2281
  %v2283 = vpop.f32.mrb[0].mxu0
  %v2284 = vpop.f32.mrb[0].mxu0
  %v2285 = vadd.f32 0.0, %v2284
  %v2286 = vpop.f32.mrb[0].mxu0
  %2287 = vmatprep.mubr.bf16.mxu0 0
  %2288 = vmatmul.mubr.bf16.gmra.mrb[0].mxu0 %v1285
  %v2289 = vpop.f32.mrb[0].mxu0
  %v2290 = vadd.f32 0.0, %v2289
  %v2291 = vpop.f32.mrb[0].mxu0
  %v2292 = vpop.f32.mrb[0].mxu0
  %v2293 = vadd.f32 0.0, %v2292
  %v2294 = vpop.f32.mrb[0].mxu0
  %2295 = vmatprep.mubr.bf16.mxu0 0
  %2296 = vmatmul.mubr.bf16.gmra.mrb[0].mxu0 %v1288
  %v2297 = vpop.f32.mrb[0].mxu0
  %v2298 = vadd.f32 0.0, %v2297
  %v2299 = vpop.f32.mrb[0].mxu0
  %v2300 = vpop.f32.mrb[0].mxu0
  %v2301 = vadd.f32 0.0, %v2300
  %v2302 = vpop.f32.mrb[0].mxu0
  %2303 = vmatprep.mubr.bf16.mxu0 0
  %2304 = vmatmul.mubr.bf16.gmra.mrb[0].mxu0 %v1291
  %v2305 = vpop.f32.mrb[0].mxu0
  %v2306 = vadd.f32 0.0, %v2305
  %v2307 = vpop.f32.mrb[0].mxu0
  %v2308 = vpop.f32.mrb[0].mxu0
  %v2309 = vadd.f32 0.0, %v2308
  %v2310 = vpop.f32.mrb[0].mxu0
  %2311 = vmatprep.mubr.bf16.mxu0 0
  %2312 = vmatmul.mubr.bf16.gmra.mrb[0].mxu0 %v1294
  %v2313 = vpop.f32.mrb[0].mxu0
  %v2314 = vadd.f32 0.0, %v2313
  %v2315 = vpop.f32.mrb[0].mxu0
  %v2316 = vpop.f32.mrb[0].mxu0
  %v2317 = vadd.f32 0.0, %v2316
  %v2318 = vpop.f32.mrb[0].mxu0
  %2319 = vmatprep.mubr.bf16.mxu0 0
  %2320 = vmatmul.mubr.bf16.gmra.mrb[0].mxu0 %v1297
  %v2321 = vpop.f32.mrb[0].mxu0
  %v2322 = vadd.f32 0.0, %v2321
  %v2323 = vpop.f32.mrb[0].mxu0
  %v2324 = vpop.f32.mrb[0].mxu0
  %v2325 = vadd.f32 0.0, %v2324
  %v2326 = vpop.f32.mrb[0].mxu0
  %2327 = vmatprep.mubr.bf16.mxu0 0
  %2328 = vmatmul.mubr.bf16.gmra.mrb[0].mxu0 %v1300
  %v2329 = vpop.f32.mrb[0].mxu0
  %v2330 = vadd.f32 0.0, %v2329
  %v2331 = vpop.f32.mrb[0].mxu0
  %v2332 = vpop.f32.mrb[0].mxu0
  %v2333 = vadd.f32 0.0, %v2332
  %v2334 = vpop.f32.mrb[0].mxu0
  %2335 = vmatprep.mubr.bf16.mxu0 0
  %2336 = vmatmul.mubr.bf16.gmra.mrb[0].mxu0 %v1303
  %v2337 = vpop.f32.mrb[0].mxu0
  %v2338 = vadd.f32 0.0, %v2337
  %v2339 = vpop.f32.mrb[0].mxu0
  %v2340 = vpop.f32.mrb[0].mxu0
  %v2341 = vadd.f32 0.0, %v2340
  %v2342 = vpop.f32.mrb[0].mxu0
  %2343 = vmatprep.mubr.bf16.mxu0 0
  %2344 = vmatmul.mubr.bf16.gmra.mrb[0].mxu0 %v1306
  %v2345 = vpop.f32.mrb[0].mxu0
  %v2346 = vadd.f32 0.0, %v2345
  %v2347 = vpop.f32.mrb[0].mxu0
  %v2348 = vpop.f32.mrb[0].mxu0
  %v2349 = vadd.f32 0.0, %v2348
  %v2350 = vpop.f32.mrb[0].mxu0
  %2351 = vmatprep.mubr.bf16.mxu0 0
  %2352 = vmatmul.mubr.bf16.gmra.mrb[0].mxu0 %v1309
  %v2353 = vpop.f32.mrb[0].mxu0
  %v2354 = vadd.f32 0.0, %v2353
  %v2355 = vpop.f32.mrb[0].mxu0
  %v2356 = vpop.f32.mrb[0].mxu0
  %v2357 = vadd.f32 0.0, %v2356
  %v2358 = vpop.f32.mrb[0].mxu0
  %2359 = vmatprep.mubr.bf16.mxu0 0
  %2360 = vmatmul.mubr.bf16.gmra.mrb[0].mxu0 %v1312
  %v2361 = vpop.f32.mrb[0].mxu0
  %v2362 = vadd.f32 0.0, %v2361
  %v2363 = vpop.f32.mrb[0].mxu0
  %v2364 = vpop.f32.mrb[0].mxu0
  %v2365 = vadd.f32 0.0, %v2364
  %v2366 = vpop.f32.mrb[0].mxu0
  %2367 = vmatprep.mubr.bf16.mxu0 0
  %2368 = vmatmul.mubr.bf16.gmra.mrb[0].mxu0 %v1315
  %v2369 = vpop.f32.mrb[0].mxu0
  %v2370 = vadd.f32 0.0, %v2369
  %v2371 = vpop.f32.mrb[0].mxu0
  %v2372 = vpop.f32.mrb[0].mxu0
  %v2373 = vadd.f32 0.0, %v2372
  %v2374 = vpop.f32.mrb[0].mxu0
  %2375 = vmatprep.mubr.bf16.mxu0 0
  %2376 = vmatmul.mubr.bf16.gmra.mrb[0].mxu0 %v1318
  %v2377 = vpop.f32.mrb[0].mxu0
  %v2378 = vadd.f32 0.0, %v2377
  %v2379 = vpop.f32.mrb[0].mxu0
  %v2380 = vpop.f32.mrb[0].mxu0
  %v2381 = vadd.f32 0.0, %v2380
  %v2382 = vpop.f32.mrb[0].mxu0
  %2383 = vdwg.mxu0
  %v2384 = vmax.f32 %v1362, %v1394
  %v2385 = vmax.f32 %v1365, %v1397
  %v2386 = vmax.f32 %v1370, %v1402
  %v2387 = vmax.f32 %v1373, %v1405
  %v2388 = vmax.f32 %v1378, %v1410
  %v2389 = vmax.f32 %v1381, %v1413
  %v2390 = vmax.f32 %v1386, %v1418
  %v2391 = vmax.f32 %v1389, %v1421
  %v2392 = vmax.f32 %v1426, %v1458
  %v2393 = vmax.f32 %v1429, %v1461
  %v2394 = vmax.f32 %v1434, %v1466
  %v2395 = vmax.f32 %v1437, %v1469
  %v2396 = vmax.f32 %v1442, %v1474
  %v2397 = vmax.f32 %v1445, %v1477
  %v2398 = vmax.f32 %v1450, %v1482
  %v2399 = vmax.f32 %v1453, %v1485
  %v2400 = vmax.f32 %v1618, %v1650
  %v2401 = vmax.f32 %v1621, %v1653
  %v2402 = vmax.f32 %v1626, %v1658
  %v2403 = vmax.f32 %v1629, %v1661
  %v2404 = vmax.f32 %v1634, %v1666
  %v2405 = vmax.f32 %v1637, %v1669
  %v2406 = vmax.f32 %v1642, %v1674
  %v2407 = vmax.f32 %v1645, %v1677
  %v2408 = vmax.f32 %v1682, %v1714
  %v2409 = vmax.f32 %v1685, %v1717
  %v2410 = vmax.f32 %v1690, %v1722
  %v2411 = vmax.f32 %v1693, %v1725
  %v2412 = vmax.f32 %v1698, %v1730
  %v2413 = vmax.f32 %v1701, %v1733
  %v2414 = vmax.f32 %v1706, %v1738
  %v2415 = vmax.f32 %v1709, %v1741
  %v2416 = vmax.f32 %v1874, %v1906
  %v2417 = vmax.f32 %v1877, %v1909
  %v2418 = vmax.f32 %v1882, %v1914
  %v2419 = vmax.f32 %v1885, %v1917
  %v2420 = vmax.f32 %v1890, %v1922
  %v2421 = vmax.f32 %v1893, %v1925
  %v2422 = vmax.f32 %v1898, %v1930
  %v2423 = vmax.f32 %v1901, %v1933
  %v2424 = vmax.f32 %v1938, %v1970
  %v2425 = vmax.f32 %v1941, %v1973
  %v2426 = vmax.f32 %v1946, %v1978
  %v2427 = vmax.f32 %v1949, %v1981
  %v2428 = vmax.f32 %v1954, %v1986
  %v2429 = vmax.f32 %v1957, %v1989
  %v2430 = vmax.f32 %v1962, %v1994
  %v2431 = vmax.f32 %v1965, %v1997
  %v2432 = vmax.f32 %v2130, %v2162
  %v2433 = vmax.f32 %v2133, %v2165
  %v2434 = vmax.f32 %v2138, %v2170
  %v2435 = vmax.f32 %v2141, %v2173
  %v2436 = vmax.f32 %v2146, %v2178
  %v2437 = vmax.f32 %v2149, %v2181
  %v2438 = vmax.f32 %v2154, %v2186
  %v2439 = vmax.f32 %v2157, %v2189
  %v2440 = vmax.f32 %v2194, %v2226
  %v2441 = vmax.f32 %v2197, %v2229
  %v2442 = vmax.f32 %v2202, %v2234
  %v2443 = vmax.f32 %v2205, %v2237
  %v2444 = vmax.f32 %v2210, %v2242
  %v2445 = vmax.f32 %v2213, %v2245
  %v2446 = vmax.f32 %v2218, %v2250
  %v2447 = vmax.f32 %v2221, %v2253
  %v2448 = vmax.f32 %v1490, %v1522
  %v2449 = vmax.f32 %v1493, %v1525
  %v2450 = vmax.f32 %v1498, %v1530
  %v2451 = vmax.f32 %v1501, %v1533
  %v2452 = vmax.f32 %v1506, %v1538
  %v2453 = vmax.f32 %v1509, %v1541
  %v2454 = vmax.f32 %v1514, %v1546
  %v2455 = vmax.f32 %v1517, %v1549
  %v2456 = vmax.f32 %v1554, %v1586
  %v2457 = vmax.f32 %v1557, %v1589
  %v2458 = vmax.f32 %v1562, %v1594
  %v2459 = vmax.f32 %v1565, %v1597
  %v2460 = vmax.f32 %v1570, %v1602
  %v2461 = vmax.f32 %v1573, %v1605
  %v2462 = vmax.f32 %v1578, %v1610
  %v2463 = vmax.f32 %v1581, %v1613
  %v2464 = vmax.f32 %v1746, %v1778
  %v2465 = vmax.f32 %v1749, %v1781
  %v2466 = vmax.f32 %v1754, %v1786
  %v2467 = vmax.f32 %v1757, %v1789
  %v2468 = vmax.f32 %v1762, %v1794
  %v2469 = vmax.f32 %v1765, %v1797
  %v2470 = vmax.f32 %v1770, %v1802
  %v2471 = vmax.f32 %v1773, %v1805
  %v2472 = vmax.f32 %v1810, %v1842
  %v2473 = vmax.f32 %v1813, %v1845
  %v2474 = vmax.f32 %v1818, %v1850
  %v2475 = vmax.f32 %v1821, %v1853
  %v2476 = vmax.f32 %v1826, %v1858
  %v2477 = vmax.f32 %v1829, %v1861
  %v2478 = vmax.f32 %v1834, %v1866
  %v2479 = vmax.f32 %v1837, %v1869
  %v2480 = vmax.f32 %v2002, %v2034
  %v2481 = vmax.f32 %v2005, %v2037
  %v2482 = vmax.f32 %v2010, %v2042
  %v2483 = vmax.f32 %v2013, %v2045
  %v2484 = vmax.f32 %v2018, %v2050
  %v2485 = vmax.f32 %v2021, %v2053
  %v2486 = vmax.f32 %v2026, %v2058
  %v2487 = vmax.f32 %v2029, %v2061
  %v2488 = vmax.f32 %v2066, %v2098
  %v2489 = vmax.f32 %v2069, %v2101
  %v2490 = vmax.f32 %v2074, %v2106
  %v2491 = vmax.f32 %v2077, %v2109
  %v2492 = vmax.f32 %v2082, %v2114
  %v2493 = vmax.f32 %v2085, %v2117
  %v2494 = vmax.f32 %v2090, %v2122
  %v2495 = vmax.f32 %v2093, %v2125
  %v2496 = vmax.f32 %v2258, %v2290
  %v2497 = vmax.f32 %v2261, %v2293
  %v2498 = vmax.f32 %v2266, %v2298
  %v2499 = vmax.f32 %v2269, %v2301
  %v2500 = vmax.f32 %v2274, %v2306
  %v2501 = vmax.f32 %v2277, %v2309
  %v2502 = vmax.f32 %v2282, %v2314
  %v2503 = vmax.f32 %v2285, %v2317
  %v2504 = vmax.f32 %v2322, %v2354
  %v2505 = vmax.f32 %v2325, %v2357
  %v2506 = vmax.f32 %v2330, %v2362
  %v2507 = vmax.f32 %v2333, %v2365
  %v2508 = vmax.f32 %v2338, %v2370
  %v2509 = vmax.f32 %v2341, %v2373
  %v2510 = vmax.f32 %v2346, %v2378
  %v2511 = vmax.f32 %v2349, %v2381
  %v2512 = vmax.f32 %v2384, %v2448
  %v2513 = vmax.f32 %v2385, %v2449
  %v2514 = vmax.f32 %v2386, %v2450
  %v2515 = vmax.f32 %v2387, %v2451
  %v2516 = vmax.f32 %v2388, %v2452
  %v2517 = vmax.f32 %v2389, %v2453
  %v2518 = vmax.f32 %v2390, %v2454
  %v2519 = vmax.f32 %v2391, %v2455
  %v2520 = vmax.f32 %v2392, %v2456
  %v2521 = vmax.f32 %v2393, %v2457
  %v2522 = vmax.f32 %v2394, %v2458
  %v2523 = vmax.f32 %v2395, %v2459
  %v2524 = vmax.f32 %v2396, %v2460
  %v2525 = vmax.f32 %v2397, %v2461
  %v2526 = vmax.f32 %v2398, %v2462
  %v2527 = vmax.f32 %v2399, %v2463
  %v2528 = vmax.f32 %v2400, %v2464
  %v2529 = vmax.f32 %v2401, %v2465
  %v2530 = vmax.f32 %v2402, %v2466
  %v2531 = vmax.f32 %v2403, %v2467
  %v2532 = vmax.f32 %v2404, %v2468
  %v2533 = vmax.f32 %v2405, %v2469
  %v2534 = vmax.f32 %v2406, %v2470
  %v2535 = vmax.f32 %v2407, %v2471
  %v2536 = vmax.f32 %v2408, %v2472
  %v2537 = vmax.f32 %v2409, %v2473
  %v2538 = vmax.f32 %v2410, %v2474
  %v2539 = vmax.f32 %v2411, %v2475
  %v2540 = vmax.f32 %v2412, %v2476
  %v2541 = vmax.f32 %v2413, %v2477
  %v2542 = vmax.f32 %v2414, %v2478
  %v2543 = vmax.f32 %v2415, %v2479
  %v2544 = vmax.f32 %v2416, %v2480
  %v2545 = vmax.f32 %v2417, %v2481
  %v2546 = vmax.f32 %v2418, %v2482
  %v2547 = vmax.f32 %v2419, %v2483
  %v2548 = vmax.f32 %v2420, %v2484
  %v2549 = vmax.f32 %v2421, %v2485
  %v2550 = vmax.f32 %v2422, %v2486
  %v2551 = vmax.f32 %v2423, %v2487
  %v2552 = vmax.f32 %v2424, %v2488
  %v2553 = vmax.f32 %v2425, %v2489
  %v2554 = vmax.f32 %v2426, %v2490
  %v2555 = vmax.f32 %v2427, %v2491
  %v2556 = vmax.f32 %v2428, %v2492
  %v2557 = vmax.f32 %v2429, %v2493
  %v2558 = vmax.f32 %v2430, %v2494
  %v2559 = vmax.f32 %v2431, %v2495
  %v2560 = vmax.f32 %v2432, %v2496
  %v2561 = vmax.f32 %v2433, %v2497
  %v2562 = vmax.f32 %v2434, %v2498
  %v2563 = vmax.f32 %v2435, %v2499
  %v2564 = vmax.f32 %v2436, %v2500
  %v2565 = vmax.f32 %v2437, %v2501
  %v2566 = vmax.f32 %v2438, %v2502
  %v2567 = vmax.f32 %v2439, %v2503
  %v2568 = vmax.f32 %v2440, %v2504
  %v2569 = vmax.f32 %v2441, %v2505
  %v2570 = vmax.f32 %v2442, %v2506
  %v2571 = vmax.f32 %v2443, %v2507
  %v2572 = vmax.f32 %v2444, %v2508
  %v2573 = vmax.f32 %v2445, %v2509
  %v2574 = vmax.f32 %v2446, %v2510
  %v2575 = vmax.f32 %v2447, %v2511
  %v2576 = vld [vmem:[%s2] sm:$0x1]
  %v2578 = vlaneseq
  %v2579 = vshrl.u32 %v2578, 7
  %v2580 = vsub.s32 0, %v2579
  %v2581 = vrot.slane %v2576, %v2580
  %v2583 = vadd.f32 %v2512, %v2581
  %v2584 = vadd.f32 %v2513, %v2581
  %v2585 = vadd.f32 %v2514, %v2581
  %v2586 = vadd.f32 %v2515, %v2581
  %v2587 = vadd.f32 %v2516, %v2581
  %v2588 = vadd.f32 %v2517, %v2581
  %v2589 = vadd.f32 %v2518, %v2581
  %v2590 = vadd.f32 %v2519, %v2581
  %v2591 = vadd.f32 %v2520, %v2581
  %v2592 = vadd.f32 %v2521, %v2581
  %v2593 = vadd.f32 %v2522, %v2581
  %v2594 = vadd.f32 %v2523, %v2581
  %v2595 = vadd.f32 %v2524, %v2581
  %v2596 = vadd.f32 %v2525, %v2581
  %v2597 = vadd.f32 %v2526, %v2581
  %v2598 = vadd.f32 %v2527, %v2581
  %v2599 = vadd.f32 %v2528, %v2581
  %v2600 = vadd.f32 %v2529, %v2581
  %v2601 = vadd.f32 %v2530, %v2581
  %v2602 = vadd.f32 %v2531, %v2581
  %v2603 = vadd.f32 %v2532, %v2581
  %v2604 = vadd.f32 %v2533, %v2581
  %v2605 = vadd.f32 %v2534, %v2581
  %v2606 = vadd.f32 %v2535, %v2581
  %v2607 = vadd.f32 %v2536, %v2581
  %v2608 = vadd.f32 %v2537, %v2581
  %v2609 = vadd.f32 %v2538, %v2581
  %v2610 = vadd.f32 %v2539, %v2581
  %v2611 = vadd.f32 %v2540, %v2581
  %v2612 = vadd.f32 %v2541, %v2581
  %v2613 = vadd.f32 %v2542, %v2581
  %v2614 = vadd.f32 %v2543, %v2581
  %v2615 = vadd.f32 %v2544, %v2581
  %v2616 = vadd.f32 %v2545, %v2581
  %v2617 = vadd.f32 %v2546, %v2581
  %v2618 = vadd.f32 %v2547, %v2581
  %v2619 = vadd.f32 %v2548, %v2581
  %v2620 = vadd.f32 %v2549, %v2581
  %v2621 = vadd.f32 %v2550, %v2581
  %v2622 = vadd.f32 %v2551, %v2581
  %v2623 = vadd.f32 %v2552, %v2581
  %v2624 = vadd.f32 %v2553, %v2581
  %v2625 = vadd.f32 %v2554, %v2581
  %v2626 = vadd.f32 %v2555, %v2581
  %v2627 = vadd.f32 %v2556, %v2581
  %v2628 = vadd.f32 %v2557, %v2581
  %v2629 = vadd.f32 %v2558, %v2581
  %v2630 = vadd.f32 %v2559, %v2581
  %v2631 = vadd.f32 %v2560, %v2581
  %v2632 = vadd.f32 %v2561, %v2581
  %v2633 = vadd.f32 %v2562, %v2581
  %v2634 = vadd.f32 %v2563, %v2581
  %v2635 = vadd.f32 %v2564, %v2581
  %v2636 = vadd.f32 %v2565, %v2581
  %v2637 = vadd.f32 %v2566, %v2581
  %v2638 = vadd.f32 %v2567, %v2581
  %v2639 = vadd.f32 %v2568, %v2581
  %v2640 = vadd.f32 %v2569, %v2581
  %v2641 = vadd.f32 %v2570, %v2581
  %v2642 = vadd.f32 %v2571, %v2581
  %v2643 = vadd.f32 %v2572, %v2581
  %v2644 = vadd.f32 %v2573, %v2581
  %v2645 = vadd.f32 %v2574, %v2581
  %v2646 = vadd.f32 %v2575, %v2581
  %v2647 = vmax.f32 %v2583, 0.0
  %v2648 = vmax.f32 %v2584, 0.0
  %v2649 = vmax.f32 %v2585, 0.0
  %v2650 = vmax.f32 %v2586, 0.0
  %v2651 = vmax.f32 %v2587, 0.0
  %v2652 = vmax.f32 %v2588, 0.0
  %v2653 = vmax.f32 %v2589, 0.0
  %v2654 = vmax.f32 %v2590, 0.0
  %v2655 = vmax.f32 %v2591, 0.0
  %v2656 = vmax.f32 %v2592, 0.0
  %v2657 = vmax.f32 %v2593, 0.0
  %v2658 = vmax.f32 %v2594, 0.0
  %v2659 = vmax.f32 %v2595, 0.0
  %v2660 = vmax.f32 %v2596, 0.0
  %v2661 = vmax.f32 %v2597, 0.0
  %v2662 = vmax.f32 %v2598, 0.0
  %v2663 = vmax.f32 %v2599, 0.0
  %v2664 = vmax.f32 %v2600, 0.0
  %v2665 = vmax.f32 %v2601, 0.0
  %v2666 = vmax.f32 %v2602, 0.0
  %v2667 = vmax.f32 %v2603, 0.0
  %v2668 = vmax.f32 %v2604, 0.0
  %v2669 = vmax.f32 %v2605, 0.0
  %v2670 = vmax.f32 %v2606, 0.0
  %v2671 = vmax.f32 %v2607, 0.0
  %v2672 = vmax.f32 %v2608, 0.0
  %v2673 = vmax.f32 %v2609, 0.0
  %v2674 = vmax.f32 %v2610, 0.0
  %v2675 = vmax.f32 %v2611, 0.0
  %v2676 = vmax.f32 %v2612, 0.0
  %v2677 = vmax.f32 %v2613, 0.0
  %v2678 = vmax.f32 %v2614, 0.0
  %v2679 = vmax.f32 %v2615, 0.0
  %v2680 = vmax.f32 %v2616, 0.0
  %v2681 = vmax.f32 %v2617, 0.0
  %v2682 = vmax.f32 %v2618, 0.0
  %v2683 = vmax.f32 %v2619, 0.0
  %v2684 = vmax.f32 %v2620, 0.0
  %v2685 = vmax.f32 %v2621, 0.0
  %v2686 = vmax.f32 %v2622, 0.0
  %v2687 = vmax.f32 %v2623, 0.0
  %v2688 = vmax.f32 %v2624, 0.0
  %v2689 = vmax.f32 %v2625, 0.0
  %v2690 = vmax.f32 %v2626, 0.0
  %v2691 = vmax.f32 %v2627, 0.0
  %v2692 = vmax.f32 %v2628, 0.0
  %v2693 = vmax.f32 %v2629, 0.0
  %v2694 = vmax.f32 %v2630, 0.0
  %v2695 = vmax.f32 %v2631, 0.0
  %v2696 = vmax.f32 %v2632, 0.0
  %v2697 = vmax.f32 %v2633, 0.0
  %v2698 = vmax.f32 %v2634, 0.0
  %v2699 = vmax.f32 %v2635, 0.0
  %v2700 = vmax.f32 %v2636, 0.0
  %v2701 = vmax.f32 %v2637, 0.0
  %v2702 = vmax.f32 %v2638, 0.0
  %v2703 = vmax.f32 %v2639, 0.0
  %v2704 = vmax.f32 %v2640, 0.0
  %v2705 = vmax.f32 %v2641, 0.0
  %v2706 = vmax.f32 %v2642, 0.0
  %v2707 = vmax.f32 %v2643, 0.0
  %v2708 = vmax.f32 %v2644, 0.0
  %v2709 = vmax.f32 %v2645, 0.0
  %v2710 = vmax.f32 %v2646, 0.0
  %v2711 = vld [vmem:[%s3] sm:$0xff]
  %v2712 = vld [vmem:[%s3 + $0x8] sm:$0xff]
  %v2713 = vld [vmem:[%s3 + $0x10] sm:$0xff]
  %v2714 = vld [vmem:[%s3 + $0x18] sm:$0xff]
  %v2715 = vld [vmem:[%s3 + $0x20] sm:$0xff]
  %v2716 = vld [vmem:[%s3 + $0x28] sm:$0xff]
  %v2717 = vld [vmem:[%s3 + $0x30] sm:$0xff]
  %v2718 = vld [vmem:[%s3 + $0x38] sm:$0xff]
  %v2719 = vmul.f32 %v2647, %v2711
  %v2720 = vmul.f32 %v2648, %v2712
  %v2721 = vmul.f32 %v2649, %v2713
  %v2722 = vmul.f32 %v2650, %v2714
  %v2723 = vmul.f32 %v2651, %v2715
  %v2724 = vmul.f32 %v2652, %v2716
  %v2725 = vmul.f32 %v2653, %v2717
  %v2726 = vmul.f32 %v2654, %v2718
  %v2727 = vmul.f32 %v2655, %v2711
  %v2728 = vmul.f32 %v2656, %v2712
  %v2729 = vmul.f32 %v2657, %v2713
  %v2730 = vmul.f32 %v2658, %v2714
  %v2731 = vmul.f32 %v2659, %v2715
  %v2732 = vmul.f32 %v2660, %v2716
  %v2733 = vmul.f32 %v2661, %v2717
  %v2734 = vmul.f32 %v2662, %v2718
  %v2735 = vmul.f32 %v2663, %v2711
  %v2736 = vmul.f32 %v2664, %v2712
  %v2737 = vmul.f32 %v2665, %v2713
  %v2738 = vmul.f32 %v2666, %v2714
  %v2739 = vmul.f32 %v2667, %v2715
  %v2740 = vmul.f32 %v2668, %v2716
  %v2741 = vmul.f32 %v2669, %v2717
  %v2742 = vmul.f32 %v2670, %v2718
  %v2743 = vmul.f32 %v2671, %v2711
  %v2744 = vmul.f32 %v2672, %v2712
  %v2745 = vmul.f32 %v2673, %v2713
  %v2746 = vmul.f32 %v2674, %v2714
  %v2747 = vmul.f32 %v2675, %v2715
  %v2748 = vmul.f32 %v2676, %v2716
  %v2749 = vmul.f32 %v2677, %v2717
  %v2750 = vmul.f32 %v2678, %v2718
  %v2751 = vmul.f32 %v2679, %v2711
  %v2752 = vmul.f32 %v2680, %v2712
  %v2753 = vmul.f32 %v2681, %v2713
  %v2754 = vmul.f32 %v2682, %v2714
  %v2755 = vmul.f32 %v2683, %v2715
  %v2756 = vmul.f32 %v2684, %v2716
  %v2757 = vmul.f32 %v2685, %v2717
  %v2758 = vmul.f32 %v2686, %v2718
  %v2759 = vmul.f32 %v2687, %v2711
  %v2760 = vmul.f32 %v2688, %v2712
  %v2761 = vmul.f32 %v2689, %v2713
  %v2762 = vmul.f32 %v2690, %v2714
  %v2763 = vmul.f32 %v2691, %v2715
  %v2764 = vmul.f32 %v2692, %v2716
  %v2765 = vmul.f32 %v2693, %v2717
  %v2766 = vmul.f32 %v2694, %v2718
  %v2767 = vmul.f32 %v2695, %v2711
  %v2768 = vmul.f32 %v2696, %v2712
  %v2769 = vmul.f32 %v2697, %v2713
  %v2770 = vmul.f32 %v2698, %v2714
  %v2771 = vmul.f32 %v2699, %v2715
  %v2772 = vmul.f32 %v2700, %v2716
  %v2773 = vmul.f32 %v2701, %v2717
  %v2774 = vmul.f32 %v2702, %v2718
  %v2775 = vmul.f32 %v2703, %v2711
  %v2776 = vmul.f32 %v2704, %v2712
  %v2777 = vmul.f32 %v2705, %v2713
  %v2778 = vmul.f32 %v2706, %v2714
  %v2779 = vmul.f32 %v2707, %v2715
  %v2780 = vmul.f32 %v2708, %v2716
  %v2781 = vmul.f32 %v2709, %v2717
  %v2782 = vmul.f32 %v2710, %v2718
  %v2783 = vpack.c.bf16 %v2720, %v2719
  %v2784 = vpack.c.bf16 %v2722, %v2721
  %v2785 = vpack.c.bf16 %v2724, %v2723
  %v2786 = vpack.c.bf16 %v2726, %v2725
  %v2787 = vpack.c.bf16 %v2728, %v2727
  %v2788 = vpack.c.bf16 %v2730, %v2729
  %v2789 = vpack.c.bf16 %v2732, %v2731
  %v2790 = vpack.c.bf16 %v2734, %v2733
  %v2791 = vpack.c.bf16 %v2736, %v2735
  %v2792 = vpack.c.bf16 %v2738, %v2737
  %v2793 = vpack.c.bf16 %v2740, %v2739
  %v2794 = vpack.c.bf16 %v2742, %v2741
  %v2795 = vpack.c.bf16 %v2744, %v2743
  %v2796 = vpack.c.bf16 %v2746, %v2745
  %v2797 = vpack.c.bf16 %v2748, %v2747
  %v2798 = vpack.c.bf16 %v2750, %v2749
  %v2799 = vpack.c.bf16 %v2752, %v2751
  %v2800 = vpack.c.bf16 %v2754, %v2753
  %v2801 = vpack.c.bf16 %v2756, %v2755
  %v2802 = vpack.c.bf16 %v2758, %v2757
  %v2803 = vpack.c.bf16 %v2760, %v2759
  %v2804 = vpack.c.bf16 %v2762, %v2761
  %v2805 = vpack.c.bf16 %v2764, %v2763
  %v2806 = vpack.c.bf16 %v2766, %v2765
  %v2807 = vpack.c.bf16 %v2768, %v2767
  %v2808 = vpack.c.bf16 %v2770, %v2769
  %v2809 = vpack.c.bf16 %v2772, %v2771
  %v2810 = vpack.c.bf16 %v2774, %v2773
  %v2811 = vpack.c.bf16 %v2776, %v2775
  %v2812 = vpack.c.bf16 %v2778, %v2777
  %v2813 = vpack.c.bf16 %v2780, %v2779
  %v2814 = vpack.c.bf16 %v2782, %v2781
  %2824 = vrot.lane.b32.xlu0 0, 16
  %v2825 = vpop.permute.xlu0 %2824
  %2826 = vrot.lane.b32.xlu0 %v2787, 16
  %v2827 = vpop.permute.xlu0 %2826
  %2828 = vrot.lane.b32.xlu0 %v2788, 16
  %v2829 = vpop.permute.xlu0 %2828
  %2830 = vrot.lane.b32.xlu0 %v2789, 16
  %v2831 = vpop.permute.xlu0 %2830
  %2832 = vrot.lane.b32.xlu0 %v2790, 16
  %v2833 = vpop.permute.xlu0 %2832
  %2834 = vrot.lane.b32.xlu0 %v2803, 16
  %v2835 = vpop.permute.xlu0 %2834
  %2836 = vrot.lane.b32.xlu0 %v2804, 16
  %v2837 = vpop.permute.xlu0 %2836
  %2838 = vrot.lane.b32.xlu0 %v2805, 16
  %v2839 = vpop.permute.xlu0 %2838
  %2840 = vrot.lane.b32.xlu0 %v2806, 16
  %v2841 = vpop.permute.xlu0 %2840
  %vm2842 = vsmask.f32 7424
  %v2844 = vshrl.u32 0, 16
  %v2846 = vshll.u32 0, 16
  %v2848 = vrot.slane %v2846, 1
  %v2849 = vor.u32 %v2844, %v2848
  %v2851 = vshll.u32 %v2783, 16
  %v2853 = vrot.slane %v2851, 1
  %v2854 = vsel %vm2842, %v2849, %v2853
  %v2855 = vshrl.u32 %v2783, 16
  %v2857 = vor.u32 %v2855, %v2853
  %v2859 = vshll.u32 %v2784, 16
  %v2861 = vrot.slane %v2859, 1
  %v2862 = vsel %vm2842, %v2857, %v2861
  %v2863 = vshrl.u32 %v2784, 16
  %v2865 = vor.u32 %v2863, %v2861
  %v2867 = vshll.u32 %v2785, 16
  %v2869 = vrot.slane %v2867, 1
  %v2870 = vsel %vm2842, %v2865, %v2869
  %v2871 = vshrl.u32 %v2785, 16
  %v2873 = vor.u32 %v2871, %v2869
  %v2875 = vshll.u32 %v2786, 16
  %v2877 = vrot.slane %v2875, 1
  %v2878 = vsel %vm2842, %v2873, %v2877
  %v2879 = vshrl.u32 %v2786, 16
  %v2881 = vor.u32 %v2879, %v2877
  %v2883 = vshll.u32 %v2799, 16
  %v2885 = vrot.slane %v2883, 1
  %v2886 = vsel %vm2842, %v2849, %v2885
  %v2887 = vshrl.u32 %v2799, 16
  %v2889 = vor.u32 %v2887, %v2885
  %v2891 = vshll.u32 %v2800, 16
  %v2893 = vrot.slane %v2891, 1
  %v2894 = vsel %vm2842, %v2889, %v2893
  %v2895 = vshrl.u32 %v2800, 16
  %v2897 = vor.u32 %v2895, %v2893
  %v2899 = vshll.u32 %v2801, 16
  %v2901 = vrot.slane %v2899, 1
  %v2902 = vsel %vm2842, %v2897, %v2901
  %v2903 = vshrl.u32 %v2801, 16
  %v2905 = vor.u32 %v2903, %v2901
  %v2907 = vshll.u32 %v2802, 16
  %v2909 = vrot.slane %v2907, 1
  %v2910 = vsel %vm2842, %v2905, %v2909
  %v2911 = vshrl.u32 %v2802, 16
  %v2913 = vor.u32 %v2911, %v2909
  %2914 = vrot.lane.b32.xlu0 %v2854, 32
  %v2915 = vpop.permute.xlu0 %2914
  %2916 = vrot.lane.b32.xlu0 %v2862, 32
  %v2917 = vpop.permute.xlu0 %2916
  %2918 = vrot.lane.b32.xlu0 %v2870, 32
  %v2919 = vpop.permute.xlu0 %2918
  %2920 = vrot.lane.b32.xlu0 %v2878, 32
  %v2921 = vpop.permute.xlu0 %2920
  %2922 = vrot.lane.b32.xlu0 %v2881, 32
  %v2923 = vpop.permute.xlu0 %2922
  %2924 = vrot.lane.b32.xlu0 %v2886, 32
  %v2925 = vpop.permute.xlu0 %2924
  %2926 = vrot.lane.b32.xlu0 %v2894, 32
  %v2927 = vpop.permute.xlu0 %2926
  %2928 = vrot.lane.b32.xlu0 %v2902, 32
  %v2929 = vpop.permute.xlu0 %2928
  %2930 = vrot.lane.b32.xlu0 %v2910, 32
  %v2931 = vpop.permute.xlu0 %2930
  %2932 = vrot.lane.b32.xlu0 %v2913, 32
  %v2933 = vpop.permute.xlu0 %2932
  %v2935 = vshll.u32 %v2787, 16
  %v2937 = vrot.slane %v2935, 1
  %v2938 = vsel %vm2842, %v2849, %v2937
  %v2939 = vshrl.u32 %v2787, 16
  %v2941 = vor.u32 %v2939, %v2937
  %v2943 = vshll.u32 %v2788, 16
  %v2945 = vrot.slane %v2943, 1
  %v2946 = vsel %vm2842, %v2941, %v2945
  %v2947 = vshrl.u32 %v2788, 16
  %v2949 = vor.u32 %v2947, %v2945
  %v2951 = vshll.u32 %v2789, 16
  %v2953 = vrot.slane %v2951, 1
  %v2954 = vsel %vm2842, %v2949, %v2953
  %v2955 = vshrl.u32 %v2789, 16
  %v2957 = vor.u32 %v2955, %v2953
  %v2959 = vshll.u32 %v2790, 16
  %v2961 = vrot.slane %v2959, 1
  %v2962 = vsel %vm2842, %v2957, %v2961
  %v2963 = vshrl.u32 %v2790, 16
  %v2965 = vor.u32 %v2963, %v2961
  %v2967 = vshll.u32 %v2803, 16
  %v2969 = vrot.slane %v2967, 1
  %v2970 = vsel %vm2842, %v2849, %v2969
  %v2971 = vshrl.u32 %v2803, 16
  %v2973 = vor.u32 %v2971, %v2969
  %v2975 = vshll.u32 %v2804, 16
  %v2977 = vrot.slane %v2975, 1
  %v2978 = vsel %vm2842, %v2973, %v2977
  %v2979 = vshrl.u32 %v2804, 16
  %v2981 = vor.u32 %v2979, %v2977
  %v2983 = vshll.u32 %v2805, 16
  %v2985 = vrot.slane %v2983, 1
  %v2986 = vsel %vm2842, %v2981, %v2985
  %v2987 = vshrl.u32 %v2805, 16
  %v2989 = vor.u32 %v2987, %v2985
  %v2991 = vshll.u32 %v2806, 16
  %v2993 = vrot.slane %v2991, 1
  %v2994 = vsel %vm2842, %v2989, %v2993
  %v2995 = vshrl.u32 %v2806, 16
  %v2997 = vor.u32 %v2995, %v2993
  %2998 = vrot.lane.b32.xlu0 %v2938, 48
  %v2999 = vpop.permute.xlu0 %2998
  %3000 = vrot.lane.b32.xlu0 %v2946, 48
  %v3001 = vpop.permute.xlu0 %3000
  %3002 = vrot.lane.b32.xlu0 %v2954, 48
  %v3003 = vpop.permute.xlu0 %3002
  %3004 = vrot.lane.b32.xlu0 %v2962, 48
  %v3005 = vpop.permute.xlu0 %3004
  %3006 = vrot.lane.b32.xlu0 %v2965, 48
  %v3007 = vpop.permute.xlu0 %3006
  %3008 = vrot.lane.b32.xlu0 %v2970, 48
  %v3009 = vpop.permute.xlu0 %3008
  %3010 = vrot.lane.b32.xlu0 %v2978, 48
  %v3011 = vpop.permute.xlu0 %3010
  %3012 = vrot.lane.b32.xlu0 %v2986, 48
  %v3013 = vpop.permute.xlu0 %3012
  %3014 = vrot.lane.b32.xlu0 %v2994, 48
  %v3015 = vpop.permute.xlu0 %3014
  %3016 = vrot.lane.b32.xlu0 %v2997, 48
  %v3017 = vpop.permute.xlu0 %3016
  %vm3026 = vcmask 1046528
  %v3027 = vrot.slane 0, 1
  %v3028 = vrot.slane %v2783, 1
  %v3029 = vsel %vm3026, %v3027, %v3028
  %v3030 = vrot.slane %v2784, 1
  %v3031 = vsel %vm3026, %v3028, %v3030
  %v3032 = vrot.slane %v2785, 1
  %v3033 = vsel %vm3026, %v3030, %v3032
  %v3034 = vrot.slane %v2786, 1
  %v3035 = vsel %vm3026, %v3032, %v3034
  %v3036 = vrot.slane %v2799, 1
  %v3037 = vsel %vm3026, %v3027, %v3036
  %v3038 = vrot.slane %v2800, 1
  %v3039 = vsel %vm3026, %v3036, %v3038
  %v3040 = vrot.slane %v2801, 1
  %v3041 = vsel %vm3026, %v3038, %v3040
  %v3042 = vrot.slane %v2802, 1
  %v3043 = vsel %vm3026, %v3040, %v3042
  %3044 = vrot.lane.b32.xlu0 %v3029, 64
  %v3045 = vpop.permute.xlu0 %3044
  %3046 = vrot.lane.b32.xlu0 %v3031, 64
  %v3047 = vpop.permute.xlu0 %3046
  %3048 = vrot.lane.b32.xlu0 %v3033, 64
  %v3049 = vpop.permute.xlu0 %3048
  %3050 = vrot.lane.b32.xlu0 %v3035, 64
  %v3051 = vpop.permute.xlu0 %3050
  %3052 = vrot.lane.b32.xlu0 %v3034, 64
  %v3053 = vpop.permute.xlu0 %3052
  %3054 = vrot.lane.b32.xlu0 %v3037, 64
  %v3055 = vpop.permute.xlu0 %3054
  %3056 = vrot.lane.b32.xlu0 %v3039, 64
  %v3057 = vpop.permute.xlu0 %3056
  %3058 = vrot.lane.b32.xlu0 %v3041, 64
  %v3059 = vpop.permute.xlu0 %3058
  %3060 = vrot.lane.b32.xlu0 %v3043, 64
  %v3061 = vpop.permute.xlu0 %3060
  %3062 = vrot.lane.b32.xlu0 %v3042, 64
  %v3063 = vpop.permute.xlu0 %3062
  %3072 = vrot.lane.b32.xlu0 0, 80
  %v3073 = vpop.permute.xlu0 %3072
  %3074 = vrot.lane.b32.xlu0 %v2791, 80
  %v3075 = vpop.permute.xlu0 %3074
  %3076 = vrot.lane.b32.xlu0 %v2792, 80
  %v3077 = vpop.permute.xlu0 %3076
  %3078 = vrot.lane.b32.xlu0 %v2793, 80
  %v3079 = vpop.permute.xlu0 %3078
  %3080 = vrot.lane.b32.xlu0 %v2794, 80
  %v3081 = vpop.permute.xlu0 %3080
  %3082 = vrot.lane.b32.xlu0 %v2807, 80
  %v3083 = vpop.permute.xlu0 %3082
  %3084 = vrot.lane.b32.xlu0 %v2808, 80
  %v3085 = vpop.permute.xlu0 %3084
  %3086 = vrot.lane.b32.xlu0 %v2809, 80
  %v3087 = vpop.permute.xlu0 %3086
  %3088 = vrot.lane.b32.xlu0 %v2810, 80
  %v3089 = vpop.permute.xlu0 %3088
  %3098 = vrot.lane.b32.xlu0 0, 96
  %v3099 = vpop.permute.xlu0 %3098
  %3100 = vrot.lane.b32.xlu0 %v2795, 96
  %v3101 = vpop.permute.xlu0 %3100
  %3102 = vrot.lane.b32.xlu0 %v2796, 96
  %v3103 = vpop.permute.xlu0 %3102
  %3104 = vrot.lane.b32.xlu0 %v2797, 96
  %v3105 = vpop.permute.xlu0 %3104
  %3106 = vrot.lane.b32.xlu0 %v2798, 96
  %v3107 = vpop.permute.xlu0 %3106
  %3108 = vrot.lane.b32.xlu0 %v2811, 96
  %v3109 = vpop.permute.xlu0 %3108
  %3110 = vrot.lane.b32.xlu0 %v2812, 96
  %v3111 = vpop.permute.xlu0 %3110
  %3112 = vrot.lane.b32.xlu0 %v2813, 96
  %v3113 = vpop.permute.xlu0 %3112
  %3114 = vrot.lane.b32.xlu0 %v2814, 96
  %v3115 = vpop.permute.xlu0 %3114
  %v3117 = vshll.u32 %v2791, 16
  %v3119 = vrot.slane %v3117, 1
  %v3120 = vsel %vm2842, %v2849, %v3119
  %v3121 = vshrl.u32 %v2791, 16
  %v3123 = vor.u32 %v3121, %v3119
  %v3125 = vshll.u32 %v2792, 16
  %v3127 = vrot.slane %v3125, 1
  %v3128 = vsel %vm2842, %v3123, %v3127
  %v3129 = vshrl.u32 %v2792, 16
  %v3131 = vor.u32 %v3129, %v3127
  %v3133 = vshll.u32 %v2793, 16
  %v3135 = vrot.slane %v3133, 1
  %v3136 = vsel %vm2842, %v3131, %v3135
  %v3137 = vshrl.u32 %v2793, 16
  %v3139 = vor.u32 %v3137, %v3135
  %v3141 = vshll.u32 %v2794, 16
  %v3143 = vrot.slane %v3141, 1
  %v3144 = vsel %vm2842, %v3139, %v3143
  %v3145 = vshrl.u32 %v2794, 16
  %v3147 = vor.u32 %v3145, %v3143
  %v3149 = vshll.u32 %v2807, 16
  %v3151 = vrot.slane %v3149, 1
  %v3152 = vsel %vm2842, %v2849, %v3151
  %v3153 = vshrl.u32 %v2807, 16
  %v3155 = vor.u32 %v3153, %v3151
  %v3157 = vshll.u32 %v2808, 16
  %v3159 = vrot.slane %v3157, 1
  %v3160 = vsel %vm2842, %v3155, %v3159
  %v3161 = vshrl.u32 %v2808, 16
  %v3163 = vor.u32 %v3161, %v3159
  %v3165 = vshll.u32 %v2809, 16
  %v3167 = vrot.slane %v3165, 1
  %v3168 = vsel %vm2842, %v3163, %v3167
  %v3169 = vshrl.u32 %v2809, 16
  %v3171 = vor.u32 %v3169, %v3167
  %v3173 = vshll.u32 %v2810, 16
  %v3175 = vrot.slane %v3173, 1
  %v3176 = vsel %vm2842, %v3171, %v3175
  %v3177 = vshrl.u32 %v2810, 16
  %v3179 = vor.u32 %v3177, %v3175
  %3180 = vrot.lane.b32.xlu0 %v3120, 112
  %v3181 = vpop.permute.xlu0 %3180
  %3182 = vrot.lane.b32.xlu0 %v3128, 112
  %v3183 = vpop.permute.xlu0 %3182
  %3184 = vrot.lane.b32.xlu0 %v3136, 112
  %v3185 = vpop.permute.xlu0 %3184
  %3186 = vrot.lane.b32.xlu0 %v3144, 112
  %v3187 = vpop.permute.xlu0 %3186
  %3188 = vrot.lane.b32.xlu0 %v3147, 112
  %v3189 = vpop.permute.xlu0 %3188
  %3190 = vrot.lane.b32.xlu0 %v3152, 112
  %v3191 = vpop.permute.xlu0 %3190
  %3192 = vrot.lane.b32.xlu0 %v3160, 112
  %v3193 = vpop.permute.xlu0 %3192
  %3194 = vrot.lane.b32.xlu0 %v3168, 112
  %v3195 = vpop.permute.xlu0 %3194
  %3196 = vrot.lane.b32.xlu0 %v3176, 112
  %v3197 = vpop.permute.xlu0 %3196
  %3198 = vrot.lane.b32.xlu0 %v3179, 112
  %v3199 = vpop.permute.xlu0 %3198
  %v3201 = vshll.u32 %v2795, 16
  %v3203 = vrot.slane %v3201, 1
  %v3204 = vsel %vm2842, %v2849, %v3203
  %v3205 = vshrl.u32 %v2795, 16
  %v3207 = vor.u32 %v3205, %v3203
  %v3209 = vshll.u32 %v2796, 16
  %v3211 = vrot.slane %v3209, 1
  %v3212 = vsel %vm2842, %v3207, %v3211
  %v3213 = vshrl.u32 %v2796, 16
  %v3215 = vor.u32 %v3213, %v3211
  %v3217 = vshll.u32 %v2797, 16
  %v3219 = vrot.slane %v3217, 1
  %v3220 = vsel %vm2842, %v3215, %v3219
  %v3221 = vshrl.u32 %v2797, 16
  %v3223 = vor.u32 %v3221, %v3219
  %v3225 = vshll.u32 %v2798, 16
  %v3227 = vrot.slane %v3225, 1
  %v3228 = vsel %vm2842, %v3223, %v3227
  %v3229 = vshrl.u32 %v2798, 16
  %v3231 = vor.u32 %v3229, %v3227
  %v3233 = vshll.u32 %v2811, 16
  %v3235 = vrot.slane %v3233, 1
  %v3236 = vsel %vm2842, %v2849, %v3235
  %v3237 = vshrl.u32 %v2811, 16
  %v3239 = vor.u32 %v3237, %v3235
  %v3241 = vshll.u32 %v2812, 16
  %v3243 = vrot.slane %v3241, 1
  %v3244 = vsel %vm2842, %v3239, %v3243
  %v3245 = vshrl.u32 %v2812, 16
  %v3247 = vor.u32 %v3245, %v3243
  %v3249 = vshll.u32 %v2813, 16
  %v3251 = vrot.slane %v3249, 1
  %v3252 = vsel %vm2842, %v3247, %v3251
  %v3253 = vshrl.u32 %v2813, 16
  %v3255 = vor.u32 %v3253, %v3251
  %v3257 = vshll.u32 %v2814, 16
  %v3259 = vrot.slane %v3257, 1
  %v3260 = vsel %vm2842, %v3255, %v3259
  %v3261 = vshrl.u32 %v2814, 16
  %v3263 = vor.u32 %v3261, %v3259
  %v3264 = vrot.slane %v2791, 1
  %v3265 = vsel %vm3026, %v3027, %v3264
  %v3266 = vrot.slane %v2792, 1
  %v3267 = vsel %vm3026, %v3264, %v3266
  %v3268 = vrot.slane %v2793, 1
  %v3269 = vsel %vm3026, %v3266, %v3268
  %v3270 = vrot.slane %v2794, 1
  %v3271 = vsel %vm3026, %v3268, %v3270
  %v3272 = vrot.slane %v2807, 1
  %v3273 = vsel %vm3026, %v3027, %v3272
  %v3274 = vrot.slane %v2808, 1
  %v3275 = vsel %vm3026, %v3272, %v3274
  %v3276 = vrot.slane %v2809, 1
  %v3277 = vsel %vm3026, %v3274, %v3276
  %v3278 = vrot.slane %v2810, 1
  %v3279 = vsel %vm3026, %v3276, %v3278
  %3280 = vrot.lane.b32.xlu0 %v3265, 16
  %v3281 = vpop.permute.xlu0 %3280
  %3282 = vrot.lane.b32.xlu0 %v3267, 16
  %v3283 = vpop.permute.xlu0 %3282
  %3284 = vrot.lane.b32.xlu0 %v3269, 16
  %v3285 = vpop.permute.xlu0 %3284
  %3286 = vrot.lane.b32.xlu0 %v3271, 16
  %v3287 = vpop.permute.xlu0 %3286
  %3288 = vrot.lane.b32.xlu0 %v3270, 16
  %v3289 = vpop.permute.xlu0 %3288
  %3290 = vrot.lane.b32.xlu0 %v3273, 16
  %v3291 = vpop.permute.xlu0 %3290
  %3292 = vrot.lane.b32.xlu0 %v3275, 16
  %v3293 = vpop.permute.xlu0 %3292
  %3294 = vrot.lane.b32.xlu0 %v3277, 16
  %v3295 = vpop.permute.xlu0 %3294
  %3296 = vrot.lane.b32.xlu0 %v3279, 16
  %v3297 = vpop.permute.xlu0 %3296
  %3298 = vrot.lane.b32.xlu0 %v3278, 16
  %v3299 = vpop.permute.xlu0 %3298
  %vm3300 = vsmask.f32 3328
  %v3301 = vrot.slane %v2844, 4
  %v3302 = vrot.slane %v2855, 4
  %v3303 = vrot.slane %v2851, 5
  %v3304 = vor.u32 %v3302, %v3303
  %v3305 = vsel %vm3300, %v3301, %v3304
  %v3306 = vrot.slane %v2863, 4
  %v3307 = vrot.slane %v2859, 5
  %v3308 = vor.u32 %v3306, %v3307
  %v3309 = vsel %vm3300, %v3304, %v3308
  %v3310 = vrot.slane %v2871, 4
  %v3311 = vrot.slane %v2867, 5
  %v3312 = vor.u32 %v3310, %v3311
  %v3313 = vsel %vm3300, %v3308, %v3312
  %v3314 = vrot.slane %v2879, 4
  %v3315 = vrot.slane %v2875, 5
  %v3316 = vor.u32 %v3314, %v3315
  %v3317 = vsel %vm3300, %v3312, %v3316
  %v3318 = vrot.slane %v2887, 4
  %v3319 = vrot.slane %v2883, 5
  %v3320 = vor.u32 %v3318, %v3319
  %v3321 = vsel %vm3300, %v3301, %v3320
  %v3322 = vrot.slane %v2895, 4
  %v3323 = vrot.slane %v2891, 5
  %v3324 = vor.u32 %v3322, %v3323
  %v3325 = vsel %vm3300, %v3320, %v3324
  %v3326 = vrot.slane %v2903, 4
  %v3327 = vrot.slane %v2899, 5
  %v3328 = vor.u32 %v3326, %v3327
  %v3329 = vsel %vm3300, %v3324, %v3328
  %v3330 = vrot.slane %v2911, 4
  %v3331 = vrot.slane %v2907, 5
  %v3332 = vor.u32 %v3330, %v3331
  %v3333 = vsel %vm3300, %v3328, %v3332
  %3334 = vrot.lane.b32.xlu0 %v3305, 32
  %v3335 = vpop.permute.xlu0 %3334
  %3336 = vrot.lane.b32.xlu0 %v3309, 32
  %v3337 = vpop.permute.xlu0 %3336
  %3338 = vrot.lane.b32.xlu0 %v3313, 32
  %v3339 = vpop.permute.xlu0 %3338
  %3340 = vrot.lane.b32.xlu0 %v3317, 32
  %v3341 = vpop.permute.xlu0 %3340
  %3342 = vrot.lane.b32.xlu0 %v3316, 32
  %v3343 = vpop.permute.xlu0 %3342
  %3344 = vrot.lane.b32.xlu0 %v3321, 32
  %v3345 = vpop.permute.xlu0 %3344
  %3346 = vrot.lane.b32.xlu0 %v3325, 32
  %v3347 = vpop.permute.xlu0 %3346
  %3348 = vrot.lane.b32.xlu0 %v3329, 32
  %v3349 = vpop.permute.xlu0 %3348
  %3350 = vrot.lane.b32.xlu0 %v3333, 32
  %v3351 = vpop.permute.xlu0 %3350
  %3352 = vrot.lane.b32.xlu0 %v3332, 32
  %v3353 = vpop.permute.xlu0 %3352
  %v3354 = vrot.slane %v2939, 4
  %v3355 = vrot.slane %v2935, 5
  %v3356 = vor.u32 %v3354, %v3355
  %v3357 = vsel %vm3300, %v3301, %v3356
  %v3358 = vrot.slane %v2947, 4
  %v3359 = vrot.slane %v2943, 5
  %v3360 = vor.u32 %v3358, %v3359
  %v3361 = vsel %vm3300, %v3356, %v3360
  %v3362 = vrot.slane %v2955, 4
  %v3363 = vrot.slane %v2951, 5
  %v3364 = vor.u32 %v3362, %v3363
  %v3365 = vsel %vm3300, %v3360, %v3364
  %v3366 = vrot.slane %v2963, 4
  %v3367 = vrot.slane %v2959, 5
  %v3368 = vor.u32 %v3366, %v3367
  %v3369 = vsel %vm3300, %v3364, %v3368
  %v3370 = vrot.slane %v2971, 4
  %v3371 = vrot.slane %v2967, 5
  %v3372 = vor.u32 %v3370, %v3371
  %v3373 = vsel %vm3300, %v3301, %v3372
  %v3374 = vrot.slane %v2979, 4
  %v3375 = vrot.slane %v2975, 5
  %v3376 = vor.u32 %v3374, %v3375
  %v3377 = vsel %vm3300, %v3372, %v3376
  %v3378 = vrot.slane %v2987, 4
  %v3379 = vrot.slane %v2983, 5
  %v3380 = vor.u32 %v3378, %v3379
  %v3381 = vsel %vm3300, %v3376, %v3380
  %v3382 = vrot.slane %v2995, 4
  %v3383 = vrot.slane %v2991, 5
  %v3384 = vor.u32 %v3382, %v3383
  %v3385 = vsel %vm3300, %v3380, %v3384
  %3386 = vrot.lane.b32.xlu0 %v3357, 48
  %v3387 = vpop.permute.xlu0 %3386
  %3388 = vrot.lane.b32.xlu0 %v3361, 48
  %v3389 = vpop.permute.xlu0 %3388
  %3390 = vrot.lane.b32.xlu0 %v3365, 48
  %v3391 = vpop.permute.xlu0 %3390
  %3392 = vrot.lane.b32.xlu0 %v3369, 48
  %v3393 = vpop.permute.xlu0 %3392
  %3394 = vrot.lane.b32.xlu0 %v3368, 48
  %v3395 = vpop.permute.xlu0 %3394
  %3396 = vrot.lane.b32.xlu0 %v3373, 48
  %v3397 = vpop.permute.xlu0 %3396
  %3398 = vrot.lane.b32.xlu0 %v3377, 48
  %v3399 = vpop.permute.xlu0 %3398
  %3400 = vrot.lane.b32.xlu0 %v3381, 48
  %v3401 = vpop.permute.xlu0 %3400
  %3402 = vrot.lane.b32.xlu0 %v3385, 48
  %v3403 = vpop.permute.xlu0 %3402
  %3404 = vrot.lane.b32.xlu0 %v3384, 48
  %v3405 = vpop.permute.xlu0 %3404
  %vm3406 = vcmask 1042432
  %v3407 = vrot.slane %v2783, 5
  %v3408 = vrot.slane %v2784, 5
  %v3409 = vsel %vm3406, %v3407, %v3408
  %v3410 = vrot.slane %v2785, 5
  %v3411 = vsel %vm3406, %v3408, %v3410
  %v3412 = vrot.slane %v2786, 5
  %v3413 = vsel %vm3406, %v3410, %v3412
  %v3414 = vrot.slane %v2799, 5
  %v3415 = vrot.slane %v2800, 5
  %v3416 = vsel %vm3406, %v3414, %v3415
  %v3417 = vrot.slane %v2801, 5
  %v3418 = vsel %vm3406, %v3415, %v3417
  %v3419 = vrot.slane %v2802, 5
  %v3420 = vsel %vm3406, %v3417, %v3419
  %3421 = vrot.lane.b32.xlu0 %v3407, 64
  %v3422 = vpop.permute.xlu0 %3421
  %3423 = vrot.lane.b32.xlu0 %v3409, 64
  %v3424 = vpop.permute.xlu0 %3423
  %3425 = vrot.lane.b32.xlu0 %v3411, 64
  %v3426 = vpop.permute.xlu0 %3425
  %3427 = vrot.lane.b32.xlu0 %v3413, 64
  %v3428 = vpop.permute.xlu0 %3427
  %3429 = vrot.lane.b32.xlu0 %v3412, 64
  %v3430 = vpop.permute.xlu0 %3429
  %3431 = vrot.lane.b32.xlu0 %v3414, 64
  %v3432 = vpop.permute.xlu0 %3431
  %3433 = vrot.lane.b32.xlu0 %v3416, 64
  %v3434 = vpop.permute.xlu0 %3433
  %3435 = vrot.lane.b32.xlu0 %v3418, 64
  %v3436 = vpop.permute.xlu0 %3435
  %3437 = vrot.lane.b32.xlu0 %v3420, 64
  %v3438 = vpop.permute.xlu0 %3437
  %3439 = vrot.lane.b32.xlu0 %v3419, 64
  %v3440 = vpop.permute.xlu0 %3439
  %v3441 = vrot.slane %v2787, 5
  %v3442 = vrot.slane %v2788, 5
  %v3443 = vsel %vm3406, %v3441, %v3442
  %v3444 = vrot.slane %v2789, 5
  %v3445 = vsel %vm3406, %v3442, %v3444
  %v3446 = vrot.slane %v2790, 5
  %v3447 = vsel %vm3406, %v3444, %v3446
  %v3448 = vrot.slane %v2803, 5
  %v3449 = vrot.slane %v2804, 5
  %v3450 = vsel %vm3406, %v3448, %v3449
  %v3451 = vrot.slane %v2805, 5
  %v3452 = vsel %vm3406, %v3449, %v3451
  %v3453 = vrot.slane %v2806, 5
  %v3454 = vsel %vm3406, %v3451, %v3453
  %3455 = vrot.lane.b32.xlu0 %v3441, 80
  %v3456 = vpop.permute.xlu0 %3455
  %3457 = vrot.lane.b32.xlu0 %v3443, 80
  %v3458 = vpop.permute.xlu0 %3457
  %3459 = vrot.lane.b32.xlu0 %v3445, 80
  %v3460 = vpop.permute.xlu0 %3459
  %3461 = vrot.lane.b32.xlu0 %v3447, 80
  %v3462 = vpop.permute.xlu0 %3461
  %3463 = vrot.lane.b32.xlu0 %v3446, 80
  %v3464 = vpop.permute.xlu0 %3463
  %3465 = vrot.lane.b32.xlu0 %v3448, 80
  %v3466 = vpop.permute.xlu0 %3465
  %3467 = vrot.lane.b32.xlu0 %v3450, 80
  %v3468 = vpop.permute.xlu0 %3467
  %3469 = vrot.lane.b32.xlu0 %v3452, 80
  %v3470 = vpop.permute.xlu0 %3469
  %3471 = vrot.lane.b32.xlu0 %v3454, 80
  %v3472 = vpop.permute.xlu0 %3471
  %3473 = vrot.lane.b32.xlu0 %v3453, 80
  %v3474 = vpop.permute.xlu0 %3473
  %vm3475 = vsmask.f32 2304
  %v3476 = vrot.slane %v2855, 5
  %v3477 = vrot.slane %v2851, 6
  %v3478 = vor.u32 %v3476, %v3477
  %v3479 = vrot.slane %v2863, 5
  %v3480 = vrot.slane %v2859, 6
  %v3481 = vor.u32 %v3479, %v3480
  %v3482 = vsel %vm3475, %v3478, %v3481
  %v3483 = vrot.slane %v2871, 5
  %v3484 = vrot.slane %v2867, 6
  %v3485 = vor.u32 %v3483, %v3484
  %v3486 = vsel %vm3475, %v3481, %v3485
  %v3487 = vrot.slane %v2879, 5
  %v3488 = vrot.slane %v2875, 6
  %v3489 = vor.u32 %v3487, %v3488
  %v3490 = vsel %vm3475, %v3485, %v3489
  %v3491 = vrot.slane %v2846, 6
  %v3492 = vsel %vm3475, %v3489, %v3491
  %v3493 = vrot.slane %v2887, 5
  %v3494 = vrot.slane %v2883, 6
  %v3495 = vor.u32 %v3493, %v3494
  %v3496 = vrot.slane %v2895, 5
  %v3497 = vrot.slane %v2891, 6
  %v3498 = vor.u32 %v3496, %v3497
  %v3499 = vsel %vm3475, %v3495, %v3498
  %v3500 = vrot.slane %v2903, 5
  %v3501 = vrot.slane %v2899, 6
  %v3502 = vor.u32 %v3500, %v3501
  %v3503 = vsel %vm3475, %v3498, %v3502
  %v3504 = vrot.slane %v2911, 5
  %v3505 = vrot.slane %v2907, 6
  %v3506 = vor.u32 %v3504, %v3505
  %v3507 = vsel %vm3475, %v3502, %v3506
  %v3508 = vsel %vm3475, %v3506, %v3491
  %3509 = vrot.lane.b32.xlu0 %v3478, 96
  %v3510 = vpop.permute.xlu0 %3509
  %3511 = vrot.lane.b32.xlu0 %v3482, 96
  %v3512 = vpop.permute.xlu0 %3511
  %3513 = vrot.lane.b32.xlu0 %v3486, 96
  %v3514 = vpop.permute.xlu0 %3513
  %3515 = vrot.lane.b32.xlu0 %v3490, 96
  %v3516 = vpop.permute.xlu0 %3515
  %3517 = vrot.lane.b32.xlu0 %v3492, 96
  %v3518 = vpop.permute.xlu0 %3517
  %3519 = vrot.lane.b32.xlu0 %v3495, 96
  %v3520 = vpop.permute.xlu0 %3519
  %3521 = vrot.lane.b32.xlu0 %v3499, 96
  %v3522 = vpop.permute.xlu0 %3521
  %3523 = vrot.lane.b32.xlu0 %v3503, 96
  %v3524 = vpop.permute.xlu0 %3523
  %3525 = vrot.lane.b32.xlu0 %v3507, 96
  %v3526 = vpop.permute.xlu0 %3525
  %3527 = vrot.lane.b32.xlu0 %v3508, 96
  %v3528 = vpop.permute.xlu0 %3527
  %v3529 = vrot.slane %v3121, 4
  %v3530 = vrot.slane %v3117, 5
  %v3531 = vor.u32 %v3529, %v3530
  %v3532 = vsel %vm3300, %v3301, %v3531
  %v3533 = vrot.slane %v3129, 4
  %v3534 = vrot.slane %v3125, 5
  %v3535 = vor.u32 %v3533, %v3534
  %v3536 = vsel %vm3300, %v3531, %v3535
  %v3537 = vrot.slane %v3137, 4
  %v3538 = vrot.slane %v3133, 5
  %v3539 = vor.u32 %v3537, %v3538
  %v3540 = vsel %vm3300, %v3535, %v3539
  %v3541 = vrot.slane %v3145, 4
  %v3542 = vrot.slane %v3141, 5
  %v3543 = vor.u32 %v3541, %v3542
  %v3544 = vsel %vm3300, %v3539, %v3543
  %v3545 = vrot.slane %v3153, 4
  %v3546 = vrot.slane %v3149, 5
  %v3547 = vor.u32 %v3545, %v3546
  %v3548 = vsel %vm3300, %v3301, %v3547
  %v3549 = vrot.slane %v3161, 4
  %v3550 = vrot.slane %v3157, 5
  %v3551 = vor.u32 %v3549, %v3550
  %v3552 = vsel %vm3300, %v3547, %v3551
  %v3553 = vrot.slane %v3169, 4
  %v3554 = vrot.slane %v3165, 5
  %v3555 = vor.u32 %v3553, %v3554
  %v3556 = vsel %vm3300, %v3551, %v3555
  %v3557 = vrot.slane %v3177, 4
  %v3558 = vrot.slane %v3173, 5
  %v3559 = vor.u32 %v3557, %v3558
  %v3560 = vsel %vm3300, %v3555, %v3559
  %3561 = vrot.lane.b32.xlu0 %v3532, 112
  %v3562 = vpop.permute.xlu0 %3561
  %3563 = vrot.lane.b32.xlu0 %v3536, 112
  %v3564 = vpop.permute.xlu0 %3563
  %3565 = vrot.lane.b32.xlu0 %v3540, 112
  %v3566 = vpop.permute.xlu0 %3565
  %3567 = vrot.lane.b32.xlu0 %v3544, 112
  %v3568 = vpop.permute.xlu0 %3567
  %3569 = vrot.lane.b32.xlu0 %v3543, 112
  %v3570 = vpop.permute.xlu0 %3569
  %3571 = vrot.lane.b32.xlu0 %v3548, 112
  %v3572 = vpop.permute.xlu0 %3571
  %3573 = vrot.lane.b32.xlu0 %v3552, 112
  %v3574 = vpop.permute.xlu0 %3573
  %3575 = vrot.lane.b32.xlu0 %v3556, 112
  %v3576 = vpop.permute.xlu0 %3575
  %3577 = vrot.lane.b32.xlu0 %v3560, 112
  %v3578 = vpop.permute.xlu0 %3577
  %3579 = vrot.lane.b32.xlu0 %v3559, 112
  %v3580 = vpop.permute.xlu0 %3579
  %vm3581 = vcmask 130048
  %v3583 = vsel %vm3581, 0, %v2825
  %v3585 = vsel %vm3581, %v2783, %v2827
  %v3587 = vsel %vm3581, %v2784, %v2829
  %v3589 = vsel %vm3581, %v2785, %v2831
  %v3591 = vsel %vm3581, %v2786, %v2833
  %v3593 = vsel %vm3581, %v2799, %v2835
  %v3595 = vsel %vm3581, %v2800, %v2837
  %v3597 = vsel %vm3581, %v2801, %v2839
  %v3599 = vsel %vm3581, %v2802, %v2841
  %vm3600 = vcmask 261120
  %v3602 = vsel %vm3600, %v3583, %v2915
  %v3604 = vsel %vm3600, %v3585, %v2917
  %v3606 = vsel %vm3600, %v3587, %v2919
  %v3608 = vsel %vm3600, %v3589, %v2921
  %v3610 = vsel %vm3600, %v3591, %v2923
  %v3612 = vsel %vm3600, %v3583, %v2925
  %v3614 = vsel %vm3600, %v3593, %v2927
  %v3616 = vsel %vm3600, %v3595, %v2929
  %v3618 = vsel %vm3600, %v3597, %v2931
  %v3620 = vsel %vm3600, %v3599, %v2933
  %vm3621 = vcmask 392192
  %v3623 = vsel %vm3621, %v3602, %v2999
  %v3625 = vsel %vm3621, %v3604, %v3001
  %v3627 = vsel %vm3621, %v3606, %v3003
  %v3629 = vsel %vm3621, %v3608, %v3005
  %v3631 = vsel %vm3621, %v3610, %v3007
  %v3633 = vsel %vm3621, %v3612, %v3009
  %v3635 = vsel %vm3621, %v3614, %v3011
  %v3637 = vsel %vm3621, %v3616, %v3013
  %v3639 = vsel %vm3621, %v3618, %v3015
  %v3641 = vsel %vm3621, %v3620, %v3017
  %vm3642 = vcmask 523264
  %v3644 = vsel %vm3642, %v3623, %v3045
  %v3646 = vsel %vm3642, %v3625, %v3047
  %v3648 = vsel %vm3642, %v3627, %v3049
  %v3650 = vsel %vm3642, %v3629, %v3051
  %v3652 = vsel %vm3642, %v3631, %v3053
  %v3654 = vsel %vm3642, %v3633, %v3055
  %v3656 = vsel %vm3642, %v3635, %v3057
  %v3658 = vsel %vm3642, %v3637, %v3059
  %v3660 = vsel %vm3642, %v3639, %v3061
  %v3662 = vsel %vm3642, %v3641, %v3063
  %vm3663 = vcmask 654336
  %v3665 = vsel %vm3663, %v3644, %v3073
  %v3667 = vsel %vm3663, %v3646, %v3075
  %v3669 = vsel %vm3663, %v3648, %v3077
  %v3671 = vsel %vm3663, %v3650, %v3079
  %v3673 = vsel %vm3663, %v3652, %v3081
  %v3674 = vsel %vm3663, %v3654, %v3073
  %v3676 = vsel %vm3663, %v3656, %v3083
  %v3678 = vsel %vm3663, %v3658, %v3085
  %v3680 = vsel %vm3663, %v3660, %v3087
  %v3682 = vsel %vm3663, %v3662, %v3089
  %vm3683 = vcmask 785408
  %v3685 = vsel %vm3683, %v3665, %v3099
  %v3687 = vsel %vm3683, %v3667, %v3101
  %v3689 = vsel %vm3683, %v3669, %v3103
  %v3691 = vsel %vm3683, %v3671, %v3105
  %v3693 = vsel %vm3683, %v3673, %v3107
  %v3694 = vsel %vm3683, %v3674, %v3099
  %v3696 = vsel %vm3683, %v3676, %v3109
  %v3698 = vsel %vm3683, %v3678, %v3111
  %v3700 = vsel %vm3683, %v3680, %v3113
  %v3702 = vsel %vm3683, %v3682, %v3115
  %vm3703 = vcmask 916480
  %v3705 = vsel %vm3703, %v3685, %v3181
  %v3707 = vsel %vm3703, %v3687, %v3183
  %v3709 = vsel %vm3703, %v3689, %v3185
  %v3711 = vsel %vm3703, %v3691, %v3187
  %v3713 = vsel %vm3703, %v3693, %v3189
  %v3715 = vsel %vm3703, %v3694, %v3191
  %v3717 = vsel %vm3703, %v3696, %v3193
  %v3719 = vsel %vm3703, %v3698, %v3195
  %v3721 = vsel %vm3703, %v3700, %v3197
  %v3723 = vsel %vm3703, %v3702, %v3199
  %v3726 = vsel %vm3581, %v3204, %v3281
  %v3729 = vsel %vm3581, %v3212, %v3283
  %v3732 = vsel %vm3581, %v3220, %v3285
  %v3735 = vsel %vm3581, %v3228, %v3287
  %v3738 = vsel %vm3581, %v3231, %v3289
  %v3741 = vsel %vm3581, %v3236, %v3291
  %v3744 = vsel %vm3581, %v3244, %v3293
  %v3747 = vsel %vm3581, %v3252, %v3295
  %v3750 = vsel %vm3581, %v3260, %v3297
  %v3753 = vsel %vm3581, %v3263, %v3299
  %v3755 = vsel %vm3600, %v3726, %v3335
  %v3757 = vsel %vm3600, %v3729, %v3337
  %v3759 = vsel %vm3600, %v3732, %v3339
  %v3761 = vsel %vm3600, %v3735, %v3341
  %v3763 = vsel %vm3600, %v3738, %v3343
  %v3765 = vsel %vm3600, %v3741, %v3345
  %v3767 = vsel %vm3600, %v3744, %v3347
  %v3769 = vsel %vm3600, %v3747, %v3349
  %v3771 = vsel %vm3600, %v3750, %v3351
  %v3773 = vsel %vm3600, %v3753, %v3353
  %v3775 = vsel %vm3621, %v3755, %v3387
  %v3777 = vsel %vm3621, %v3757, %v3389
  %v3779 = vsel %vm3621, %v3759, %v3391
  %v3781 = vsel %vm3621, %v3761, %v3393
  %v3783 = vsel %vm3621, %v3763, %v3395
  %v3785 = vsel %vm3621, %v3765, %v3397
  %v3787 = vsel %vm3621, %v3767, %v3399
  %v3789 = vsel %vm3621, %v3769, %v3401
  %v3791 = vsel %vm3621, %v3771, %v3403
  %v3793 = vsel %vm3621, %v3773, %v3405
  %v3795 = vsel %vm3642, %v3775, %v3422
  %v3797 = vsel %vm3642, %v3777, %v3424
  %v3799 = vsel %vm3642, %v3779, %v3426
  %v3801 = vsel %vm3642, %v3781, %v3428
  %v3803 = vsel %vm3642, %v3783, %v3430
  %v3805 = vsel %vm3642, %v3785, %v3432
  %v3807 = vsel %vm3642, %v3787, %v3434
  %v3809 = vsel %vm3642, %v3789, %v3436
  %v3811 = vsel %vm3642, %v3791, %v3438
  %v3813 = vsel %vm3642, %v3793, %v3440
  %v3815 = vsel %vm3663, %v3795, %v3456
  %v3817 = vsel %vm3663, %v3797, %v3458
  %v3819 = vsel %vm3663, %v3799, %v3460
  %v3821 = vsel %vm3663, %v3801, %v3462
  %v3823 = vsel %vm3663, %v3803, %v3464
  %v3825 = vsel %vm3663, %v3805, %v3466
  %v3827 = vsel %vm3663, %v3807, %v3468
  %v3829 = vsel %vm3663, %v3809, %v3470
  %v3831 = vsel %vm3663, %v3811, %v3472
  %v3833 = vsel %vm3663, %v3813, %v3474
  %v3835 = vsel %vm3683, %v3815, %v3510
  %v3837 = vsel %vm3683, %v3817, %v3512
  %v3839 = vsel %vm3683, %v3819, %v3514
  %v3841 = vsel %vm3683, %v3821, %v3516
  %v3843 = vsel %vm3683, %v3823, %v3518
  %v3845 = vsel %vm3683, %v3825, %v3520
  %v3847 = vsel %vm3683, %v3827, %v3522
  %v3849 = vsel %vm3683, %v3829, %v3524
  %v3851 = vsel %vm3683, %v3831, %v3526
  %v3853 = vsel %vm3683, %v3833, %v3528
  %v3855 = vsel %vm3703, %v3835, %v3562
  %v3857 = vsel %vm3703, %v3837, %v3564
  %v3859 = vsel %vm3703, %v3839, %v3566
  %v3861 = vsel %vm3703, %v3841, %v3568
  %v3863 = vsel %vm3703, %v3843, %v3570
  %v3865 = vsel %vm3703, %v3845, %v3572
  %v3867 = vsel %vm3703, %v3847, %v3574
  %v3869 = vsel %vm3703, %v3849, %v3576
  %v3871 = vsel %vm3703, %v3851, %v3578
  %v3873 = vsel %vm3703, %v3853, %v3580
  %3874 = vrot.lane.b32.xlu0 %v3119, 16
  %v3875 = vpop.permute.xlu0 %3874
  %3876 = vrot.lane.b32.xlu0 %v3128, 16
  %v3877 = vpop.permute.xlu0 %3876
  %3878 = vrot.lane.b32.xlu0 %v3136, 16
  %v3879 = vpop.permute.xlu0 %3878
  %3880 = vrot.lane.b32.xlu0 %v3144, 16
  %v3881 = vpop.permute.xlu0 %3880
  %3882 = vrot.lane.b32.xlu0 %v3147, 16
  %v3883 = vpop.permute.xlu0 %3882
  %3884 = vrot.lane.b32.xlu0 %v3151, 16
  %v3885 = vpop.permute.xlu0 %3884
  %3886 = vrot.lane.b32.xlu0 %v3160, 16
  %v3887 = vpop.permute.xlu0 %3886
  %3888 = vrot.lane.b32.xlu0 %v3168, 16
  %v3889 = vpop.permute.xlu0 %3888
  %3890 = vrot.lane.b32.xlu0 %v3176, 16
  %v3891 = vpop.permute.xlu0 %3890
  %3892 = vrot.lane.b32.xlu0 %v3179, 16
  %v3893 = vpop.permute.xlu0 %3892
  %3894 = vrot.lane.b32.xlu0 %v3203, 32
  %v3895 = vpop.permute.xlu0 %3894
  %3896 = vrot.lane.b32.xlu0 %v3212, 32
  %v3897 = vpop.permute.xlu0 %3896
  %3898 = vrot.lane.b32.xlu0 %v3220, 32
  %v3899 = vpop.permute.xlu0 %3898
  %3900 = vrot.lane.b32.xlu0 %v3228, 32
  %v3901 = vpop.permute.xlu0 %3900
  %3902 = vrot.lane.b32.xlu0 %v3231, 32
  %v3903 = vpop.permute.xlu0 %3902
  %3904 = vrot.lane.b32.xlu0 %v3235, 32
  %v3905 = vpop.permute.xlu0 %3904
  %3906 = vrot.lane.b32.xlu0 %v3244, 32
  %v3907 = vpop.permute.xlu0 %3906
  %3908 = vrot.lane.b32.xlu0 %v3252, 32
  %v3909 = vpop.permute.xlu0 %3908
  %3910 = vrot.lane.b32.xlu0 %v3260, 32
  %v3911 = vpop.permute.xlu0 %3910
  %3912 = vrot.lane.b32.xlu0 %v3263, 32
  %v3913 = vpop.permute.xlu0 %3912
  %v3914 = vsel %vm3026, %v3270, %v3027
  %v3915 = vsel %vm3026, %v3278, %v3027
  %3916 = vrot.lane.b32.xlu0 %v3264, 48
  %v3917 = vpop.permute.xlu0 %3916
  %3918 = vrot.lane.b32.xlu0 %v3267, 48
  %v3919 = vpop.permute.xlu0 %3918
  %3920 = vrot.lane.b32.xlu0 %v3269, 48
  %v3921 = vpop.permute.xlu0 %3920
  %3922 = vrot.lane.b32.xlu0 %v3271, 48
  %v3923 = vpop.permute.xlu0 %3922
  %3924 = vrot.lane.b32.xlu0 %v3914, 48
  %v3925 = vpop.permute.xlu0 %3924
  %3926 = vrot.lane.b32.xlu0 %v3272, 48
  %v3927 = vpop.permute.xlu0 %3926
  %3928 = vrot.lane.b32.xlu0 %v3275, 48
  %v3929 = vpop.permute.xlu0 %3928
  %3930 = vrot.lane.b32.xlu0 %v3277, 48
  %v3931 = vpop.permute.xlu0 %3930
  %3932 = vrot.lane.b32.xlu0 %v3279, 48
  %v3933 = vpop.permute.xlu0 %3932
  %3934 = vrot.lane.b32.xlu0 %v3915, 48
  %v3935 = vpop.permute.xlu0 %3934
  %v3936 = vrot.slane %v2846, 5
  %v3937 = vor.u32 %v3301, %v3936
  %v3938 = vsel %vm3300, %v3316, %v3937
  %v3939 = vsel %vm3300, %v3332, %v3937
  %3940 = vrot.lane.b32.xlu0 %v3303, 64
  %v3941 = vpop.permute.xlu0 %3940
  %3942 = vrot.lane.b32.xlu0 %v3309, 64
  %v3943 = vpop.permute.xlu0 %3942
  %3944 = vrot.lane.b32.xlu0 %v3313, 64
  %v3945 = vpop.permute.xlu0 %3944
  %3946 = vrot.lane.b32.xlu0 %v3317, 64
  %v3947 = vpop.permute.xlu0 %3946
  %3948 = vrot.lane.b32.xlu0 %v3938, 64
  %v3949 = vpop.permute.xlu0 %3948
  %3950 = vrot.lane.b32.xlu0 %v3319, 64
  %v3951 = vpop.permute.xlu0 %3950
  %3952 = vrot.lane.b32.xlu0 %v3325, 64
  %v3953 = vpop.permute.xlu0 %3952
  %3954 = vrot.lane.b32.xlu0 %v3329, 64
  %v3955 = vpop.permute.xlu0 %3954
  %3956 = vrot.lane.b32.xlu0 %v3333, 64
  %v3957 = vpop.permute.xlu0 %3956
  %3958 = vrot.lane.b32.xlu0 %v3939, 64
  %v3959 = vpop.permute.xlu0 %3958
  %v3960 = vsel %vm3300, %v3368, %v3937
  %v3961 = vsel %vm3300, %v3384, %v3937
  %3962 = vrot.lane.b32.xlu0 %v3355, 80
  %v3963 = vpop.permute.xlu0 %3962
  %3964 = vrot.lane.b32.xlu0 %v3361, 80
  %v3965 = vpop.permute.xlu0 %3964
  %3966 = vrot.lane.b32.xlu0 %v3365, 80
  %v3967 = vpop.permute.xlu0 %3966
  %3968 = vrot.lane.b32.xlu0 %v3369, 80
  %v3969 = vpop.permute.xlu0 %3968
  %3970 = vrot.lane.b32.xlu0 %v3960, 80
  %v3971 = vpop.permute.xlu0 %3970
  %3972 = vrot.lane.b32.xlu0 %v3371, 80
  %v3973 = vpop.permute.xlu0 %3972
  %3974 = vrot.lane.b32.xlu0 %v3377, 80
  %v3975 = vpop.permute.xlu0 %3974
  %3976 = vrot.lane.b32.xlu0 %v3381, 80
  %v3977 = vpop.permute.xlu0 %3976
  %3978 = vrot.lane.b32.xlu0 %v3385, 80
  %v3979 = vpop.permute.xlu0 %3978
  %3980 = vrot.lane.b32.xlu0 %v3961, 80
  %v3981 = vpop.permute.xlu0 %3980
  %v3982 = vrot.slane 0, 5
  %v3983 = vsel %vm3406, %v3412, %v3982
  %v3984 = vsel %vm3406, %v3419, %v3982
  %3985 = vrot.lane.b32.xlu0 %v3407, 96
  %v3986 = vpop.permute.xlu0 %3985
  %3987 = vrot.lane.b32.xlu0 %v3409, 96
  %v3988 = vpop.permute.xlu0 %3987
  %3989 = vrot.lane.b32.xlu0 %v3411, 96
  %v3990 = vpop.permute.xlu0 %3989
  %3991 = vrot.lane.b32.xlu0 %v3413, 96
  %v3992 = vpop.permute.xlu0 %3991
  %3993 = vrot.lane.b32.xlu0 %v3983, 96
  %v3994 = vpop.permute.xlu0 %3993
  %3995 = vrot.lane.b32.xlu0 %v3414, 96
  %v3996 = vpop.permute.xlu0 %3995
  %3997 = vrot.lane.b32.xlu0 %v3416, 96
  %v3998 = vpop.permute.xlu0 %3997
  %3999 = vrot.lane.b32.xlu0 %v3418, 96
  %v4000 = vpop.permute.xlu0 %3999
  %4001 = vrot.lane.b32.xlu0 %v3420, 96
  %v4002 = vpop.permute.xlu0 %4001
  %4003 = vrot.lane.b32.xlu0 %v3984, 96
  %v4004 = vpop.permute.xlu0 %4003
  %v4005 = vsel %vm3406, %v3446, %v3982
  %v4006 = vsel %vm3406, %v3453, %v3982
  %4007 = vrot.lane.b32.xlu0 %v3441, 112
  %v4008 = vpop.permute.xlu0 %4007
  %4009 = vrot.lane.b32.xlu0 %v3443, 112
  %v4010 = vpop.permute.xlu0 %4009
  %4011 = vrot.lane.b32.xlu0 %v3445, 112
  %v4012 = vpop.permute.xlu0 %4011
  %4013 = vrot.lane.b32.xlu0 %v3447, 112
  %v4014 = vpop.permute.xlu0 %4013
  %4015 = vrot.lane.b32.xlu0 %v4005, 112
  %v4016 = vpop.permute.xlu0 %4015
  %4017 = vrot.lane.b32.xlu0 %v3448, 112
  %v4018 = vpop.permute.xlu0 %4017
  %4019 = vrot.lane.b32.xlu0 %v3450, 112
  %v4020 = vpop.permute.xlu0 %4019
  %4021 = vrot.lane.b32.xlu0 %v3452, 112
  %v4022 = vpop.permute.xlu0 %4021
  %4023 = vrot.lane.b32.xlu0 %v3454, 112
  %v4024 = vpop.permute.xlu0 %4023
  %4025 = vrot.lane.b32.xlu0 %v4006, 112
  %v4026 = vpop.permute.xlu0 %4025
  %v4027 = vrot.slane %v2844, 5
  %v4028 = vor.u32 %v4027, %v3491
  %v4029 = vsel %vm3475, %v3489, %v4028
  %v4030 = vsel %vm3475, %v3506, %v4028
  %v4032 = vsel %vm3581, 0, %v3875
  %v4034 = vsel %vm3581, %v2795, %v3877
  %v4036 = vsel %vm3581, %v2796, %v3879
  %v4038 = vsel %vm3581, %v2797, %v3881
  %v4040 = vsel %vm3581, %v2798, %v3883
  %v4042 = vsel %vm3581, 0, %v3885
  %v4044 = vsel %vm3581, %v2811, %v3887
  %v4046 = vsel %vm3581, %v2812, %v3889
  %v4048 = vsel %vm3581, %v2813, %v3891
  %v4050 = vsel %vm3581, %v2814, %v3893
  %v4052 = vsel %vm3600, %v4032, %v3895
  %v4054 = vsel %vm3600, %v4034, %v3897
  %v4056 = vsel %vm3600, %v4036, %v3899
  %v4058 = vsel %vm3600, %v4038, %v3901
  %v4060 = vsel %vm3600, %v4040, %v3903
  %v4062 = vsel %vm3600, %v4042, %v3905
  %v4064 = vsel %vm3600, %v4044, %v3907
  %v4066 = vsel %vm3600, %v4046, %v3909
  %v4068 = vsel %vm3600, %v4048, %v3911
  %v4070 = vsel %vm3600, %v4050, %v3913
  %v4072 = vsel %vm3621, %v4052, %v3917
  %v4074 = vsel %vm3621, %v4054, %v3919
  %v4076 = vsel %vm3621, %v4056, %v3921
  %v4078 = vsel %vm3621, %v4058, %v3923
  %v4080 = vsel %vm3621, %v4060, %v3925
  %v4082 = vsel %vm3621, %v4062, %v3927
  %v4084 = vsel %vm3621, %v4064, %v3929
  %v4086 = vsel %vm3621, %v4066, %v3931
  %v4088 = vsel %vm3621, %v4068, %v3933
  %v4090 = vsel %vm3621, %v4070, %v3935
  %v4092 = vsel %vm3642, %v4072, %v3941
  %v4094 = vsel %vm3642, %v4074, %v3943
  %v4096 = vsel %vm3642, %v4076, %v3945
  %v4098 = vsel %vm3642, %v4078, %v3947
  %v4100 = vsel %vm3642, %v4080, %v3949
  %v4102 = vsel %vm3642, %v4082, %v3951
  %v4104 = vsel %vm3642, %v4084, %v3953
  %v4106 = vsel %vm3642, %v4086, %v3955
  %v4108 = vsel %vm3642, %v4088, %v3957
  %v4110 = vsel %vm3642, %v4090, %v3959
  %v4112 = vsel %vm3663, %v4092, %v3963
  %v4114 = vsel %vm3663, %v4094, %v3965
  %v4116 = vsel %vm3663, %v4096, %v3967
  %v4118 = vsel %vm3663, %v4098, %v3969
  %v4120 = vsel %vm3663, %v4100, %v3971
  %v4122 = vsel %vm3663, %v4102, %v3973
  %v4124 = vsel %vm3663, %v4104, %v3975
  %v4126 = vsel %vm3663, %v4106, %v3977
  %v4128 = vsel %vm3663, %v4108, %v3979
  %v4130 = vsel %vm3663, %v4110, %v3981
  %v4132 = vsel %vm3683, %v4112, %v3986
  %v4134 = vsel %vm3683, %v4114, %v3988
  %v4136 = vsel %vm3683, %v4116, %v3990
  %v4138 = vsel %vm3683, %v4118, %v3992
  %v4140 = vsel %vm3683, %v4120, %v3994
  %v4142 = vsel %vm3683, %v4122, %v3996
  %v4144 = vsel %vm3683, %v4124, %v3998
  %v4146 = vsel %vm3683, %v4126, %v4000
  %v4148 = vsel %vm3683, %v4128, %v4002
  %v4150 = vsel %vm3683, %v4130, %v4004
  %v4152 = vsel %vm3703, %v4132, %v4008
  %v4154 = vsel %vm3703, %v4134, %v4010
  %v4156 = vsel %vm3703, %v4136, %v4012
  %v4158 = vsel %vm3703, %v4138, %v4014
  %v4160 = vsel %vm3703, %v4140, %v4016
  %v4162 = vsel %vm3703, %v4142, %v4018
  %v4164 = vsel %vm3703, %v4144, %v4020
  %v4166 = vsel %vm3703, %v4146, %v4022
  %v4168 = vsel %vm3703, %v4148, %v4024
  %v4170 = vsel %vm3703, %v4150, %v4026
  %v4171 = vshrl.u32 %v4152, 16
  %v4173 = vrot.slane %v4171, 4
  %v4174 = vshrl.u32 %v4154, 16
  %v4176 = vrot.slane %v4174, 4
  %v4177 = vshll.u32 %v4154, 16
  %v4179 = vrot.slane %v4177, 5
  %v4180 = vor.u32 %v4176, %v4179
  %v4181 = vsel %vm3300, %v4173, %v4180
  %v4183 = vshrl.u32 %v3477, 16
  %v4185 = vrot.slane %v4183, 4
  %v4187 = vshrl.u32 %v3482, 16
  %v4189 = vrot.slane %v4187, 4
  %v4190 = vshll.u32 %v3482, 16
  %v4192 = vrot.slane %v4190, 5
  %v4193 = vor.u32 %v4189, %v4192
  %v4194 = vsel %vm3300, %v4185, %v4193
  %v4195 = vshrl.u32 %v4156, 16
  %v4197 = vrot.slane %v4195, 4
  %v4198 = vshll.u32 %v4156, 16
  %v4200 = vrot.slane %v4198, 5
  %v4201 = vor.u32 %v4197, %v4200
  %v4202 = vsel %vm3300, %v4180, %v4201
  %v4204 = vshrl.u32 %v3486, 16
  %v4206 = vrot.slane %v4204, 4
  %v4207 = vshll.u32 %v3486, 16
  %v4209 = vrot.slane %v4207, 5
  %v4210 = vor.u32 %v4206, %v4209
  %v4211 = vsel %vm3300, %v4193, %v4210
  %v4212 = vshrl.u32 %v4158, 16
  %v4214 = vrot.slane %v4212, 4
  %v4215 = vshll.u32 %v4158, 16
  %v4217 = vrot.slane %v4215, 5
  %v4218 = vor.u32 %v4214, %v4217
  %v4219 = vsel %vm3300, %v4201, %v4218
  %v4221 = vshrl.u32 %v3490, 16
  %v4223 = vrot.slane %v4221, 4
  %v4224 = vshll.u32 %v3490, 16
  %v4226 = vrot.slane %v4224, 5
  %v4227 = vor.u32 %v4223, %v4226
  %v4228 = vsel %vm3300, %v4210, %v4227
  %v4229 = vshrl.u32 %v4160, 16
  %v4231 = vrot.slane %v4229, 4
  %v4232 = vshll.u32 %v4160, 16
  %v4234 = vrot.slane %v4232, 5
  %v4235 = vor.u32 %v4231, %v4234
  %v4236 = vsel %vm3300, %v4218, %v4235
  %v4238 = vshrl.u32 %v4029, 16
  %v4240 = vrot.slane %v4238, 4
  %v4241 = vshll.u32 %v4029, 16
  %v4243 = vrot.slane %v4241, 5
  %v4244 = vor.u32 %v4240, %v4243
  %v4245 = vsel %vm3300, %v4227, %v4244
  %v4246 = vshrl.u32 %v4162, 16
  %v4248 = vrot.slane %v4246, 4
  %v4249 = vshrl.u32 %v4164, 16
  %v4251 = vrot.slane %v4249, 4
  %v4252 = vshll.u32 %v4164, 16
  %v4254 = vrot.slane %v4252, 5
  %v4255 = vor.u32 %v4251, %v4254
  %v4256 = vsel %vm3300, %v4248, %v4255
  %v4258 = vshrl.u32 %v3494, 16
  %v4260 = vrot.slane %v4258, 4
  %v4262 = vshrl.u32 %v3499, 16
  %v4264 = vrot.slane %v4262, 4
  %v4265 = vshll.u32 %v3499, 16
  %v4267 = vrot.slane %v4265, 5
  %v4268 = vor.u32 %v4264, %v4267
  %v4269 = vsel %vm3300, %v4260, %v4268
  %v4270 = vshrl.u32 %v4166, 16
  %v4272 = vrot.slane %v4270, 4
  %v4273 = vshll.u32 %v4166, 16
  %v4275 = vrot.slane %v4273, 5
  %v4276 = vor.u32 %v4272, %v4275
  %v4277 = vsel %vm3300, %v4255, %v4276
  %v4279 = vshrl.u32 %v3503, 16
  %v4281 = vrot.slane %v4279, 4
  %v4282 = vshll.u32 %v3503, 16
  %v4284 = vrot.slane %v4282, 5
  %v4285 = vor.u32 %v4281, %v4284
  %v4286 = vsel %vm3300, %v4268, %v4285
  %v4287 = vshrl.u32 %v4168, 16
  %v4289 = vrot.slane %v4287, 4
  %v4290 = vshll.u32 %v4168, 16
  %v4292 = vrot.slane %v4290, 5
  %v4293 = vor.u32 %v4289, %v4292
  %v4294 = vsel %vm3300, %v4276, %v4293
  %v4296 = vshrl.u32 %v3507, 16
  %v4298 = vrot.slane %v4296, 4
  %v4299 = vshll.u32 %v3507, 16
  %v4301 = vrot.slane %v4299, 5
  %v4302 = vor.u32 %v4298, %v4301
  %v4303 = vsel %vm3300, %v4285, %v4302
  %v4304 = vshrl.u32 %v4170, 16
  %v4306 = vrot.slane %v4304, 4
  %v4307 = vshll.u32 %v4170, 16
  %v4309 = vrot.slane %v4307, 5
  %v4310 = vor.u32 %v4306, %v4309
  %v4311 = vsel %vm3300, %v4293, %v4310
  %v4313 = vshrl.u32 %v4030, 16
  %v4315 = vrot.slane %v4313, 4
  %v4316 = vshll.u32 %v4030, 16
  %v4318 = vrot.slane %v4316, 5
  %v4319 = vor.u32 %v4315, %v4318
  %v4320 = vsel %vm3300, %v4302, %v4319
  %vm4341 = vcmask 1044480
  %v4342 = vrot.slane %v3705, 3
  %v4343 = vrot.slane %v3707, 3
  %v4344 = vsel %vm4341, %v4342, %v4343
  %v4345 = vrot.slane %v3855, 3
  %v4346 = vrot.slane %v3857, 3
  %v4347 = vsel %vm4341, %v4345, %v4346
  %v4348 = vrot.slane %v4181, 3
  %v4349 = vrot.slane %v4202, 3
  %v4350 = vsel %vm4341, %v4348, %v4349
  %v4351 = vrot.slane %v4194, 3
  %v4352 = vrot.slane %v4211, 3
  %v4353 = vsel %vm4341, %v4351, %v4352
  %v4354 = vrot.slane %v3709, 3
  %v4355 = vsel %vm4341, %v4343, %v4354
  %v4356 = vrot.slane %v3859, 3
  %v4357 = vsel %vm4341, %v4346, %v4356
  %v4358 = vrot.slane %v4219, 3
  %v4359 = vsel %vm4341, %v4349, %v4358
  %v4360 = vrot.slane %v4228, 3
  %v4361 = vsel %vm4341, %v4352, %v4360
  %v4362 = vrot.slane %v3711, 3
  %v4363 = vsel %vm4341, %v4354, %v4362
  %v4364 = vrot.slane %v3861, 3
  %v4365 = vsel %vm4341, %v4356, %v4364
  %v4366 = vrot.slane %v4236, 3
  %v4367 = vsel %vm4341, %v4358, %v4366
  %v4368 = vrot.slane %v4245, 3
  %v4369 = vsel %vm4341, %v4360, %v4368
  %v4370 = vrot.slane %v3713, 3
  %v4371 = vsel %vm4341, %v4362, %v4370
  %v4372 = vrot.slane %v3863, 3
  %v4373 = vsel %vm4341, %v4364, %v4372
  %v4374 = vrot.slane %v4235, 3
  %v4375 = vsel %vm4341, %v4366, %v4374
  %v4376 = vrot.slane %v4244, 3
  %v4377 = vsel %vm4341, %v4368, %v4376
  %v4378 = vrot.slane %v3715, 3
  %v4379 = vrot.slane %v3717, 3
  %v4380 = vsel %vm4341, %v4378, %v4379
  %v4381 = vrot.slane %v3865, 3
  %v4382 = vrot.slane %v3867, 3
  %v4383 = vsel %vm4341, %v4381, %v4382
  %v4384 = vrot.slane %v4256, 3
  %v4385 = vrot.slane %v4277, 3
  %v4386 = vsel %vm4341, %v4384, %v4385
  %v4387 = vrot.slane %v4269, 3
  %v4388 = vrot.slane %v4286, 3
  %v4389 = vsel %vm4341, %v4387, %v4388
  %v4390 = vrot.slane %v3719, 3
  %v4391 = vsel %vm4341, %v4379, %v4390
  %v4392 = vrot.slane %v3869, 3
  %v4393 = vsel %vm4341, %v4382, %v4392
  %v4394 = vrot.slane %v4294, 3
  %v4395 = vsel %vm4341, %v4385, %v4394
  %v4396 = vrot.slane %v4303, 3
  %v4397 = vsel %vm4341, %v4388, %v4396
  %v4398 = vrot.slane %v3721, 3
  %v4399 = vsel %vm4341, %v4390, %v4398
  %v4400 = vrot.slane %v3871, 3
  %v4401 = vsel %vm4341, %v4392, %v4400
  %v4402 = vrot.slane %v4311, 3
  %v4403 = vsel %vm4341, %v4394, %v4402
  %v4404 = vrot.slane %v4320, 3
  %v4405 = vsel %vm4341, %v4396, %v4404
  %v4406 = vrot.slane %v3723, 3
  %v4407 = vsel %vm4341, %v4398, %v4406
  %v4408 = vrot.slane %v3873, 3
  %v4409 = vsel %vm4341, %v4400, %v4408
  %v4410 = vrot.slane %v4310, 3
  %v4411 = vsel %vm4341, %v4402, %v4410
  %v4412 = vrot.slane %v4319, 3
  %v4413 = vsel %vm4341, %v4404, %v4412
  %4438 = vrot.lane.b32.xlu0 %v2854, 16
  %v4439 = vpop.permute.xlu0 %4438
  %4440 = vrot.lane.b32.xlu0 %v2862, 16
  %v4441 = vpop.permute.xlu0 %4440
  %4442 = vrot.lane.b32.xlu0 %v2870, 16
  %v4443 = vpop.permute.xlu0 %4442
  %4444 = vrot.lane.b32.xlu0 %v2878, 16
  %v4445 = vpop.permute.xlu0 %4444
  %4446 = vrot.lane.b32.xlu0 %v2881, 16
  %v4447 = vpop.permute.xlu0 %4446
  %4448 = vrot.lane.b32.xlu0 %v2886, 16
  %v4449 = vpop.permute.xlu0 %4448
  %4450 = vrot.lane.b32.xlu0 %v2894, 16
  %v4451 = vpop.permute.xlu0 %4450
  %4452 = vrot.lane.b32.xlu0 %v2902, 16
  %v4453 = vpop.permute.xlu0 %4452
  %4454 = vrot.lane.b32.xlu0 %v2910, 16
  %v4455 = vpop.permute.xlu0 %4454
  %4456 = vrot.lane.b32.xlu0 %v2913, 16
  %v4457 = vpop.permute.xlu0 %4456
  %4458 = vrot.lane.b32.xlu0 %v2938, 32
  %v4459 = vpop.permute.xlu0 %4458
  %4460 = vrot.lane.b32.xlu0 %v2946, 32
  %v4461 = vpop.permute.xlu0 %4460
  %4462 = vrot.lane.b32.xlu0 %v2954, 32
  %v4463 = vpop.permute.xlu0 %4462
  %4464 = vrot.lane.b32.xlu0 %v2962, 32
  %v4465 = vpop.permute.xlu0 %4464
  %4466 = vrot.lane.b32.xlu0 %v2965, 32
  %v4467 = vpop.permute.xlu0 %4466
  %4468 = vrot.lane.b32.xlu0 %v2970, 32
  %v4469 = vpop.permute.xlu0 %4468
  %4470 = vrot.lane.b32.xlu0 %v2978, 32
  %v4471 = vpop.permute.xlu0 %4470
  %4472 = vrot.lane.b32.xlu0 %v2986, 32
  %v4473 = vpop.permute.xlu0 %4472
  %4474 = vrot.lane.b32.xlu0 %v2994, 32
  %v4475 = vpop.permute.xlu0 %4474
  %4476 = vrot.lane.b32.xlu0 %v2997, 32
  %v4477 = vpop.permute.xlu0 %4476
  %4478 = vrot.lane.b32.xlu0 %v3029, 48
  %v4479 = vpop.permute.xlu0 %4478
  %4480 = vrot.lane.b32.xlu0 %v3031, 48
  %v4481 = vpop.permute.xlu0 %4480
  %4482 = vrot.lane.b32.xlu0 %v3033, 48
  %v4483 = vpop.permute.xlu0 %4482
  %4484 = vrot.lane.b32.xlu0 %v3035, 48
  %v4485 = vpop.permute.xlu0 %4484
  %4486 = vrot.lane.b32.xlu0 %v3034, 48
  %v4487 = vpop.permute.xlu0 %4486
  %4488 = vrot.lane.b32.xlu0 %v3037, 48
  %v4489 = vpop.permute.xlu0 %4488
  %4490 = vrot.lane.b32.xlu0 %v3039, 48
  %v4491 = vpop.permute.xlu0 %4490
  %4492 = vrot.lane.b32.xlu0 %v3041, 48
  %v4493 = vpop.permute.xlu0 %4492
  %4494 = vrot.lane.b32.xlu0 %v3043, 48
  %v4495 = vpop.permute.xlu0 %4494
  %4496 = vrot.lane.b32.xlu0 %v3042, 48
  %v4497 = vpop.permute.xlu0 %4496
  %v4498 = vrot.slane %v2787, 1
  %v4499 = vsel %vm3026, %v3027, %v4498
  %v4500 = vrot.slane %v2788, 1
  %v4501 = vsel %vm3026, %v4498, %v4500
  %v4502 = vrot.slane %v2789, 1
  %v4503 = vsel %vm3026, %v4500, %v4502
  %v4504 = vrot.slane %v2790, 1
  %v4505 = vsel %vm3026, %v4502, %v4504
  %v4506 = vrot.slane %v2803, 1
  %v4507 = vsel %vm3026, %v3027, %v4506
  %v4508 = vrot.slane %v2804, 1
  %v4509 = vsel %vm3026, %v4506, %v4508
  %v4510 = vrot.slane %v2805, 1
  %v4511 = vsel %vm3026, %v4508, %v4510
  %v4512 = vrot.slane %v2806, 1
  %v4513 = vsel %vm3026, %v4510, %v4512
  %4514 = vrot.lane.b32.xlu0 %v4499, 64
  %v4515 = vpop.permute.xlu0 %4514
  %4516 = vrot.lane.b32.xlu0 %v4501, 64
  %v4517 = vpop.permute.xlu0 %4516
  %4518 = vrot.lane.b32.xlu0 %v4503, 64
  %v4519 = vpop.permute.xlu0 %4518
  %4520 = vrot.lane.b32.xlu0 %v4505, 64
  %v4521 = vpop.permute.xlu0 %4520
  %4522 = vrot.lane.b32.xlu0 %v4504, 64
  %v4523 = vpop.permute.xlu0 %4522
  %4524 = vrot.lane.b32.xlu0 %v4507, 64
  %v4525 = vpop.permute.xlu0 %4524
  %4526 = vrot.lane.b32.xlu0 %v4509, 64
  %v4527 = vpop.permute.xlu0 %4526
  %4528 = vrot.lane.b32.xlu0 %v4511, 64
  %v4529 = vpop.permute.xlu0 %4528
  %4530 = vrot.lane.b32.xlu0 %v4513, 64
  %v4531 = vpop.permute.xlu0 %4530
  %4532 = vrot.lane.b32.xlu0 %v4512, 64
  %v4533 = vpop.permute.xlu0 %4532
  %4534 = vrot.lane.b32.xlu0 %v2795, 80
  %v4535 = vpop.permute.xlu0 %4534
  %4536 = vrot.lane.b32.xlu0 %v2796, 80
  %v4537 = vpop.permute.xlu0 %4536
  %4538 = vrot.lane.b32.xlu0 %v2797, 80
  %v4539 = vpop.permute.xlu0 %4538
  %4540 = vrot.lane.b32.xlu0 %v2798, 80
  %v4541 = vpop.permute.xlu0 %4540
  %4542 = vrot.lane.b32.xlu0 %v2811, 80
  %v4543 = vpop.permute.xlu0 %4542
  %4544 = vrot.lane.b32.xlu0 %v2812, 80
  %v4545 = vpop.permute.xlu0 %4544
  %4546 = vrot.lane.b32.xlu0 %v2813, 80
  %v4547 = vpop.permute.xlu0 %4546
  %4548 = vrot.lane.b32.xlu0 %v2814, 80
  %v4549 = vpop.permute.xlu0 %4548
  %4550 = vrot.lane.b32.xlu0 %v3120, 96
  %v4551 = vpop.permute.xlu0 %4550
  %4552 = vrot.lane.b32.xlu0 %v3128, 96
  %v4553 = vpop.permute.xlu0 %4552
  %4554 = vrot.lane.b32.xlu0 %v3136, 96
  %v4555 = vpop.permute.xlu0 %4554
  %4556 = vrot.lane.b32.xlu0 %v3144, 96
  %v4557 = vpop.permute.xlu0 %4556
  %4558 = vrot.lane.b32.xlu0 %v3147, 96
  %v4559 = vpop.permute.xlu0 %4558
  %4560 = vrot.lane.b32.xlu0 %v3152, 96
  %v4561 = vpop.permute.xlu0 %4560
  %4562 = vrot.lane.b32.xlu0 %v3160, 96
  %v4563 = vpop.permute.xlu0 %4562
  %4564 = vrot.lane.b32.xlu0 %v3168, 96
  %v4565 = vpop.permute.xlu0 %4564
  %4566 = vrot.lane.b32.xlu0 %v3176, 96
  %v4567 = vpop.permute.xlu0 %4566
  %4568 = vrot.lane.b32.xlu0 %v3179, 96
  %v4569 = vpop.permute.xlu0 %4568
  %4570 = vrot.lane.b32.xlu0 %v3204, 112
  %v4571 = vpop.permute.xlu0 %4570
  %4572 = vrot.lane.b32.xlu0 %v3212, 112
  %v4573 = vpop.permute.xlu0 %4572
  %4574 = vrot.lane.b32.xlu0 %v3220, 112
  %v4575 = vpop.permute.xlu0 %4574
  %4576 = vrot.lane.b32.xlu0 %v3228, 112
  %v4577 = vpop.permute.xlu0 %4576
  %4578 = vrot.lane.b32.xlu0 %v3231, 112
  %v4579 = vpop.permute.xlu0 %4578
  %4580 = vrot.lane.b32.xlu0 %v3236, 112
  %v4581 = vpop.permute.xlu0 %4580
  %4582 = vrot.lane.b32.xlu0 %v3244, 112
  %v4583 = vpop.permute.xlu0 %4582
  %4584 = vrot.lane.b32.xlu0 %v3252, 112
  %v4585 = vpop.permute.xlu0 %4584
  %4586 = vrot.lane.b32.xlu0 %v3260, 112
  %v4587 = vpop.permute.xlu0 %4586
  %4588 = vrot.lane.b32.xlu0 %v3263, 112
  %v4589 = vpop.permute.xlu0 %4588
  %v4590 = vrot.slane %v2795, 1
  %v4591 = vsel %vm3026, %v3027, %v4590
  %v4592 = vrot.slane %v2796, 1
  %v4593 = vsel %vm3026, %v4590, %v4592
  %v4594 = vrot.slane %v2797, 1
  %v4595 = vsel %vm3026, %v4592, %v4594
  %v4596 = vrot.slane %v2798, 1
  %v4597 = vsel %vm3026, %v4594, %v4596
  %v4598 = vrot.slane %v2811, 1
  %v4599 = vsel %vm3026, %v3027, %v4598
  %v4600 = vrot.slane %v2812, 1
  %v4601 = vsel %vm3026, %v4598, %v4600
  %v4602 = vrot.slane %v2813, 1
  %v4603 = vsel %vm3026, %v4600, %v4602
  %v4604 = vrot.slane %v2814, 1
  %v4605 = vsel %vm3026, %v4602, %v4604
  %4606 = vrot.lane.b32.xlu0 %v4591, 16
  %v4607 = vpop.permute.xlu0 %4606
  %4608 = vrot.lane.b32.xlu0 %v4593, 16
  %v4609 = vpop.permute.xlu0 %4608
  %4610 = vrot.lane.b32.xlu0 %v4595, 16
  %v4611 = vpop.permute.xlu0 %4610
  %4612 = vrot.lane.b32.xlu0 %v4597, 16
  %v4613 = vpop.permute.xlu0 %4612
  %4614 = vrot.lane.b32.xlu0 %v4596, 16
  %v4615 = vpop.permute.xlu0 %4614
  %4616 = vrot.lane.b32.xlu0 %v4599, 16
  %v4617 = vpop.permute.xlu0 %4616
  %4618 = vrot.lane.b32.xlu0 %v4601, 16
  %v4619 = vpop.permute.xlu0 %4618
  %4620 = vrot.lane.b32.xlu0 %v4603, 16
  %v4621 = vpop.permute.xlu0 %4620
  %4622 = vrot.lane.b32.xlu0 %v4605, 16
  %v4623 = vpop.permute.xlu0 %4622
  %4624 = vrot.lane.b32.xlu0 %v4604, 16
  %v4625 = vpop.permute.xlu0 %4624
  %4626 = vrot.lane.b32.xlu0 %v3357, 32
  %v4627 = vpop.permute.xlu0 %4626
  %4628 = vrot.lane.b32.xlu0 %v3361, 32
  %v4629 = vpop.permute.xlu0 %4628
  %4630 = vrot.lane.b32.xlu0 %v3365, 32
  %v4631 = vpop.permute.xlu0 %4630
  %4632 = vrot.lane.b32.xlu0 %v3369, 32
  %v4633 = vpop.permute.xlu0 %4632
  %4634 = vrot.lane.b32.xlu0 %v3368, 32
  %v4635 = vpop.permute.xlu0 %4634
  %4636 = vrot.lane.b32.xlu0 %v3373, 32
  %v4637 = vpop.permute.xlu0 %4636
  %4638 = vrot.lane.b32.xlu0 %v3377, 32
  %v4639 = vpop.permute.xlu0 %4638
  %4640 = vrot.lane.b32.xlu0 %v3381, 32
  %v4641 = vpop.permute.xlu0 %4640
  %4642 = vrot.lane.b32.xlu0 %v3385, 32
  %v4643 = vpop.permute.xlu0 %4642
  %4644 = vrot.lane.b32.xlu0 %v3384, 32
  %v4645 = vpop.permute.xlu0 %4644
  %4646 = vrot.lane.b32.xlu0 %v3407, 48
  %v4647 = vpop.permute.xlu0 %4646
  %4648 = vrot.lane.b32.xlu0 %v3409, 48
  %v4649 = vpop.permute.xlu0 %4648
  %4650 = vrot.lane.b32.xlu0 %v3411, 48
  %v4651 = vpop.permute.xlu0 %4650
  %4652 = vrot.lane.b32.xlu0 %v3413, 48
  %v4653 = vpop.permute.xlu0 %4652
  %4654 = vrot.lane.b32.xlu0 %v3412, 48
  %v4655 = vpop.permute.xlu0 %4654
  %4656 = vrot.lane.b32.xlu0 %v3414, 48
  %v4657 = vpop.permute.xlu0 %4656
  %4658 = vrot.lane.b32.xlu0 %v3416, 48
  %v4659 = vpop.permute.xlu0 %4658
  %4660 = vrot.lane.b32.xlu0 %v3418, 48
  %v4661 = vpop.permute.xlu0 %4660
  %4662 = vrot.lane.b32.xlu0 %v3420, 48
  %v4663 = vpop.permute.xlu0 %4662
  %4664 = vrot.lane.b32.xlu0 %v3419, 48
  %v4665 = vpop.permute.xlu0 %4664
  %4666 = vrot.lane.b32.xlu0 %v3441, 64
  %v4667 = vpop.permute.xlu0 %4666
  %4668 = vrot.lane.b32.xlu0 %v3443, 64
  %v4669 = vpop.permute.xlu0 %4668
  %4670 = vrot.lane.b32.xlu0 %v3445, 64
  %v4671 = vpop.permute.xlu0 %4670
  %4672 = vrot.lane.b32.xlu0 %v3447, 64
  %v4673 = vpop.permute.xlu0 %4672
  %4674 = vrot.lane.b32.xlu0 %v3446, 64
  %v4675 = vpop.permute.xlu0 %4674
  %4676 = vrot.lane.b32.xlu0 %v3448, 64
  %v4677 = vpop.permute.xlu0 %4676
  %4678 = vrot.lane.b32.xlu0 %v3450, 64
  %v4679 = vpop.permute.xlu0 %4678
  %4680 = vrot.lane.b32.xlu0 %v3452, 64
  %v4681 = vpop.permute.xlu0 %4680
  %4682 = vrot.lane.b32.xlu0 %v3454, 64
  %v4683 = vpop.permute.xlu0 %4682
  %4684 = vrot.lane.b32.xlu0 %v3453, 64
  %v4685 = vpop.permute.xlu0 %4684
  %4686 = vrot.lane.b32.xlu0 %v3478, 80
  %v4687 = vpop.permute.xlu0 %4686
  %4688 = vrot.lane.b32.xlu0 %v3482, 80
  %v4689 = vpop.permute.xlu0 %4688
  %4690 = vrot.lane.b32.xlu0 %v3486, 80
  %v4691 = vpop.permute.xlu0 %4690
  %4692 = vrot.lane.b32.xlu0 %v3490, 80
  %v4693 = vpop.permute.xlu0 %4692
  %4694 = vrot.lane.b32.xlu0 %v3492, 80
  %v4695 = vpop.permute.xlu0 %4694
  %4696 = vrot.lane.b32.xlu0 %v3495, 80
  %v4697 = vpop.permute.xlu0 %4696
  %4698 = vrot.lane.b32.xlu0 %v3499, 80
  %v4699 = vpop.permute.xlu0 %4698
  %4700 = vrot.lane.b32.xlu0 %v3503, 80
  %v4701 = vpop.permute.xlu0 %4700
  %4702 = vrot.lane.b32.xlu0 %v3507, 80
  %v4703 = vpop.permute.xlu0 %4702
  %4704 = vrot.lane.b32.xlu0 %v3508, 80
  %v4705 = vpop.permute.xlu0 %4704
  %v4706 = vrot.slane %v2939, 5
  %v4707 = vrot.slane %v2935, 6
  %v4708 = vor.u32 %v4706, %v4707
  %v4709 = vrot.slane %v2947, 5
  %v4710 = vrot.slane %v2943, 6
  %v4711 = vor.u32 %v4709, %v4710
  %v4712 = vsel %vm3475, %v4708, %v4711
  %v4713 = vrot.slane %v2955, 5
  %v4714 = vrot.slane %v2951, 6
  %v4715 = vor.u32 %v4713, %v4714
  %v4716 = vsel %vm3475, %v4711, %v4715
  %v4717 = vrot.slane %v2963, 5
  %v4718 = vrot.slane %v2959, 6
  %v4719 = vor.u32 %v4717, %v4718
  %v4720 = vsel %vm3475, %v4715, %v4719
  %v4721 = vsel %vm3475, %v4719, %v3491
  %v4722 = vrot.slane %v2971, 5
  %v4723 = vrot.slane %v2967, 6
  %v4724 = vor.u32 %v4722, %v4723
  %v4725 = vrot.slane %v2979, 5
  %v4726 = vrot.slane %v2975, 6
  %v4727 = vor.u32 %v4725, %v4726
  %v4728 = vsel %vm3475, %v4724, %v4727
  %v4729 = vrot.slane %v2987, 5
  %v4730 = vrot.slane %v2983, 6
  %v4731 = vor.u32 %v4729, %v4730
  %v4732 = vsel %vm3475, %v4727, %v4731
  %v4733 = vrot.slane %v2995, 5
  %v4734 = vrot.slane %v2991, 6
  %v4735 = vor.u32 %v4733, %v4734
  %v4736 = vsel %vm3475, %v4731, %v4735
  %v4737 = vsel %vm3475, %v4735, %v3491
  %4738 = vrot.lane.b32.xlu0 %v4708, 96
  %v4739 = vpop.permute.xlu0 %4738
  %4740 = vrot.lane.b32.xlu0 %v4712, 96
  %v4741 = vpop.permute.xlu0 %4740
  %4742 = vrot.lane.b32.xlu0 %v4716, 96
  %v4743 = vpop.permute.xlu0 %4742
  %4744 = vrot.lane.b32.xlu0 %v4720, 96
  %v4745 = vpop.permute.xlu0 %4744
  %4746 = vrot.lane.b32.xlu0 %v4721, 96
  %v4747 = vpop.permute.xlu0 %4746
  %4748 = vrot.lane.b32.xlu0 %v4724, 96
  %v4749 = vpop.permute.xlu0 %4748
  %4750 = vrot.lane.b32.xlu0 %v4728, 96
  %v4751 = vpop.permute.xlu0 %4750
  %4752 = vrot.lane.b32.xlu0 %v4732, 96
  %v4753 = vpop.permute.xlu0 %4752
  %4754 = vrot.lane.b32.xlu0 %v4736, 96
  %v4755 = vpop.permute.xlu0 %4754
  %4756 = vrot.lane.b32.xlu0 %v4737, 96
  %v4757 = vpop.permute.xlu0 %4756
  %v4758 = vrot.slane %v3205, 4
  %v4759 = vrot.slane %v3201, 5
  %v4760 = vor.u32 %v4758, %v4759
  %v4761 = vsel %vm3300, %v3301, %v4760
  %v4762 = vrot.slane %v3213, 4
  %v4763 = vrot.slane %v3209, 5
  %v4764 = vor.u32 %v4762, %v4763
  %v4765 = vsel %vm3300, %v4760, %v4764
  %v4766 = vrot.slane %v3221, 4
  %v4767 = vrot.slane %v3217, 5
  %v4768 = vor.u32 %v4766, %v4767
  %v4769 = vsel %vm3300, %v4764, %v4768
  %v4770 = vrot.slane %v3229, 4
  %v4771 = vrot.slane %v3225, 5
  %v4772 = vor.u32 %v4770, %v4771
  %v4773 = vsel %vm3300, %v4768, %v4772
  %v4774 = vrot.slane %v3237, 4
  %v4775 = vrot.slane %v3233, 5
  %v4776 = vor.u32 %v4774, %v4775
  %v4777 = vsel %vm3300, %v3301, %v4776
  %v4778 = vrot.slane %v3245, 4
  %v4779 = vrot.slane %v3241, 5
  %v4780 = vor.u32 %v4778, %v4779
  %v4781 = vsel %vm3300, %v4776, %v4780
  %v4782 = vrot.slane %v3253, 4
  %v4783 = vrot.slane %v3249, 5
  %v4784 = vor.u32 %v4782, %v4783
  %v4785 = vsel %vm3300, %v4780, %v4784
  %v4786 = vrot.slane %v3261, 4
  %v4787 = vrot.slane %v3257, 5
  %v4788 = vor.u32 %v4786, %v4787
  %v4789 = vsel %vm3300, %v4784, %v4788
  %4790 = vrot.lane.b32.xlu0 %v4761, 112
  %v4791 = vpop.permute.xlu0 %4790
  %4792 = vrot.lane.b32.xlu0 %v4765, 112
  %v4793 = vpop.permute.xlu0 %4792
  %4794 = vrot.lane.b32.xlu0 %v4769, 112
  %v4795 = vpop.permute.xlu0 %4794
  %4796 = vrot.lane.b32.xlu0 %v4773, 112
  %v4797 = vpop.permute.xlu0 %4796
  %4798 = vrot.lane.b32.xlu0 %v4772, 112
  %v4799 = vpop.permute.xlu0 %4798
  %4800 = vrot.lane.b32.xlu0 %v4777, 112
  %v4801 = vpop.permute.xlu0 %4800
  %4802 = vrot.lane.b32.xlu0 %v4781, 112
  %v4803 = vpop.permute.xlu0 %4802
  %4804 = vrot.lane.b32.xlu0 %v4785, 112
  %v4805 = vpop.permute.xlu0 %4804
  %4806 = vrot.lane.b32.xlu0 %v4789, 112
  %v4807 = vpop.permute.xlu0 %4806
  %4808 = vrot.lane.b32.xlu0 %v4788, 112
  %v4809 = vpop.permute.xlu0 %4808
  %v4811 = vsel %vm3581, 0, %v4439
  %v4813 = vsel %vm3581, %v2787, %v4441
  %v4815 = vsel %vm3581, %v2788, %v4443
  %v4817 = vsel %vm3581, %v2789, %v4445
  %v4819 = vsel %vm3581, %v2790, %v4447
  %v4821 = vsel %vm3581, 0, %v4449
  %v4823 = vsel %vm3581, %v2803, %v4451
  %v4825 = vsel %vm3581, %v2804, %v4453
  %v4827 = vsel %vm3581, %v2805, %v4455
  %v4829 = vsel %vm3581, %v2806, %v4457
  %v4831 = vsel %vm3600, %v4811, %v4459
  %v4833 = vsel %vm3600, %v4813, %v4461
  %v4835 = vsel %vm3600, %v4815, %v4463
  %v4837 = vsel %vm3600, %v4817, %v4465
  %v4839 = vsel %vm3600, %v4819, %v4467
  %v4841 = vsel %vm3600, %v4821, %v4469
  %v4843 = vsel %vm3600, %v4823, %v4471
  %v4845 = vsel %vm3600, %v4825, %v4473
  %v4847 = vsel %vm3600, %v4827, %v4475
  %v4849 = vsel %vm3600, %v4829, %v4477
  %v4851 = vsel %vm3621, %v4831, %v4479
  %v4853 = vsel %vm3621, %v4833, %v4481
  %v4855 = vsel %vm3621, %v4835, %v4483
  %v4857 = vsel %vm3621, %v4837, %v4485
  %v4859 = vsel %vm3621, %v4839, %v4487
  %v4861 = vsel %vm3621, %v4841, %v4489
  %v4863 = vsel %vm3621, %v4843, %v4491
  %v4865 = vsel %vm3621, %v4845, %v4493
  %v4867 = vsel %vm3621, %v4847, %v4495
  %v4869 = vsel %vm3621, %v4849, %v4497
  %v4871 = vsel %vm3642, %v4851, %v4515
  %v4873 = vsel %vm3642, %v4853, %v4517
  %v4875 = vsel %vm3642, %v4855, %v4519
  %v4877 = vsel %vm3642, %v4857, %v4521
  %v4879 = vsel %vm3642, %v4859, %v4523
  %v4881 = vsel %vm3642, %v4861, %v4525
  %v4883 = vsel %vm3642, %v4863, %v4527
  %v4885 = vsel %vm3642, %v4865, %v4529
  %v4887 = vsel %vm3642, %v4867, %v4531
  %v4889 = vsel %vm3642, %v4869, %v4533
  %v4890 = vsel %vm3663, %v4871, %v3073
  %v4892 = vsel %vm3663, %v4873, %v4535
  %v4894 = vsel %vm3663, %v4875, %v4537
  %v4896 = vsel %vm3663, %v4877, %v4539
  %v4898 = vsel %vm3663, %v4879, %v4541
  %v4899 = vsel %vm3663, %v4881, %v3073
  %v4901 = vsel %vm3663, %v4883, %v4543
  %v4903 = vsel %vm3663, %v4885, %v4545
  %v4905 = vsel %vm3663, %v4887, %v4547
  %v4907 = vsel %vm3663, %v4889, %v4549
  %v4909 = vsel %vm3683, %v4890, %v4551
  %v4911 = vsel %vm3683, %v4892, %v4553
  %v4913 = vsel %vm3683, %v4894, %v4555
  %v4915 = vsel %vm3683, %v4896, %v4557
  %v4917 = vsel %vm3683, %v4898, %v4559
  %v4919 = vsel %vm3683, %v4899, %v4561
  %v4921 = vsel %vm3683, %v4901, %v4563
  %v4923 = vsel %vm3683, %v4903, %v4565
  %v4925 = vsel %vm3683, %v4905, %v4567
  %v4927 = vsel %vm3683, %v4907, %v4569
  %v4929 = vsel %vm3703, %v4909, %v4571
  %v4931 = vsel %vm3703, %v4911, %v4573
  %v4933 = vsel %vm3703, %v4913, %v4575
  %v4935 = vsel %vm3703, %v4915, %v4577
  %v4937 = vsel %vm3703, %v4917, %v4579
  %v4939 = vsel %vm3703, %v4919, %v4581
  %v4941 = vsel %vm3703, %v4921, %v4583
  %v4943 = vsel %vm3703, %v4923, %v4585
  %v4945 = vsel %vm3703, %v4925, %v4587
  %v4947 = vsel %vm3703, %v4927, %v4589
  %v4950 = vsel %vm3581, %v3265, %v4607
  %v4953 = vsel %vm3581, %v3267, %v4609
  %v4956 = vsel %vm3581, %v3269, %v4611
  %v4959 = vsel %vm3581, %v3271, %v4613
  %v4962 = vsel %vm3581, %v3270, %v4615
  %v4965 = vsel %vm3581, %v3273, %v4617
  %v4968 = vsel %vm3581, %v3275, %v4619
  %v4971 = vsel %vm3581, %v3277, %v4621
  %v4974 = vsel %vm3581, %v3279, %v4623
  %v4977 = vsel %vm3581, %v3278, %v4625
  %v4979 = vsel %vm3600, %v4950, %v4627
  %v4981 = vsel %vm3600, %v4953, %v4629
  %v4983 = vsel %vm3600, %v4956, %v4631
  %v4985 = vsel %vm3600, %v4959, %v4633
  %v4987 = vsel %vm3600, %v4962, %v4635
  %v4989 = vsel %vm3600, %v4965, %v4637
  %v4991 = vsel %vm3600, %v4968, %v4639
  %v4993 = vsel %vm3600, %v4971, %v4641
  %v4995 = vsel %vm3600, %v4974, %v4643
  %v4997 = vsel %vm3600, %v4977, %v4645
  %v4999 = vsel %vm3621, %v4979, %v4647
  %v5001 = vsel %vm3621, %v4981, %v4649
  %v5003 = vsel %vm3621, %v4983, %v4651
  %v5005 = vsel %vm3621, %v4985, %v4653
  %v5007 = vsel %vm3621, %v4987, %v4655
  %v5009 = vsel %vm3621, %v4989, %v4657
  %v5011 = vsel %vm3621, %v4991, %v4659
  %v5013 = vsel %vm3621, %v4993, %v4661
  %v5015 = vsel %vm3621, %v4995, %v4663
  %v5017 = vsel %vm3621, %v4997, %v4665
  %v5019 = vsel %vm3642, %v4999, %v4667
  %v5021 = vsel %vm3642, %v5001, %v4669
  %v5023 = vsel %vm3642, %v5003, %v4671
  %v5025 = vsel %vm3642, %v5005, %v4673
  %v5027 = vsel %vm3642, %v5007, %v4675
  %v5029 = vsel %vm3642, %v5009, %v4677
  %v5031 = vsel %vm3642, %v5011, %v4679
  %v5033 = vsel %vm3642, %v5013, %v4681
  %v5035 = vsel %vm3642, %v5015, %v4683
  %v5037 = vsel %vm3642, %v5017, %v4685
  %v5039 = vsel %vm3663, %v5019, %v4687
  %v5041 = vsel %vm3663, %v5021, %v4689
  %v5043 = vsel %vm3663, %v5023, %v4691
  %v5045 = vsel %vm3663, %v5025, %v4693
  %v5047 = vsel %vm3663, %v5027, %v4695
  %v5049 = vsel %vm3663, %v5029, %v4697
  %v5051 = vsel %vm3663, %v5031, %v4699
  %v5053 = vsel %vm3663, %v5033, %v4701
  %v5055 = vsel %vm3663, %v5035, %v4703
  %v5057 = vsel %vm3663, %v5037, %v4705
  %v5059 = vsel %vm3683, %v5039, %v4739
  %v5061 = vsel %vm3683, %v5041, %v4741
  %v5063 = vsel %vm3683, %v5043, %v4743
  %v5065 = vsel %vm3683, %v5045, %v4745
  %v5067 = vsel %vm3683, %v5047, %v4747
  %v5069 = vsel %vm3683, %v5049, %v4749
  %v5071 = vsel %vm3683, %v5051, %v4751
  %v5073 = vsel %vm3683, %v5053, %v4753
  %v5075 = vsel %vm3683, %v5055, %v4755
  %v5077 = vsel %vm3683, %v5057, %v4757
  %v5079 = vsel %vm3703, %v5059, %v4791
  %v5081 = vsel %vm3703, %v5061, %v4793
  %v5083 = vsel %vm3703, %v5063, %v4795
  %v5085 = vsel %vm3703, %v5065, %v4797
  %v5087 = vsel %vm3703, %v5067, %v4799
  %v5089 = vsel %vm3703, %v5069, %v4801
  %v5091 = vsel %vm3703, %v5071, %v4803
  %v5093 = vsel %vm3703, %v5073, %v4805
  %v5095 = vsel %vm3703, %v5075, %v4807
  %v5097 = vsel %vm3703, %v5077, %v4809
  %5098 = vrot.lane.b32.xlu0 %v2795, 16
  %v5099 = vpop.permute.xlu0 %5098
  %5100 = vrot.lane.b32.xlu0 %v2796, 16
  %v5101 = vpop.permute.xlu0 %5100
  %5102 = vrot.lane.b32.xlu0 %v2797, 16
  %v5103 = vpop.permute.xlu0 %5102
  %5104 = vrot.lane.b32.xlu0 %v2798, 16
  %v5105 = vpop.permute.xlu0 %5104
  %5106 = vrot.lane.b32.xlu0 %v2811, 16
  %v5107 = vpop.permute.xlu0 %5106
  %5108 = vrot.lane.b32.xlu0 %v2812, 16
  %v5109 = vpop.permute.xlu0 %5108
  %5110 = vrot.lane.b32.xlu0 %v2813, 16
  %v5111 = vpop.permute.xlu0 %5110
  %5112 = vrot.lane.b32.xlu0 %v2814, 16
  %v5113 = vpop.permute.xlu0 %5112
  %v5114 = vsel %vm2842, %v3147, %v2848
  %v5115 = vsel %vm2842, %v3179, %v2848
  %5116 = vrot.lane.b32.xlu0 %v3128, 32
  %v5117 = vpop.permute.xlu0 %5116
  %5118 = vrot.lane.b32.xlu0 %v3136, 32
  %v5119 = vpop.permute.xlu0 %5118
  %5120 = vrot.lane.b32.xlu0 %v3144, 32
  %v5121 = vpop.permute.xlu0 %5120
  %5122 = vrot.lane.b32.xlu0 %v5114, 32
  %v5123 = vpop.permute.xlu0 %5122
  %5124 = vrot.lane.b32.xlu0 %v3160, 32
  %v5125 = vpop.permute.xlu0 %5124
  %5126 = vrot.lane.b32.xlu0 %v3168, 32
  %v5127 = vpop.permute.xlu0 %5126
  %5128 = vrot.lane.b32.xlu0 %v3176, 32
  %v5129 = vpop.permute.xlu0 %5128
  %5130 = vrot.lane.b32.xlu0 %v5115, 32
  %v5131 = vpop.permute.xlu0 %5130
  %v5132 = vsel %vm2842, %v3231, %v2848
  %v5133 = vsel %vm2842, %v3263, %v2848
  %5134 = vrot.lane.b32.xlu0 %v3212, 48
  %v5135 = vpop.permute.xlu0 %5134
  %5136 = vrot.lane.b32.xlu0 %v3220, 48
  %v5137 = vpop.permute.xlu0 %5136
  %5138 = vrot.lane.b32.xlu0 %v3228, 48
  %v5139 = vpop.permute.xlu0 %5138
  %5140 = vrot.lane.b32.xlu0 %v5132, 48
  %v5141 = vpop.permute.xlu0 %5140
  %5142 = vrot.lane.b32.xlu0 %v3244, 48
  %v5143 = vpop.permute.xlu0 %5142
  %5144 = vrot.lane.b32.xlu0 %v3252, 48
  %v5145 = vpop.permute.xlu0 %5144
  %5146 = vrot.lane.b32.xlu0 %v3260, 48
  %v5147 = vpop.permute.xlu0 %5146
  %5148 = vrot.lane.b32.xlu0 %v5133, 48
  %v5149 = vpop.permute.xlu0 %5148
  %vm5150 = vcmask 1043456
  %v5151 = vrot.slane %v2787, 4
  %v5152 = vrot.slane %v2788, 4
  %v5153 = vsel %vm5150, %v5151, %v5152
  %v5154 = vrot.slane %v2789, 4
  %v5155 = vsel %vm5150, %v5152, %v5154
  %v5156 = vrot.slane %v2790, 4
  %v5157 = vsel %vm5150, %v5154, %v5156
  %v5158 = vrot.slane 0, 4
  %v5159 = vsel %vm5150, %v5156, %v5158
  %v5160 = vrot.slane %v2803, 4
  %v5161 = vrot.slane %v2804, 4
  %v5162 = vsel %vm5150, %v5160, %v5161
  %v5163 = vrot.slane %v2805, 4
  %v5164 = vsel %vm5150, %v5161, %v5163
  %v5165 = vrot.slane %v2806, 4
  %v5166 = vsel %vm5150, %v5163, %v5165
  %v5167 = vsel %vm5150, %v5165, %v5158
  %5168 = vrot.lane.b32.xlu0 %v5153, 64
  %v5169 = vpop.permute.xlu0 %5168
  %5170 = vrot.lane.b32.xlu0 %v5155, 64
  %v5171 = vpop.permute.xlu0 %5170
  %5172 = vrot.lane.b32.xlu0 %v5157, 64
  %v5173 = vpop.permute.xlu0 %5172
  %5174 = vrot.lane.b32.xlu0 %v5159, 64
  %v5175 = vpop.permute.xlu0 %5174
  %5176 = vrot.lane.b32.xlu0 %v5162, 64
  %v5177 = vpop.permute.xlu0 %5176
  %5178 = vrot.lane.b32.xlu0 %v5164, 64
  %v5179 = vpop.permute.xlu0 %5178
  %5180 = vrot.lane.b32.xlu0 %v5166, 64
  %v5181 = vpop.permute.xlu0 %5180
  %5182 = vrot.lane.b32.xlu0 %v5167, 64
  %v5183 = vpop.permute.xlu0 %5182
  %5184 = vrot.lane.b32.xlu0 %v3309, 80
  %v5185 = vpop.permute.xlu0 %5184
  %5186 = vrot.lane.b32.xlu0 %v3313, 80
  %v5187 = vpop.permute.xlu0 %5186
  %5188 = vrot.lane.b32.xlu0 %v3317, 80
  %v5189 = vpop.permute.xlu0 %5188
  %5190 = vrot.lane.b32.xlu0 %v3938, 80
  %v5191 = vpop.permute.xlu0 %5190
  %5192 = vrot.lane.b32.xlu0 %v3325, 80
  %v5193 = vpop.permute.xlu0 %5192
  %5194 = vrot.lane.b32.xlu0 %v3329, 80
  %v5195 = vpop.permute.xlu0 %5194
  %5196 = vrot.lane.b32.xlu0 %v3333, 80
  %v5197 = vpop.permute.xlu0 %5196
  %5198 = vrot.lane.b32.xlu0 %v3939, 80
  %v5199 = vpop.permute.xlu0 %5198
  %5200 = vrot.lane.b32.xlu0 %v3361, 96
  %v5201 = vpop.permute.xlu0 %5200
  %5202 = vrot.lane.b32.xlu0 %v3365, 96
  %v5203 = vpop.permute.xlu0 %5202
  %5204 = vrot.lane.b32.xlu0 %v3369, 96
  %v5205 = vpop.permute.xlu0 %5204
  %5206 = vrot.lane.b32.xlu0 %v3960, 96
  %v5207 = vpop.permute.xlu0 %5206
  %5208 = vrot.lane.b32.xlu0 %v3377, 96
  %v5209 = vpop.permute.xlu0 %5208
  %5210 = vrot.lane.b32.xlu0 %v3381, 96
  %v5211 = vpop.permute.xlu0 %5210
  %5212 = vrot.lane.b32.xlu0 %v3385, 96
  %v5213 = vpop.permute.xlu0 %5212
  %5214 = vrot.lane.b32.xlu0 %v3961, 96
  %v5215 = vpop.permute.xlu0 %5214
  %5216 = vrot.lane.b32.xlu0 %v3409, 112
  %v5217 = vpop.permute.xlu0 %5216
  %5218 = vrot.lane.b32.xlu0 %v3411, 112
  %v5219 = vpop.permute.xlu0 %5218
  %5220 = vrot.lane.b32.xlu0 %v3413, 112
  %v5221 = vpop.permute.xlu0 %5220
  %5222 = vrot.lane.b32.xlu0 %v3983, 112
  %v5223 = vpop.permute.xlu0 %5222
  %5224 = vrot.lane.b32.xlu0 %v3416, 112
  %v5225 = vpop.permute.xlu0 %5224
  %5226 = vrot.lane.b32.xlu0 %v3418, 112
  %v5227 = vpop.permute.xlu0 %5226
  %5228 = vrot.lane.b32.xlu0 %v3420, 112
  %v5229 = vpop.permute.xlu0 %5228
  %5230 = vrot.lane.b32.xlu0 %v3984, 112
  %v5231 = vpop.permute.xlu0 %5230
  %v5233 = vsel %vm3581, %v2791, %v5099
  %v5235 = vsel %vm3581, %v2792, %v5101
  %v5237 = vsel %vm3581, %v2793, %v5103
  %v5239 = vsel %vm3581, %v2794, %v5105
  %v5241 = vsel %vm3581, %v2807, %v5107
  %v5243 = vsel %vm3581, %v2808, %v5109
  %v5245 = vsel %vm3581, %v2809, %v5111
  %v5247 = vsel %vm3581, %v2810, %v5113
  %v5249 = vsel %vm3600, %v5233, %v5117
  %v5251 = vsel %vm3600, %v5235, %v5119
  %v5253 = vsel %vm3600, %v5237, %v5121
  %v5255 = vsel %vm3600, %v5239, %v5123
  %v5257 = vsel %vm3600, %v5241, %v5125
  %v5259 = vsel %vm3600, %v5243, %v5127
  %v5261 = vsel %vm3600, %v5245, %v5129
  %v5263 = vsel %vm3600, %v5247, %v5131
  %v5265 = vsel %vm3621, %v5249, %v5135
  %v5267 = vsel %vm3621, %v5251, %v5137
  %v5269 = vsel %vm3621, %v5253, %v5139
  %v5271 = vsel %vm3621, %v5255, %v5141
  %v5273 = vsel %vm3621, %v5257, %v5143
  %v5275 = vsel %vm3621, %v5259, %v5145
  %v5277 = vsel %vm3621, %v5261, %v5147
  %v5279 = vsel %vm3621, %v5263, %v5149
  %v5281 = vsel %vm3642, %v5265, %v5169
  %v5283 = vsel %vm3642, %v5267, %v5171
  %v5285 = vsel %vm3642, %v5269, %v5173
  %v5287 = vsel %vm3642, %v5271, %v5175
  %v5289 = vsel %vm3642, %v5273, %v5177
  %v5291 = vsel %vm3642, %v5275, %v5179
  %v5293 = vsel %vm3642, %v5277, %v5181
  %v5295 = vsel %vm3642, %v5279, %v5183
  %v5297 = vsel %vm3663, %v5281, %v5185
  %v5299 = vsel %vm3663, %v5283, %v5187
  %v5301 = vsel %vm3663, %v5285, %v5189
  %v5303 = vsel %vm3663, %v5287, %v5191
  %v5305 = vsel %vm3663, %v5289, %v5193
  %v5307 = vsel %vm3663, %v5291, %v5195
  %v5309 = vsel %vm3663, %v5293, %v5197
  %v5311 = vsel %vm3663, %v5295, %v5199
  %v5313 = vsel %vm3683, %v5297, %v5201
  %v5315 = vsel %vm3683, %v5299, %v5203
  %v5317 = vsel %vm3683, %v5301, %v5205
  %v5319 = vsel %vm3683, %v5303, %v5207
  %v5321 = vsel %vm3683, %v5305, %v5209
  %v5323 = vsel %vm3683, %v5307, %v5211
  %v5325 = vsel %vm3683, %v5309, %v5213
  %v5327 = vsel %vm3683, %v5311, %v5215
  %v5329 = vsel %vm3703, %v5313, %v5217
  %v5331 = vsel %vm3703, %v5315, %v5219
  %v5333 = vsel %vm3703, %v5317, %v5221
  %v5335 = vsel %vm3703, %v5319, %v5223
  %v5337 = vsel %vm3703, %v5321, %v5225
  %v5339 = vsel %vm3703, %v5323, %v5227
  %v5341 = vsel %vm3703, %v5325, %v5229
  %v5343 = vsel %vm3703, %v5327, %v5231
  %v5352 = vrot.slane %v5329, 5
  %v5353 = vrot.slane %v3443, 5
  %v5354 = vrot.slane %v5331, 5
  %v5355 = vsel %vm3406, %v5352, %v5354
  %v5356 = vrot.slane %v3445, 5
  %v5357 = vsel %vm3406, %v5353, %v5356
  %v5358 = vrot.slane %v5333, 5
  %v5359 = vsel %vm3406, %v5354, %v5358
  %v5360 = vrot.slane %v3447, 5
  %v5361 = vsel %vm3406, %v5356, %v5360
  %v5362 = vrot.slane %v5335, 5
  %v5363 = vsel %vm3406, %v5358, %v5362
  %v5364 = vrot.slane %v4005, 5
  %v5365 = vsel %vm3406, %v5360, %v5364
  %v5366 = vrot.slane %v5337, 5
  %v5367 = vrot.slane %v3450, 5
  %v5368 = vrot.slane %v5339, 5
  %v5369 = vsel %vm3406, %v5366, %v5368
  %v5370 = vrot.slane %v3452, 5
  %v5371 = vsel %vm3406, %v5367, %v5370
  %v5372 = vrot.slane %v5341, 5
  %v5373 = vsel %vm3406, %v5368, %v5372
  %v5374 = vrot.slane %v3454, 5
  %v5375 = vsel %vm3406, %v5370, %v5374
  %v5376 = vrot.slane %v5343, 5
  %v5377 = vsel %vm3406, %v5372, %v5376
  %v5378 = vrot.slane %v4006, 5
  %v5379 = vsel %vm3406, %v5374, %v5378
  %v5400 = vrot.slane %v4929, 3
  %v5401 = vrot.slane %v4931, 3
  %v5402 = vsel %vm4341, %v5400, %v5401
  %v5403 = vrot.slane %v5079, 3
  %v5404 = vrot.slane %v5081, 3
  %v5405 = vsel %vm4341, %v5403, %v5404
  %v5406 = vrot.slane %v5352, 3
  %v5407 = vrot.slane %v5355, 3
  %v5408 = vsel %vm4341, %v5406, %v5407
  %v5409 = vrot.slane %v5353, 3
  %v5410 = vrot.slane %v5357, 3
  %v5411 = vsel %vm4341, %v5409, %v5410
  %v5412 = vrot.slane %v4933, 3
  %v5413 = vsel %vm4341, %v5401, %v5412
  %v5414 = vrot.slane %v5083, 3
  %v5415 = vsel %vm4341, %v5404, %v5414
  %v5416 = vrot.slane %v5359, 3
  %v5417 = vsel %vm4341, %v5407, %v5416
  %v5418 = vrot.slane %v5361, 3
  %v5419 = vsel %vm4341, %v5410, %v5418
  %v5420 = vrot.slane %v4935, 3
  %v5421 = vsel %vm4341, %v5412, %v5420
  %v5422 = vrot.slane %v5085, 3
  %v5423 = vsel %vm4341, %v5414, %v5422
  %v5424 = vrot.slane %v5363, 3
  %v5425 = vsel %vm4341, %v5416, %v5424
  %v5426 = vrot.slane %v5365, 3
  %v5427 = vsel %vm4341, %v5418, %v5426
  %v5428 = vrot.slane %v4937, 3
  %v5429 = vsel %vm4341, %v5420, %v5428
  %v5430 = vrot.slane %v5087, 3
  %v5431 = vsel %vm4341, %v5422, %v5430
  %v5432 = vrot.slane %v5362, 3
  %v5433 = vsel %vm4341, %v5424, %v5432
  %v5434 = vrot.slane %v5364, 3
  %v5435 = vsel %vm4341, %v5426, %v5434
  %v5436 = vrot.slane %v4939, 3
  %v5437 = vrot.slane %v4941, 3
  %v5438 = vsel %vm4341, %v5436, %v5437
  %v5439 = vrot.slane %v5089, 3
  %v5440 = vrot.slane %v5091, 3
  %v5441 = vsel %vm4341, %v5439, %v5440
  %v5442 = vrot.slane %v5366, 3
  %v5443 = vrot.slane %v5369, 3
  %v5444 = vsel %vm4341, %v5442, %v5443
  %v5445 = vrot.slane %v5367, 3
  %v5446 = vrot.slane %v5371, 3
  %v5447 = vsel %vm4341, %v5445, %v5446
  %v5448 = vrot.slane %v4943, 3
  %v5449 = vsel %vm4341, %v5437, %v5448
  %v5450 = vrot.slane %v5093, 3
  %v5451 = vsel %vm4341, %v5440, %v5450
  %v5452 = vrot.slane %v5373, 3
  %v5453 = vsel %vm4341, %v5443, %v5452
  %v5454 = vrot.slane %v5375, 3
  %v5455 = vsel %vm4341, %v5446, %v5454
  %v5456 = vrot.slane %v4945, 3
  %v5457 = vsel %vm4341, %v5448, %v5456
  %v5458 = vrot.slane %v5095, 3
  %v5459 = vsel %vm4341, %v5450, %v5458
  %v5460 = vrot.slane %v5377, 3
  %v5461 = vsel %vm4341, %v5452, %v5460
  %v5462 = vrot.slane %v5379, 3
  %v5463 = vsel %vm4341, %v5454, %v5462
  %v5464 = vrot.slane %v4947, 3
  %v5465 = vsel %vm4341, %v5456, %v5464
  %v5466 = vrot.slane %v5097, 3
  %v5467 = vsel %vm4341, %v5458, %v5466
  %v5468 = vrot.slane %v5376, 3
  %v5469 = vsel %vm4341, %v5460, %v5468
  %v5470 = vrot.slane %v5378, 3
  %v5471 = vsel %vm4341, %v5462, %v5470
  %5496 = vrot.lane.b32.xlu0 %v3120, 32
  %v5497 = vpop.permute.xlu0 %5496
  %5498 = vrot.lane.b32.xlu0 %v3147, 32
  %v5499 = vpop.permute.xlu0 %5498
  %5500 = vrot.lane.b32.xlu0 %v3152, 32
  %v5501 = vpop.permute.xlu0 %5500
  %5502 = vrot.lane.b32.xlu0 %v3179, 32
  %v5503 = vpop.permute.xlu0 %5502
  %5504 = vrot.lane.b32.xlu0 %v3204, 48
  %v5505 = vpop.permute.xlu0 %5504
  %5506 = vrot.lane.b32.xlu0 %v3231, 48
  %v5507 = vpop.permute.xlu0 %5506
  %5508 = vrot.lane.b32.xlu0 %v3236, 48
  %v5509 = vpop.permute.xlu0 %5508
  %5510 = vrot.lane.b32.xlu0 %v3263, 48
  %v5511 = vpop.permute.xlu0 %5510
  %5512 = vrot.lane.b32.xlu0 %v3265, 64
  %v5513 = vpop.permute.xlu0 %5512
  %5514 = vrot.lane.b32.xlu0 %v3267, 64
  %v5515 = vpop.permute.xlu0 %5514
  %5516 = vrot.lane.b32.xlu0 %v3269, 64
  %v5517 = vpop.permute.xlu0 %5516
  %5518 = vrot.lane.b32.xlu0 %v3271, 64
  %v5519 = vpop.permute.xlu0 %5518
  %5520 = vrot.lane.b32.xlu0 %v3270, 64
  %v5521 = vpop.permute.xlu0 %5520
  %5522 = vrot.lane.b32.xlu0 %v3273, 64
  %v5523 = vpop.permute.xlu0 %5522
  %5524 = vrot.lane.b32.xlu0 %v3275, 64
  %v5525 = vpop.permute.xlu0 %5524
  %5526 = vrot.lane.b32.xlu0 %v3277, 64
  %v5527 = vpop.permute.xlu0 %5526
  %5528 = vrot.lane.b32.xlu0 %v3279, 64
  %v5529 = vpop.permute.xlu0 %5528
  %5530 = vrot.lane.b32.xlu0 %v3278, 64
  %v5531 = vpop.permute.xlu0 %5530
  %5532 = vrot.lane.b32.xlu0 %v3305, 80
  %v5533 = vpop.permute.xlu0 %5532
  %5534 = vrot.lane.b32.xlu0 %v3316, 80
  %v5535 = vpop.permute.xlu0 %5534
  %5536 = vrot.lane.b32.xlu0 %v3321, 80
  %v5537 = vpop.permute.xlu0 %5536
  %5538 = vrot.lane.b32.xlu0 %v3332, 80
  %v5539 = vpop.permute.xlu0 %5538
  %5540 = vrot.lane.b32.xlu0 %v3357, 96
  %v5541 = vpop.permute.xlu0 %5540
  %5542 = vrot.lane.b32.xlu0 %v3368, 96
  %v5543 = vpop.permute.xlu0 %5542
  %5544 = vrot.lane.b32.xlu0 %v3373, 96
  %v5545 = vpop.permute.xlu0 %5544
  %5546 = vrot.lane.b32.xlu0 %v3384, 96
  %v5547 = vpop.permute.xlu0 %5546
  %5548 = vrot.lane.b32.xlu0 %v3407, 112
  %v5549 = vpop.permute.xlu0 %5548
  %5550 = vrot.lane.b32.xlu0 %v3412, 112
  %v5551 = vpop.permute.xlu0 %5550
  %5552 = vrot.lane.b32.xlu0 %v3414, 112
  %v5553 = vpop.permute.xlu0 %5552
  %5554 = vrot.lane.b32.xlu0 %v3419, 112
  %v5555 = vpop.permute.xlu0 %5554
  %5556 = vrot.lane.b32.xlu0 %v3478, 16
  %v5557 = vpop.permute.xlu0 %5556
  %5558 = vrot.lane.b32.xlu0 %v3482, 16
  %v5559 = vpop.permute.xlu0 %5558
  %5560 = vrot.lane.b32.xlu0 %v3486, 16
  %v5561 = vpop.permute.xlu0 %5560
  %5562 = vrot.lane.b32.xlu0 %v3490, 16
  %v5563 = vpop.permute.xlu0 %5562
  %5564 = vrot.lane.b32.xlu0 %v3492, 16
  %v5565 = vpop.permute.xlu0 %5564
  %5566 = vrot.lane.b32.xlu0 %v3495, 16
  %v5567 = vpop.permute.xlu0 %5566
  %5568 = vrot.lane.b32.xlu0 %v3499, 16
  %v5569 = vpop.permute.xlu0 %5568
  %5570 = vrot.lane.b32.xlu0 %v3503, 16
  %v5571 = vpop.permute.xlu0 %5570
  %5572 = vrot.lane.b32.xlu0 %v3507, 16
  %v5573 = vpop.permute.xlu0 %5572
  %5574 = vrot.lane.b32.xlu0 %v3508, 16
  %v5575 = vpop.permute.xlu0 %5574
  %5576 = vrot.lane.b32.xlu0 %v3532, 32
  %v5577 = vpop.permute.xlu0 %5576
  %5578 = vrot.lane.b32.xlu0 %v3536, 32
  %v5579 = vpop.permute.xlu0 %5578
  %5580 = vrot.lane.b32.xlu0 %v3540, 32
  %v5581 = vpop.permute.xlu0 %5580
  %5582 = vrot.lane.b32.xlu0 %v3544, 32
  %v5583 = vpop.permute.xlu0 %5582
  %5584 = vrot.lane.b32.xlu0 %v3543, 32
  %v5585 = vpop.permute.xlu0 %5584
  %5586 = vrot.lane.b32.xlu0 %v3548, 32
  %v5587 = vpop.permute.xlu0 %5586
  %5588 = vrot.lane.b32.xlu0 %v3552, 32
  %v5589 = vpop.permute.xlu0 %5588
  %5590 = vrot.lane.b32.xlu0 %v3556, 32
  %v5591 = vpop.permute.xlu0 %5590
  %5592 = vrot.lane.b32.xlu0 %v3560, 32
  %v5593 = vpop.permute.xlu0 %5592
  %5594 = vrot.lane.b32.xlu0 %v3559, 32
  %v5595 = vpop.permute.xlu0 %5594
  %5596 = vrot.lane.b32.xlu0 %v4761, 48
  %v5597 = vpop.permute.xlu0 %5596
  %5598 = vrot.lane.b32.xlu0 %v4765, 48
  %v5599 = vpop.permute.xlu0 %5598
  %5600 = vrot.lane.b32.xlu0 %v4769, 48
  %v5601 = vpop.permute.xlu0 %5600
  %5602 = vrot.lane.b32.xlu0 %v4773, 48
  %v5603 = vpop.permute.xlu0 %5602
  %5604 = vrot.lane.b32.xlu0 %v4772, 48
  %v5605 = vpop.permute.xlu0 %5604
  %5606 = vrot.lane.b32.xlu0 %v4777, 48
  %v5607 = vpop.permute.xlu0 %5606
  %5608 = vrot.lane.b32.xlu0 %v4781, 48
  %v5609 = vpop.permute.xlu0 %5608
  %5610 = vrot.lane.b32.xlu0 %v4785, 48
  %v5611 = vpop.permute.xlu0 %5610
  %5612 = vrot.lane.b32.xlu0 %v4789, 48
  %v5613 = vpop.permute.xlu0 %5612
  %5614 = vrot.lane.b32.xlu0 %v4788, 48
  %v5615 = vpop.permute.xlu0 %5614
  %v5616 = vrot.slane %v2791, 5
  %v5617 = vrot.slane %v2792, 5
  %v5618 = vsel %vm3406, %v5616, %v5617
  %v5619 = vrot.slane %v2793, 5
  %v5620 = vsel %vm3406, %v5617, %v5619
  %v5621 = vrot.slane %v2794, 5
  %v5622 = vsel %vm3406, %v5619, %v5621
  %v5623 = vrot.slane %v2807, 5
  %v5624 = vrot.slane %v2808, 5
  %v5625 = vsel %vm3406, %v5623, %v5624
  %v5626 = vrot.slane %v2809, 5
  %v5627 = vsel %vm3406, %v5624, %v5626
  %v5628 = vrot.slane %v2810, 5
  %v5629 = vsel %vm3406, %v5626, %v5628
  %5630 = vrot.lane.b32.xlu0 %v5616, 64
  %v5631 = vpop.permute.xlu0 %5630
  %5632 = vrot.lane.b32.xlu0 %v5618, 64
  %v5633 = vpop.permute.xlu0 %5632
  %5634 = vrot.lane.b32.xlu0 %v5620, 64
  %v5635 = vpop.permute.xlu0 %5634
  %5636 = vrot.lane.b32.xlu0 %v5622, 64
  %v5637 = vpop.permute.xlu0 %5636
  %5638 = vrot.lane.b32.xlu0 %v5621, 64
  %v5639 = vpop.permute.xlu0 %5638
  %5640 = vrot.lane.b32.xlu0 %v5623, 64
  %v5641 = vpop.permute.xlu0 %5640
  %5642 = vrot.lane.b32.xlu0 %v5625, 64
  %v5643 = vpop.permute.xlu0 %5642
  %5644 = vrot.lane.b32.xlu0 %v5627, 64
  %v5645 = vpop.permute.xlu0 %5644
  %5646 = vrot.lane.b32.xlu0 %v5629, 64
  %v5647 = vpop.permute.xlu0 %5646
  %5648 = vrot.lane.b32.xlu0 %v5628, 64
  %v5649 = vpop.permute.xlu0 %5648
  %v5650 = vrot.slane %v2795, 5
  %v5651 = vrot.slane %v2796, 5
  %v5652 = vsel %vm3406, %v5650, %v5651
  %v5653 = vrot.slane %v2797, 5
  %v5654 = vsel %vm3406, %v5651, %v5653
  %v5655 = vrot.slane %v2798, 5
  %v5656 = vsel %vm3406, %v5653, %v5655
  %v5657 = vrot.slane %v2811, 5
  %v5658 = vrot.slane %v2812, 5
  %v5659 = vsel %vm3406, %v5657, %v5658
  %v5660 = vrot.slane %v2813, 5
  %v5661 = vsel %vm3406, %v5658, %v5660
  %v5662 = vrot.slane %v2814, 5
  %v5663 = vsel %vm3406, %v5660, %v5662
  %5664 = vrot.lane.b32.xlu0 %v5650, 80
  %v5665 = vpop.permute.xlu0 %5664
  %5666 = vrot.lane.b32.xlu0 %v5652, 80
  %v5667 = vpop.permute.xlu0 %5666
  %5668 = vrot.lane.b32.xlu0 %v5654, 80
  %v5669 = vpop.permute.xlu0 %5668
  %5670 = vrot.lane.b32.xlu0 %v5656, 80
  %v5671 = vpop.permute.xlu0 %5670
  %5672 = vrot.lane.b32.xlu0 %v5655, 80
  %v5673 = vpop.permute.xlu0 %5672
  %5674 = vrot.lane.b32.xlu0 %v5657, 80
  %v5675 = vpop.permute.xlu0 %5674
  %5676 = vrot.lane.b32.xlu0 %v5659, 80
  %v5677 = vpop.permute.xlu0 %5676
  %5678 = vrot.lane.b32.xlu0 %v5661, 80
  %v5679 = vpop.permute.xlu0 %5678
  %5680 = vrot.lane.b32.xlu0 %v5663, 80
  %v5681 = vpop.permute.xlu0 %5680
  %5682 = vrot.lane.b32.xlu0 %v5662, 80
  %v5683 = vpop.permute.xlu0 %5682
  %v5684 = vrot.slane %v3121, 5
  %v5685 = vrot.slane %v3117, 6
  %v5686 = vor.u32 %v5684, %v5685
  %v5687 = vrot.slane %v3129, 5
  %v5688 = vrot.slane %v3125, 6
  %v5689 = vor.u32 %v5687, %v5688
  %v5690 = vsel %vm3475, %v5686, %v5689
  %v5691 = vrot.slane %v3137, 5
  %v5692 = vrot.slane %v3133, 6
  %v5693 = vor.u32 %v5691, %v5692
  %v5694 = vsel %vm3475, %v5689, %v5693
  %v5695 = vrot.slane %v3145, 5
  %v5696 = vrot.slane %v3141, 6
  %v5697 = vor.u32 %v5695, %v5696
  %v5698 = vsel %vm3475, %v5693, %v5697
  %v5699 = vsel %vm3475, %v5697, %v3491
  %v5700 = vrot.slane %v3153, 5
  %v5701 = vrot.slane %v3149, 6
  %v5702 = vor.u32 %v5700, %v5701
  %v5703 = vrot.slane %v3161, 5
  %v5704 = vrot.slane %v3157, 6
  %v5705 = vor.u32 %v5703, %v5704
  %v5706 = vsel %vm3475, %v5702, %v5705
  %v5707 = vrot.slane %v3169, 5
  %v5708 = vrot.slane %v3165, 6
  %v5709 = vor.u32 %v5707, %v5708
  %v5710 = vsel %vm3475, %v5705, %v5709
  %v5711 = vrot.slane %v3177, 5
  %v5712 = vrot.slane %v3173, 6
  %v5713 = vor.u32 %v5711, %v5712
  %v5714 = vsel %vm3475, %v5709, %v5713
  %v5715 = vsel %vm3475, %v5713, %v3491
  %5716 = vrot.lane.b32.xlu0 %v5686, 96
  %v5717 = vpop.permute.xlu0 %5716
  %5718 = vrot.lane.b32.xlu0 %v5690, 96
  %v5719 = vpop.permute.xlu0 %5718
  %5720 = vrot.lane.b32.xlu0 %v5694, 96
  %v5721 = vpop.permute.xlu0 %5720
  %5722 = vrot.lane.b32.xlu0 %v5698, 96
  %v5723 = vpop.permute.xlu0 %5722
  %5724 = vrot.lane.b32.xlu0 %v5699, 96
  %v5725 = vpop.permute.xlu0 %5724
  %5726 = vrot.lane.b32.xlu0 %v5702, 96
  %v5727 = vpop.permute.xlu0 %5726
  %5728 = vrot.lane.b32.xlu0 %v5706, 96
  %v5729 = vpop.permute.xlu0 %5728
  %5730 = vrot.lane.b32.xlu0 %v5710, 96
  %v5731 = vpop.permute.xlu0 %5730
  %5732 = vrot.lane.b32.xlu0 %v5714, 96
  %v5733 = vpop.permute.xlu0 %5732
  %5734 = vrot.lane.b32.xlu0 %v5715, 96
  %v5735 = vpop.permute.xlu0 %5734
  %v5736 = vsel %vm3026, %v3034, %v3027
  %v5737 = vsel %vm3026, %v3042, %v3027
  %5738 = vrot.lane.b32.xlu0 %v3031, 112
  %v5739 = vpop.permute.xlu0 %5738
  %5740 = vrot.lane.b32.xlu0 %v3033, 112
  %v5741 = vpop.permute.xlu0 %5740
  %5742 = vrot.lane.b32.xlu0 %v3035, 112
  %v5743 = vpop.permute.xlu0 %5742
  %5744 = vrot.lane.b32.xlu0 %v5736, 112
  %v5745 = vpop.permute.xlu0 %5744
  %5746 = vrot.lane.b32.xlu0 %v3027, 112
  %v5747 = vpop.permute.xlu0 %5746
  %5748 = vrot.lane.b32.xlu0 %v3039, 112
  %v5749 = vpop.permute.xlu0 %5748
  %5750 = vrot.lane.b32.xlu0 %v3041, 112
  %v5751 = vpop.permute.xlu0 %5750
  %5752 = vrot.lane.b32.xlu0 %v3043, 112
  %v5753 = vpop.permute.xlu0 %5752
  %5754 = vrot.lane.b32.xlu0 %v5737, 112
  %v5755 = vpop.permute.xlu0 %5754
  %v5757 = vsel %vm3600, %v3583, %v5497
  %v5759 = vsel %vm3600, %v5239, %v5499
  %v5761 = vsel %vm3600, %v3583, %v5501
  %v5763 = vsel %vm3600, %v5247, %v5503
  %v5765 = vsel %vm3621, %v5757, %v5505
  %v5767 = vsel %vm3621, %v5759, %v5507
  %v5769 = vsel %vm3621, %v5761, %v5509
  %v5771 = vsel %vm3621, %v5763, %v5511
  %v5773 = vsel %vm3642, %v5765, %v5513
  %v5775 = vsel %vm3642, %v5265, %v5515
  %v5777 = vsel %vm3642, %v5267, %v5517
  %v5779 = vsel %vm3642, %v5269, %v5519
  %v5781 = vsel %vm3642, %v5767, %v5521
  %v5783 = vsel %vm3642, %v5769, %v5523
  %v5785 = vsel %vm3642, %v5273, %v5525
  %v5787 = vsel %vm3642, %v5275, %v5527
  %v5789 = vsel %vm3642, %v5277, %v5529
  %v5791 = vsel %vm3642, %v5771, %v5531
  %v5793 = vsel %vm3663, %v5773, %v5533
  %v5794 = vsel %vm3663, %v5775, %v5185
  %v5795 = vsel %vm3663, %v5777, %v5187
  %v5796 = vsel %vm3663, %v5779, %v5189
  %v5798 = vsel %vm3663, %v5781, %v5535
  %v5800 = vsel %vm3663, %v5783, %v5537
  %v5801 = vsel %vm3663, %v5785, %v5193
  %v5802 = vsel %vm3663, %v5787, %v5195
  %v5803 = vsel %vm3663, %v5789, %v5197
  %v5805 = vsel %vm3663, %v5791, %v5539
  %v5807 = vsel %vm3683, %v5793, %v5541
  %v5808 = vsel %vm3683, %v5794, %v5201
  %v5809 = vsel %vm3683, %v5795, %v5203
  %v5810 = vsel %vm3683, %v5796, %v5205
  %v5812 = vsel %vm3683, %v5798, %v5543
  %v5814 = vsel %vm3683, %v5800, %v5545
  %v5815 = vsel %vm3683, %v5801, %v5209
  %v5816 = vsel %vm3683, %v5802, %v5211
  %v5817 = vsel %vm3683, %v5803, %v5213
  %v5819 = vsel %vm3683, %v5805, %v5547
  %v5821 = vsel %vm3703, %v5807, %v5549
  %v5822 = vsel %vm3703, %v5808, %v5217
  %v5823 = vsel %vm3703, %v5809, %v5219
  %v5824 = vsel %vm3703, %v5810, %v5221
  %v5826 = vsel %vm3703, %v5812, %v5551
  %v5828 = vsel %vm3703, %v5814, %v5553
  %v5829 = vsel %vm3703, %v5815, %v5225
  %v5830 = vsel %vm3703, %v5816, %v5227
  %v5831 = vsel %vm3703, %v5817, %v5229
  %v5833 = vsel %vm3703, %v5819, %v5555
  %v5836 = vsel %vm3581, %v3441, %v5557
  %v5839 = vsel %vm3581, %v3443, %v5559
  %v5842 = vsel %vm3581, %v3445, %v5561
  %v5845 = vsel %vm3581, %v3447, %v5563
  %v5848 = vsel %vm3581, %v3446, %v5565
  %v5851 = vsel %vm3581, %v3448, %v5567
  %v5854 = vsel %vm3581, %v3450, %v5569
  %v5857 = vsel %vm3581, %v3452, %v5571
  %v5860 = vsel %vm3581, %v3454, %v5573
  %v5863 = vsel %vm3581, %v3453, %v5575
  %v5865 = vsel %vm3600, %v5836, %v5577
  %v5867 = vsel %vm3600, %v5839, %v5579
  %v5869 = vsel %vm3600, %v5842, %v5581
  %v5871 = vsel %vm3600, %v5845, %v5583
  %v5873 = vsel %vm3600, %v5848, %v5585
  %v5875 = vsel %vm3600, %v5851, %v5587
  %v5877 = vsel %vm3600, %v5854, %v5589
  %v5879 = vsel %vm3600, %v5857, %v5591
  %v5881 = vsel %vm3600, %v5860, %v5593
  %v5883 = vsel %vm3600, %v5863, %v5595
  %v5885 = vsel %vm3621, %v5865, %v5597
  %v5887 = vsel %vm3621, %v5867, %v5599
  %v5889 = vsel %vm3621, %v5869, %v5601
  %v5891 = vsel %vm3621, %v5871, %v5603
  %v5893 = vsel %vm3621, %v5873, %v5605
  %v5895 = vsel %vm3621, %v5875, %v5607
  %v5897 = vsel %vm3621, %v5877, %v5609
  %v5899 = vsel %vm3621, %v5879, %v5611
  %v5901 = vsel %vm3621, %v5881, %v5613
  %v5903 = vsel %vm3621, %v5883, %v5615
  %v5905 = vsel %vm3642, %v5885, %v5631
  %v5907 = vsel %vm3642, %v5887, %v5633
  %v5909 = vsel %vm3642, %v5889, %v5635
  %v5911 = vsel %vm3642, %v5891, %v5637
  %v5913 = vsel %vm3642, %v5893, %v5639
  %v5915 = vsel %vm3642, %v5895, %v5641
  %v5917 = vsel %vm3642, %v5897, %v5643
  %v5919 = vsel %vm3642, %v5899, %v5645
  %v5921 = vsel %vm3642, %v5901, %v5647
  %v5923 = vsel %vm3642, %v5903, %v5649
  %v5925 = vsel %vm3663, %v5905, %v5665
  %v5927 = vsel %vm3663, %v5907, %v5667
  %v5929 = vsel %vm3663, %v5909, %v5669
  %v5931 = vsel %vm3663, %v5911, %v5671
  %v5933 = vsel %vm3663, %v5913, %v5673
  %v5935 = vsel %vm3663, %v5915, %v5675
  %v5937 = vsel %vm3663, %v5917, %v5677
  %v5939 = vsel %vm3663, %v5919, %v5679
  %v5941 = vsel %vm3663, %v5921, %v5681
  %v5943 = vsel %vm3663, %v5923, %v5683
  %v5945 = vsel %vm3683, %v5925, %v5717
  %v5947 = vsel %vm3683, %v5927, %v5719
  %v5949 = vsel %vm3683, %v5929, %v5721
  %v5951 = vsel %vm3683, %v5931, %v5723
  %v5953 = vsel %vm3683, %v5933, %v5725
  %v5955 = vsel %vm3683, %v5935, %v5727
  %v5957 = vsel %vm3683, %v5937, %v5729
  %v5959 = vsel %vm3683, %v5939, %v5731
  %v5961 = vsel %vm3683, %v5941, %v5733
  %v5963 = vsel %vm3683, %v5943, %v5735
  %v5965 = vsel %vm3703, %v5945, %v5739
  %v5967 = vsel %vm3703, %v5947, %v5741
  %v5969 = vsel %vm3703, %v5949, %v5743
  %v5971 = vsel %vm3703, %v5951, %v5745
  %v5973 = vsel %vm3703, %v5953, %v5747
  %v5975 = vsel %vm3703, %v5955, %v5749
  %v5977 = vsel %vm3703, %v5957, %v5751
  %v5979 = vsel %vm3703, %v5959, %v5753
  %v5981 = vsel %vm3703, %v5961, %v5755
  %v5982 = vsel %vm3703, %v5963, %v5747
  %v5983 = vsel %vm2842, %v2881, %v2848
  %v5984 = vsel %vm2842, %v2913, %v2848
  %5985 = vrot.lane.b32.xlu0 %v5983, 16
  %v5986 = vpop.permute.xlu0 %5985
  %5987 = vrot.lane.b32.xlu0 %v2849, 16
  %v5988 = vpop.permute.xlu0 %5987
  %5989 = vrot.lane.b32.xlu0 %v5984, 16
  %v5990 = vpop.permute.xlu0 %5989
  %v5991 = vsel %vm2842, %v2965, %v2848
  %v5992 = vsel %vm2842, %v2997, %v2848
  %5993 = vrot.lane.b32.xlu0 %v5991, 32
  %v5994 = vpop.permute.xlu0 %5993
  %5995 = vrot.lane.b32.xlu0 %v2849, 32
  %v5996 = vpop.permute.xlu0 %5995
  %5997 = vrot.lane.b32.xlu0 %v5992, 32
  %v5998 = vpop.permute.xlu0 %5997
  %5999 = vrot.lane.b32.xlu0 %v5736, 48
  %v6000 = vpop.permute.xlu0 %5999
  %6001 = vrot.lane.b32.xlu0 %v3027, 48
  %v6002 = vpop.permute.xlu0 %6001
  %6003 = vrot.lane.b32.xlu0 %v5737, 48
  %v6004 = vpop.permute.xlu0 %6003
  %6005 = vrot.lane.b32.xlu0 %v2791, 64
  %v6006 = vpop.permute.xlu0 %6005
  %6007 = vrot.lane.b32.xlu0 %v2792, 64
  %v6008 = vpop.permute.xlu0 %6007
  %6009 = vrot.lane.b32.xlu0 %v2793, 64
  %v6010 = vpop.permute.xlu0 %6009
  %6011 = vrot.lane.b32.xlu0 %v2794, 64
  %v6012 = vpop.permute.xlu0 %6011
  %6013 = vrot.lane.b32.xlu0 0, 64
  %v6014 = vpop.permute.xlu0 %6013
  %6015 = vrot.lane.b32.xlu0 %v2807, 64
  %v6016 = vpop.permute.xlu0 %6015
  %6017 = vrot.lane.b32.xlu0 %v2808, 64
  %v6018 = vpop.permute.xlu0 %6017
  %6019 = vrot.lane.b32.xlu0 %v2809, 64
  %v6020 = vpop.permute.xlu0 %6019
  %6021 = vrot.lane.b32.xlu0 %v2810, 64
  %v6022 = vpop.permute.xlu0 %6021
  %6023 = vrot.lane.b32.xlu0 %v5114, 96
  %v6024 = vpop.permute.xlu0 %6023
  %6025 = vrot.lane.b32.xlu0 %v2849, 96
  %v6026 = vpop.permute.xlu0 %6025
  %6027 = vrot.lane.b32.xlu0 %v5115, 96
  %v6028 = vpop.permute.xlu0 %6027
  %6029 = vrot.lane.b32.xlu0 %v5132, 112
  %v6030 = vpop.permute.xlu0 %6029
  %6031 = vrot.lane.b32.xlu0 %v2849, 112
  %v6032 = vpop.permute.xlu0 %6031
  %6033 = vrot.lane.b32.xlu0 %v5133, 112
  %v6034 = vpop.permute.xlu0 %6033
  %v6036 = vsel %vm3581, %v2790, %v5986
  %v6038 = vsel %vm3581, 0, %v5988
  %v6040 = vsel %vm3581, %v2806, %v5990
  %v6042 = vsel %vm3600, %v6036, %v5994
  %v6044 = vsel %vm3600, %v6038, %v5996
  %v6046 = vsel %vm3600, %v6040, %v5998
  %v6048 = vsel %vm3621, %v6042, %v6000
  %v6050 = vsel %vm3621, %v6044, %v6002
  %v6052 = vsel %vm3621, %v6046, %v6004
  %v6054 = vsel %vm3642, %v4853, %v6006
  %v6056 = vsel %vm3642, %v4855, %v6008
  %v6058 = vsel %vm3642, %v4857, %v6010
  %v6060 = vsel %vm3642, %v6048, %v6012
  %v6062 = vsel %vm3642, %v6050, %v6014
  %v6064 = vsel %vm3642, %v4863, %v6016
  %v6066 = vsel %vm3642, %v4865, %v6018
  %v6068 = vsel %vm3642, %v4867, %v6020
  %v6070 = vsel %vm3642, %v6052, %v6022
  %v6071 = vsel %vm3663, %v6054, %v4535
  %v6072 = vsel %vm3663, %v6056, %v4537
  %v6073 = vsel %vm3663, %v6058, %v4539
  %v6074 = vsel %vm3663, %v6060, %v4541
  %v6075 = vsel %vm3663, %v6062, %v3073
  %v6076 = vsel %vm3663, %v6064, %v4543
  %v6077 = vsel %vm3663, %v6066, %v4545
  %v6078 = vsel %vm3663, %v6068, %v4547
  %v6079 = vsel %vm3663, %v6070, %v4549
  %v6080 = vsel %vm3683, %v6071, %v4553
  %v6081 = vsel %vm3683, %v6072, %v4555
  %v6082 = vsel %vm3683, %v6073, %v4557
  %v6084 = vsel %vm3683, %v6074, %v6024
  %v6086 = vsel %vm3683, %v6075, %v6026
  %v6087 = vsel %vm3683, %v6076, %v4563
  %v6088 = vsel %vm3683, %v6077, %v4565
  %v6089 = vsel %vm3683, %v6078, %v4567
  %v6091 = vsel %vm3683, %v6079, %v6028
  %v6092 = vsel %vm3703, %v6080, %v4573
  %v6093 = vsel %vm3703, %v6081, %v4575
  %v6094 = vsel %vm3703, %v6082, %v4577
  %v6096 = vsel %vm3703, %v6084, %v6030
  %v6098 = vsel %vm3703, %v6086, %v6032
  %v6099 = vsel %vm3703, %v6087, %v4583
  %v6100 = vsel %vm3703, %v6088, %v4585
  %v6101 = vsel %vm3703, %v6089, %v4587
  %v6103 = vsel %vm3703, %v6091, %v6034
  %v6113 = vrot.slane %v6092, 1
  %v6114 = vrot.slane %v6093, 1
  %v6115 = vsel %vm3026, %v6113, %v6114
  %v6116 = vrot.slane %v3267, 1
  %v6117 = vrot.slane %v3269, 1
  %v6118 = vsel %vm3026, %v6116, %v6117
  %v6119 = vrot.slane %v6094, 1
  %v6120 = vsel %vm3026, %v6114, %v6119
  %v6121 = vrot.slane %v3271, 1
  %v6122 = vsel %vm3026, %v6117, %v6121
  %v6123 = vrot.slane %v6096, 1
  %v6124 = vsel %vm3026, %v6119, %v6123
  %v6125 = vrot.slane %v3914, 1
  %v6126 = vsel %vm3026, %v6121, %v6125
  %v6127 = vrot.slane %v6098, 1
  %v6128 = vsel %vm3026, %v6123, %v6127
  %v6129 = vrot.slane %v3027, 1
  %v6130 = vsel %vm3026, %v6125, %v6129
  %v6131 = vrot.slane %v6099, 1
  %v6132 = vrot.slane %v6100, 1
  %v6133 = vsel %vm3026, %v6131, %v6132
  %v6134 = vrot.slane %v3275, 1
  %v6135 = vrot.slane %v3277, 1
  %v6136 = vsel %vm3026, %v6134, %v6135
  %v6137 = vrot.slane %v6101, 1
  %v6138 = vsel %vm3026, %v6132, %v6137
  %v6139 = vrot.slane %v3279, 1
  %v6140 = vsel %vm3026, %v6135, %v6139
  %v6141 = vrot.slane %v6103, 1
  %v6142 = vsel %vm3026, %v6137, %v6141
  %v6143 = vrot.slane %v3915, 1
  %v6144 = vsel %vm3026, %v6139, %v6143
  %v6145 = vsel %vm3026, %v6141, %v6127
  %v6146 = vsel %vm3026, %v6143, %v6129
  %v6167 = vrot.slane %v5821, 3
  %v6168 = vrot.slane %v5822, 3
  %v6169 = vsel %vm4341, %v6167, %v6168
  %v6170 = vrot.slane %v5965, 3
  %v6171 = vrot.slane %v5967, 3
  %v6172 = vsel %vm4341, %v6170, %v6171
  %v6173 = vrot.slane %v6115, 3
  %v6174 = vrot.slane %v6120, 3
  %v6175 = vsel %vm4341, %v6173, %v6174
  %v6176 = vrot.slane %v6118, 3
  %v6177 = vrot.slane %v6122, 3
  %v6178 = vsel %vm4341, %v6176, %v6177
  %v6179 = vrot.slane %v5823, 3
  %v6180 = vsel %vm4341, %v6168, %v6179
  %v6181 = vrot.slane %v5969, 3
  %v6182 = vsel %vm4341, %v6171, %v6181
  %v6183 = vrot.slane %v6124, 3
  %v6184 = vsel %vm4341, %v6174, %v6183
  %v6185 = vrot.slane %v6126, 3
  %v6186 = vsel %vm4341, %v6177, %v6185
  %v6187 = vrot.slane %v5824, 3
  %v6188 = vsel %vm4341, %v6179, %v6187
  %v6189 = vrot.slane %v5971, 3
  %v6190 = vsel %vm4341, %v6181, %v6189
  %v6191 = vrot.slane %v6128, 3
  %v6192 = vsel %vm4341, %v6183, %v6191
  %v6193 = vrot.slane %v6130, 3
  %v6194 = vsel %vm4341, %v6185, %v6193
  %v6195 = vrot.slane %v5826, 3
  %v6196 = vsel %vm4341, %v6187, %v6195
  %v6197 = vrot.slane %v5973, 3
  %v6198 = vsel %vm4341, %v6189, %v6197
  %v6199 = vrot.slane %v6127, 3
  %v6200 = vsel %vm4341, %v6191, %v6199
  %v6201 = vrot.slane %v6129, 3
  %v6202 = vsel %vm4341, %v6193, %v6201
  %v6203 = vrot.slane %v5828, 3
  %v6204 = vrot.slane %v5829, 3
  %v6205 = vsel %vm4341, %v6203, %v6204
  %v6206 = vrot.slane %v5975, 3
  %v6207 = vrot.slane %v5977, 3
  %v6208 = vsel %vm4341, %v6206, %v6207
  %v6209 = vrot.slane %v6133, 3
  %v6210 = vrot.slane %v6138, 3
  %v6211 = vsel %vm4341, %v6209, %v6210
  %v6212 = vrot.slane %v6136, 3
  %v6213 = vrot.slane %v6140, 3
  %v6214 = vsel %vm4341, %v6212, %v6213
  %v6215 = vrot.slane %v5830, 3
  %v6216 = vsel %vm4341, %v6204, %v6215
  %v6217 = vrot.slane %v5979, 3
  %v6218 = vsel %vm4341, %v6207, %v6217
  %v6219 = vrot.slane %v6142, 3
  %v6220 = vsel %vm4341, %v6210, %v6219
  %v6221 = vrot.slane %v6144, 3
  %v6222 = vsel %vm4341, %v6213, %v6221
  %v6223 = vrot.slane %v5831, 3
  %v6224 = vsel %vm4341, %v6215, %v6223
  %v6225 = vrot.slane %v5981, 3
  %v6226 = vsel %vm4341, %v6217, %v6225
  %v6227 = vrot.slane %v6145, 3
  %v6228 = vsel %vm4341, %v6219, %v6227
  %v6229 = vrot.slane %v6146, 3
  %v6230 = vsel %vm4341, %v6221, %v6229
  %v6231 = vrot.slane %v5833, 3
  %v6232 = vsel %vm4341, %v6223, %v6231
  %v6233 = vrot.slane %v5982, 3
  %v6234 = vsel %vm4341, %v6225, %v6233
  %v6235 = vsel %vm4341, %v6227, %v6199
  %v6236 = vsel %vm4341, %v6229, %v6201
  %6261 = vrot.lane.b32.xlu0 %v3120, 16
  %v6262 = vpop.permute.xlu0 %6261
  %6263 = vrot.lane.b32.xlu0 %v3152, 16
  %v6264 = vpop.permute.xlu0 %6263
  %6265 = vrot.lane.b32.xlu0 %v3204, 32
  %v6266 = vpop.permute.xlu0 %6265
  %6267 = vrot.lane.b32.xlu0 %v3236, 32
  %v6268 = vpop.permute.xlu0 %6267
  %6269 = vrot.lane.b32.xlu0 %v3265, 48
  %v6270 = vpop.permute.xlu0 %6269
  %6271 = vrot.lane.b32.xlu0 %v3270, 48
  %v6272 = vpop.permute.xlu0 %6271
  %6273 = vrot.lane.b32.xlu0 %v3273, 48
  %v6274 = vpop.permute.xlu0 %6273
  %6275 = vrot.lane.b32.xlu0 %v3278, 48
  %v6276 = vpop.permute.xlu0 %6275
  %6277 = vrot.lane.b32.xlu0 %v4591, 64
  %v6278 = vpop.permute.xlu0 %6277
  %6279 = vrot.lane.b32.xlu0 %v4593, 64
  %v6280 = vpop.permute.xlu0 %6279
  %6281 = vrot.lane.b32.xlu0 %v4595, 64
  %v6282 = vpop.permute.xlu0 %6281
  %6283 = vrot.lane.b32.xlu0 %v4597, 64
  %v6284 = vpop.permute.xlu0 %6283
  %6285 = vrot.lane.b32.xlu0 %v4596, 64
  %v6286 = vpop.permute.xlu0 %6285
  %6287 = vrot.lane.b32.xlu0 %v4599, 64
  %v6288 = vpop.permute.xlu0 %6287
  %6289 = vrot.lane.b32.xlu0 %v4601, 64
  %v6290 = vpop.permute.xlu0 %6289
  %6291 = vrot.lane.b32.xlu0 %v4603, 64
  %v6292 = vpop.permute.xlu0 %6291
  %6293 = vrot.lane.b32.xlu0 %v4605, 64
  %v6294 = vpop.permute.xlu0 %6293
  %6295 = vrot.lane.b32.xlu0 %v4604, 64
  %v6296 = vpop.permute.xlu0 %6295
  %6297 = vrot.lane.b32.xlu0 %v3357, 80
  %v6298 = vpop.permute.xlu0 %6297
  %6299 = vrot.lane.b32.xlu0 %v3368, 80
  %v6300 = vpop.permute.xlu0 %6299
  %6301 = vrot.lane.b32.xlu0 %v3373, 80
  %v6302 = vpop.permute.xlu0 %6301
  %6303 = vrot.lane.b32.xlu0 %v3384, 80
  %v6304 = vpop.permute.xlu0 %6303
  %6305 = vrot.lane.b32.xlu0 %v3412, 96
  %v6306 = vpop.permute.xlu0 %6305
  %6307 = vrot.lane.b32.xlu0 %v3419, 96
  %v6308 = vpop.permute.xlu0 %6307
  %6309 = vrot.lane.b32.xlu0 %v3446, 112
  %v6310 = vpop.permute.xlu0 %6309
  %6311 = vrot.lane.b32.xlu0 %v3453, 112
  %v6312 = vpop.permute.xlu0 %6311
  %6313 = vrot.lane.b32.xlu0 %v4708, 16
  %v6314 = vpop.permute.xlu0 %6313
  %6315 = vrot.lane.b32.xlu0 %v4712, 16
  %v6316 = vpop.permute.xlu0 %6315
  %6317 = vrot.lane.b32.xlu0 %v4716, 16
  %v6318 = vpop.permute.xlu0 %6317
  %6319 = vrot.lane.b32.xlu0 %v4720, 16
  %v6320 = vpop.permute.xlu0 %6319
  %6321 = vrot.lane.b32.xlu0 %v4721, 16
  %v6322 = vpop.permute.xlu0 %6321
  %6323 = vrot.lane.b32.xlu0 %v4724, 16
  %v6324 = vpop.permute.xlu0 %6323
  %6325 = vrot.lane.b32.xlu0 %v4728, 16
  %v6326 = vpop.permute.xlu0 %6325
  %6327 = vrot.lane.b32.xlu0 %v4732, 16
  %v6328 = vpop.permute.xlu0 %6327
  %6329 = vrot.lane.b32.xlu0 %v4736, 16
  %v6330 = vpop.permute.xlu0 %6329
  %6331 = vrot.lane.b32.xlu0 %v4737, 16
  %v6332 = vpop.permute.xlu0 %6331
  %6333 = vrot.lane.b32.xlu0 %v4761, 32
  %v6334 = vpop.permute.xlu0 %6333
  %6335 = vrot.lane.b32.xlu0 %v4765, 32
  %v6336 = vpop.permute.xlu0 %6335
  %6337 = vrot.lane.b32.xlu0 %v4769, 32
  %v6338 = vpop.permute.xlu0 %6337
  %6339 = vrot.lane.b32.xlu0 %v4773, 32
  %v6340 = vpop.permute.xlu0 %6339
  %6341 = vrot.lane.b32.xlu0 %v4772, 32
  %v6342 = vpop.permute.xlu0 %6341
  %6343 = vrot.lane.b32.xlu0 %v4777, 32
  %v6344 = vpop.permute.xlu0 %6343
  %6345 = vrot.lane.b32.xlu0 %v4781, 32
  %v6346 = vpop.permute.xlu0 %6345
  %6347 = vrot.lane.b32.xlu0 %v4785, 32
  %v6348 = vpop.permute.xlu0 %6347
  %6349 = vrot.lane.b32.xlu0 %v4789, 32
  %v6350 = vpop.permute.xlu0 %6349
  %6351 = vrot.lane.b32.xlu0 %v4788, 32
  %v6352 = vpop.permute.xlu0 %6351
  %6353 = vrot.lane.b32.xlu0 %v5616, 48
  %v6354 = vpop.permute.xlu0 %6353
  %6355 = vrot.lane.b32.xlu0 %v5618, 48
  %v6356 = vpop.permute.xlu0 %6355
  %6357 = vrot.lane.b32.xlu0 %v5620, 48
  %v6358 = vpop.permute.xlu0 %6357
  %6359 = vrot.lane.b32.xlu0 %v5622, 48
  %v6360 = vpop.permute.xlu0 %6359
  %6361 = vrot.lane.b32.xlu0 %v5621, 48
  %v6362 = vpop.permute.xlu0 %6361
  %6363 = vrot.lane.b32.xlu0 %v5623, 48
  %v6364 = vpop.permute.xlu0 %6363
  %6365 = vrot.lane.b32.xlu0 %v5625, 48
  %v6366 = vpop.permute.xlu0 %6365
  %6367 = vrot.lane.b32.xlu0 %v5627, 48
  %v6368 = vpop.permute.xlu0 %6367
  %6369 = vrot.lane.b32.xlu0 %v5629, 48
  %v6370 = vpop.permute.xlu0 %6369
  %6371 = vrot.lane.b32.xlu0 %v5628, 48
  %v6372 = vpop.permute.xlu0 %6371
  %6373 = vrot.lane.b32.xlu0 %v5650, 64
  %v6374 = vpop.permute.xlu0 %6373
  %6375 = vrot.lane.b32.xlu0 %v5652, 64
  %v6376 = vpop.permute.xlu0 %6375
  %6377 = vrot.lane.b32.xlu0 %v5654, 64
  %v6378 = vpop.permute.xlu0 %6377
  %6379 = vrot.lane.b32.xlu0 %v5656, 64
  %v6380 = vpop.permute.xlu0 %6379
  %6381 = vrot.lane.b32.xlu0 %v5655, 64
  %v6382 = vpop.permute.xlu0 %6381
  %6383 = vrot.lane.b32.xlu0 %v5657, 64
  %v6384 = vpop.permute.xlu0 %6383
  %6385 = vrot.lane.b32.xlu0 %v5659, 64
  %v6386 = vpop.permute.xlu0 %6385
  %6387 = vrot.lane.b32.xlu0 %v5661, 64
  %v6388 = vpop.permute.xlu0 %6387
  %6389 = vrot.lane.b32.xlu0 %v5663, 64
  %v6390 = vpop.permute.xlu0 %6389
  %6391 = vrot.lane.b32.xlu0 %v5662, 64
  %v6392 = vpop.permute.xlu0 %6391
  %6393 = vrot.lane.b32.xlu0 %v5686, 80
  %v6394 = vpop.permute.xlu0 %6393
  %6395 = vrot.lane.b32.xlu0 %v5690, 80
  %v6396 = vpop.permute.xlu0 %6395
  %6397 = vrot.lane.b32.xlu0 %v5694, 80
  %v6398 = vpop.permute.xlu0 %6397
  %6399 = vrot.lane.b32.xlu0 %v5698, 80
  %v6400 = vpop.permute.xlu0 %6399
  %6401 = vrot.lane.b32.xlu0 %v5699, 80
  %v6402 = vpop.permute.xlu0 %6401
  %6403 = vrot.lane.b32.xlu0 %v5702, 80
  %v6404 = vpop.permute.xlu0 %6403
  %6405 = vrot.lane.b32.xlu0 %v5706, 80
  %v6406 = vpop.permute.xlu0 %6405
  %6407 = vrot.lane.b32.xlu0 %v5710, 80
  %v6408 = vpop.permute.xlu0 %6407
  %6409 = vrot.lane.b32.xlu0 %v5714, 80
  %v6410 = vpop.permute.xlu0 %6409
  %6411 = vrot.lane.b32.xlu0 %v5715, 80
  %v6412 = vpop.permute.xlu0 %6411
  %v6413 = vrot.slane %v3205, 5
  %v6414 = vrot.slane %v3201, 6
  %v6415 = vor.u32 %v6413, %v6414
  %v6416 = vrot.slane %v3213, 5
  %v6417 = vrot.slane %v3209, 6
  %v6418 = vor.u32 %v6416, %v6417
  %v6419 = vsel %vm3475, %v6415, %v6418
  %v6420 = vrot.slane %v3221, 5
  %v6421 = vrot.slane %v3217, 6
  %v6422 = vor.u32 %v6420, %v6421
  %v6423 = vsel %vm3475, %v6418, %v6422
  %v6424 = vrot.slane %v3229, 5
  %v6425 = vrot.slane %v3225, 6
  %v6426 = vor.u32 %v6424, %v6425
  %v6427 = vsel %vm3475, %v6422, %v6426
  %v6428 = vsel %vm3475, %v6426, %v3491
  %v6429 = vrot.slane %v3237, 5
  %v6430 = vrot.slane %v3233, 6
  %v6431 = vor.u32 %v6429, %v6430
  %v6432 = vrot.slane %v3245, 5
  %v6433 = vrot.slane %v3241, 6
  %v6434 = vor.u32 %v6432, %v6433
  %v6435 = vsel %vm3475, %v6431, %v6434
  %v6436 = vrot.slane %v3253, 5
  %v6437 = vrot.slane %v3249, 6
  %v6438 = vor.u32 %v6436, %v6437
  %v6439 = vsel %vm3475, %v6434, %v6438
  %v6440 = vrot.slane %v3261, 5
  %v6441 = vrot.slane %v3257, 6
  %v6442 = vor.u32 %v6440, %v6441
  %v6443 = vsel %vm3475, %v6438, %v6442
  %v6444 = vsel %vm3475, %v6442, %v3491
  %6445 = vrot.lane.b32.xlu0 %v6415, 96
  %v6446 = vpop.permute.xlu0 %6445
  %6447 = vrot.lane.b32.xlu0 %v6419, 96
  %v6448 = vpop.permute.xlu0 %6447
  %6449 = vrot.lane.b32.xlu0 %v6423, 96
  %v6450 = vpop.permute.xlu0 %6449
  %6451 = vrot.lane.b32.xlu0 %v6427, 96
  %v6452 = vpop.permute.xlu0 %6451
  %6453 = vrot.lane.b32.xlu0 %v6428, 96
  %v6454 = vpop.permute.xlu0 %6453
  %6455 = vrot.lane.b32.xlu0 %v6431, 96
  %v6456 = vpop.permute.xlu0 %6455
  %6457 = vrot.lane.b32.xlu0 %v6435, 96
  %v6458 = vpop.permute.xlu0 %6457
  %6459 = vrot.lane.b32.xlu0 %v6439, 96
  %v6460 = vpop.permute.xlu0 %6459
  %6461 = vrot.lane.b32.xlu0 %v6443, 96
  %v6462 = vpop.permute.xlu0 %6461
  %6463 = vrot.lane.b32.xlu0 %v6444, 96
  %v6464 = vpop.permute.xlu0 %6463
  %v6465 = vsel %vm3026, %v4504, %v3027
  %v6466 = vsel %vm3026, %v4512, %v3027
  %6467 = vrot.lane.b32.xlu0 %v4501, 112
  %v6468 = vpop.permute.xlu0 %6467
  %6469 = vrot.lane.b32.xlu0 %v4503, 112
  %v6470 = vpop.permute.xlu0 %6469
  %6471 = vrot.lane.b32.xlu0 %v4505, 112
  %v6472 = vpop.permute.xlu0 %6471
  %6473 = vrot.lane.b32.xlu0 %v6465, 112
  %v6474 = vpop.permute.xlu0 %6473
  %6475 = vrot.lane.b32.xlu0 %v4509, 112
  %v6476 = vpop.permute.xlu0 %6475
  %6477 = vrot.lane.b32.xlu0 %v4511, 112
  %v6478 = vpop.permute.xlu0 %6477
  %6479 = vrot.lane.b32.xlu0 %v4513, 112
  %v6480 = vpop.permute.xlu0 %6479
  %6481 = vrot.lane.b32.xlu0 %v6466, 112
  %v6482 = vpop.permute.xlu0 %6481
  %v6484 = vsel %vm3581, 0, %v6262
  %v6486 = vsel %vm3581, 0, %v6264
  %v6488 = vsel %vm3600, %v6484, %v6266
  %v6490 = vsel %vm3600, %v6486, %v6268
  %v6492 = vsel %vm3621, %v6488, %v6270
  %v6494 = vsel %vm3621, %v4060, %v6272
  %v6496 = vsel %vm3621, %v6490, %v6274
  %v6498 = vsel %vm3621, %v4070, %v6276
  %v6500 = vsel %vm3642, %v6492, %v6278
  %v6502 = vsel %vm3642, %v4074, %v6280
  %v6504 = vsel %vm3642, %v4076, %v6282
  %v6506 = vsel %vm3642, %v4078, %v6284
  %v6508 = vsel %vm3642, %v6494, %v6286
  %v6510 = vsel %vm3642, %v6496, %v6288
  %v6512 = vsel %vm3642, %v4084, %v6290
  %v6514 = vsel %vm3642, %v4086, %v6292
  %v6516 = vsel %vm3642, %v4088, %v6294
  %v6518 = vsel %vm3642, %v6498, %v6296
  %v6520 = vsel %vm3663, %v6500, %v6298
  %v6521 = vsel %vm3663, %v6502, %v3965
  %v6522 = vsel %vm3663, %v6504, %v3967
  %v6523 = vsel %vm3663, %v6506, %v3969
  %v6525 = vsel %vm3663, %v6508, %v6300
  %v6527 = vsel %vm3663, %v6510, %v6302
  %v6528 = vsel %vm3663, %v6512, %v3975
  %v6529 = vsel %vm3663, %v6514, %v3977
  %v6530 = vsel %vm3663, %v6516, %v3979
  %v6532 = vsel %vm3663, %v6518, %v6304
  %v6533 = vsel %vm3683, %v6520, %v3986
  %v6534 = vsel %vm3683, %v6521, %v3988
  %v6535 = vsel %vm3683, %v6522, %v3990
  %v6536 = vsel %vm3683, %v6523, %v3992
  %v6538 = vsel %vm3683, %v6525, %v6306
  %v6539 = vsel %vm3683, %v6527, %v3996
  %v6540 = vsel %vm3683, %v6528, %v3998
  %v6541 = vsel %vm3683, %v6529, %v4000
  %v6542 = vsel %vm3683, %v6530, %v4002
  %v6544 = vsel %vm3683, %v6532, %v6308
  %v6545 = vsel %vm3703, %v6533, %v4008
  %v6546 = vsel %vm3703, %v6534, %v4010
  %v6547 = vsel %vm3703, %v6535, %v4012
  %v6548 = vsel %vm3703, %v6536, %v4014
  %v6550 = vsel %vm3703, %v6538, %v6310
  %v6551 = vsel %vm3703, %v6539, %v4018
  %v6552 = vsel %vm3703, %v6540, %v4020
  %v6553 = vsel %vm3703, %v6541, %v4022
  %v6554 = vsel %vm3703, %v6542, %v4024
  %v6556 = vsel %vm3703, %v6544, %v6312
  %v6559 = vsel %vm3581, %v3478, %v6314
  %v6561 = vsel %vm3581, %v3482, %v6316
  %v6563 = vsel %vm3581, %v3486, %v6318
  %v6565 = vsel %vm3581, %v3490, %v6320
  %v6568 = vsel %vm3581, %v3492, %v6322
  %v6571 = vsel %vm3581, %v3495, %v6324
  %v6573 = vsel %vm3581, %v3499, %v6326
  %v6575 = vsel %vm3581, %v3503, %v6328
  %v6577 = vsel %vm3581, %v3507, %v6330
  %v6580 = vsel %vm3581, %v3508, %v6332
  %v6582 = vsel %vm3600, %v6559, %v6334
  %v6584 = vsel %vm3600, %v6561, %v6336
  %v6586 = vsel %vm3600, %v6563, %v6338
  %v6588 = vsel %vm3600, %v6565, %v6340
  %v6590 = vsel %vm3600, %v6568, %v6342
  %v6592 = vsel %vm3600, %v6571, %v6344
  %v6594 = vsel %vm3600, %v6573, %v6346
  %v6596 = vsel %vm3600, %v6575, %v6348
  %v6598 = vsel %vm3600, %v6577, %v6350
  %v6600 = vsel %vm3600, %v6580, %v6352
  %v6602 = vsel %vm3621, %v6582, %v6354
  %v6604 = vsel %vm3621, %v6584, %v6356
  %v6606 = vsel %vm3621, %v6586, %v6358
  %v6608 = vsel %vm3621, %v6588, %v6360
  %v6610 = vsel %vm3621, %v6590, %v6362
  %v6612 = vsel %vm3621, %v6592, %v6364
  %v6614 = vsel %vm3621, %v6594, %v6366
  %v6616 = vsel %vm3621, %v6596, %v6368
  %v6618 = vsel %vm3621, %v6598, %v6370
  %v6620 = vsel %vm3621, %v6600, %v6372
  %v6622 = vsel %vm3642, %v6602, %v6374
  %v6624 = vsel %vm3642, %v6604, %v6376
  %v6626 = vsel %vm3642, %v6606, %v6378
  %v6628 = vsel %vm3642, %v6608, %v6380
  %v6630 = vsel %vm3642, %v6610, %v6382
  %v6632 = vsel %vm3642, %v6612, %v6384
  %v6634 = vsel %vm3642, %v6614, %v6386
  %v6636 = vsel %vm3642, %v6616, %v6388
  %v6638 = vsel %vm3642, %v6618, %v6390
  %v6640 = vsel %vm3642, %v6620, %v6392
  %v6642 = vsel %vm3663, %v6622, %v6394
  %v6644 = vsel %vm3663, %v6624, %v6396
  %v6646 = vsel %vm3663, %v6626, %v6398
  %v6648 = vsel %vm3663, %v6628, %v6400
  %v6650 = vsel %vm3663, %v6630, %v6402
  %v6652 = vsel %vm3663, %v6632, %v6404
  %v6654 = vsel %vm3663, %v6634, %v6406
  %v6656 = vsel %vm3663, %v6636, %v6408
  %v6658 = vsel %vm3663, %v6638, %v6410
  %v6660 = vsel %vm3663, %v6640, %v6412
  %v6662 = vsel %vm3683, %v6642, %v6446
  %v6664 = vsel %vm3683, %v6644, %v6448
  %v6666 = vsel %vm3683, %v6646, %v6450
  %v6668 = vsel %vm3683, %v6648, %v6452
  %v6670 = vsel %vm3683, %v6650, %v6454
  %v6672 = vsel %vm3683, %v6652, %v6456
  %v6674 = vsel %vm3683, %v6654, %v6458
  %v6676 = vsel %vm3683, %v6656, %v6460
  %v6678 = vsel %vm3683, %v6658, %v6462
  %v6680 = vsel %vm3683, %v6660, %v6464
  %v6682 = vsel %vm3703, %v6662, %v6468
  %v6684 = vsel %vm3703, %v6664, %v6470
  %v6686 = vsel %vm3703, %v6666, %v6472
  %v6688 = vsel %vm3703, %v6668, %v6474
  %v6689 = vsel %vm3703, %v6670, %v5747
  %v6691 = vsel %vm3703, %v6672, %v6476
  %v6693 = vsel %vm3703, %v6674, %v6478
  %v6695 = vsel %vm3703, %v6676, %v6480
  %v6697 = vsel %vm3703, %v6678, %v6482
  %v6698 = vsel %vm3703, %v6680, %v5747
  %6699 = vrot.lane.b32.xlu0 %v5983, 32
  %v6700 = vpop.permute.xlu0 %6699
  %6701 = vrot.lane.b32.xlu0 %v5984, 32
  %v6702 = vpop.permute.xlu0 %6701
  %6703 = vrot.lane.b32.xlu0 %v5991, 48
  %v6704 = vpop.permute.xlu0 %6703
  %6705 = vrot.lane.b32.xlu0 %v2849, 48
  %v6706 = vpop.permute.xlu0 %6705
  %6707 = vrot.lane.b32.xlu0 %v5992, 48
  %v6708 = vpop.permute.xlu0 %6707
  %vm6709 = vsmask.f32 256
  %v6710 = vrot.slane %v3205, 7
  %v6711 = vor.u32 %v6710, %v3201
  %v6712 = vrot.slane %v3213, 7
  %v6713 = vor.u32 %v6712, %v3209
  %v6714 = vsel %vm6709, %v6710, %v6713
  %v6715 = vrot.slane %v3221, 7
  %v6716 = vor.u32 %v6715, %v3217
  %v6717 = vsel %vm6709, %v6712, %v6716
  %v6718 = vrot.slane %v3229, 7
  %v6719 = vor.u32 %v6718, %v3225
  %v6720 = vsel %vm6709, %v6715, %v6719
  %v6721 = vrot.slane %v2844, 7
  %v6722 = vor.u32 %v6721, %v2846
  %v6723 = vsel %vm6709, %v6718, %v6722
  %v6724 = vrot.slane %v3237, 7
  %v6725 = vor.u32 %v6724, %v3233
  %v6726 = vrot.slane %v3245, 7
  %v6727 = vor.u32 %v6726, %v3241
  %v6728 = vsel %vm6709, %v6724, %v6727
  %v6729 = vrot.slane %v3253, 7
  %v6730 = vor.u32 %v6729, %v3249
  %v6731 = vsel %vm6709, %v6726, %v6730
  %v6732 = vrot.slane %v3261, 7
  %v6733 = vor.u32 %v6732, %v3257
  %v6734 = vsel %vm6709, %v6729, %v6733
  %v6735 = vsel %vm6709, %v6732, %v6722
  %6736 = vrot.lane.b32.xlu0 %v6711, 64
  %v6737 = vpop.permute.xlu0 %6736
  %6738 = vrot.lane.b32.xlu0 %v6714, 64
  %v6739 = vpop.permute.xlu0 %6738
  %6740 = vrot.lane.b32.xlu0 %v6717, 64
  %v6741 = vpop.permute.xlu0 %6740
  %6742 = vrot.lane.b32.xlu0 %v6720, 64
  %v6743 = vpop.permute.xlu0 %6742
  %6744 = vrot.lane.b32.xlu0 %v6723, 64
  %v6745 = vpop.permute.xlu0 %6744
  %6746 = vrot.lane.b32.xlu0 %v6725, 64
  %v6747 = vpop.permute.xlu0 %6746
  %6748 = vrot.lane.b32.xlu0 %v6728, 64
  %v6749 = vpop.permute.xlu0 %6748
  %6750 = vrot.lane.b32.xlu0 %v6731, 64
  %v6751 = vpop.permute.xlu0 %6750
  %6752 = vrot.lane.b32.xlu0 %v6734, 64
  %v6753 = vpop.permute.xlu0 %6752
  %6754 = vrot.lane.b32.xlu0 %v6735, 64
  %v6755 = vpop.permute.xlu0 %6754
  %6756 = vrot.lane.b32.xlu0 %v5114, 112
  %v6757 = vpop.permute.xlu0 %6756
  %6758 = vrot.lane.b32.xlu0 %v5115, 112
  %v6759 = vpop.permute.xlu0 %6758
  %v6761 = vsel %vm3600, %v3591, %v6700
  %v6762 = vsel %vm3600, %v3583, %v5996
  %v6764 = vsel %vm3600, %v3599, %v6702
  %v6766 = vsel %vm3621, %v6761, %v6704
  %v6768 = vsel %vm3621, %v6762, %v6706
  %v6770 = vsel %vm3621, %v6764, %v6708
  %v6772 = vsel %vm3642, %v3625, %v6737
  %v6774 = vsel %vm3642, %v3627, %v6739
  %v6776 = vsel %vm3642, %v3629, %v6741
  %v6778 = vsel %vm3642, %v6766, %v6743
  %v6780 = vsel %vm3642, %v6768, %v6745
  %v6782 = vsel %vm3642, %v3635, %v6747
  %v6784 = vsel %vm3642, %v3637, %v6749
  %v6786 = vsel %vm3642, %v3639, %v6751
  %v6788 = vsel %vm3642, %v6770, %v6753
  %v6790 = vsel %vm3642, %v6768, %v6755
  %v6791 = vsel %vm3663, %v6772, %v3075
  %v6792 = vsel %vm3663, %v6774, %v3077
  %v6793 = vsel %vm3663, %v6776, %v3079
  %v6794 = vsel %vm3663, %v6778, %v3081
  %v6795 = vsel %vm3663, %v6780, %v3073
  %v6796 = vsel %vm3663, %v6782, %v3083
  %v6797 = vsel %vm3663, %v6784, %v3085
  %v6798 = vsel %vm3663, %v6786, %v3087
  %v6799 = vsel %vm3663, %v6788, %v3089
  %v6800 = vsel %vm3663, %v6790, %v3073
  %v6801 = vsel %vm3683, %v6791, %v3101
  %v6802 = vsel %vm3683, %v6792, %v3103
  %v6803 = vsel %vm3683, %v6793, %v3105
  %v6804 = vsel %vm3683, %v6794, %v3107
  %v6805 = vsel %vm3683, %v6795, %v3099
  %v6806 = vsel %vm3683, %v6796, %v3109
  %v6807 = vsel %vm3683, %v6797, %v3111
  %v6808 = vsel %vm3683, %v6798, %v3113
  %v6809 = vsel %vm3683, %v6799, %v3115
  %v6810 = vsel %vm3683, %v6800, %v3099
  %v6811 = vsel %vm3703, %v6801, %v3183
  %v6812 = vsel %vm3703, %v6802, %v3185
  %v6813 = vsel %vm3703, %v6803, %v3187
  %v6815 = vsel %vm3703, %v6804, %v6757
  %v6816 = vsel %vm3703, %v6805, %v6032
  %v6817 = vsel %vm3703, %v6806, %v3193
  %v6818 = vsel %vm3703, %v6807, %v3195
  %v6819 = vsel %vm3703, %v6808, %v3197
  %v6821 = vsel %vm3703, %v6809, %v6759
  %v6822 = vsel %vm3703, %v6810, %v6032
  %vm6823 = vsmask.f32 6400
  %v6824 = vshrl.u32 %v6811, 16
  %v6826 = vrot.slane %v6824, 1
  %v6827 = vshll.u32 %v6811, 16
  %v6829 = vrot.slane %v6827, 2
  %v6830 = vor.u32 %v6826, %v6829
  %v6831 = vshrl.u32 %v6812, 16
  %v6833 = vrot.slane %v6831, 1
  %v6834 = vshll.u32 %v6812, 16
  %v6836 = vrot.slane %v6834, 2
  %v6837 = vor.u32 %v6833, %v6836
  %v6838 = vsel %vm6823, %v6830, %v6837
  %v6839 = vshrl.u32 %v3212, 16
  %v6841 = vrot.slane %v6839, 1
  %v6842 = vshll.u32 %v3212, 16
  %v6844 = vrot.slane %v6842, 2
  %v6845 = vor.u32 %v6841, %v6844
  %v6846 = vshrl.u32 %v3220, 16
  %v6848 = vrot.slane %v6846, 1
  %v6849 = vshll.u32 %v3220, 16
  %v6851 = vrot.slane %v6849, 2
  %v6852 = vor.u32 %v6848, %v6851
  %v6853 = vsel %vm6823, %v6845, %v6852
  %v6854 = vshrl.u32 %v6813, 16
  %v6856 = vrot.slane %v6854, 1
  %v6857 = vshll.u32 %v6813, 16
  %v6859 = vrot.slane %v6857, 2
  %v6860 = vor.u32 %v6856, %v6859
  %v6861 = vsel %vm6823, %v6837, %v6860
  %v6862 = vshrl.u32 %v3228, 16
  %v6864 = vrot.slane %v6862, 1
  %v6865 = vshll.u32 %v3228, 16
  %v6867 = vrot.slane %v6865, 2
  %v6868 = vor.u32 %v6864, %v6867
  %v6869 = vsel %vm6823, %v6852, %v6868
  %v6870 = vshrl.u32 %v6815, 16
  %v6872 = vrot.slane %v6870, 1
  %v6873 = vshll.u32 %v6815, 16
  %v6875 = vrot.slane %v6873, 2
  %v6876 = vor.u32 %v6872, %v6875
  %v6877 = vsel %vm6823, %v6860, %v6876
  %v6879 = vshrl.u32 %v5132, 16
  %v6881 = vrot.slane %v6879, 1
  %v6882 = vshll.u32 %v5132, 16
  %v6884 = vrot.slane %v6882, 2
  %v6885 = vor.u32 %v6881, %v6884
  %v6886 = vsel %vm6823, %v6868, %v6885
  %v6887 = vshrl.u32 %v6816, 16
  %v6889 = vrot.slane %v6887, 1
  %v6890 = vshll.u32 %v6816, 16
  %v6892 = vrot.slane %v6890, 2
  %v6893 = vor.u32 %v6889, %v6892
  %v6894 = vsel %vm6823, %v6876, %v6893
  %v6896 = vshrl.u32 %v2849, 16
  %v6898 = vrot.slane %v6896, 1
  %v6899 = vshll.u32 %v2849, 16
  %v6901 = vrot.slane %v6899, 2
  %v6902 = vor.u32 %v6898, %v6901
  %v6903 = vsel %vm6823, %v6885, %v6902
  %v6904 = vshrl.u32 %v6817, 16
  %v6906 = vrot.slane %v6904, 1
  %v6907 = vshll.u32 %v6817, 16
  %v6909 = vrot.slane %v6907, 2
  %v6910 = vor.u32 %v6906, %v6909
  %v6911 = vshrl.u32 %v6818, 16
  %v6913 = vrot.slane %v6911, 1
  %v6914 = vshll.u32 %v6818, 16
  %v6916 = vrot.slane %v6914, 2
  %v6917 = vor.u32 %v6913, %v6916
  %v6918 = vsel %vm6823, %v6910, %v6917
  %v6919 = vshrl.u32 %v3244, 16
  %v6921 = vrot.slane %v6919, 1
  %v6922 = vshll.u32 %v3244, 16
  %v6924 = vrot.slane %v6922, 2
  %v6925 = vor.u32 %v6921, %v6924
  %v6926 = vshrl.u32 %v3252, 16
  %v6928 = vrot.slane %v6926, 1
  %v6929 = vshll.u32 %v3252, 16
  %v6931 = vrot.slane %v6929, 2
  %v6932 = vor.u32 %v6928, %v6931
  %v6933 = vsel %vm6823, %v6925, %v6932
  %v6934 = vshrl.u32 %v6819, 16
  %v6936 = vrot.slane %v6934, 1
  %v6937 = vshll.u32 %v6819, 16
  %v6939 = vrot.slane %v6937, 2
  %v6940 = vor.u32 %v6936, %v6939
  %v6941 = vsel %vm6823, %v6917, %v6940
  %v6942 = vshrl.u32 %v3260, 16
  %v6944 = vrot.slane %v6942, 1
  %v6945 = vshll.u32 %v3260, 16
  %v6947 = vrot.slane %v6945, 2
  %v6948 = vor.u32 %v6944, %v6947
  %v6949 = vsel %vm6823, %v6932, %v6948
  %v6950 = vshrl.u32 %v6821, 16
  %v6952 = vrot.slane %v6950, 1
  %v6953 = vshll.u32 %v6821, 16
  %v6955 = vrot.slane %v6953, 2
  %v6956 = vor.u32 %v6952, %v6955
  %v6957 = vsel %vm6823, %v6940, %v6956
  %v6959 = vshrl.u32 %v5133, 16
  %v6961 = vrot.slane %v6959, 1
  %v6962 = vshll.u32 %v5133, 16
  %v6964 = vrot.slane %v6962, 2
  %v6965 = vor.u32 %v6961, %v6964
  %v6966 = vsel %vm6823, %v6948, %v6965
  %v6967 = vshrl.u32 %v6822, 16
  %v6969 = vrot.slane %v6967, 1
  %v6970 = vshll.u32 %v6822, 16
  %v6972 = vrot.slane %v6970, 2
  %v6973 = vor.u32 %v6969, %v6972
  %v6974 = vsel %vm6823, %v6956, %v6973
  %v6975 = vsel %vm6823, %v6965, %v6902
  %v6996 = vrot.slane %v6545, 3
  %v6997 = vrot.slane %v6546, 3
  %v6998 = vsel %vm4341, %v6996, %v6997
  %v6999 = vrot.slane %v6682, 3
  %v7000 = vrot.slane %v6684, 3
  %v7001 = vsel %vm4341, %v6999, %v7000
  %v7002 = vrot.slane %v6838, 3
  %v7003 = vrot.slane %v6861, 3
  %v7004 = vsel %vm4341, %v7002, %v7003
  %v7005 = vrot.slane %v6853, 3
  %v7006 = vrot.slane %v6869, 3
  %v7007 = vsel %vm4341, %v7005, %v7006
  %v7008 = vrot.slane %v6547, 3
  %v7009 = vsel %vm4341, %v6997, %v7008
  %v7010 = vrot.slane %v6686, 3
  %v7011 = vsel %vm4341, %v7000, %v7010
  %v7012 = vrot.slane %v6877, 3
  %v7013 = vsel %vm4341, %v7003, %v7012
  %v7014 = vrot.slane %v6886, 3
  %v7015 = vsel %vm4341, %v7006, %v7014
  %v7016 = vrot.slane %v6548, 3
  %v7017 = vsel %vm4341, %v7008, %v7016
  %v7018 = vrot.slane %v6688, 3
  %v7019 = vsel %vm4341, %v7010, %v7018
  %v7020 = vrot.slane %v6894, 3
  %v7021 = vsel %vm4341, %v7012, %v7020
  %v7022 = vrot.slane %v6903, 3
  %v7023 = vsel %vm4341, %v7014, %v7022
  %v7024 = vrot.slane %v6550, 3
  %v7025 = vsel %vm4341, %v7016, %v7024
  %v7026 = vrot.slane %v6689, 3
  %v7027 = vsel %vm4341, %v7018, %v7026
  %v7028 = vrot.slane %v6893, 3
  %v7029 = vsel %vm4341, %v7020, %v7028
  %v7030 = vrot.slane %v6902, 3
  %v7031 = vsel %vm4341, %v7022, %v7030
  %v7032 = vrot.slane %v6551, 3
  %v7033 = vrot.slane %v6552, 3
  %v7034 = vsel %vm4341, %v7032, %v7033
  %v7035 = vrot.slane %v6691, 3
  %v7036 = vrot.slane %v6693, 3
  %v7037 = vsel %vm4341, %v7035, %v7036
  %v7038 = vrot.slane %v6918, 3
  %v7039 = vrot.slane %v6941, 3
  %v7040 = vsel %vm4341, %v7038, %v7039
  %v7041 = vrot.slane %v6933, 3
  %v7042 = vrot.slane %v6949, 3
  %v7043 = vsel %vm4341, %v7041, %v7042
  %v7044 = vrot.slane %v6553, 3
  %v7045 = vsel %vm4341, %v7033, %v7044
  %v7046 = vrot.slane %v6695, 3
  %v7047 = vsel %vm4341, %v7036, %v7046
  %v7048 = vrot.slane %v6957, 3
  %v7049 = vsel %vm4341, %v7039, %v7048
  %v7050 = vrot.slane %v6966, 3
  %v7051 = vsel %vm4341, %v7042, %v7050
  %v7052 = vrot.slane %v6554, 3
  %v7053 = vsel %vm4341, %v7044, %v7052
  %v7054 = vrot.slane %v6697, 3
  %v7055 = vsel %vm4341, %v7046, %v7054
  %v7056 = vrot.slane %v6974, 3
  %v7057 = vsel %vm4341, %v7048, %v7056
  %v7058 = vrot.slane %v6975, 3
  %v7059 = vsel %vm4341, %v7050, %v7058
  %v7060 = vrot.slane %v6556, 3
  %v7061 = vsel %vm4341, %v7052, %v7060
  %v7062 = vrot.slane %v6698, 3
  %v7063 = vsel %vm4341, %v7054, %v7062
  %v7064 = vrot.slane %v6973, 3
  %v7065 = vsel %vm4341, %v7056, %v7064
  %v7066 = vsel %vm4341, %v7058, %v7030
  %v7091 = vld [vmem:[%s4] sm:$0xf]
  %v7092 = vld [vmem:[%s4 + $0x4] sm:$0xf]
  %v7093 = vld [vmem:[%s4 + $0x8] sm:$0xf]
  %v7094 = vld [vmem:[%s4 + $0xc] sm:$0xf]
  %v7095 = vld [vmem:[%s4 + $0x10] sm:$0xf]
  %v7096 = vld [vmem:[%s4 + $0x14] sm:$0xf]
  %v7097 = vld [vmem:[%s4 + $0x18] sm:$0xf]
  %v7098 = vld [vmem:[%s4 + $0x1c] sm:$0xf]
  %v7099 = vld [vmem:[%s4 + $0x20] sm:$0xf]
  %v7100 = vld [vmem:[%s4 + $0x24] sm:$0xf]
  %v7101 = vld [vmem:[%s4 + $0x28] sm:$0xf]
  %v7102 = vld [vmem:[%s4 + $0x2c] sm:$0xf]
  %v7103 = vld [vmem:[%s4 + $0x30] sm:$0xf]
  %v7104 = vld [vmem:[%s4 + $0x34] sm:$0xf]
  %v7105 = vld [vmem:[%s4 + $0x38] sm:$0xf]
  %v7106 = vld [vmem:[%s4 + $0x3c] sm:$0xf]
  %v7107 = vld [vmem:[%s4 + $0x40] sm:$0xf]
  %v7108 = vld [vmem:[%s4 + $0x44] sm:$0xf]
  %v7109 = vld [vmem:[%s4 + $0x48] sm:$0xf]
  %v7110 = vld [vmem:[%s4 + $0x4c] sm:$0xf]
  %v7111 = vld [vmem:[%s4 + $0x50] sm:$0xf]
  %v7112 = vld [vmem:[%s4 + $0x54] sm:$0xf]
  %v7113 = vld [vmem:[%s4 + $0x58] sm:$0xf]
  %v7114 = vld [vmem:[%s4 + $0x5c] sm:$0xf]
  %v7115 = vld [vmem:[%s4 + $0x60] sm:$0xf]
  %v7116 = vld [vmem:[%s4 + $0x64] sm:$0xf]
  %v7117 = vld [vmem:[%s4 + $0x68] sm:$0xf]
  %v7118 = vld [vmem:[%s4 + $0x6c] sm:$0xf]
  %v7119 = vld [vmem:[%s4 + $0x70] sm:$0xf]
  %v7120 = vld [vmem:[%s4 + $0x74] sm:$0xf]
  %v7121 = vld [vmem:[%s4 + $0x78] sm:$0xf]
  %v7122 = vld [vmem:[%s4 + $0x7c] sm:$0xf]
  %v7123 = vld [vmem:[%s4 + $0x80] sm:$0xf]
  %v7124 = vld [vmem:[%s4 + $0x84] sm:$0xf]
  %v7125 = vld [vmem:[%s4 + $0x88] sm:$0xf]
  %v7126 = vld [vmem:[%s4 + $0x8c] sm:$0xf]
  %v7127 = vld [vmem:[%s4 + $0x90] sm:$0xf]
  %v7128 = vld [vmem:[%s4 + $0x94] sm:$0xf]
  %v7129 = vld [vmem:[%s4 + $0x98] sm:$0xf]
  %v7130 = vld [vmem:[%s4 + $0x9c] sm:$0xf]
  %v7131 = vld [vmem:[%s4 + $0xa0] sm:$0xf]
  %v7132 = vld [vmem:[%s4 + $0xa4] sm:$0xf]
  %v7133 = vld [vmem:[%s4 + $0xa8] sm:$0xf]
  %v7134 = vld [vmem:[%s4 + $0xac] sm:$0xf]
  %v7135 = vld [vmem:[%s4 + $0xb0] sm:$0xf]
  %v7136 = vld [vmem:[%s4 + $0xb4] sm:$0xf]
  %v7137 = vld [vmem:[%s4 + $0xb8] sm:$0xf]
  %v7138 = vld [vmem:[%s4 + $0xbc] sm:$0xf]
  %v7139 = vld [vmem:[%s4 + $0xc0] sm:$0xf]
  %v7140 = vld [vmem:[%s4 + $0xc4] sm:$0xf]
  %v7191 = vunpack.c.l.b16 %v7091
  %v7192 = vunpack.c.l.b16 %v7092
  %v7193 = vunpack.c.l.b16 %v7093
  %v7194 = vunpack.c.l.b16 %v7094
  %v7195 = vunpack.c.l.b16 %v7095
  %v7196 = vunpack.c.l.b16 %v7096
  %v7197 = vunpack.c.l.b16 %v7097
  %v7198 = vunpack.c.l.b16 %v7098
  %v7199 = vunpack.c.l.b16 %v7099
  %v7200 = vunpack.c.l.b16 %v7100
  %v7201 = vunpack.c.l.b16 %v7101
  %v7202 = vunpack.c.l.b16 %v7102
  %v7203 = vunpack.c.l.b16 %v7103
  %v7204 = vunpack.c.l.b16 %v7104
  %v7205 = vunpack.c.l.b16 %v7105
  %v7206 = vunpack.c.l.b16 %v7106
  %v7207 = vunpack.c.l.b16 %v7107
  %v7208 = vunpack.c.l.b16 %v7108
  %v7209 = vunpack.c.l.b16 %v7109
  %v7210 = vunpack.c.l.b16 %v7110
  %v7211 = vunpack.c.l.b16 %v7111
  %v7212 = vunpack.c.l.b16 %v7112
  %v7213 = vunpack.c.l.b16 %v7113
  %v7214 = vunpack.c.l.b16 %v7114
  %v7215 = vunpack.c.l.b16 %v7115
  %v7216 = vunpack.c.l.b16 %v7116
  %v7217 = vunpack.c.l.b16 %v7117
  %v7218 = vunpack.c.l.b16 %v7118
  %v7219 = vunpack.c.l.b16 %v7119
  %v7220 = vunpack.c.l.b16 %v7120
  %v7221 = vunpack.c.l.b16 %v7121
  %v7222 = vunpack.c.l.b16 %v7122
  %v7223 = vunpack.c.l.b16 %v7123
  %v7224 = vunpack.c.l.b16 %v7124
  %v7225 = vunpack.c.l.b16 %v7125
  %v7226 = vunpack.c.l.b16 %v7126
  %v7227 = vunpack.c.l.b16 %v7127
  %v7228 = vunpack.c.l.b16 %v7128
  %v7229 = vunpack.c.l.b16 %v7129
  %v7230 = vunpack.c.l.b16 %v7130
  %v7231 = vunpack.c.l.b16 %v7131
  %v7232 = vunpack.c.l.b16 %v7132
  %v7233 = vunpack.c.l.b16 %v7133
  %v7234 = vunpack.c.l.b16 %v7134
  %v7235 = vunpack.c.l.b16 %v7135
  %v7236 = vunpack.c.l.b16 %v7136
  %v7237 = vunpack.c.l.b16 %v7137
  %v7238 = vunpack.c.l.b16 %v7138
  %v7239 = vunpack.c.l.b16 %v7139
  %v7240 = vunpack.c.l.b16 %v7140
  %v7241 = vpack.c.b16 %v7192, %v7191
  %v7242 = vpack.c.b16 %v7194, %v7193
  %v7243 = vpack.c.b16 %v7196, %v7195
  %v7244 = vpack.c.b16 %v7198, %v7197
  %v7245 = vpack.c.b16 %v7200, %v7199
  %v7246 = vpack.c.b16 %v7202, %v7201
  %v7247 = vpack.c.b16 %v7204, %v7203
  %v7248 = vpack.c.b16 %v7206, %v7205
  %v7249 = vpack.c.b16 %v7208, %v7207
  %v7250 = vpack.c.b16 %v7210, %v7209
  %v7251 = vpack.c.b16 %v7212, %v7211
  %v7252 = vpack.c.b16 %v7214, %v7213
  %v7253 = vpack.c.b16 %v7216, %v7215
  %v7254 = vpack.c.b16 %v7218, %v7217
  %v7255 = vpack.c.b16 %v7220, %v7219
  %v7256 = vpack.c.b16 %v7222, %v7221
  %v7257 = vpack.c.b16 %v7224, %v7223
  %v7258 = vpack.c.b16 %v7226, %v7225
  %v7259 = vpack.c.b16 %v7228, %v7227
  %v7260 = vpack.c.b16 %v7230, %v7229
  %v7261 = vpack.c.b16 %v7232, %v7231
  %v7262 = vpack.c.b16 %v7234, %v7233
  %v7263 = vpack.c.b16 %v7236, %v7235
  %v7264 = vpack.c.b16 %v7238, %v7237
  %v7265 = vpack.c.b16 %v7240, %v7239
  %v7292 = vsel %vm3581, %v4353, 0
  %v7295 = vsel %vm3581, %v4361, 0
  %v7298 = vsel %vm3581, %v4369, 0
  %v7301 = vsel %vm3581, %v4377, 0
  %v7304 = vsel %vm3581, %v4389, 0
  %v7307 = vsel %vm3581, %v4397, 0
  %v7310 = vsel %vm3581, %v4405, 0
  %v7313 = vsel %vm3581, %v4413, 0
  %v7316 = vsel %vm3581, %v5411, 0
  %v7319 = vsel %vm3581, %v5419, 0
  %v7322 = vsel %vm3581, %v5427, 0
  %v7325 = vsel %vm3581, %v5435, 0
  %v7328 = vsel %vm3581, %v5447, 0
  %v7331 = vsel %vm3581, %v5455, 0
  %v7334 = vsel %vm3581, %v5463, 0
  %v7337 = vsel %vm3581, %v5471, 0
  %v7340 = vsel %vm3581, %v6178, 0
  %v7343 = vsel %vm3581, %v6186, 0
  %v7346 = vsel %vm3581, %v6194, 0
  %v7349 = vsel %vm3581, %v6202, 0
  %v7352 = vsel %vm3581, %v6214, 0
  %v7355 = vsel %vm3581, %v6222, 0
  %v7358 = vsel %vm3581, %v6230, 0
  %v7361 = vsel %vm3581, %v6236, 0
  %v7364 = vsel %vm3581, %v7007, 0
  %v7367 = vsel %vm3581, %v7015, 0
  %v7370 = vsel %vm3581, %v7023, 0
  %v7373 = vsel %vm3581, %v7031, 0
  %v7376 = vsel %vm3581, %v7043, 0
  %v7379 = vsel %vm3581, %v7051, 0
  %v7382 = vsel %vm3581, %v7059, 0
  %v7385 = vsel %vm3581, %v7066, 0
  %7387 = vmatprep.subr.bf16.mxu0 0
  %7388 = vmatpush1.bf16.msra.mxu0 %v7241
  %7389 = vmatprep.subr.bf16.mxu0 0
  %7390 = vmatpush1.bf16.msra.mxu0 %v7242
  %7391 = vmatprep.subr.bf16.mxu0 0
  %7392 = vmatpush1.bf16.msra.mxu0 %v7243
  %7393 = vmatprep.subr.bf16.mxu0 0
  %7394 = vmatpush1.bf16.msra.mxu0 %v7244
  %7395 = vmatprep.subr.bf16.mxu0 0
  %7396 = vmatpush1.bf16.msra.mxu0 %v7245
  %7397 = vmatprep.subr.bf16.mxu0 0
  %7398 = vmatpush1.bf16.msra.mxu0 %v7246
  %7399 = vmatprep.subr.bf16.mxu0 0
  %7400 = vmatpush1.bf16.msra.mxu0 %v7247
  %7401 = vmatprep.subr.bf16.mxu0 0
  %7402 = vmatpush1.bf16.msra.mxu0 %v7248
  %7403 = vmatprep.subr.bf16.mxu0 0
  %7404 = vmatpush1.bf16.msra.mxu0 %v7249
  %7405 = vmatprep.subr.bf16.mxu0 0
  %7406 = vmatpush1.bf16.msra.mxu0 %v7250
  %7407 = vmatprep.subr.bf16.mxu0 0
  %7408 = vmatpush1.bf16.msra.mxu0 %v7251
  %7409 = vmatprep.subr.bf16.mxu0 0
  %7410 = vmatpush1.bf16.msra.mxu0 %v7252
  %7411 = vmatprep.subr.bf16.mxu0 0
  %7412 = vmatpush1.bf16.msra.mxu0 %v7253
  %7413 = vmatprep.subr.bf16.mxu0 0
  %7414 = vmatpush1.bf16.msra.mxu0 %v7254
  %7415 = vmatprep.subr.bf16.mxu0 0
  %7416 = vmatpush1.bf16.msra.mxu0 %v7255
  %7417 = vmatprep.subr.bf16.mxu0 0
  %7418 = vmatpush1.bf16.msra.mxu0 %v7256
  %7419 = vmatprep.mubr.bf16.mxu0 %v4347
  %7420 = vmatmul.mubr.bf16.gmra.mrb[0].mxu0 %v4344
  %v7421 = vpop.f32.mrb[0].mxu0
  %v7422 = vadd.f32 0.0, %v7421
  %v7423 = vpop.f32.mrb[0].mxu0
  %v7424 = vpop.f32.mrb[0].mxu0
  %v7425 = vadd.f32 0.0, %v7424
  %v7426 = vpop.f32.mrb[0].mxu0
  %7427 = vmatprep.mubr.bf16.mxu0 %v4357
  %7428 = vmatmul.mubr.bf16.gmra.mrb[0].mxu0 %v4355
  %v7429 = vpop.f32.mrb[0].mxu0
  %v7430 = vadd.f32 0.0, %v7429
  %v7431 = vpop.f32.mrb[0].mxu0
  %v7432 = vpop.f32.mrb[0].mxu0
  %v7433 = vadd.f32 0.0, %v7432
  %v7434 = vpop.f32.mrb[0].mxu0
  %7435 = vmatprep.mubr.bf16.mxu0 %v4365
  %7436 = vmatmul.mubr.bf16.gmra.mrb[0].mxu0 %v4363
  %v7437 = vpop.f32.mrb[0].mxu0
  %v7438 = vadd.f32 0.0, %v7437
  %v7439 = vpop.f32.mrb[0].mxu0
  %v7440 = vpop.f32.mrb[0].mxu0
  %v7441 = vadd.f32 0.0, %v7440
  %v7442 = vpop.f32.mrb[0].mxu0
  %7443 = vmatprep.mubr.bf16.mxu0 %v4373
  %7444 = vmatmul.mubr.bf16.gmra.mrb[0].mxu0 %v4371
  %v7445 = vpop.f32.mrb[0].mxu0
  %v7446 = vadd.f32 0.0, %v7445
  %v7447 = vpop.f32.mrb[0].mxu0
  %v7448 = vpop.f32.mrb[0].mxu0
  %v7449 = vadd.f32 0.0, %v7448
  %v7450 = vpop.f32.mrb[0].mxu0
  %7451 = vmatprep.mubr.bf16.mxu0 %v4383
  %7452 = vmatmul.mubr.bf16.gmra.mrb[0].mxu0 %v4380
  %v7453 = vpop.f32.mrb[0].mxu0
  %v7454 = vadd.f32 0.0, %v7453
  %v7455 = vpop.f32.mrb[0].mxu0
  %v7456 = vpop.f32.mrb[0].mxu0
  %v7457 = vadd.f32 0.0, %v7456
  %v7458 = vpop.f32.mrb[0].mxu0
  %7459 = vmatprep.mubr.bf16.mxu0 %v4393
  %7460 = vmatmul.mubr.bf16.gmra.mrb[0].mxu0 %v4391
  %v7461 = vpop.f32.mrb[0].mxu0
  %v7462 = vadd.f32 0.0, %v7461
  %v7463 = vpop.f32.mrb[0].mxu0
  %v7464 = vpop.f32.mrb[0].mxu0
  %v7465 = vadd.f32 0.0, %v7464
  %v7466 = vpop.f32.mrb[0].mxu0
  %7467 = vmatprep.mubr.bf16.mxu0 %v4401
  %7468 = vmatmul.mubr.bf16.gmra.mrb[0].mxu0 %v4399
  %v7469 = vpop.f32.mrb[0].mxu0
  %v7470 = vadd.f32 0.0, %v7469
  %v7471 = vpop.f32.mrb[0].mxu0
  %v7472 = vpop.f32.mrb[0].mxu0
  %v7473 = vadd.f32 0.0, %v7472
  %v7474 = vpop.f32.mrb[0].mxu0
  %7475 = vmatprep.mubr.bf16.mxu0 %v4409
  %7476 = vmatmul.mubr.bf16.gmra.mrb[0].mxu0 %v4407
  %v7477 = vpop.f32.mrb[0].mxu0
  %v7478 = vadd.f32 0.0, %v7477
  %v7479 = vpop.f32.mrb[0].mxu0
  %v7480 = vpop.f32.mrb[0].mxu0
  %v7481 = vadd.f32 0.0, %v7480
  %v7482 = vpop.f32.mrb[0].mxu0
  %7483 = vmatprep.mubr.bf16.mxu0 %v5405
  %7484 = vmatmul.mubr.bf16.gmra.mrb[0].mxu0 %v5402
  %v7485 = vpop.f32.mrb[0].mxu0
  %v7486 = vadd.f32 0.0, %v7485
  %v7487 = vpop.f32.mrb[0].mxu0
  %v7488 = vpop.f32.mrb[0].mxu0
  %v7489 = vadd.f32 0.0, %v7488
  %v7490 = vpop.f32.mrb[0].mxu0
  %7491 = vmatprep.mubr.bf16.mxu0 %v5415
  %7492 = vmatmul.mubr.bf16.gmra.mrb[0].mxu0 %v5413
  %v7493 = vpop.f32.mrb[0].mxu0
  %v7494 = vadd.f32 0.0, %v7493
  %v7495 = vpop.f32.mrb[0].mxu0
  %v7496 = vpop.f32.mrb[0].mxu0
  %v7497 = vadd.f32 0.0, %v7496
  %v7498 = vpop.f32.mrb[0].mxu0
  %7499 = vmatprep.mubr.bf16.mxu0 %v5423
  %7500 = vmatmul.mubr.bf16.gmra.mrb[0].mxu0 %v5421
  %v7501 = vpop.f32.mrb[0].mxu0
  %v7502 = vadd.f32 0.0, %v7501
  %v7503 = vpop.f32.mrb[0].mxu0
  %v7504 = vpop.f32.mrb[0].mxu0
  %v7505 = vadd.f32 0.0, %v7504
  %v7506 = vpop.f32.mrb[0].mxu0
  %7507 = vmatprep.mubr.bf16.mxu0 %v5431
  %7508 = vmatmul.mubr.bf16.gmra.mrb[0].mxu0 %v5429
  %v7509 = vpop.f32.mrb[0].mxu0
  %v7510 = vadd.f32 0.0, %v7509
  %v7511 = vpop.f32.mrb[0].mxu0
  %v7512 = vpop.f32.mrb[0].mxu0
  %v7513 = vadd.f32 0.0, %v7512
  %v7514 = vpop.f32.mrb[0].mxu0
  %7515 = vmatprep.mubr.bf16.mxu0 %v5441
  %7516 = vmatmul.mubr.bf16.gmra.mrb[0].mxu0 %v5438
  %v7517 = vpop.f32.mrb[0].mxu0
  %v7518 = vadd.f32 0.0, %v7517
  %v7519 = vpop.f32.mrb[0].mxu0
  %v7520 = vpop.f32.mrb[0].mxu0
  %v7521 = vadd.f32 0.0, %v7520
  %v7522 = vpop.f32.mrb[0].mxu0
  %7523 = vmatprep.mubr.bf16.mxu0 %v5451
  %7524 = vmatmul.mubr.bf16.gmra.mrb[0].mxu0 %v5449
  %v7525 = vpop.f32.mrb[0].mxu0
  %v7526 = vadd.f32 0.0, %v7525
  %v7527 = vpop.f32.mrb[0].mxu0
  %v7528 = vpop.f32.mrb[0].mxu0
  %v7529 = vadd.f32 0.0, %v7528
  %v7530 = vpop.f32.mrb[0].mxu0
  %7531 = vmatprep.mubr.bf16.mxu0 %v5459
  %7532 = vmatmul.mubr.bf16.gmra.mrb[0].mxu0 %v5457
  %v7533 = vpop.f32.mrb[0].mxu0
  %v7534 = vadd.f32 0.0, %v7533
  %v7535 = vpop.f32.mrb[0].mxu0
  %v7536 = vpop.f32.mrb[0].mxu0
  %v7537 = vadd.f32 0.0, %v7536
  %v7538 = vpop.f32.mrb[0].mxu0
  %7539 = vmatprep.mubr.bf16.mxu0 %v5467
  %7540 = vmatmul.mubr.bf16.gmra.mrb[0].mxu0 %v5465
  %v7541 = vpop.f32.mrb[0].mxu0
  %v7542 = vadd.f32 0.0, %v7541
  %v7543 = vpop.f32.mrb[0].mxu0
  %v7544 = vpop.f32.mrb[0].mxu0
  %v7545 = vadd.f32 0.0, %v7544
  %v7546 = vpop.f32.mrb[0].mxu0
  %7547 = vmatprep.mubr.bf16.mxu0 %v6172
  %7548 = vmatmul.mubr.bf16.gmra.mrb[0].mxu0 %v6169
  %v7549 = vpop.f32.mrb[0].mxu0
  %v7550 = vadd.f32 0.0, %v7549
  %v7551 = vpop.f32.mrb[0].mxu0
  %v7552 = vpop.f32.mrb[0].mxu0
  %v7553 = vadd.f32 0.0, %v7552
  %v7554 = vpop.f32.mrb[0].mxu0
  %7555 = vmatprep.mubr.bf16.mxu0 %v6182
  %7556 = vmatmul.mubr.bf16.gmra.mrb[0].mxu0 %v6180
  %v7557 = vpop.f32.mrb[0].mxu0
  %v7558 = vadd.f32 0.0, %v7557
  %v7559 = vpop.f32.mrb[0].mxu0
  %v7560 = vpop.f32.mrb[0].mxu0
  %v7561 = vadd.f32 0.0, %v7560
  %v7562 = vpop.f32.mrb[0].mxu0
  %7563 = vmatprep.mubr.bf16.mxu0 %v6190
  %7564 = vmatmul.mubr.bf16.gmra.mrb[0].mxu0 %v6188
  %v7565 = vpop.f32.mrb[0].mxu0
  %v7566 = vadd.f32 0.0, %v7565
  %v7567 = vpop.f32.mrb[0].mxu0
  %v7568 = vpop.f32.mrb[0].mxu0
  %v7569 = vadd.f32 0.0, %v7568
  %v7570 = vpop.f32.mrb[0].mxu0
  %7571 = vmatprep.mubr.bf16.mxu0 %v6198
  %7572 = vmatmul.mubr.bf16.gmra.mrb[0].mxu0 %v6196
  %v7573 = vpop.f32.mrb[0].mxu0
  %v7574 = vadd.f32 0.0, %v7573
  %v7575 = vpop.f32.mrb[0].mxu0
  %v7576 = vpop.f32.mrb[0].mxu0
  %v7577 = vadd.f32 0.0, %v7576
  %v7578 = vpop.f32.mrb[0].mxu0
  %7579 = vmatprep.mubr.bf16.mxu0 %v6208
  %7580 = vmatmul.mubr.bf16.gmra.mrb[0].mxu0 %v6205
  %v7581 = vpop.f32.mrb[0].mxu0
  %v7582 = vadd.f32 0.0, %v7581
  %v7583 = vpop.f32.mrb[0].mxu0
  %v7584 = vpop.f32.mrb[0].mxu0
  %v7585 = vadd.f32 0.0, %v7584
  %v7586 = vpop.f32.mrb[0].mxu0
  %7587 = vmatprep.mubr.bf16.mxu0 %v6218
  %7588 = vmatmul.mubr.bf16.gmra.mrb[0].mxu0 %v6216
  %v7589 = vpop.f32.mrb[0].mxu0
  %v7590 = vadd.f32 0.0, %v7589
  %v7591 = vpop.f32.mrb[0].mxu0
  %v7592 = vpop.f32.mrb[0].mxu0
  %v7593 = vadd.f32 0.0, %v7592
  %v7594 = vpop.f32.mrb[0].mxu0
  %7595 = vmatprep.mubr.bf16.mxu0 %v6226
  %7596 = vmatmul.mubr.bf16.gmra.mrb[0].mxu0 %v6224
  %v7597 = vpop.f32.mrb[0].mxu0
  %v7598 = vadd.f32 0.0, %v7597
  %v7599 = vpop.f32.mrb[0].mxu0
  %v7600 = vpop.f32.mrb[0].mxu0
  %v7601 = vadd.f32 0.0, %v7600
  %v7602 = vpop.f32.mrb[0].mxu0
  %7603 = vmatprep.mubr.bf16.mxu0 %v6234
  %7604 = vmatmul.mubr.bf16.gmra.mrb[0].mxu0 %v6232
  %v7605 = vpop.f32.mrb[0].mxu0
  %v7606 = vadd.f32 0.0, %v7605
  %v7607 = vpop.f32.mrb[0].mxu0
  %v7608 = vpop.f32.mrb[0].mxu0
  %v7609 = vadd.f32 0.0, %v7608
  %v7610 = vpop.f32.mrb[0].mxu0
  %7611 = vmatprep.mubr.bf16.mxu0 %v7001
  %7612 = vmatmul.mubr.bf16.gmra.mrb[0].mxu0 %v6998
  %v7613 = vpop.f32.mrb[0].mxu0
  %v7614 = vadd.f32 0.0, %v7613
  %v7615 = vpop.f32.mrb[0].mxu0
  %v7616 = vpop.f32.mrb[0].mxu0
  %v7617 = vadd.f32 0.0, %v7616
  %v7618 = vpop.f32.mrb[0].mxu0
  %7619 = vmatprep.mubr.bf16.mxu0 %v7011
  %7620 = vmatmul.mubr.bf16.gmra.mrb[0].mxu0 %v7009
  %v7621 = vpop.f32.mrb[0].mxu0
  %v7622 = vadd.f32 0.0, %v7621
  %v7623 = vpop.f32.mrb[0].mxu0
  %v7624 = vpop.f32.mrb[0].mxu0
  %v7625 = vadd.f32 0.0, %v7624
  %v7626 = vpop.f32.mrb[0].mxu0
  %7627 = vmatprep.mubr.bf16.mxu0 %v7019
  %7628 = vmatmul.mubr.bf16.gmra.mrb[0].mxu0 %v7017
  %v7629 = vpop.f32.mrb[0].mxu0
  %v7630 = vadd.f32 0.0, %v7629
  %v7631 = vpop.f32.mrb[0].mxu0
  %v7632 = vpop.f32.mrb[0].mxu0
  %v7633 = vadd.f32 0.0, %v7632
  %v7634 = vpop.f32.mrb[0].mxu0
  %7635 = vmatprep.mubr.bf16.mxu0 %v7027
  %7636 = vmatmul.mubr.bf16.gmra.mrb[0].mxu0 %v7025
  %v7637 = vpop.f32.mrb[0].mxu0
  %v7638 = vadd.f32 0.0, %v7637
  %v7639 = vpop.f32.mrb[0].mxu0
  %v7640 = vpop.f32.mrb[0].mxu0
  %v7641 = vadd.f32 0.0, %v7640
  %v7642 = vpop.f32.mrb[0].mxu0
  %7643 = vmatprep.mubr.bf16.mxu0 %v7037
  %7644 = vmatmul.mubr.bf16.gmra.mrb[0].mxu0 %v7034
  %v7645 = vpop.f32.mrb[0].mxu0
  %v7646 = vadd.f32 0.0, %v7645
  %v7647 = vpop.f32.mrb[0].mxu0
  %v7648 = vpop.f32.mrb[0].mxu0
  %v7649 = vadd.f32 0.0, %v7648
  %v7650 = vpop.f32.mrb[0].mxu0
  %7651 = vmatprep.mubr.bf16.mxu0 %v7047
  %7652 = vmatmul.mubr.bf16.gmra.mrb[0].mxu0 %v7045
  %v7653 = vpop.f32.mrb[0].mxu0
  %v7654 = vadd.f32 0.0, %v7653
  %v7655 = vpop.f32.mrb[0].mxu0
  %v7656 = vpop.f32.mrb[0].mxu0
  %v7657 = vadd.f32 0.0, %v7656
  %v7658 = vpop.f32.mrb[0].mxu0
  %7659 = vmatprep.mubr.bf16.mxu0 %v7055
  %7660 = vmatmul.mubr.bf16.gmra.mrb[0].mxu0 %v7053
  %v7661 = vpop.f32.mrb[0].mxu0
  %v7662 = vadd.f32 0.0, %v7661
  %v7663 = vpop.f32.mrb[0].mxu0
  %v7664 = vpop.f32.mrb[0].mxu0
  %v7665 = vadd.f32 0.0, %v7664
  %v7666 = vpop.f32.mrb[0].mxu0
  %7667 = vmatprep.mubr.bf16.mxu0 %v7063
  %7668 = vmatmul.mubr.bf16.gmra.mrb[0].mxu0 %v7061
  %v7669 = vpop.f32.mrb[0].mxu0
  %v7670 = vadd.f32 0.0, %v7669
  %v7671 = vpop.f32.mrb[0].mxu0
  %v7672 = vpop.f32.mrb[0].mxu0
  %v7673 = vadd.f32 0.0, %v7672
  %v7674 = vpop.f32.mrb[0].mxu0
  %7675 = vdwg.mxu0
  %7676 = vmatprep.subr.bf16.mxu0 0
  %7677 = vmatpush1.bf16.msra.mxu0 %v7257
  %7678 = vmatprep.subr.bf16.mxu0 0
  %7679 = vmatpush1.bf16.msra.mxu0 %v7258
  %7680 = vmatprep.subr.bf16.mxu0 0
  %7681 = vmatpush1.bf16.msra.mxu0 %v7259
  %7682 = vmatprep.subr.bf16.mxu0 0
  %7683 = vmatpush1.bf16.msra.mxu0 %v7260
  %7684 = vmatprep.subr.bf16.mxu0 0
  %7685 = vmatpush1.bf16.msra.mxu0 %v7261
  %7686 = vmatprep.subr.bf16.mxu0 0
  %7687 = vmatpush1.bf16.msra.mxu0 %v7262
  %7688 = vmatprep.subr.bf16.mxu0 0
  %7689 = vmatpush1.bf16.msra.mxu0 %v7263
  %7690 = vmatprep.subr.bf16.mxu0 0
  %7691 = vmatpush1.bf16.msra.mxu0 %v7264
  %7692 = vmatprep.subr.bf16.mxu0 0
  %7693 = vmatpush1.bf16.msra.mxu0 %v7265
  %7694 = vmatprep.subr.bf16.mxu0 0
  %7695 = vmatpush1.bf16.msra.mxu0 0
  %7696 = vmatprep.subr.bf16.mxu0 0
  %7697 = vmatpush1.bf16.msra.mxu0 0
  %7698 = vmatprep.subr.bf16.mxu0 0
  %7699 = vmatpush1.bf16.msra.mxu0 0
  %7700 = vmatprep.subr.bf16.mxu0 0
  %7701 = vmatpush1.bf16.msra.mxu0 0
  %7702 = vmatprep.subr.bf16.mxu0 0
  %7703 = vmatpush1.bf16.msra.mxu0 0
  %7704 = vmatprep.subr.bf16.mxu0 0
  %7705 = vmatpush1.bf16.msra.mxu0 0
  %7706 = vmatprep.subr.bf16.mxu0 0
  %7707 = vmatpush1.bf16.msra.mxu0 0
  %7708 = vmatprep.mubr.bf16.mxu0 %v7292
  %7709 = vmatmul.mubr.bf16.gmra.mrb[0].mxu0 %v4350
  %v7710 = vpop.f32.mrb[0].mxu0
  %v7711 = vadd.f32 %v7422, %v7710
  %v7712 = vpop.f32.mrb[0].mxu0
  %v7713 = vpop.f32.mrb[0].mxu0
  %v7714 = vadd.f32 %v7425, %v7713
  %v7715 = vpop.f32.mrb[0].mxu0
  %7716 = vmatprep.mubr.bf16.mxu0 %v7295
  %7717 = vmatmul.mubr.bf16.gmra.mrb[0].mxu0 %v4359
  %v7718 = vpop.f32.mrb[0].mxu0
  %v7719 = vadd.f32 %v7430, %v7718
  %v7720 = vpop.f32.mrb[0].mxu0
  %v7721 = vpop.f32.mrb[0].mxu0
  %v7722 = vadd.f32 %v7433, %v7721
  %v7723 = vpop.f32.mrb[0].mxu0
  %7724 = vmatprep.mubr.bf16.mxu0 %v7298
  %7725 = vmatmul.mubr.bf16.gmra.mrb[0].mxu0 %v4367
  %v7726 = vpop.f32.mrb[0].mxu0
  %v7727 = vadd.f32 %v7438, %v7726
  %v7728 = vpop.f32.mrb[0].mxu0
  %v7729 = vpop.f32.mrb[0].mxu0
  %v7730 = vadd.f32 %v7441, %v7729
  %v7731 = vpop.f32.mrb[0].mxu0
  %7732 = vmatprep.mubr.bf16.mxu0 %v7301
  %7733 = vmatmul.mubr.bf16.gmra.mrb[0].mxu0 %v4375
  %v7734 = vpop.f32.mrb[0].mxu0
  %v7735 = vadd.f32 %v7446, %v7734
  %v7736 = vpop.f32.mrb[0].mxu0
  %v7737 = vpop.f32.mrb[0].mxu0
  %v7738 = vadd.f32 %v7449, %v7737
  %v7739 = vpop.f32.mrb[0].mxu0
  %7740 = vmatprep.mubr.bf16.mxu0 %v7304
  %7741 = vmatmul.mubr.bf16.gmra.mrb[0].mxu0 %v4386
  %v7742 = vpop.f32.mrb[0].mxu0
  %v7743 = vadd.f32 %v7454, %v7742
  %v7744 = vpop.f32.mrb[0].mxu0
  %v7745 = vpop.f32.mrb[0].mxu0
  %v7746 = vadd.f32 %v7457, %v7745
  %v7747 = vpop.f32.mrb[0].mxu0
  %7748 = vmatprep.mubr.bf16.mxu0 %v7307
  %7749 = vmatmul.mubr.bf16.gmra.mrb[0].mxu0 %v4395
  %v7750 = vpop.f32.mrb[0].mxu0
  %v7751 = vadd.f32 %v7462, %v7750
  %v7752 = vpop.f32.mrb[0].mxu0
  %v7753 = vpop.f32.mrb[0].mxu0
  %v7754 = vadd.f32 %v7465, %v7753
  %v7755 = vpop.f32.mrb[0].mxu0
  %7756 = vmatprep.mubr.bf16.mxu0 %v7310
  %7757 = vmatmul.mubr.bf16.gmra.mrb[0].mxu0 %v4403
  %v7758 = vpop.f32.mrb[0].mxu0
  %v7759 = vadd.f32 %v7470, %v7758
  %v7760 = vpop.f32.mrb[0].mxu0
  %v7761 = vpop.f32.mrb[0].mxu0
  %v7762 = vadd.f32 %v7473, %v7761
  %v7763 = vpop.f32.mrb[0].mxu0
  %7764 = vmatprep.mubr.bf16.mxu0 %v7313
  %7765 = vmatmul.mubr.bf16.gmra.mrb[0].mxu0 %v4411
  %v7766 = vpop.f32.mrb[0].mxu0
  %v7767 = vadd.f32 %v7478, %v7766
  %v7768 = vpop.f32.mrb[0].mxu0
  %v7769 = vpop.f32.mrb[0].mxu0
  %v7770 = vadd.f32 %v7481, %v7769
  %v7771 = vpop.f32.mrb[0].mxu0
  %7772 = vmatprep.mubr.bf16.mxu0 %v7316
  %7773 = vmatmul.mubr.bf16.gmra.mrb[0].mxu0 %v5408
  %v7774 = vpop.f32.mrb[0].mxu0
  %v7775 = vadd.f32 %v7486, %v7774
  %v7776 = vpop.f32.mrb[0].mxu0
  %v7777 = vpop.f32.mrb[0].mxu0
  %v7778 = vadd.f32 %v7489, %v7777
  %v7779 = vpop.f32.mrb[0].mxu0
  %7780 = vmatprep.mubr.bf16.mxu0 %v7319
  %7781 = vmatmul.mubr.bf16.gmra.mrb[0].mxu0 %v5417
  %v7782 = vpop.f32.mrb[0].mxu0
  %v7783 = vadd.f32 %v7494, %v7782
  %v7784 = vpop.f32.mrb[0].mxu0
  %v7785 = vpop.f32.mrb[0].mxu0
  %v7786 = vadd.f32 %v7497, %v7785
  %v7787 = vpop.f32.mrb[0].mxu0
  %7788 = vmatprep.mubr.bf16.mxu0 %v7322
  %7789 = vmatmul.mubr.bf16.gmra.mrb[0].mxu0 %v5425
  %v7790 = vpop.f32.mrb[0].mxu0
  %v7791 = vadd.f32 %v7502, %v7790
  %v7792 = vpop.f32.mrb[0].mxu0
  %v7793 = vpop.f32.mrb[0].mxu0
  %v7794 = vadd.f32 %v7505, %v7793
  %v7795 = vpop.f32.mrb[0].mxu0
  %7796 = vmatprep.mubr.bf16.mxu0 %v7325
  %7797 = vmatmul.mubr.bf16.gmra.mrb[0].mxu0 %v5433
  %v7798 = vpop.f32.mrb[0].mxu0
  %v7799 = vadd.f32 %v7510, %v7798
  %v7800 = vpop.f32.mrb[0].mxu0
  %v7801 = vpop.f32.mrb[0].mxu0
  %v7802 = vadd.f32 %v7513, %v7801
  %v7803 = vpop.f32.mrb[0].mxu0
  %7804 = vmatprep.mubr.bf16.mxu0 %v7328
  %7805 = vmatmul.mubr.bf16.gmra.mrb[0].mxu0 %v5444
  %v7806 = vpop.f32.mrb[0].mxu0
  %v7807 = vadd.f32 %v7518, %v7806
  %v7808 = vpop.f32.mrb[0].mxu0
  %v7809 = vpop.f32.mrb[0].mxu0
  %v7810 = vadd.f32 %v7521, %v7809
  %v7811 = vpop.f32.mrb[0].mxu0
  %7812 = vmatprep.mubr.bf16.mxu0 %v7331
  %7813 = vmatmul.mubr.bf16.gmra.mrb[0].mxu0 %v5453
  %v7814 = vpop.f32.mrb[0].mxu0
  %v7815 = vadd.f32 %v7526, %v7814
  %v7816 = vpop.f32.mrb[0].mxu0
  %v7817 = vpop.f32.mrb[0].mxu0
  %v7818 = vadd.f32 %v7529, %v7817
  %v7819 = vpop.f32.mrb[0].mxu0
  %7820 = vmatprep.mubr.bf16.mxu0 %v7334
  %7821 = vmatmul.mubr.bf16.gmra.mrb[0].mxu0 %v5461
  %v7822 = vpop.f32.mrb[0].mxu0
  %v7823 = vadd.f32 %v7534, %v7822
  %v7824 = vpop.f32.mrb[0].mxu0
  %v7825 = vpop.f32.mrb[0].mxu0
  %v7826 = vadd.f32 %v7537, %v7825
  %v7827 = vpop.f32.mrb[0].mxu0
  %7828 = vmatprep.mubr.bf16.mxu0 %v7337
  %7829 = vmatmul.mubr.bf16.gmra.mrb[0].mxu0 %v5469
  %v7830 = vpop.f32.mrb[0].mxu0
  %v7831 = vadd.f32 %v7542, %v7830
  %v7832 = vpop.f32.mrb[0].mxu0
  %v7833 = vpop.f32.mrb[0].mxu0
  %v7834 = vadd.f32 %v7545, %v7833
  %v7835 = vpop.f32.mrb[0].mxu0
  %7836 = vmatprep.mubr.bf16.mxu0 %v7340
  %7837 = vmatmul.mubr.bf16.gmra.mrb[0].mxu0 %v6175
  %v7838 = vpop.f32.mrb[0].mxu0
  %v7839 = vadd.f32 %v7550, %v7838
  %v7840 = vpop.f32.mrb[0].mxu0
  %v7841 = vpop.f32.mrb[0].mxu0
  %v7842 = vadd.f32 %v7553, %v7841
  %v7843 = vpop.f32.mrb[0].mxu0
  %7844 = vmatprep.mubr.bf16.mxu0 %v7343
  %7845 = vmatmul.mubr.bf16.gmra.mrb[0].mxu0 %v6184
  %v7846 = vpop.f32.mrb[0].mxu0
  %v7847 = vadd.f32 %v7558, %v7846
  %v7848 = vpop.f32.mrb[0].mxu0
  %v7849 = vpop.f32.mrb[0].mxu0
  %v7850 = vadd.f32 %v7561, %v7849
  %v7851 = vpop.f32.mrb[0].mxu0
  %7852 = vmatprep.mubr.bf16.mxu0 %v7346
  %7853 = vmatmul.mubr.bf16.gmra.mrb[0].mxu0 %v6192
  %v7854 = vpop.f32.mrb[0].mxu0
  %v7855 = vadd.f32 %v7566, %v7854
  %v7856 = vpop.f32.mrb[0].mxu0
  %v7857 = vpop.f32.mrb[0].mxu0
  %v7858 = vadd.f32 %v7569, %v7857
  %v7859 = vpop.f32.mrb[0].mxu0
  %7860 = vmatprep.mubr.bf16.mxu0 %v7349
  %7861 = vmatmul.mubr.bf16.gmra.mrb[0].mxu0 %v6200
  %v7862 = vpop.f32.mrb[0].mxu0
  %v7863 = vadd.f32 %v7574, %v7862
  %v7864 = vpop.f32.mrb[0].mxu0
  %v7865 = vpop.f32.mrb[0].mxu0
  %v7866 = vadd.f32 %v7577, %v7865
  %v7867 = vpop.f32.mrb[0].mxu0
  %7868 = vmatprep.mubr.bf16.mxu0 %v7352
  %7869 = vmatmul.mubr.bf16.gmra.mrb[0].mxu0 %v6211
  %v7870 = vpop.f32.mrb[0].mxu0
  %v7871 = vadd.f32 %v7582, %v7870
  %v7872 = vpop.f32.mrb[0].mxu0
  %v7873 = vpop.f32.mrb[0].mxu0
  %v7874 = vadd.f32 %v7585, %v7873
  %v7875 = vpop.f32.mrb[0].mxu0
  %7876 = vmatprep.mubr.bf16.mxu0 %v7355
  %7877 = vmatmul.mubr.bf16.gmra.mrb[0].mxu0 %v6220
  %v7878 = vpop.f32.mrb[0].mxu0
  %v7879 = vadd.f32 %v7590, %v7878
  %v7880 = vpop.f32.mrb[0].mxu0
  %v7881 = vpop.f32.mrb[0].mxu0
  %v7882 = vadd.f32 %v7593, %v7881
  %v7883 = vpop.f32.mrb[0].mxu0
  %7884 = vmatprep.mubr.bf16.mxu0 %v7358
  %7885 = vmatmul.mubr.bf16.gmra.mrb[0].mxu0 %v6228
  %v7886 = vpop.f32.mrb[0].mxu0
  %v7887 = vadd.f32 %v7598, %v7886
  %v7888 = vpop.f32.mrb[0].mxu0
  %v7889 = vpop.f32.mrb[0].mxu0
  %v7890 = vadd.f32 %v7601, %v7889
  %v7891 = vpop.f32.mrb[0].mxu0
  %7892 = vmatprep.mubr.bf16.mxu0 %v7361
  %7893 = vmatmul.mubr.bf16.gmra.mrb[0].mxu0 %v6235
  %v7894 = vpop.f32.mrb[0].mxu0
  %v7895 = vadd.f32 %v7606, %v7894
  %v7896 = vpop.f32.mrb[0].mxu0
  %v7897 = vpop.f32.mrb[0].mxu0
  %v7898 = vadd.f32 %v7609, %v7897
  %v7899 = vpop.f32.mrb[0].mxu0
  %7900 = vmatprep.mubr.bf16.mxu0 %v7364
  %7901 = vmatmul.mubr.bf16.gmra.mrb[0].mxu0 %v7004
  %v7902 = vpop.f32.mrb[0].mxu0
  %v7903 = vadd.f32 %v7614, %v7902
  %v7904 = vpop.f32.mrb[0].mxu0
  %v7905 = vpop.f32.mrb[0].mxu0
  %v7906 = vadd.f32 %v7617, %v7905
  %v7907 = vpop.f32.mrb[0].mxu0
  %7908 = vmatprep.mubr.bf16.mxu0 %v7367
  %7909 = vmatmul.mubr.bf16.gmra.mrb[0].mxu0 %v7013
  %v7910 = vpop.f32.mrb[0].mxu0
  %v7911 = vadd.f32 %v7622, %v7910
  %v7912 = vpop.f32.mrb[0].mxu0
  %v7913 = vpop.f32.mrb[0].mxu0
  %v7914 = vadd.f32 %v7625, %v7913
  %v7915 = vpop.f32.mrb[0].mxu0
  %7916 = vmatprep.mubr.bf16.mxu0 %v7370
  %7917 = vmatmul.mubr.bf16.gmra.mrb[0].mxu0 %v7021
  %v7918 = vpop.f32.mrb[0].mxu0
  %v7919 = vadd.f32 %v7630, %v7918
  %v7920 = vpop.f32.mrb[0].mxu0
  %v7921 = vpop.f32.mrb[0].mxu0
  %v7922 = vadd.f32 %v7633, %v7921
  %v7923 = vpop.f32.mrb[0].mxu0
  %7924 = vmatprep.mubr.bf16.mxu0 %v7373
  %7925 = vmatmul.mubr.bf16.gmra.mrb[0].mxu0 %v7029
  %v7926 = vpop.f32.mrb[0].mxu0
  %v7927 = vadd.f32 %v7638, %v7926
  %v7928 = vpop.f32.mrb[0].mxu0
  %v7929 = vpop.f32.mrb[0].mxu0
  %v7930 = vadd.f32 %v7641, %v7929
  %v7931 = vpop.f32.mrb[0].mxu0
  %7932 = vmatprep.mubr.bf16.mxu0 %v7376
  %7933 = vmatmul.mubr.bf16.gmra.mrb[0].mxu0 %v7040
  %v7934 = vpop.f32.mrb[0].mxu0
  %v7935 = vadd.f32 %v7646, %v7934
  %v7936 = vpop.f32.mrb[0].mxu0
  %v7937 = vpop.f32.mrb[0].mxu0
  %v7938 = vadd.f32 %v7649, %v7937
  %v7939 = vpop.f32.mrb[0].mxu0
  %7940 = vmatprep.mubr.bf16.mxu0 %v7379
  %7941 = vmatmul.mubr.bf16.gmra.mrb[0].mxu0 %v7049
  %v7942 = vpop.f32.mrb[0].mxu0
  %v7943 = vadd.f32 %v7654, %v7942
  %v7944 = vpop.f32.mrb[0].mxu0
  %v7945 = vpop.f32.mrb[0].mxu0
  %v7946 = vadd.f32 %v7657, %v7945
  %v7947 = vpop.f32.mrb[0].mxu0
  %7948 = vmatprep.mubr.bf16.mxu0 %v7382
  %7949 = vmatmul.mubr.bf16.gmra.mrb[0].mxu0 %v7057
  %v7950 = vpop.f32.mrb[0].mxu0
  %v7951 = vadd.f32 %v7662, %v7950
  %v7952 = vpop.f32.mrb[0].mxu0
  %v7953 = vpop.f32.mrb[0].mxu0
  %v7954 = vadd.f32 %v7665, %v7953
  %v7955 = vpop.f32.mrb[0].mxu0
  %7956 = vmatprep.mubr.bf16.mxu0 %v7385
  %7957 = vmatmul.mubr.bf16.gmra.mrb[0].mxu0 %v7065
  %v7958 = vpop.f32.mrb[0].mxu0
  %v7959 = vadd.f32 %v7670, %v7958
  %v7960 = vpop.f32.mrb[0].mxu0
  %v7961 = vpop.f32.mrb[0].mxu0
  %v7962 = vadd.f32 %v7673, %v7961
  %v7963 = vpop.f32.mrb[0].mxu0
  %7964 = vdwg.mxu0
  %v7965 = vmax.f32 %v7711, %v7775
  %v7966 = vmax.f32 %v7714, %v7778
  %v7967 = vmax.f32 %v7719, %v7783
  %v7968 = vmax.f32 %v7722, %v7786
  %v7969 = vmax.f32 %v7727, %v7791
  %v7970 = vmax.f32 %v7730, %v7794
  %v7971 = vmax.f32 %v7735, %v7799
  %v7972 = vmax.f32 %v7738, %v7802
  %v7973 = vmax.f32 %v7743, %v7807
  %v7974 = vmax.f32 %v7746, %v7810
  %v7975 = vmax.f32 %v7751, %v7815
  %v7976 = vmax.f32 %v7754, %v7818
  %v7977 = vmax.f32 %v7759, %v7823
  %v7978 = vmax.f32 %v7762, %v7826
  %v7979 = vmax.f32 %v7767, %v7831
  %v7980 = vmax.f32 %v7770, %v7834
  %v7981 = vmax.f32 %v7839, %v7903
  %v7982 = vmax.f32 %v7842, %v7906
  %v7983 = vmax.f32 %v7847, %v7911
  %v7984 = vmax.f32 %v7850, %v7914
  %v7985 = vmax.f32 %v7855, %v7919
  %v7986 = vmax.f32 %v7858, %v7922
  %v7987 = vmax.f32 %v7863, %v7927
  %v7988 = vmax.f32 %v7866, %v7930
  %v7989 = vmax.f32 %v7871, %v7935
  %v7990 = vmax.f32 %v7874, %v7938
  %v7991 = vmax.f32 %v7879, %v7943
  %v7992 = vmax.f32 %v7882, %v7946
  %v7993 = vmax.f32 %v7887, %v7951
  %v7994 = vmax.f32 %v7890, %v7954
  %v7995 = vmax.f32 %v7895, %v7959
  %v7996 = vmax.f32 %v7898, %v7962
  %v7997 = vmax.f32 %v7965, %v7981
  %v7998 = vmax.f32 %v7966, %v7982
  %v7999 = vmax.f32 %v7967, %v7983
  %v8000 = vmax.f32 %v7968, %v7984
  %v8001 = vmax.f32 %v7969, %v7985
  %v8002 = vmax.f32 %v7970, %v7986
  %v8003 = vmax.f32 %v7971, %v7987
  %v8004 = vmax.f32 %v7972, %v7988
  %v8005 = vmax.f32 %v7973, %v7989
  %v8006 = vmax.f32 %v7974, %v7990
  %v8007 = vmax.f32 %v7975, %v7991
  %v8008 = vmax.f32 %v7976, %v7992
  %v8009 = vmax.f32 %v7977, %v7993
  %v8010 = vmax.f32 %v7978, %v7994
  %v8011 = vmax.f32 %v7979, %v7995
  %v8012 = vmax.f32 %v7980, %v7996
  %v8013 = vld [vmem:[%s5] sm:$0x1]
  %v8015 = vlaneseq
  %v8016 = vshrl.u32 %v8015, 7
  %v8017 = vsub.s32 0, %v8016
  %v8018 = vrot.slane %v8013, %v8017
  %v8020 = vadd.f32 %v7997, %v8018
  %v8021 = vadd.f32 %v7998, %v8018
  %v8022 = vadd.f32 %v7999, %v8018
  %v8023 = vadd.f32 %v8000, %v8018
  %v8024 = vadd.f32 %v8001, %v8018
  %v8025 = vadd.f32 %v8002, %v8018
  %v8026 = vadd.f32 %v8003, %v8018
  %v8027 = vadd.f32 %v8004, %v8018
  %v8028 = vadd.f32 %v8005, %v8018
  %v8029 = vadd.f32 %v8006, %v8018
  %v8030 = vadd.f32 %v8007, %v8018
  %v8031 = vadd.f32 %v8008, %v8018
  %v8032 = vadd.f32 %v8009, %v8018
  %v8033 = vadd.f32 %v8010, %v8018
  %v8034 = vadd.f32 %v8011, %v8018
  %v8035 = vadd.f32 %v8012, %v8018
  %v8036 = vmax.f32 %v8020, 0.0
  %v8037 = vmax.f32 %v8021, 0.0
  %v8038 = vmax.f32 %v8022, 0.0
  %v8039 = vmax.f32 %v8023, 0.0
  %v8040 = vmax.f32 %v8024, 0.0
  %v8041 = vmax.f32 %v8025, 0.0
  %v8042 = vmax.f32 %v8026, 0.0
  %v8043 = vmax.f32 %v8027, 0.0
  %v8044 = vmax.f32 %v8028, 0.0
  %v8045 = vmax.f32 %v8029, 0.0
  %v8046 = vmax.f32 %v8030, 0.0
  %v8047 = vmax.f32 %v8031, 0.0
  %v8048 = vmax.f32 %v8032, 0.0
  %v8049 = vmax.f32 %v8033, 0.0
  %v8050 = vmax.f32 %v8034, 0.0
  %v8051 = vmax.f32 %v8035, 0.0
  %v8052 = vpack.c.bf16 %v8037, %v8036
  %v8053 = vpack.c.bf16 %v8039, %v8038
  %v8054 = vpack.c.bf16 %v8041, %v8040
  %v8055 = vpack.c.bf16 %v8043, %v8042
  %v8056 = vpack.c.bf16 %v8045, %v8044
  %v8057 = vpack.c.bf16 %v8047, %v8046
  %v8058 = vpack.c.bf16 %v8049, %v8048
  %v8059 = vpack.c.bf16 %v8051, %v8050
  %v8068 = vunpack.c.l.b16 %v8052
  %v8069 = vunpack.c.h.b16 %v8052
  %v8070 = vunpack.c.l.b16 %v8053
  %v8071 = vunpack.c.h.b16 %v8053
  %v8072 = vunpack.c.l.b16 %v8054
  %v8073 = vunpack.c.h.b16 %v8054
  %v8074 = vunpack.c.l.b16 %v8055
  %v8075 = vunpack.c.h.b16 %v8055
  %v8076 = vunpack.c.l.b16 %v8056
  %v8077 = vunpack.c.h.b16 %v8056
  %v8078 = vunpack.c.l.b16 %v8057
  %v8079 = vunpack.c.h.b16 %v8057
  %v8080 = vunpack.c.l.b16 %v8058
  %v8081 = vunpack.c.h.b16 %v8058
  %v8082 = vunpack.c.l.b16 %v8059
  %v8083 = vunpack.c.h.b16 %v8059
  %v8084 = vpack.c.b16 %v8068, %v8068
  %v8085 = vpack.c.b16 %v8069, %v8069
  %v8086 = vpack.c.b16 %v8070, %v8070
  %v8087 = vpack.c.b16 %v8071, %v8071
  %v8088 = vpack.c.b16 %v8072, %v8072
  %v8089 = vpack.c.b16 %v8073, %v8073
  %v8090 = vpack.c.b16 %v8074, %v8074
  %v8091 = vpack.c.b16 %v8075, %v8075
  %v8092 = vpack.c.b16 %v8076, %v8076
  %v8093 = vpack.c.b16 %v8077, %v8077
  %v8094 = vpack.c.b16 %v8078, %v8078
  %v8095 = vpack.c.b16 %v8079, %v8079
  %v8096 = vpack.c.b16 %v8080, %v8080
  %v8097 = vpack.c.b16 %v8081, %v8081
  %v8098 = vpack.c.b16 %v8082, %v8082
  %v8099 = vpack.c.b16 %v8083, %v8083
  %vm8116 = vcmask 257024
  %8117 = vst.msk [vmem:[%s6] sm:$0xf] %vm8116, %v8084
  %8118 = vst.msk [vmem:[%s6 + $0x4] sm:$0xf] %vm8116, %v8085
  %8119 = vst.msk [vmem:[%s6 + $0x8] sm:$0xf] %vm8116, %v8086
  %8120 = vst.msk [vmem:[%s6 + $0xc] sm:$0xf] %vm8116, %v8087
  %8121 = vst.msk [vmem:[%s6 + $0x10] sm:$0xf] %vm8116, %v8088
  %8122 = vst.msk [vmem:[%s6 + $0x14] sm:$0xf] %vm8116, %v8089
  %8123 = vst.msk [vmem:[%s6 + $0x18] sm:$0xf] %vm8116, %v8090
  %8124 = vst.msk [vmem:[%s6 + $0x1c] sm:$0xf] %vm8116, %v8091
  %8125 = vst.msk [vmem:[%s6 + $0x20] sm:$0xf] %vm8116, %v8092
  %8126 = vst.msk [vmem:[%s6 + $0x24] sm:$0xf] %vm8116, %v8093
  %8127 = vst.msk [vmem:[%s6 + $0x28] sm:$0xf] %vm8116, %v8094
  %8128 = vst.msk [vmem:[%s6 + $0x2c] sm:$0xf] %vm8116, %v8095
  %8129 = vst.msk [vmem:[%s6 + $0x30] sm:$0xf] %vm8116, %v8096
  %8130 = vst.msk [vmem:[%s6 + $0x34] sm:$0xf] %vm8116, %v8097
  %8131 = vst.msk [vmem:[%s6 + $0x38] sm:$0xf] %vm8116, %v8098
  %8132 = vst.msk [vmem:[%s6 + $0x3c] sm:$0xf] %vm8116, %v8099
  // Predicated region
  $region26: #{cnn_forward.1} parent=0 // pred_check
    _
  $region27: #{cnn_forward.1} parent=0 // pred_check_branch
    %8134 = sbr.rel (0) target = $region29
  $region28: #{cnn_forward.1} parent=0 // pred_region
    _
  $region29: #{cnn_forward.1} parent=0 // pred_fallthru
    _
  // Predicated region
  $region30: #{cnn_forward.1} parent=0 // pred_check
    _
  $region31: #{cnn_forward.1} parent=0 // pred_check_branch
    %8136 = sbr.rel (0) target = $region33
  $region32: #{cnn_forward.1} parent=0 // pred_region
    _
  $region33: #{cnn_forward.1} parent=0 // pred_fallthru
    _

</llo_original>
